<compile_context>
chip_gen: v7x
topology: tpu7x:2x2x1
jax: 0.10.0
libtpu: 0.0.40
codegen_flags: <defaults>
</compile_context>

<pallas_src>
import functools

import jax
import jax.numpy as jnp
import numpy as np
from jax import lax
from jax.experimental import pallas as pl
from jax.experimental.pallas import tpu as pltpu

GN_EPS = 1e-5  # torch.nn.GroupNorm default eps


def _conv_gn_kernel(x_ref, w_ref, b_ref, gamma_ref, beta_ref, grp_ref, out_ref,
                    patch_ref, *, kh, kw, stride, dilation, oh, ow, eps):
    """Fused Conv2d + GroupNorm for a block of `nb` samples.

    x_ref:     (nb, Hp, Wp, C)   bf16  padded NHWC input slab
    w_ref:     (KH*KW*C, F)      bf16  conv weight, im2col K ordering (kh, kw, c)
    b_ref:     (1, F)            f32   conv bias
    gamma_ref: (1, F)            f32   GroupNorm weight
    beta_ref:  (1, F)            f32   GroupNorm bias
    grp_ref:   (F, F)            f32   group-membership matrix / (group_size*OH*OW)
    out_ref:   (nb, OH*OW, F)    f32   normalized conv output
    patch_ref: (OH*OW, KH*KW*C)  bf16  VMEM scratch: im2col slab (reused per sample)
    """
    hw = oh * ow
    nb = x_ref.shape[0]
    c = x_ref.shape[-1]

    # Per-channel parameters, hoisted out of the per-sample loop.
    bias_v = b_ref[...]        # (1, F)
    gamma_v = gamma_ref[...]   # (1, F)
    beta_v = beta_ref[...]     # (1, F)
    grp = grp_ref[...]         # (F, F)

    for sb in range(nb):
        # ---- im2col into the VMEM scratch: each resident input element is copied
        # once, turning the conv into a single K = KH*KW*C matmul instead of
        # KH*KW lane-sparse K=C matmuls carried in a traced accumulator.
        for i in range(kh):
            for j in range(kw):
                t = i * kw + j
                r0 = i * dilation
                c0 = j * dilation
                if stride == 1:
                    slab = x_ref[sb, r0:r0 + oh, c0:c0 + ow, :]
                else:
                    # TODO(synk): for stride>1 configs, verify these strided slices
                    # lower to strided loads (pl.lower_as_mlir) and not per-row gathers.
                    slab = x_ref[sb, pl.ds(r0, oh, stride), pl.ds(c0, ow, stride), :]
                patch_ref[:, t * c:(t + 1) * c] = slab.reshape(hw, c)

        # ---- single MXU matmul with f32 accumulation (bias folded analytically
        # into the GroupNorm scale/shift below -> no (hw, F) bias-add pass).
        conv = jnp.dot(patch_ref[...], w_ref[...],
                       preferred_element_type=jnp.float32)            # (hw, F)

        # ---- GroupNorm statistics in a single pass over the conv result.
        # Per-channel sums are group-combined / broadcast back per channel with a
        # tiny membership-matrix matmul (stays lane-dense, no reshuffles).
        s = jnp.sum(conv, axis=0, keepdims=True)                      # (1, F)
        q = jnp.sum(conv * conv, axis=0, keepdims=True)               # (1, F)
        s_b = s + hw * bias_v                                         # sums of conv+bias
        q_b = q + 2.0 * bias_v * s + hw * bias_v * bias_v             # sums of (conv+bias)^2
        mean = jnp.dot(s_b, grp, preferred_element_type=jnp.float32)  # (1, F)
        ex2 = jnp.dot(q_b, grp, preferred_element_type=jnp.float32)   # (1, F)
        var = jnp.maximum(ex2 - mean * mean, 0.0)                     # clamp E[x^2]-m^2
        inv_std = lax.rsqrt(var + eps)

        # ---- fused normalize + affine: one multiply-add pass on (hw, F).
        scale = inv_std * gamma_v                                     # (1, F)
        shift = beta_v + (bias_v - mean) * scale                      # (1, F)
        out_ref[sb, :, :] = conv * scale + shift


def _vmem_limit_bytes():
    """~75% of this generation's physical VMEM (never claim v7x's full 64 MiB)."""
    try:
        cap = int(pltpu.get_tpu_info().vmem_capacity_bytes)
    except Exception:
        cap = 64 * 1024 * 1024
    return max(32 * 1024 * 1024, min((cap * 3) // 4, 100 * 1024 * 1024))


def _pick_samples_per_block(n, hp, wp, c, hw, f):
    """Samples per grid step: batch on single-TC chips (amortize the ~0.35us/step
    overhead), keep >=2 parallel steps on dual-TC (v7x), stay well inside VMEM."""
    per_sample = 2 * (hp * wp * c * 2 + hw * f * 4)   # double-buffered in+out blocks
    cap = max(1, (8 * 1024 * 1024) // per_sample)
    try:
        dual_tc = "v7" in jax.devices()[0].device_kind.lower()
    except Exception:
        dual_tc = False
    min_steps = 2 if (dual_tc and n >= 2) else 1
    best = 1
    for bs in range(1, n + 1):
        if n % bs == 0 and bs <= cap and n // bs >= min_steps:
            best = bs
    return best


@functools.partial(jax.jit,
                   static_argnames=("stride", "padding", "dilation", "groups"))
def conv2d_groupnorm(x, weight, bias, gamma, beta, *, stride, padding, dilation,
                     groups):
    """Forward of conv2DGroupNorm. x: (N, C, H, W) f32 -> (N, F, OH, OW) f32."""
    n, cin, h, w_in = x.shape
    f, _, kh, kw = weight.shape
    assert f % groups == 0, "n_filters must be divisible by n_groups"
    cpg = f // groups

    oh = (h + 2 * padding - dilation * (kh - 1) - 1) // stride + 1
    ow = (w_in + 2 * padding - dilation * (kw - 1) - 1) // stride + 1
    hp, wp = h + 2 * padding, w_in + 2 * padding
    hw = oh * ow
    kp = kh * kw * cin                       # im2col contraction depth

    # Input prep: cast + NHWC transpose first, pad last (padded HBM slab is bf16).
    # TODO(synk): for large inputs drop the HBM pad by zero-filling a VMEM scratch
    # in-kernel and DMAing only the interior via memory_space=pl.ANY.
    xh = jnp.transpose(x.astype(jnp.bfloat16), (0, 2, 3, 1))            # (N,H,W,C)
    xp = jnp.pad(xh, ((0, 0), (padding, padding), (padding, padding), (0, 0)))

    # Weight (F, C, KH, KW) -> (KH, KW, C, F) -> (KH*KW*C, F) bf16; K ordering
    # (tap-major, channel-minor) matches the patch slab built in-kernel.
    wk = jnp.transpose(weight, (2, 3, 1, 0)).reshape(kp, f).astype(jnp.bfloat16)

    row = lambda v: v.astype(jnp.float32).reshape(1, f)
    b2, g2, bt2 = row(bias), row(gamma), row(beta)

    # Group-membership matrix scaled by 1/(group_size * OH * OW):
    #   (sums @ grp)[c] == mean of channel c's group.
    # NOTE: the baked-in 1/(cpg*hw) assumes whole-sample spatial extent per grid
    # step; any future OH tiling must switch to a two-pass statistics structure.
    gid = jnp.arange(f) // cpg
    grp = (gid[:, None] == gid[None, :]).astype(jnp.float32) / float(cpg * hw)

    bs = _pick_samples_per_block(n, hp, wp, cin, hw, f)
    nblk = n // bs

    kernel = functools.partial(_conv_gn_kernel, kh=kh, kw=kw, stride=stride,
                               dilation=dilation, oh=oh, ow=ow, eps=GN_EPS)

    flops = 2 * n * hw * kp * f + 4 * n * f * f + 6 * n * hw * f
    bytes_accessed = (xp.size * 2 + wk.size * 2 + grp.size * 4
                      + (b2.size + g2.size + bt2.size) * 4 + n * hw * f * 4)

    out = pl.pallas_call(
        kernel,
        out_shape=jax.ShapeDtypeStruct((n, hw, f), jnp.float32),
        grid=(nblk,),
        in_specs=[
            pl.BlockSpec((bs, hp, wp, cin), lambda i: (i, 0, 0, 0)),
            pl.BlockSpec((kp, f), lambda i: (0, 0)),
            pl.BlockSpec((1, f), lambda i: (0, 0)),
            pl.BlockSpec((1, f), lambda i: (0, 0)),
            pl.BlockSpec((1, f), lambda i: (0, 0)),
            pl.BlockSpec((f, f), lambda i: (0, 0)),
        ],
        out_specs=pl.BlockSpec((bs, hw, f), lambda i: (i, 0, 0)),
        scratch_shapes=[pltpu.VMEM((hw, kp), jnp.bfloat16)],
        compiler_params=pltpu.CompilerParams(
            dimension_semantics=("parallel",),
            vmem_limit_bytes=_vmem_limit_bytes(),
        ),
        cost_estimate=pl.CostEstimate(flops=int(flops), transcendentals=n * f,
                                      bytes_accessed=int(bytes_accessed)),
    )(xp, wk, b2, g2, bt2, grp)

    # (N, OH*OW, F): exact channels, no padded writeback.  Convert to NCHW to match
    # the PyTorch module output; an NHWC consumer could skip this transpose.
    return jnp.transpose(out, (0, 2, 1)).reshape(n, f, oh, ow)


def _reference(x, weight, bias, gamma, beta, *, stride, padding, dilation, groups):
    """Pure-JAX reference: lax conv + GroupNorm (per-sample, per-group stats)."""
    y = lax.conv_general_dilated(
        x, weight,
        window_strides=(stride, stride),
        padding=[(padding, padding), (padding, padding)],
        rhs_dilation=(dilation, dilation),
        dimension_numbers=("NCHW", "OIHW", "NCHW"),
    )
    y = y + bias.reshape(1, -1, 1, 1)
    n, f, oh, ow = y.shape
    yg = y.reshape(n, groups, f // groups, oh, ow)
    mean = jnp.mean(yg, axis=(2, 3, 4), keepdims=True)
    var = jnp.mean((yg - mean) ** 2, axis=(2, 3, 4), keepdims=True)
    yn = ((yg - mean) * lax.rsqrt(var + GN_EPS)).reshape(n, f, oh, ow)
    return yn * gamma.reshape(1, -1, 1, 1) + beta.reshape(1, -1, 1, 1)


if __name__ == "__main__":
    # conv2DGroupNorm(in_channels=4, n_filters=32, k_size=3, stride=1, padding=1,
    #                 bias=True, dilation=1, n_groups=16)
    N, C, H, W = 2, 4, 16, 16
    F, KH, KW = 32, 3, 3
    stride, padding, dilation = 1, 1, 1
    groups = 16  # module default n_groups

    key = jax.random.PRNGKey(0)
    kx, kw_, kb, kg, kbt = jax.random.split(key, 5)

    x = jax.random.normal(kx, (N, C, H, W), dtype=jnp.float32)
    fan_in = C * KH * KW
    bound = 1.0 / np.sqrt(fan_in)
    weight = jax.random.uniform(kw_, (F, C, KH, KW), jnp.float32, -bound, bound)
    bias = jax.random.uniform(kb, (F,), jnp.float32, -bound, bound)
    # GroupNorm affine params (module init is gamma=1, beta=0; perturb to exercise path).
    gamma = 1.0 + 0.1 * jax.random.normal(kg, (F,), dtype=jnp.float32)
    beta = 0.1 * jax.random.normal(kbt, (F,), dtype=jnp.float32)

    out = conv2d_groupnorm(x, weight, bias, gamma, beta, stride=stride,
                           padding=padding, dilation=dilation, groups=groups)
    out = jax.block_until_ready(out)

    ref = _reference(x, weight, bias, gamma, beta, stride=stride, padding=padding,
                     dilation=dilation, groups=groups)
    # Tolerance accounts for bf16 GEMM inputs (f32 accumulation) in the kernel.
    np.testing.assert_allclose(np.asarray(out), np.asarray(ref), atol=2e-2, rtol=2e-2)
    assert out.shape == (N, F, H, W) and out.dtype == jnp.float32

    print("KERNEL_OK")
</pallas_src>

<mosaic_0001>
module attributes {stable_mosaic.version = 11 : i64} {
  func.func @_conv_gn_kernel(%arg0: i32, %arg1: memref<2x18x18x4xbf16, #tpu.memory_space<vmem>>, %arg2: memref<36x32xbf16, #tpu.memory_space<vmem>>, %arg3: memref<1x32xf32, #tpu.memory_space<vmem>>, %arg4: memref<1x32xf32, #tpu.memory_space<vmem>>, %arg5: memref<1x32xf32, #tpu.memory_space<vmem>>, %arg6: memref<32x32xf32, #tpu.memory_space<vmem>>, %arg7: memref<2x256x32xf32, #tpu.memory_space<vmem>>, %arg8: memref<256x36xbf16, #tpu.memory_space<vmem>>) attributes {dimension_semantics = [#tpu.dimension_semantics<parallel>], iteration_bounds = array<i64: 1>, scalar_prefetch = 0 : i64, scratch_operands = 1 : i64, tpu.core_type = #tpu.core_type<tc>, window_params = [{transform_indices = @transform_0, window_bounds = array<i64: 2, 18, 18, 4>}, {pipeline_mode = #tpu.pipeline_mode<synchronous>, transform_indices = @transform_1, window_bounds = array<i64: 36, 32>}, {pipeline_mode = #tpu.pipeline_mode<synchronous>, transform_indices = @transform_2, window_bounds = array<i64: 1, 32>}, {pipeline_mode = #tpu.pipeline_mode<synchronous>, transform_indices = @transform_3, window_bounds = array<i64: 1, 32>}, {pipeline_mode = #tpu.pipeline_mode<synchronous>, transform_indices = @transform_4, window_bounds = array<i64: 1, 32>}, {pipeline_mode = #tpu.pipeline_mode<synchronous>, transform_indices = @transform_5, window_bounds = array<i64: 32, 32>}, {transform_indices = @transform_6, window_bounds = array<i64: 2, 256, 32>}]} {
    %c0 = arith.constant 0 : index
    %c0_0 = arith.constant 0 : index
    %0 = vector.load %arg3[%c0, %c0_0] : memref<1x32xf32, #tpu.memory_space<vmem>>, vector<1x32xf32>
    %c0_1 = arith.constant 0 : index
    %c0_2 = arith.constant 0 : index
    %1 = vector.load %arg4[%c0_1, %c0_2] : memref<1x32xf32, #tpu.memory_space<vmem>>, vector<1x32xf32>
    %c0_3 = arith.constant 0 : index
    %c0_4 = arith.constant 0 : index
    %2 = vector.load %arg5[%c0_3, %c0_4] : memref<1x32xf32, #tpu.memory_space<vmem>>, vector<1x32xf32>
    %c0_5 = arith.constant 0 : index
    %c0_6 = arith.constant 0 : index
    %3 = vector.load %arg6[%c0_5, %c0_6] : memref<32x32xf32, #tpu.memory_space<vmem>>, vector<32x32xf32>
    %c0_7 = arith.constant 0 : index
    %c0_8 = arith.constant 0 : index
    %c0_9 = arith.constant 0 : index
    %c0_10 = arith.constant 0 : index
    %4 = vector.load %arg1[%c0_7, %c0_8, %c0_9, %c0_10] : memref<2x18x18x4xbf16, #tpu.memory_space<vmem>>, vector<1x16x16x4xbf16>
    %5 = vector.shape_cast %4 : vector<1x16x16x4xbf16> to vector<16x16x4xbf16>
    %6 = vector.shape_cast %5 : vector<16x16x4xbf16> to vector<256x4xbf16>
    %c0_11 = arith.constant 0 : index
    %c0_12 = arith.constant 0 : index
    %7 = vector.load %arg8[%c0_11, %c0_12] : memref<256x36xbf16, #tpu.memory_space<vmem>>, vector<256x4xbf16>
    tpu.vector_store %arg8[%c0_11, %c0_12], %6 {strides = array<i32>} : memref<256x36xbf16, #tpu.memory_space<vmem>>, vector<256x4xbf16>,
    %c0_13 = arith.constant 0 : index
    %c0_14 = arith.constant 0 : index
    %c1 = arith.constant 1 : index
    %c0_15 = arith.constant 0 : index
    %8 = vector.load %arg1[%c0_13, %c0_14, %c1, %c0_15] : memref<2x18x18x4xbf16, #tpu.memory_space<vmem>>, vector<1x16x16x4xbf16>
    %9 = vector.shape_cast %8 : vector<1x16x16x4xbf16> to vector<16x16x4xbf16>
    %10 = vector.shape_cast %9 : vector<16x16x4xbf16> to vector<256x4xbf16>
    %c0_16 = arith.constant 0 : index
    %c4 = arith.constant 4 : index
    %11 = vector.load %arg8[%c0_16, %c4] : memref<256x36xbf16, #tpu.memory_space<vmem>>, vector<256x4xbf16>
    tpu.vector_store %arg8[%c0_16, %c4], %10 {strides = array<i32>} : memref<256x36xbf16, #tpu.memory_space<vmem>>, vector<256x4xbf16>,
    %c0_17 = arith.constant 0 : index
    %c0_18 = arith.constant 0 : index
    %c2 = arith.constant 2 : index
    %c0_19 = arith.constant 0 : index
    %12 = vector.load %arg1[%c0_17, %c0_18, %c2, %c0_19] : memref<2x18x18x4xbf16, #tpu.memory_space<vmem>>, vector<1x16x16x4xbf16>
    %13 = vector.shape_cast %12 : vector<1x16x16x4xbf16> to vector<16x16x4xbf16>
    %14 = vector.shape_cast %13 : vector<16x16x4xbf16> to vector<256x4xbf16>
    %c0_20 = arith.constant 0 : index
    %c8 = arith.constant 8 : index
    %15 = vector.load %arg8[%c0_20, %c8] : memref<256x36xbf16, #tpu.memory_space<vmem>>, vector<256x4xbf16>
    tpu.vector_store %arg8[%c0_20, %c8], %14 {strides = array<i32>} : memref<256x36xbf16, #tpu.memory_space<vmem>>, vector<256x4xbf16>,
    %c0_21 = arith.constant 0 : index
    %c1_22 = arith.constant 1 : index
    %c0_23 = arith.constant 0 : index
    %c0_24 = arith.constant 0 : index
    %16 = vector.load %arg1[%c0_21, %c1_22, %c0_23, %c0_24] : memref<2x18x18x4xbf16, #tpu.memory_space<vmem>>, vector<1x16x16x4xbf16>
    %17 = vector.shape_cast %16 : vector<1x16x16x4xbf16> to vector<16x16x4xbf16>
    %18 = vector.shape_cast %17 : vector<16x16x4xbf16> to vector<256x4xbf16>
    %c0_25 = arith.constant 0 : index
    %c12 = arith.constant 12 : index
    %19 = vector.load %arg8[%c0_25, %c12] : memref<256x36xbf16, #tpu.memory_space<vmem>>, vector<256x4xbf16>
    tpu.vector_store %arg8[%c0_25, %c12], %18 {strides = array<i32>} : memref<256x36xbf16, #tpu.memory_space<vmem>>, vector<256x4xbf16>,
    %c0_26 = arith.constant 0 : index
    %c1_27 = arith.constant 1 : index
    %c1_28 = arith.constant 1 : index
    %c0_29 = arith.constant 0 : index
    %20 = vector.load %arg1[%c0_26, %c1_27, %c1_28, %c0_29] : memref<2x18x18x4xbf16, #tpu.memory_space<vmem>>, vector<1x16x16x4xbf16>
    %21 = vector.shape_cast %20 : vector<1x16x16x4xbf16> to vector<16x16x4xbf16>
    %22 = vector.shape_cast %21 : vector<16x16x4xbf16> to vector<256x4xbf16>
    %c0_30 = arith.constant 0 : index
    %c16 = arith.constant 16 : index
    %23 = vector.load %arg8[%c0_30, %c16] : memref<256x36xbf16, #tpu.memory_space<vmem>>, vector<256x4xbf16>
    tpu.vector_store %arg8[%c0_30, %c16], %22 {strides = array<i32>} : memref<256x36xbf16, #tpu.memory_space<vmem>>, vector<256x4xbf16>,
    %c0_31 = arith.constant 0 : index
    %c1_32 = arith.constant 1 : index
    %c2_33 = arith.constant 2 : index
    %c0_34 = arith.constant 0 : index
    %24 = vector.load %arg1[%c0_31, %c1_32, %c2_33, %c0_34] : memref<2x18x18x4xbf16, #tpu.memory_space<vmem>>, vector<1x16x16x4xbf16>
    %25 = vector.shape_cast %24 : vector<1x16x16x4xbf16> to vector<16x16x4xbf16>
    %26 = vector.shape_cast %25 : vector<16x16x4xbf16> to vector<256x4xbf16>
    %c0_35 = arith.constant 0 : index
    %c20 = arith.constant 20 : index
    %27 = vector.load %arg8[%c0_35, %c20] : memref<256x36xbf16, #tpu.memory_space<vmem>>, vector<256x4xbf16>
    tpu.vector_store %arg8[%c0_35, %c20], %26 {strides = array<i32>} : memref<256x36xbf16, #tpu.memory_space<vmem>>, vector<256x4xbf16>,
    %c0_36 = arith.constant 0 : index
    %c2_37 = arith.constant 2 : index
    %c0_38 = arith.constant 0 : index
    %c0_39 = arith.constant 0 : index
    %28 = vector.load %arg1[%c0_36, %c2_37, %c0_38, %c0_39] : memref<2x18x18x4xbf16, #tpu.memory_space<vmem>>, vector<1x16x16x4xbf16>
    %29 = vector.shape_cast %28 : vector<1x16x16x4xbf16> to vector<16x16x4xbf16>
    %30 = vector.shape_cast %29 : vector<16x16x4xbf16> to vector<256x4xbf16>
    %c0_40 = arith.constant 0 : index
    %c24 = arith.constant 24 : index
    %31 = vector.load %arg8[%c0_40, %c24] : memref<256x36xbf16, #tpu.memory_space<vmem>>, vector<256x4xbf16>
    tpu.vector_store %arg8[%c0_40, %c24], %30 {strides = array<i32>} : memref<256x36xbf16, #tpu.memory_space<vmem>>, vector<256x4xbf16>,
    %c0_41 = arith.constant 0 : index
    %c2_42 = arith.constant 2 : index
    %c1_43 = arith.constant 1 : index
    %c0_44 = arith.constant 0 : index
    %32 = vector.load %arg1[%c0_41, %c2_42, %c1_43, %c0_44] : memref<2x18x18x4xbf16, #tpu.memory_space<vmem>>, vector<1x16x16x4xbf16>
    %33 = vector.shape_cast %32 : vector<1x16x16x4xbf16> to vector<16x16x4xbf16>
    %34 = vector.shape_cast %33 : vector<16x16x4xbf16> to vector<256x4xbf16>
    %c0_45 = arith.constant 0 : index
    %c28 = arith.constant 28 : index
    %35 = vector.load %arg8[%c0_45, %c28] : memref<256x36xbf16, #tpu.memory_space<vmem>>, vector<256x4xbf16>
    tpu.vector_store %arg8[%c0_45, %c28], %34 {strides = array<i32>} : memref<256x36xbf16, #tpu.memory_space<vmem>>, vector<256x4xbf16>,
    %c0_46 = arith.constant 0 : index
    %c2_47 = arith.constant 2 : index
    %c2_48 = arith.constant 2 : index
    %c0_49 = arith.constant 0 : index
    %36 = vector.load %arg1[%c0_46, %c2_47, %c2_48, %c0_49] : memref<2x18x18x4xbf16, #tpu.memory_space<vmem>>, vector<1x16x16x4xbf16>
    %37 = vector.shape_cast %36 : vector<1x16x16x4xbf16> to vector<16x16x4xbf16>
    %38 = vector.shape_cast %37 : vector<16x16x4xbf16> to vector<256x4xbf16>
    %c0_50 = arith.constant 0 : index
    %c32 = arith.constant 32 : index
    %39 = vector.load %arg8[%c0_50, %c32] : memref<256x36xbf16, #tpu.memory_space<vmem>>, vector<256x4xbf16>
    tpu.vector_store %arg8[%c0_50, %c32], %38 {strides = array<i32>} : memref<256x36xbf16, #tpu.memory_space<vmem>>, vector<256x4xbf16>,
    %c0_51 = arith.constant 0 : index
    %c0_52 = arith.constant 0 : index
    %40 = vector.load %arg8[%c0_51, %c0_52] : memref<256x36xbf16, #tpu.memory_space<vmem>>, vector<256x36xbf16>
    %c0_53 = arith.constant 0 : index
    %c0_54 = arith.constant 0 : index
    %41 = vector.load %arg2[%c0_53, %c0_54] : memref<36x32xbf16, #tpu.memory_space<vmem>>, vector<36x32xbf16>
    %cst = arith.constant dense<0.000000e+00> : vector<256x32xf32>
    %42 = tpu.matmul %40, %41, %cst {dimension_numbers = #tpu.dot_dimension_numbers<[1], [0], [0], [1], [0, 0, 1, 1], [], []>} : vector<256x36xbf16>, vector<36x32xbf16>, vector<256x32xf32> -> vector<256x32xf32>
    %cst_55 = arith.constant dense<0.000000e+00> : vector<32xf32>
    %43 = vector.multi_reduction <add>, %42, %cst_55 [0] : vector<256x32xf32> to vector<32xf32>
    %44 = vector.shape_cast %43 : vector<32xf32> to vector<1x32xf32>
    %45 = arith.mulf %42, %42 : vector<256x32xf32>
    %cst_56 = arith.constant dense<0.000000e+00> : vector<32xf32>
    %46 = vector.multi_reduction <add>, %45, %cst_56 [0] : vector<256x32xf32> to vector<32xf32>
    %47 = vector.shape_cast %46 : vector<32xf32> to vector<1x32xf32>
    %cst_57 = arith.constant 2.560000e+02 : f32
    %48 = vector.broadcast %cst_57 : f32 to vector<1x32xf32>
    %49 = arith.mulf %48, %0 : vector<1x32xf32>
    %50 = arith.addf %44, %49 : vector<1x32xf32>
    %cst_58 = arith.constant 2.000000e+00 : f32
    %51 = vector.broadcast %cst_58 : f32 to vector<1x32xf32>
    %52 = arith.mulf %51, %0 : vector<1x32xf32>
    %53 = arith.mulf %52, %44 : vector<1x32xf32>
    %54 = arith.addf %47, %53 : vector<1x32xf32>
    %cst_59 = arith.constant 2.560000e+02 : f32
    %55 = vector.broadcast %cst_59 : f32 to vector<1x32xf32>
    %56 = arith.mulf %55, %0 : vector<1x32xf32>
    %57 = arith.mulf %56, %0 : vector<1x32xf32>
    %58 = arith.addf %54, %57 : vector<1x32xf32>
    %cst_60 = arith.constant dense<0.000000e+00> : vector<1x32xf32>
    %59 = tpu.matmul %50, %3, %cst_60 {dimension_numbers = #tpu.dot_dimension_numbers<[1], [0], [0], [1], [0, 0, 1, 1], [], []>} : vector<1x32xf32>, vector<32x32xf32>, vector<1x32xf32> -> vector<1x32xf32>
    %cst_61 = arith.constant dense<0.000000e+00> : vector<1x32xf32>
    %60 = tpu.matmul %58, %3, %cst_61 {dimension_numbers = #tpu.dot_dimension_numbers<[1], [0], [0], [1], [0, 0, 1, 1], [], []>} : vector<1x32xf32>, vector<32x32xf32>, vector<1x32xf32> -> vector<1x32xf32>
    %61 = arith.mulf %59, %59 : vector<1x32xf32>
    %62 = arith.subf %60, %61 : vector<1x32xf32>
    %cst_62 = arith.constant 0.000000e+00 : f32
    %63 = vector.broadcast %cst_62 : f32 to vector<1x32xf32>
    %64 = arith.maximumf %62, %63 : vector<1x32xf32>
    %cst_63 = arith.constant 9.99999974E-6 : f32
    %65 = vector.broadcast %cst_63 : f32 to vector<1x32xf32>
    %66 = arith.addf %64, %65 : vector<1x32xf32>
    %67 = math.rsqrt %66 : vector<1x32xf32>
    %68 = arith.mulf %67, %1 : vector<1x32xf32>
    %69 = arith.subf %0, %59 : vector<1x32xf32>
    %70 = arith.mulf %69, %68 : vector<1x32xf32>
    %71 = arith.addf %2, %70 : vector<1x32xf32>
    %72 = vector.broadcast %68 : vector<1x32xf32> to vector<256x32xf32>
    %73 = arith.mulf %42, %72 : vector<256x32xf32>
    %74 = vector.broadcast %71 : vector<1x32xf32> to vector<256x32xf32>
    %75 = arith.addf %73, %74 : vector<256x32xf32>
    %c0_64 = arith.constant 0 : index
    %c0_65 = arith.constant 0 : index
    %c0_66 = arith.constant 0 : index
    %76 = vector.load %arg7[%c0_64, %c0_65, %c0_66] : memref<2x256x32xf32, #tpu.memory_space<vmem>>, vector<1x256x32xf32>
    %77 = vector.shape_cast %76 : vector<1x256x32xf32> to vector<256x32xf32>
    %78 = vector.shape_cast %75 : vector<256x32xf32> to vector<1x256x32xf32>
    tpu.vector_store %arg7[%c0_64, %c0_65, %c0_66], %78 {strides = array<i32>} : memref<2x256x32xf32, #tpu.memory_space<vmem>>, vector<1x256x32xf32>,
    %c1_67 = arith.constant 1 : index
    %c0_68 = arith.constant 0 : index
    %c0_69 = arith.constant 0 : index
    %c0_70 = arith.constant 0 : index
    %79 = vector.load %arg1[%c1_67, %c0_68, %c0_69, %c0_70] : memref<2x18x18x4xbf16, #tpu.memory_space<vmem>>, vector<1x16x16x4xbf16>
    %80 = vector.shape_cast %79 : vector<1x16x16x4xbf16> to vector<16x16x4xbf16>
    %81 = vector.shape_cast %80 : vector<16x16x4xbf16> to vector<256x4xbf16>
    %c0_71 = arith.constant 0 : index
    %c0_72 = arith.constant 0 : index
    %82 = vector.load %arg8[%c0_71, %c0_72] : memref<256x36xbf16, #tpu.memory_space<vmem>>, vector<256x4xbf16>
    tpu.vector_store %arg8[%c0_71, %c0_72], %81 {strides = array<i32>} : memref<256x36xbf16, #tpu.memory_space<vmem>>, vector<256x4xbf16>,
    %c1_73 = arith.constant 1 : index
    %c0_74 = arith.constant 0 : index
    %c1_75 = arith.constant 1 : index
    %c0_76 = arith.constant 0 : index
    %83 = vector.load %arg1[%c1_73, %c0_74, %c1_75, %c0_76] : memref<2x18x18x4xbf16, #tpu.memory_space<vmem>>, vector<1x16x16x4xbf16>
    %84 = vector.shape_cast %83 : vector<1x16x16x4xbf16> to vector<16x16x4xbf16>
    %85 = vector.shape_cast %84 : vector<16x16x4xbf16> to vector<256x4xbf16>
    %c0_77 = arith.constant 0 : index
    %c4_78 = arith.constant 4 : index
    %86 = vector.load %arg8[%c0_77, %c4_78] : memref<256x36xbf16, #tpu.memory_space<vmem>>, vector<256x4xbf16>
    tpu.vector_store %arg8[%c0_77, %c4_78], %85 {strides = array<i32>} : memref<256x36xbf16, #tpu.memory_space<vmem>>, vector<256x4xbf16>,
    %c1_79 = arith.constant 1 : index
    %c0_80 = arith.constant 0 : index
    %c2_81 = arith.constant 2 : index
    %c0_82 = arith.constant 0 : index
    %87 = vector.load %arg1[%c1_79, %c0_80, %c2_81, %c0_82] : memref<2x18x18x4xbf16, #tpu.memory_space<vmem>>, vector<1x16x16x4xbf16>
    %88 = vector.shape_cast %87 : vector<1x16x16x4xbf16> to vector<16x16x4xbf16>
    %89 = vector.shape_cast %88 : vector<16x16x4xbf16> to vector<256x4xbf16>
    %c0_83 = arith.constant 0 : index
    %c8_84 = arith.constant 8 : index
    %90 = vector.load %arg8[%c0_83, %c8_84] : memref<256x36xbf16, #tpu.memory_space<vmem>>, vector<256x4xbf16>
    tpu.vector_store %arg8[%c0_83, %c8_84], %89 {strides = array<i32>} : memref<256x36xbf16, #tpu.memory_space<vmem>>, vector<256x4xbf16>,
    %c1_85 = arith.constant 1 : index
    %c1_86 = arith.constant 1 : index
    %c0_87 = arith.constant 0 : index
    %c0_88 = arith.constant 0 : index
    %91 = vector.load %arg1[%c1_85, %c1_86, %c0_87, %c0_88] : memref<2x18x18x4xbf16, #tpu.memory_space<vmem>>, vector<1x16x16x4xbf16>
    %92 = vector.shape_cast %91 : vector<1x16x16x4xbf16> to vector<16x16x4xbf16>
    %93 = vector.shape_cast %92 : vector<16x16x4xbf16> to vector<256x4xbf16>
    %c0_89 = arith.constant 0 : index
    %c12_90 = arith.constant 12 : index
    %94 = vector.load %arg8[%c0_89, %c12_90] : memref<256x36xbf16, #tpu.memory_space<vmem>>, vector<256x4xbf16>
    tpu.vector_store %arg8[%c0_89, %c12_90], %93 {strides = array<i32>} : memref<256x36xbf16, #tpu.memory_space<vmem>>, vector<256x4xbf16>,
    %c1_91 = arith.constant 1 : index
    %c1_92 = arith.constant 1 : index
    %c1_93 = arith.constant 1 : index
    %c0_94 = arith.constant 0 : index
    %95 = vector.load %arg1[%c1_91, %c1_92, %c1_93, %c0_94] : memref<2x18x18x4xbf16, #tpu.memory_space<vmem>>, vector<1x16x16x4xbf16>
    %96 = vector.shape_cast %95 : vector<1x16x16x4xbf16> to vector<16x16x4xbf16>
    %97 = vector.shape_cast %96 : vector<16x16x4xbf16> to vector<256x4xbf16>
    %c0_95 = arith.constant 0 : index
    %c16_96 = arith.constant 16 : index
    %98 = vector.load %arg8[%c0_95, %c16_96] : memref<256x36xbf16, #tpu.memory_space<vmem>>, vector<256x4xbf16>
    tpu.vector_store %arg8[%c0_95, %c16_96], %97 {strides = array<i32>} : memref<256x36xbf16, #tpu.memory_space<vmem>>, vector<256x4xbf16>,
    %c1_97 = arith.constant 1 : index
    %c1_98 = arith.constant 1 : index
    %c2_99 = arith.constant 2 : index
    %c0_100 = arith.constant 0 : index
    %99 = vector.load %arg1[%c1_97, %c1_98, %c2_99, %c0_100] : memref<2x18x18x4xbf16, #tpu.memory_space<vmem>>, vector<1x16x16x4xbf16>
    %100 = vector.shape_cast %99 : vector<1x16x16x4xbf16> to vector<16x16x4xbf16>
    %101 = vector.shape_cast %100 : vector<16x16x4xbf16> to vector<256x4xbf16>
    %c0_101 = arith.constant 0 : index
    %c20_102 = arith.constant 20 : index
    %102 = vector.load %arg8[%c0_101, %c20_102] : memref<256x36xbf16, #tpu.memory_space<vmem>>, vector<256x4xbf16>
    tpu.vector_store %arg8[%c0_101, %c20_102], %101 {strides = array<i32>} : memref<256x36xbf16, #tpu.memory_space<vmem>>, vector<256x4xbf16>,
    %c1_103 = arith.constant 1 : index
    %c2_104 = arith.constant 2 : index
    %c0_105 = arith.constant 0 : index
    %c0_106 = arith.constant 0 : index
    %103 = vector.load %arg1[%c1_103, %c2_104, %c0_105, %c0_106] : memref<2x18x18x4xbf16, #tpu.memory_space<vmem>>, vector<1x16x16x4xbf16>
    %104 = vector.shape_cast %103 : vector<1x16x16x4xbf16> to vector<16x16x4xbf16>
    %105 = vector.shape_cast %104 : vector<16x16x4xbf16> to vector<256x4xbf16>
    %c0_107 = arith.constant 0 : index
    %c24_108 = arith.constant 24 : index
    %106 = vector.load %arg8[%c0_107, %c24_108] : memref<256x36xbf16, #tpu.memory_space<vmem>>, vector<256x4xbf16>
    tpu.vector_store %arg8[%c0_107, %c24_108], %105 {strides = array<i32>} : memref<256x36xbf16, #tpu.memory_space<vmem>>, vector<256x4xbf16>,
    %c1_109 = arith.constant 1 : index
    %c2_110 = arith.constant 2 : index
    %c1_111 = arith.constant 1 : index
    %c0_112 = arith.constant 0 : index
    %107 = vector.load %arg1[%c1_109, %c2_110, %c1_111, %c0_112] : memref<2x18x18x4xbf16, #tpu.memory_space<vmem>>, vector<1x16x16x4xbf16>
    %108 = vector.shape_cast %107 : vector<1x16x16x4xbf16> to vector<16x16x4xbf16>
    %109 = vector.shape_cast %108 : vector<16x16x4xbf16> to vector<256x4xbf16>
    %c0_113 = arith.constant 0 : index
    %c28_114 = arith.constant 28 : index
    %110 = vector.load %arg8[%c0_113, %c28_114] : memref<256x36xbf16, #tpu.memory_space<vmem>>, vector<256x4xbf16>
    tpu.vector_store %arg8[%c0_113, %c28_114], %109 {strides = array<i32>} : memref<256x36xbf16, #tpu.memory_space<vmem>>, vector<256x4xbf16>,
    %c1_115 = arith.constant 1 : index
    %c2_116 = arith.constant 2 : index
    %c2_117 = arith.constant 2 : index
    %c0_118 = arith.constant 0 : index
    %111 = vector.load %arg1[%c1_115, %c2_116, %c2_117, %c0_118] : memref<2x18x18x4xbf16, #tpu.memory_space<vmem>>, vector<1x16x16x4xbf16>
    %112 = vector.shape_cast %111 : vector<1x16x16x4xbf16> to vector<16x16x4xbf16>
    %113 = vector.shape_cast %112 : vector<16x16x4xbf16> to vector<256x4xbf16>
    %c0_119 = arith.constant 0 : index
    %c32_120 = arith.constant 32 : index
    %114 = vector.load %arg8[%c0_119, %c32_120] : memref<256x36xbf16, #tpu.memory_space<vmem>>, vector<256x4xbf16>
    tpu.vector_store %arg8[%c0_119, %c32_120], %113 {strides = array<i32>} : memref<256x36xbf16, #tpu.memory_space<vmem>>, vector<256x4xbf16>,
    %c0_121 = arith.constant 0 : index
    %c0_122 = arith.constant 0 : index
    %115 = vector.load %arg8[%c0_121, %c0_122] : memref<256x36xbf16, #tpu.memory_space<vmem>>, vector<256x36xbf16>
    %c0_123 = arith.constant 0 : index
    %c0_124 = arith.constant 0 : index
    %116 = vector.load %arg2[%c0_123, %c0_124] : memref<36x32xbf16, #tpu.memory_space<vmem>>, vector<36x32xbf16>
    %cst_125 = arith.constant dense<0.000000e+00> : vector<256x32xf32>
    %117 = tpu.matmul %115, %116, %cst_125 {dimension_numbers = #tpu.dot_dimension_numbers<[1], [0], [0], [1], [0, 0, 1, 1], [], []>} : vector<256x36xbf16>, vector<36x32xbf16>, vector<256x32xf32> -> vector<256x32xf32>
    %cst_126 = arith.constant dense<0.000000e+00> : vector<32xf32>
    %118 = vector.multi_reduction <add>, %117, %cst_126 [0] : vector<256x32xf32> to vector<32xf32>
    %119 = vector.shape_cast %118 : vector<32xf32> to vector<1x32xf32>
    %120 = arith.mulf %117, %117 : vector<256x32xf32>
    %cst_127 = arith.constant dense<0.000000e+00> : vector<32xf32>
    %121 = vector.multi_reduction <add>, %120, %cst_127 [0] : vector<256x32xf32> to vector<32xf32>
    %122 = vector.shape_cast %121 : vector<32xf32> to vector<1x32xf32>
    %cst_128 = arith.constant 2.560000e+02 : f32
    %123 = vector.broadcast %cst_128 : f32 to vector<1x32xf32>
    %124 = arith.mulf %123, %0 : vector<1x32xf32>
    %125 = arith.addf %119, %124 : vector<1x32xf32>
    %cst_129 = arith.constant 2.000000e+00 : f32
    %126 = vector.broadcast %cst_129 : f32 to vector<1x32xf32>
    %127 = arith.mulf %126, %0 : vector<1x32xf32>
    %128 = arith.mulf %127, %119 : vector<1x32xf32>
    %129 = arith.addf %122, %128 : vector<1x32xf32>
    %cst_130 = arith.constant 2.560000e+02 : f32
    %130 = vector.broadcast %cst_130 : f32 to vector<1x32xf32>
    %131 = arith.mulf %130, %0 : vector<1x32xf32>
    %132 = arith.mulf %131, %0 : vector<1x32xf32>
    %133 = arith.addf %129, %132 : vector<1x32xf32>
    %cst_131 = arith.constant dense<0.000000e+00> : vector<1x32xf32>
    %134 = tpu.matmul %125, %3, %cst_131 {dimension_numbers = #tpu.dot_dimension_numbers<[1], [0], [0], [1], [0, 0, 1, 1], [], []>} : vector<1x32xf32>, vector<32x32xf32>, vector<1x32xf32> -> vector<1x32xf32>
    %cst_132 = arith.constant dense<0.000000e+00> : vector<1x32xf32>
    %135 = tpu.matmul %133, %3, %cst_132 {dimension_numbers = #tpu.dot_dimension_numbers<[1], [0], [0], [1], [0, 0, 1, 1], [], []>} : vector<1x32xf32>, vector<32x32xf32>, vector<1x32xf32> -> vector<1x32xf32>
    %136 = arith.mulf %134, %134 : vector<1x32xf32>
    %137 = arith.subf %135, %136 : vector<1x32xf32>
    %cst_133 = arith.constant 0.000000e+00 : f32
    %138 = vector.broadcast %cst_133 : f32 to vector<1x32xf32>
    %139 = arith.maximumf %137, %138 : vector<1x32xf32>
    %cst_134 = arith.constant 9.99999974E-6 : f32
    %140 = vector.broadcast %cst_134 : f32 to vector<1x32xf32>
    %141 = arith.addf %139, %140 : vector<1x32xf32>
    %142 = math.rsqrt %141 : vector<1x32xf32>
    %143 = arith.mulf %142, %1 : vector<1x32xf32>
    %144 = arith.subf %0, %134 : vector<1x32xf32>
    %145 = arith.mulf %144, %143 : vector<1x32xf32>
    %146 = arith.addf %2, %145 : vector<1x32xf32>
    %147 = vector.broadcast %143 : vector<1x32xf32> to vector<256x32xf32>
    %148 = arith.mulf %117, %147 : vector<256x32xf32>
    %149 = vector.broadcast %146 : vector<1x32xf32> to vector<256x32xf32>
    %150 = arith.addf %148, %149 : vector<256x32xf32>
    %c1_135 = arith.constant 1 : index
    %c0_136 = arith.constant 0 : index
    %c0_137 = arith.constant 0 : index
    %151 = vector.load %arg7[%c1_135, %c0_136, %c0_137] : memref<2x256x32xf32, #tpu.memory_space<vmem>>, vector<1x256x32xf32>
    %152 = vector.shape_cast %151 : vector<1x256x32xf32> to vector<256x32xf32>
    %153 = vector.shape_cast %150 : vector<256x32xf32> to vector<1x256x32xf32>
    tpu.vector_store %arg7[%c1_135, %c0_136, %c0_137], %153 {strides = array<i32>} : memref<2x256x32xf32, #tpu.memory_space<vmem>>, vector<1x256x32xf32>,
    return
  }
  func.func @transform_0(%arg0: i32) -> (i32, i32, i32, i32) {
    %c0_i32 = arith.constant 0 : i32
    %c0_i32_0 = arith.constant 0 : i32
    %c0_i32_1 = arith.constant 0 : i32
    %c0_i32_2 = arith.constant 0 : i32
    return %arg0, %c0_i32, %c0_i32_0, %c0_i32_1 : i32, i32, i32, i32
  }
  func.func @transform_1(%arg0: i32) -> (i32, i32) {
    %c0_i32 = arith.constant 0 : i32
    %c0_i32_0 = arith.constant 0 : i32
    %c0_i32_1 = arith.constant 0 : i32
    return %c0_i32, %c0_i32_0 : i32, i32
  }
  func.func @transform_2(%arg0: i32) -> (i32, i32) {
    %c0_i32 = arith.constant 0 : i32
    %c0_i32_0 = arith.constant 0 : i32
    %c0_i32_1 = arith.constant 0 : i32
    return %c0_i32, %c0_i32_0 : i32, i32
  }
  func.func @transform_3(%arg0: i32) -> (i32, i32) {
    %c0_i32 = arith.constant 0 : i32
    %c0_i32_0 = arith.constant 0 : i32
    %c0_i32_1 = arith.constant 0 : i32
    return %c0_i32, %c0_i32_0 : i32, i32
  }
  func.func @transform_4(%arg0: i32) -> (i32, i32) {
    %c0_i32 = arith.constant 0 : i32
    %c0_i32_0 = arith.constant 0 : i32
    %c0_i32_1 = arith.constant 0 : i32
    return %c0_i32, %c0_i32_0 : i32, i32
  }
  func.func @transform_5(%arg0: i32) -> (i32, i32) {
    %c0_i32 = arith.constant 0 : i32
    %c0_i32_0 = arith.constant 0 : i32
    %c0_i32_1 = arith.constant 0 : i32
    return %c0_i32, %c0_i32_0 : i32, i32
  }
  func.func @transform_6(%arg0: i32) -> (i32, i32, i32) {
    %c0_i32 = arith.constant 0 : i32
    %c0_i32_0 = arith.constant 0 : i32
    %c0_i32_1 = arith.constant 0 : i32
    return %arg0, %c0_i32, %c0_i32_0 : i32, i32, i32
  }
}

</mosaic_0001>

<llo_original>
// kernel: conv2d_groupnorm.1
$region0: #{conv2d_groupnorm.1}
  #allocation0 [shape = 'u32[]', space=smem, size = 0x4, offset = 0x4, fixed_abs, tag = 'smem constant byte address 0x4 - core index']
  #allocation1 [shape = 'u32[144,128]{1,0:T(1,128)}', space=vmem, size = 0x12000, scoped, tag = 'internal scratch']
  #allocation2 [shape = 'bf16[256,36]{1,0:T(16,128)(2,1)}', space=vmem, size = 0x10000, scoped, tag = 'scratch operand']
  %s0 = inlined_call_operand.vmem [shape: bf16[2,18,18,4], index: 0, kind: input, shape index: {}]
  %s1 = inlined_call_operand.vmem [shape: bf16[36,32], index: 1, kind: input, shape index: {}]
  %s2 = inlined_call_operand.vmem [shape: f32[1,32], index: 2, kind: input, shape index: {}]
  %s3 = inlined_call_operand.vmem [shape: f32[1,32], index: 3, kind: input, shape index: {}]
  %s4 = inlined_call_operand.vmem [shape: f32[1,32], index: 4, kind: input, shape index: {}]
  %s5 = inlined_call_operand.vmem [shape: f32[32,32], index: 5, kind: input, shape index: {}]
  %s6 = inlined_call_operand.hbm [shape: f32[2,256,32], index: 6, kind: output, shape index: {}]
  %s7 = sld [smem:[#allocation0]]
  $region34: #{conv2d_groupnorm.1} parent=0
    _
  %s9 = ssub.s32 1, %s7
  %s10 = scalar_select 0, %s9, %s7
  $region1: #{conv2d_groupnorm.1} parent=0
    #allocation3 [shape = 'u8[262144]{0}', space=vmem, size = 0x40000, scoped, tag = 'output window, operand 0, single buffered']
    #allocation4 [shape = 's32[1]{0}', space=sflag, size = 0x4, scoped, tag = 'scoped memory for conv2d_groupnorm.1']
    %11 = vsyncpa [#allocation4], 0
    // Predicated region
    $region2: #{conv2d_groupnorm.1} parent=1 // pred_check
      _
    $region3: #{conv2d_groupnorm.1} parent=1 // pred_check_branch
      %13 = sbr.rel (0) target = $region5
    $region4: #{conv2d_groupnorm.1} parent=1 // pred_region
      _
    $region5: #{conv2d_groupnorm.1} parent=1 // pred_fallthru
      _
    // Predicated region
    $region6: #{conv2d_groupnorm.1} parent=1 // pred_check
      _
    $region7: #{conv2d_groupnorm.1} parent=1 // pred_check_branch
      %15 = sbr.rel (0) target = $region9
    $region8: #{conv2d_groupnorm.1} parent=1 // pred_region
      _
    $region9: #{conv2d_groupnorm.1} parent=1 // pred_fallthru
      _
    // Predicated region
    $region10: #{conv2d_groupnorm.1} parent=1 // pred_check
      _
    $region11: #{conv2d_groupnorm.1} parent=1 // pred_check_branch
      %17 = sbr.rel (0) target = $region13
    $region12: #{conv2d_groupnorm.1} parent=1 // pred_region
      _
    $region13: #{conv2d_groupnorm.1} parent=1 // pred_fallthru
      _
    // Predicated region
    $region14: #{conv2d_groupnorm.1} parent=1 // pred_check
      _
    $region15: #{conv2d_groupnorm.1} parent=1 // pred_check_branch
      %19 = sbr.rel (0) target = $region17
    $region16: #{conv2d_groupnorm.1} parent=1 // pred_region
      _
    $region17: #{conv2d_groupnorm.1} parent=1 // pred_fallthru
      _
    // Predicated region
    $region18: #{conv2d_groupnorm.1} parent=1 // pred_check
      _
    $region19: #{conv2d_groupnorm.1} parent=1 // pred_check_branch
      %21 = sbr.rel (0) target = $region21
    $region20: #{conv2d_groupnorm.1} parent=1 // pred_region
      _
    $region21: #{conv2d_groupnorm.1} parent=1 // pred_fallthru
      _
    // Predicated region
    $region22: #{conv2d_groupnorm.1} parent=1 // pred_check
      _
    $region23: #{conv2d_groupnorm.1} parent=1 // pred_check_branch
      %23 = sbr.rel (0) target = $region25
    $region24: #{conv2d_groupnorm.1} parent=1 // pred_region
      _
    $region25: #{conv2d_groupnorm.1} parent=1 // pred_fallthru
      _
    %v25 = vld [vmem:[%s2] sm:$0x1]
    %v26 = vld [vmem:[%s3] sm:$0x1]
    %v27 = vld [vmem:[%s4] sm:$0x1]
    %v28 = vld [vmem:[%s5] sm:$0xff]
    %v29 = vld [vmem:[%s5 + $0x8] sm:$0xff]
    %v30 = vld [vmem:[%s5 + $0x10] sm:$0xff]
    %v31 = vld [vmem:[%s5 + $0x18] sm:$0xff]
    %v32 = vld [vmem:[%s0] sm:$0xf]
    %v33 = vld [vmem:[%s0 + $0x4] sm:$0xf]
    %v34 = vld [vmem:[%s0 + $0xc] sm:$0xf]
    %v35 = vld [vmem:[%s0 + $0x10] sm:$0xf]
    %v36 = vld [vmem:[%s0 + $0x18] sm:$0xf]
    %v37 = vld [vmem:[%s0 + $0x1c] sm:$0xf]
    %v38 = vld [vmem:[%s0 + $0x24] sm:$0xf]
    %v39 = vld [vmem:[%s0 + $0x28] sm:$0xf]
    %v40 = vld [vmem:[%s0 + $0x30] sm:$0xf]
    %v41 = vld [vmem:[%s0 + $0x34] sm:$0xf]
    %v42 = vld [vmem:[%s0 + $0x3c] sm:$0xf]
    %v43 = vld [vmem:[%s0 + $0x40] sm:$0xf]
    %v44 = vld [vmem:[%s0 + $0x48] sm:$0xf]
    %v45 = vld [vmem:[%s0 + $0x4c] sm:$0xf]
    %v46 = vld [vmem:[%s0 + $0x54] sm:$0xf]
    %v47 = vld [vmem:[%s0 + $0x58] sm:$0xf]
    %v48 = vld [vmem:[%s0 + $0x60] sm:$0xf]
    %v49 = vld [vmem:[%s0 + $0x64] sm:$0xf]
    %v50 = vld [vmem:[%s0 + $0x6c] sm:$0xf]
    %v51 = vld [vmem:[%s0 + $0x70] sm:$0xf]
    %v52 = vld [vmem:[%s0 + $0x78] sm:$0xf]
    %v53 = vld [vmem:[%s0 + $0x7c] sm:$0xf]
    %v54 = vld [vmem:[%s0 + $0x84] sm:$0xf]
    %v55 = vld [vmem:[%s0 + $0x88] sm:$0xf]
    %v56 = vld [vmem:[%s0 + $0x90] sm:$0xf]
    %v57 = vld [vmem:[%s0 + $0x94] sm:$0xf]
    %v58 = vld [vmem:[%s0 + $0x9c] sm:$0xf]
    %v59 = vld [vmem:[%s0 + $0xa0] sm:$0xf]
    %v60 = vld [vmem:[%s0 + $0xa8] sm:$0xf]
    %v61 = vld [vmem:[%s0 + $0xac] sm:$0xf]
    %v62 = vld [vmem:[%s0 + $0xb4] sm:$0xf]
    %v63 = vld [vmem:[%s0 + $0xb8] sm:$0xf]
    %v96 = vunpack.c.l.b16 %v32
    %v97 = vunpack.c.l.b16 %v33
    %v98 = vunpack.c.l.b16 %v34
    %v99 = vunpack.c.l.b16 %v35
    %v100 = vunpack.c.l.b16 %v36
    %v101 = vunpack.c.l.b16 %v37
    %v102 = vunpack.c.l.b16 %v38
    %v103 = vunpack.c.l.b16 %v39
    %v104 = vunpack.c.l.b16 %v40
    %v105 = vunpack.c.l.b16 %v41
    %v106 = vunpack.c.l.b16 %v42
    %v107 = vunpack.c.l.b16 %v43
    %v108 = vunpack.c.l.b16 %v44
    %v109 = vunpack.c.l.b16 %v45
    %v110 = vunpack.c.l.b16 %v46
    %v111 = vunpack.c.l.b16 %v47
    %v112 = vunpack.c.l.b16 %v48
    %v113 = vunpack.c.l.b16 %v49
    %v114 = vunpack.c.l.b16 %v50
    %v115 = vunpack.c.l.b16 %v51
    %v116 = vunpack.c.l.b16 %v52
    %v117 = vunpack.c.l.b16 %v53
    %v118 = vunpack.c.l.b16 %v54
    %v119 = vunpack.c.l.b16 %v55
    %v120 = vunpack.c.l.b16 %v56
    %v121 = vunpack.c.l.b16 %v57
    %v122 = vunpack.c.l.b16 %v58
    %v123 = vunpack.c.l.b16 %v59
    %v124 = vunpack.c.l.b16 %v60
    %v125 = vunpack.c.l.b16 %v61
    %v126 = vunpack.c.l.b16 %v62
    %v127 = vunpack.c.l.b16 %v63
    %v128 = vpack.c.b16 %v97, %v96
    %v129 = vpack.c.b16 %v99, %v98
    %v130 = vpack.c.b16 %v101, %v100
    %v131 = vpack.c.b16 %v103, %v102
    %v132 = vpack.c.b16 %v105, %v104
    %v133 = vpack.c.b16 %v107, %v106
    %v134 = vpack.c.b16 %v109, %v108
    %v135 = vpack.c.b16 %v111, %v110
    %v136 = vpack.c.b16 %v113, %v112
    %v137 = vpack.c.b16 %v115, %v114
    %v138 = vpack.c.b16 %v117, %v116
    %v139 = vpack.c.b16 %v119, %v118
    %v140 = vpack.c.b16 %v121, %v120
    %v141 = vpack.c.b16 %v123, %v122
    %v142 = vpack.c.b16 %v125, %v124
    %v143 = vpack.c.b16 %v127, %v126
    %vm160 = vcmask 31744
    %161 = vst.msk [vmem:[#allocation2] sm:$0xff] %vm160, %v128
    %162 = vst.msk [vmem:[#allocation2 + $0x8] sm:$0xff] %vm160, %v129
    %163 = vst.msk [vmem:[#allocation2 + $0x10] sm:$0xff] %vm160, %v130
    %164 = vst.msk [vmem:[#allocation2 + $0x18] sm:$0xff] %vm160, %v131
    %165 = vst.msk [vmem:[#allocation2 + $0x20] sm:$0xff] %vm160, %v132
    %166 = vst.msk [vmem:[#allocation2 + $0x28] sm:$0xff] %vm160, %v133
    %167 = vst.msk [vmem:[#allocation2 + $0x30] sm:$0xff] %vm160, %v134
    %168 = vst.msk [vmem:[#allocation2 + $0x38] sm:$0xff] %vm160, %v135
    %169 = vst.msk [vmem:[#allocation2 + $0x40] sm:$0xff] %vm160, %v136
    %170 = vst.msk [vmem:[#allocation2 + $0x48] sm:$0xff] %vm160, %v137
    %171 = vst.msk [vmem:[#allocation2 + $0x50] sm:$0xff] %vm160, %v138
    %172 = vst.msk [vmem:[#allocation2 + $0x58] sm:$0xff] %vm160, %v139
    %173 = vst.msk [vmem:[#allocation2 + $0x60] sm:$0xff] %vm160, %v140
    %174 = vst.msk [vmem:[#allocation2 + $0x68] sm:$0xff] %vm160, %v141
    %175 = vst.msk [vmem:[#allocation2 + $0x70] sm:$0xff] %vm160, %v142
    %176 = vst.msk [vmem:[#allocation2 + $0x78] sm:$0xff] %vm160, %v143
    %v177 = vld [vmem:[%s0] sm:$0xf]
    %v178 = vld [vmem:[%s0 + $0x4] sm:$0xf]
    %v179 = vld [vmem:[%s0 + $0x8] sm:$0x1]
    %v180 = vld [vmem:[%s0 + $0xc] sm:$0xf]
    %v181 = vld [vmem:[%s0 + $0x10] sm:$0xf]
    %v182 = vld [vmem:[%s0 + $0x14] sm:$0x1]
    %v183 = vld [vmem:[%s0 + $0x18] sm:$0xf]
    %v184 = vld [vmem:[%s0 + $0x1c] sm:$0xf]
    %v185 = vld [vmem:[%s0 + $0x20] sm:$0x1]
    %v186 = vld [vmem:[%s0 + $0x24] sm:$0xf]
    %v187 = vld [vmem:[%s0 + $0x28] sm:$0xf]
    %v188 = vld [vmem:[%s0 + $0x2c] sm:$0x1]
    %v189 = vld [vmem:[%s0 + $0x30] sm:$0xf]
    %v190 = vld [vmem:[%s0 + $0x34] sm:$0xf]
    %v191 = vld [vmem:[%s0 + $0x38] sm:$0x1]
    %v192 = vld [vmem:[%s0 + $0x3c] sm:$0xf]
    %v193 = vld [vmem:[%s0 + $0x40] sm:$0xf]
    %v194 = vld [vmem:[%s0 + $0x44] sm:$0x1]
    %v195 = vld [vmem:[%s0 + $0x48] sm:$0xf]
    %v196 = vld [vmem:[%s0 + $0x4c] sm:$0xf]
    %v197 = vld [vmem:[%s0 + $0x50] sm:$0x1]
    %v198 = vld [vmem:[%s0 + $0x54] sm:$0xf]
    %v199 = vld [vmem:[%s0 + $0x58] sm:$0xf]
    %v200 = vld [vmem:[%s0 + $0x5c] sm:$0x1]
    %v201 = vld [vmem:[%s0 + $0x60] sm:$0xf]
    %v202 = vld [vmem:[%s0 + $0x64] sm:$0xf]
    %v203 = vld [vmem:[%s0 + $0x68] sm:$0x1]
    %v204 = vld [vmem:[%s0 + $0x6c] sm:$0xf]
    %v205 = vld [vmem:[%s0 + $0x70] sm:$0xf]
    %v206 = vld [vmem:[%s0 + $0x74] sm:$0x1]
    %v207 = vld [vmem:[%s0 + $0x78] sm:$0xf]
    %v208 = vld [vmem:[%s0 + $0x7c] sm:$0xf]
    %v209 = vld [vmem:[%s0 + $0x80] sm:$0x1]
    %v210 = vld [vmem:[%s0 + $0x84] sm:$0xf]
    %v211 = vld [vmem:[%s0 + $0x88] sm:$0xf]
    %v212 = vld [vmem:[%s0 + $0x8c] sm:$0x1]
    %v213 = vld [vmem:[%s0 + $0x90] sm:$0xf]
    %v214 = vld [vmem:[%s0 + $0x94] sm:$0xf]
    %v215 = vld [vmem:[%s0 + $0x98] sm:$0x1]
    %v216 = vld [vmem:[%s0 + $0x9c] sm:$0xf]
    %v217 = vld [vmem:[%s0 + $0xa0] sm:$0xf]
    %v218 = vld [vmem:[%s0 + $0xa4] sm:$0x1]
    %v219 = vld [vmem:[%s0 + $0xa8] sm:$0xf]
    %v220 = vld [vmem:[%s0 + $0xac] sm:$0xf]
    %v221 = vld [vmem:[%s0 + $0xb0] sm:$0x1]
    %v222 = vld [vmem:[%s0 + $0xb4] sm:$0xf]
    %v223 = vld [vmem:[%s0 + $0xb8] sm:$0xf]
    %v224 = vld [vmem:[%s0 + $0xbc] sm:$0x1]
    %vm225 = vsmask.f32 3328
    %vm226 = vsmask.f32 7440
    %vm227 = vmor %vm225, %vm226
    %v229 = vshrl.u32 %v177, 16
    %v231 = vrot.slane %v229, 4
    %v232 = vshll.u32 %v177, 16
    %v234 = vrot.slane %v232, 5
    %v235 = vor.u32 %v231, %v234
    %v236 = vrot.slane %v235, 4
    %v238 = vshll.u32 %v178, 16
    %v240 = vrot.slane %v238, 5
    %v241 = vsel %vm227, %v236, %v240
    %v242 = vshrl.u32 %v178, 16
    %v244 = vrot.slane %v242, 4
    %v245 = vor.u32 %v244, %v240
    %v246 = vrot.slane %v245, 4
    %v248 = vshll.u32 %v179, 16
    %v250 = vrot.slane %v248, 5
    %v251 = vsel %vm227, %v246, %v250
    %v253 = vshrl.u32 %v180, 16
    %v255 = vrot.slane %v253, 4
    %v256 = vshll.u32 %v180, 16
    %v258 = vrot.slane %v256, 5
    %v259 = vor.u32 %v255, %v258
    %v260 = vrot.slane %v259, 4
    %v262 = vshll.u32 %v181, 16
    %v264 = vrot.slane %v262, 5
    %v265 = vsel %vm227, %v260, %v264
    %v266 = vshrl.u32 %v181, 16
    %v268 = vrot.slane %v266, 4
    %v269 = vor.u32 %v268, %v264
    %v270 = vrot.slane %v269, 4
    %v272 = vshll.u32 %v182, 16
    %v274 = vrot.slane %v272, 5
    %v275 = vsel %vm227, %v270, %v274
    %v277 = vshrl.u32 %v183, 16
    %v279 = vrot.slane %v277, 4
    %v280 = vshll.u32 %v183, 16
    %v282 = vrot.slane %v280, 5
    %v283 = vor.u32 %v279, %v282
    %v284 = vrot.slane %v283, 4
    %v286 = vshll.u32 %v184, 16
    %v288 = vrot.slane %v286, 5
    %v289 = vsel %vm227, %v284, %v288
    %v290 = vshrl.u32 %v184, 16
    %v292 = vrot.slane %v290, 4
    %v293 = vor.u32 %v292, %v288
    %v294 = vrot.slane %v293, 4
    %v296 = vshll.u32 %v185, 16
    %v298 = vrot.slane %v296, 5
    %v299 = vsel %vm227, %v294, %v298
    %v301 = vshrl.u32 %v186, 16
    %v303 = vrot.slane %v301, 4
    %v304 = vshll.u32 %v186, 16
    %v306 = vrot.slane %v304, 5
    %v307 = vor.u32 %v303, %v306
    %v308 = vrot.slane %v307, 4
    %v310 = vshll.u32 %v187, 16
    %v312 = vrot.slane %v310, 5
    %v313 = vsel %vm227, %v308, %v312
    %v314 = vshrl.u32 %v187, 16
    %v316 = vrot.slane %v314, 4
    %v317 = vor.u32 %v316, %v312
    %v318 = vrot.slane %v317, 4
    %v320 = vshll.u32 %v188, 16
    %v322 = vrot.slane %v320, 5
    %v323 = vsel %vm227, %v318, %v322
    %v325 = vshrl.u32 %v189, 16
    %v327 = vrot.slane %v325, 4
    %v328 = vshll.u32 %v189, 16
    %v330 = vrot.slane %v328, 5
    %v331 = vor.u32 %v327, %v330
    %v332 = vrot.slane %v331, 4
    %v334 = vshll.u32 %v190, 16
    %v336 = vrot.slane %v334, 5
    %v337 = vsel %vm227, %v332, %v336
    %v338 = vshrl.u32 %v190, 16
    %v340 = vrot.slane %v338, 4
    %v341 = vor.u32 %v340, %v336
    %v342 = vrot.slane %v341, 4
    %v344 = vshll.u32 %v191, 16
    %v346 = vrot.slane %v344, 5
    %v347 = vsel %vm227, %v342, %v346
    %v349 = vshrl.u32 %v192, 16
    %v351 = vrot.slane %v349, 4
    %v352 = vshll.u32 %v192, 16
    %v354 = vrot.slane %v352, 5
    %v355 = vor.u32 %v351, %v354
    %v356 = vrot.slane %v355, 4
    %v358 = vshll.u32 %v193, 16
    %v360 = vrot.slane %v358, 5
    %v361 = vsel %vm227, %v356, %v360
    %v362 = vshrl.u32 %v193, 16
    %v364 = vrot.slane %v362, 4
    %v365 = vor.u32 %v364, %v360
    %v366 = vrot.slane %v365, 4
    %v368 = vshll.u32 %v194, 16
    %v370 = vrot.slane %v368, 5
    %v371 = vsel %vm227, %v366, %v370
    %v373 = vshrl.u32 %v195, 16
    %v375 = vrot.slane %v373, 4
    %v376 = vshll.u32 %v195, 16
    %v378 = vrot.slane %v376, 5
    %v379 = vor.u32 %v375, %v378
    %v380 = vrot.slane %v379, 4
    %v382 = vshll.u32 %v196, 16
    %v384 = vrot.slane %v382, 5
    %v385 = vsel %vm227, %v380, %v384
    %v386 = vshrl.u32 %v196, 16
    %v388 = vrot.slane %v386, 4
    %v389 = vor.u32 %v388, %v384
    %v390 = vrot.slane %v389, 4
    %v392 = vshll.u32 %v197, 16
    %v394 = vrot.slane %v392, 5
    %v395 = vsel %vm227, %v390, %v394
    %v397 = vshrl.u32 %v198, 16
    %v399 = vrot.slane %v397, 4
    %v400 = vshll.u32 %v198, 16
    %v402 = vrot.slane %v400, 5
    %v403 = vor.u32 %v399, %v402
    %v404 = vrot.slane %v403, 4
    %v406 = vshll.u32 %v199, 16
    %v408 = vrot.slane %v406, 5
    %v409 = vsel %vm227, %v404, %v408
    %v410 = vshrl.u32 %v199, 16
    %v412 = vrot.slane %v410, 4
    %v413 = vor.u32 %v412, %v408
    %v414 = vrot.slane %v413, 4
    %v416 = vshll.u32 %v200, 16
    %v418 = vrot.slane %v416, 5
    %v419 = vsel %vm227, %v414, %v418
    %v421 = vshrl.u32 %v201, 16
    %v423 = vrot.slane %v421, 4
    %v424 = vshll.u32 %v201, 16
    %v426 = vrot.slane %v424, 5
    %v427 = vor.u32 %v423, %v426
    %v428 = vrot.slane %v427, 4
    %v430 = vshll.u32 %v202, 16
    %v432 = vrot.slane %v430, 5
    %v433 = vsel %vm227, %v428, %v432
    %v434 = vshrl.u32 %v202, 16
    %v436 = vrot.slane %v434, 4
    %v437 = vor.u32 %v436, %v432
    %v438 = vrot.slane %v437, 4
    %v440 = vshll.u32 %v203, 16
    %v442 = vrot.slane %v440, 5
    %v443 = vsel %vm227, %v438, %v442
    %v445 = vshrl.u32 %v204, 16
    %v447 = vrot.slane %v445, 4
    %v448 = vshll.u32 %v204, 16
    %v450 = vrot.slane %v448, 5
    %v451 = vor.u32 %v447, %v450
    %v452 = vrot.slane %v451, 4
    %v454 = vshll.u32 %v205, 16
    %v456 = vrot.slane %v454, 5
    %v457 = vsel %vm227, %v452, %v456
    %v458 = vshrl.u32 %v205, 16
    %v460 = vrot.slane %v458, 4
    %v461 = vor.u32 %v460, %v456
    %v462 = vrot.slane %v461, 4
    %v464 = vshll.u32 %v206, 16
    %v466 = vrot.slane %v464, 5
    %v467 = vsel %vm227, %v462, %v466
    %v469 = vshrl.u32 %v207, 16
    %v471 = vrot.slane %v469, 4
    %v472 = vshll.u32 %v207, 16
    %v474 = vrot.slane %v472, 5
    %v475 = vor.u32 %v471, %v474
    %v476 = vrot.slane %v475, 4
    %v478 = vshll.u32 %v208, 16
    %v480 = vrot.slane %v478, 5
    %v481 = vsel %vm227, %v476, %v480
    %v482 = vshrl.u32 %v208, 16
    %v484 = vrot.slane %v482, 4
    %v485 = vor.u32 %v484, %v480
    %v486 = vrot.slane %v485, 4
    %v488 = vshll.u32 %v209, 16
    %v490 = vrot.slane %v488, 5
    %v491 = vsel %vm227, %v486, %v490
    %v493 = vshrl.u32 %v210, 16
    %v495 = vrot.slane %v493, 4
    %v496 = vshll.u32 %v210, 16
    %v498 = vrot.slane %v496, 5
    %v499 = vor.u32 %v495, %v498
    %v500 = vrot.slane %v499, 4
    %v502 = vshll.u32 %v211, 16
    %v504 = vrot.slane %v502, 5
    %v505 = vsel %vm227, %v500, %v504
    %v506 = vshrl.u32 %v211, 16
    %v508 = vrot.slane %v506, 4
    %v509 = vor.u32 %v508, %v504
    %v510 = vrot.slane %v509, 4
    %v512 = vshll.u32 %v212, 16
    %v514 = vrot.slane %v512, 5
    %v515 = vsel %vm227, %v510, %v514
    %v517 = vshrl.u32 %v213, 16
    %v519 = vrot.slane %v517, 4
    %v520 = vshll.u32 %v213, 16
    %v522 = vrot.slane %v520, 5
    %v523 = vor.u32 %v519, %v522
    %v524 = vrot.slane %v523, 4
    %v526 = vshll.u32 %v214, 16
    %v528 = vrot.slane %v526, 5
    %v529 = vsel %vm227, %v524, %v528
    %v530 = vshrl.u32 %v214, 16
    %v532 = vrot.slane %v530, 4
    %v533 = vor.u32 %v532, %v528
    %v534 = vrot.slane %v533, 4
    %v536 = vshll.u32 %v215, 16
    %v538 = vrot.slane %v536, 5
    %v539 = vsel %vm227, %v534, %v538
    %v541 = vshrl.u32 %v216, 16
    %v543 = vrot.slane %v541, 4
    %v544 = vshll.u32 %v216, 16
    %v546 = vrot.slane %v544, 5
    %v547 = vor.u32 %v543, %v546
    %v548 = vrot.slane %v547, 4
    %v550 = vshll.u32 %v217, 16
    %v552 = vrot.slane %v550, 5
    %v553 = vsel %vm227, %v548, %v552
    %v554 = vshrl.u32 %v217, 16
    %v556 = vrot.slane %v554, 4
    %v557 = vor.u32 %v556, %v552
    %v558 = vrot.slane %v557, 4
    %v560 = vshll.u32 %v218, 16
    %v562 = vrot.slane %v560, 5
    %v563 = vsel %vm227, %v558, %v562
    %v565 = vshrl.u32 %v219, 16
    %v567 = vrot.slane %v565, 4
    %v568 = vshll.u32 %v219, 16
    %v570 = vrot.slane %v568, 5
    %v571 = vor.u32 %v567, %v570
    %v572 = vrot.slane %v571, 4
    %v574 = vshll.u32 %v220, 16
    %v576 = vrot.slane %v574, 5
    %v577 = vsel %vm227, %v572, %v576
    %v578 = vshrl.u32 %v220, 16
    %v580 = vrot.slane %v578, 4
    %v581 = vor.u32 %v580, %v576
    %v582 = vrot.slane %v581, 4
    %v584 = vshll.u32 %v221, 16
    %v586 = vrot.slane %v584, 5
    %v587 = vsel %vm227, %v582, %v586
    %v589 = vshrl.u32 %v222, 16
    %v591 = vrot.slane %v589, 4
    %v592 = vshll.u32 %v222, 16
    %v594 = vrot.slane %v592, 5
    %v595 = vor.u32 %v591, %v594
    %v596 = vrot.slane %v595, 4
    %v598 = vshll.u32 %v223, 16
    %v600 = vrot.slane %v598, 5
    %v601 = vsel %vm227, %v596, %v600
    %v602 = vshrl.u32 %v223, 16
    %v604 = vrot.slane %v602, 4
    %v605 = vor.u32 %v604, %v600
    %v606 = vrot.slane %v605, 4
    %v608 = vshll.u32 %v224, 16
    %v610 = vrot.slane %v608, 5
    %v611 = vsel %vm227, %v606, %v610
    %v612 = vunpack.c.l.b16 %v241
    %v613 = vunpack.c.l.b16 %v251
    %v614 = vunpack.c.l.b16 %v265
    %v615 = vunpack.c.l.b16 %v275
    %v616 = vunpack.c.l.b16 %v289
    %v617 = vunpack.c.l.b16 %v299
    %v618 = vunpack.c.l.b16 %v313
    %v619 = vunpack.c.l.b16 %v323
    %v620 = vunpack.c.l.b16 %v337
    %v621 = vunpack.c.l.b16 %v347
    %v622 = vunpack.c.l.b16 %v361
    %v623 = vunpack.c.l.b16 %v371
    %v624 = vunpack.c.l.b16 %v385
    %v625 = vunpack.c.l.b16 %v395
    %v626 = vunpack.c.l.b16 %v409
    %v627 = vunpack.c.l.b16 %v419
    %v628 = vunpack.c.l.b16 %v433
    %v629 = vunpack.c.l.b16 %v443
    %v630 = vunpack.c.l.b16 %v457
    %v631 = vunpack.c.l.b16 %v467
    %v632 = vunpack.c.l.b16 %v481
    %v633 = vunpack.c.l.b16 %v491
    %v634 = vunpack.c.l.b16 %v505
    %v635 = vunpack.c.l.b16 %v515
    %v636 = vunpack.c.l.b16 %v529
    %v637 = vunpack.c.l.b16 %v539
    %v638 = vunpack.c.l.b16 %v553
    %v639 = vunpack.c.l.b16 %v563
    %v640 = vunpack.c.l.b16 %v577
    %v641 = vunpack.c.l.b16 %v587
    %v642 = vunpack.c.l.b16 %v601
    %v643 = vunpack.c.l.b16 %v611
    %v644 = vpack.c.b16 %v613, %v612
    %v645 = vpack.c.b16 %v615, %v614
    %v646 = vpack.c.b16 %v617, %v616
    %v647 = vpack.c.b16 %v619, %v618
    %v648 = vpack.c.b16 %v621, %v620
    %v649 = vpack.c.b16 %v623, %v622
    %v650 = vpack.c.b16 %v625, %v624
    %v651 = vpack.c.b16 %v627, %v626
    %v652 = vpack.c.b16 %v629, %v628
    %v653 = vpack.c.b16 %v631, %v630
    %v654 = vpack.c.b16 %v633, %v632
    %v655 = vpack.c.b16 %v635, %v634
    %v656 = vpack.c.b16 %v637, %v636
    %v657 = vpack.c.b16 %v639, %v638
    %v658 = vpack.c.b16 %v641, %v640
    %v659 = vpack.c.b16 %v643, %v642
    %660 = vrot.lane.b32.xlu0 %v644, 4
    %v661 = vpop.permute.xlu0 %660
    %662 = vrot.lane.b32.xlu0 %v645, 4
    %v663 = vpop.permute.xlu0 %662
    %664 = vrot.lane.b32.xlu0 %v646, 4
    %v665 = vpop.permute.xlu0 %664
    %666 = vrot.lane.b32.xlu0 %v647, 4
    %v667 = vpop.permute.xlu0 %666
    %668 = vrot.lane.b32.xlu0 %v648, 4
    %v669 = vpop.permute.xlu0 %668
    %670 = vrot.lane.b32.xlu0 %v649, 4
    %v671 = vpop.permute.xlu0 %670
    %672 = vrot.lane.b32.xlu0 %v650, 4
    %v673 = vpop.permute.xlu0 %672
    %674 = vrot.lane.b32.xlu0 %v651, 4
    %v675 = vpop.permute.xlu0 %674
    %676 = vrot.lane.b32.xlu0 %v652, 4
    %v677 = vpop.permute.xlu0 %676
    %678 = vrot.lane.b32.xlu0 %v653, 4
    %v679 = vpop.permute.xlu0 %678
    %680 = vrot.lane.b32.xlu0 %v654, 4
    %v681 = vpop.permute.xlu0 %680
    %682 = vrot.lane.b32.xlu0 %v655, 4
    %v683 = vpop.permute.xlu0 %682
    %684 = vrot.lane.b32.xlu0 %v656, 4
    %v685 = vpop.permute.xlu0 %684
    %686 = vrot.lane.b32.xlu0 %v657, 4
    %v687 = vpop.permute.xlu0 %686
    %688 = vrot.lane.b32.xlu0 %v658, 4
    %v689 = vpop.permute.xlu0 %688
    %690 = vrot.lane.b32.xlu0 %v659, 4
    %v691 = vpop.permute.xlu0 %690
    %vm708 = vcmask 64544
    %709 = vst.msk [vmem:[#allocation2] sm:$0xff] %vm708, %v661
    %710 = vst.msk [vmem:[#allocation2 + $0x8] sm:$0xff] %vm708, %v663
    %711 = vst.msk [vmem:[#allocation2 + $0x10] sm:$0xff] %vm708, %v665
    %712 = vst.msk [vmem:[#allocation2 + $0x18] sm:$0xff] %vm708, %v667
    %713 = vst.msk [vmem:[#allocation2 + $0x20] sm:$0xff] %vm708, %v669
    %714 = vst.msk [vmem:[#allocation2 + $0x28] sm:$0xff] %vm708, %v671
    %715 = vst.msk [vmem:[#allocation2 + $0x30] sm:$0xff] %vm708, %v673
    %716 = vst.msk [vmem:[#allocation2 + $0x38] sm:$0xff] %vm708, %v675
    %717 = vst.msk [vmem:[#allocation2 + $0x40] sm:$0xff] %vm708, %v677
    %718 = vst.msk [vmem:[#allocation2 + $0x48] sm:$0xff] %vm708, %v679
    %719 = vst.msk [vmem:[#allocation2 + $0x50] sm:$0xff] %vm708, %v681
    %720 = vst.msk [vmem:[#allocation2 + $0x58] sm:$0xff] %vm708, %v683
    %721 = vst.msk [vmem:[#allocation2 + $0x60] sm:$0xff] %vm708, %v685
    %722 = vst.msk [vmem:[#allocation2 + $0x68] sm:$0xff] %vm708, %v687
    %723 = vst.msk [vmem:[#allocation2 + $0x70] sm:$0xff] %vm708, %v689
    %724 = vst.msk [vmem:[#allocation2 + $0x78] sm:$0xff] %vm708, %v691
    %v725 = vld [vmem:[%s0] sm:$0xe]
    %v726 = vld [vmem:[%s0 + $0x4] sm:$0xf]
    %v727 = vld [vmem:[%s0 + $0x8] sm:$0x1]
    %v728 = vld [vmem:[%s0 + $0xc] sm:$0xe]
    %v729 = vld [vmem:[%s0 + $0x10] sm:$0xf]
    %v730 = vld [vmem:[%s0 + $0x14] sm:$0x1]
    %v731 = vld [vmem:[%s0 + $0x18] sm:$0xe]
    %v732 = vld [vmem:[%s0 + $0x1c] sm:$0xf]
    %v733 = vld [vmem:[%s0 + $0x20] sm:$0x1]
    %v734 = vld [vmem:[%s0 + $0x24] sm:$0xe]
    %v735 = vld [vmem:[%s0 + $0x28] sm:$0xf]
    %v736 = vld [vmem:[%s0 + $0x2c] sm:$0x1]
    %v737 = vld [vmem:[%s0 + $0x30] sm:$0xe]
    %v738 = vld [vmem:[%s0 + $0x34] sm:$0xf]
    %v739 = vld [vmem:[%s0 + $0x38] sm:$0x1]
    %v740 = vld [vmem:[%s0 + $0x3c] sm:$0xe]
    %v741 = vld [vmem:[%s0 + $0x40] sm:$0xf]
    %v742 = vld [vmem:[%s0 + $0x44] sm:$0x1]
    %v743 = vld [vmem:[%s0 + $0x48] sm:$0xe]
    %v744 = vld [vmem:[%s0 + $0x4c] sm:$0xf]
    %v745 = vld [vmem:[%s0 + $0x50] sm:$0x1]
    %v746 = vld [vmem:[%s0 + $0x54] sm:$0xe]
    %v747 = vld [vmem:[%s0 + $0x58] sm:$0xf]
    %v748 = vld [vmem:[%s0 + $0x5c] sm:$0x1]
    %v749 = vld [vmem:[%s0 + $0x60] sm:$0xe]
    %v750 = vld [vmem:[%s0 + $0x64] sm:$0xf]
    %v751 = vld [vmem:[%s0 + $0x68] sm:$0x1]
    %v752 = vld [vmem:[%s0 + $0x6c] sm:$0xe]
    %v753 = vld [vmem:[%s0 + $0x70] sm:$0xf]
    %v754 = vld [vmem:[%s0 + $0x74] sm:$0x1]
    %v755 = vld [vmem:[%s0 + $0x78] sm:$0xe]
    %v756 = vld [vmem:[%s0 + $0x7c] sm:$0xf]
    %v757 = vld [vmem:[%s0 + $0x80] sm:$0x1]
    %v758 = vld [vmem:[%s0 + $0x84] sm:$0xe]
    %v759 = vld [vmem:[%s0 + $0x88] sm:$0xf]
    %v760 = vld [vmem:[%s0 + $0x8c] sm:$0x1]
    %v761 = vld [vmem:[%s0 + $0x90] sm:$0xe]
    %v762 = vld [vmem:[%s0 + $0x94] sm:$0xf]
    %v763 = vld [vmem:[%s0 + $0x98] sm:$0x1]
    %v764 = vld [vmem:[%s0 + $0x9c] sm:$0xe]
    %v765 = vld [vmem:[%s0 + $0xa0] sm:$0xf]
    %v766 = vld [vmem:[%s0 + $0xa4] sm:$0x1]
    %v767 = vld [vmem:[%s0 + $0xa8] sm:$0xe]
    %v768 = vld [vmem:[%s0 + $0xac] sm:$0xf]
    %v769 = vld [vmem:[%s0 + $0xb0] sm:$0x1]
    %v770 = vld [vmem:[%s0 + $0xb4] sm:$0xe]
    %v771 = vld [vmem:[%s0 + $0xb8] sm:$0xf]
    %v772 = vld [vmem:[%s0 + $0xbc] sm:$0x1]
    %vm821 = vcmask 1042432
    %vm822 = vcmask 1046532
    %vm823 = vmor %vm821, %vm822
    %v824 = vrot.slane %v725, 5
    %v825 = vrot.slane %v824, 4
    %v826 = vrot.slane %v726, 5
    %v827 = vsel %vm823, %v825, %v826
    %v828 = vrot.slane %v826, 4
    %v829 = vrot.slane %v727, 5
    %v830 = vsel %vm823, %v828, %v829
    %v831 = vrot.slane %v728, 5
    %v832 = vrot.slane %v831, 4
    %v833 = vrot.slane %v729, 5
    %v834 = vsel %vm823, %v832, %v833
    %v835 = vrot.slane %v833, 4
    %v836 = vrot.slane %v730, 5
    %v837 = vsel %vm823, %v835, %v836
    %v838 = vrot.slane %v731, 5
    %v839 = vrot.slane %v838, 4
    %v840 = vrot.slane %v732, 5
    %v841 = vsel %vm823, %v839, %v840
    %v842 = vrot.slane %v840, 4
    %v843 = vrot.slane %v733, 5
    %v844 = vsel %vm823, %v842, %v843
    %v845 = vrot.slane %v734, 5
    %v846 = vrot.slane %v845, 4
    %v847 = vrot.slane %v735, 5
    %v848 = vsel %vm823, %v846, %v847
    %v849 = vrot.slane %v847, 4
    %v850 = vrot.slane %v736, 5
    %v851 = vsel %vm823, %v849, %v850
    %v852 = vrot.slane %v737, 5
    %v853 = vrot.slane %v852, 4
    %v854 = vrot.slane %v738, 5
    %v855 = vsel %vm823, %v853, %v854
    %v856 = vrot.slane %v854, 4
    %v857 = vrot.slane %v739, 5
    %v858 = vsel %vm823, %v856, %v857
    %v859 = vrot.slane %v740, 5
    %v860 = vrot.slane %v859, 4
    %v861 = vrot.slane %v741, 5
    %v862 = vsel %vm823, %v860, %v861
    %v863 = vrot.slane %v861, 4
    %v864 = vrot.slane %v742, 5
    %v865 = vsel %vm823, %v863, %v864
    %v866 = vrot.slane %v743, 5
    %v867 = vrot.slane %v866, 4
    %v868 = vrot.slane %v744, 5
    %v869 = vsel %vm823, %v867, %v868
    %v870 = vrot.slane %v868, 4
    %v871 = vrot.slane %v745, 5
    %v872 = vsel %vm823, %v870, %v871
    %v873 = vrot.slane %v746, 5
    %v874 = vrot.slane %v873, 4
    %v875 = vrot.slane %v747, 5
    %v876 = vsel %vm823, %v874, %v875
    %v877 = vrot.slane %v875, 4
    %v878 = vrot.slane %v748, 5
    %v879 = vsel %vm823, %v877, %v878
    %v880 = vrot.slane %v749, 5
    %v881 = vrot.slane %v880, 4
    %v882 = vrot.slane %v750, 5
    %v883 = vsel %vm823, %v881, %v882
    %v884 = vrot.slane %v882, 4
    %v885 = vrot.slane %v751, 5
    %v886 = vsel %vm823, %v884, %v885
    %v887 = vrot.slane %v752, 5
    %v888 = vrot.slane %v887, 4
    %v889 = vrot.slane %v753, 5
    %v890 = vsel %vm823, %v888, %v889
    %v891 = vrot.slane %v889, 4
    %v892 = vrot.slane %v754, 5
    %v893 = vsel %vm823, %v891, %v892
    %v894 = vrot.slane %v755, 5
    %v895 = vrot.slane %v894, 4
    %v896 = vrot.slane %v756, 5
    %v897 = vsel %vm823, %v895, %v896
    %v898 = vrot.slane %v896, 4
    %v899 = vrot.slane %v757, 5
    %v900 = vsel %vm823, %v898, %v899
    %v901 = vrot.slane %v758, 5
    %v902 = vrot.slane %v901, 4
    %v903 = vrot.slane %v759, 5
    %v904 = vsel %vm823, %v902, %v903
    %v905 = vrot.slane %v903, 4
    %v906 = vrot.slane %v760, 5
    %v907 = vsel %vm823, %v905, %v906
    %v908 = vrot.slane %v761, 5
    %v909 = vrot.slane %v908, 4
    %v910 = vrot.slane %v762, 5
    %v911 = vsel %vm823, %v909, %v910
    %v912 = vrot.slane %v910, 4
    %v913 = vrot.slane %v763, 5
    %v914 = vsel %vm823, %v912, %v913
    %v915 = vrot.slane %v764, 5
    %v916 = vrot.slane %v915, 4
    %v917 = vrot.slane %v765, 5
    %v918 = vsel %vm823, %v916, %v917
    %v919 = vrot.slane %v917, 4
    %v920 = vrot.slane %v766, 5
    %v921 = vsel %vm823, %v919, %v920
    %v922 = vrot.slane %v767, 5
    %v923 = vrot.slane %v922, 4
    %v924 = vrot.slane %v768, 5
    %v925 = vsel %vm823, %v923, %v924
    %v926 = vrot.slane %v924, 4
    %v927 = vrot.slane %v769, 5
    %v928 = vsel %vm823, %v926, %v927
    %v929 = vrot.slane %v770, 5
    %v930 = vrot.slane %v929, 4
    %v931 = vrot.slane %v771, 5
    %v932 = vsel %vm823, %v930, %v931
    %v933 = vrot.slane %v931, 4
    %v934 = vrot.slane %v772, 5
    %v935 = vsel %vm823, %v933, %v934
    %v936 = vunpack.c.l.b16 %v827
    %v937 = vunpack.c.l.b16 %v830
    %v938 = vunpack.c.l.b16 %v834
    %v939 = vunpack.c.l.b16 %v837
    %v940 = vunpack.c.l.b16 %v841
    %v941 = vunpack.c.l.b16 %v844
    %v942 = vunpack.c.l.b16 %v848
    %v943 = vunpack.c.l.b16 %v851
    %v944 = vunpack.c.l.b16 %v855
    %v945 = vunpack.c.l.b16 %v858
    %v946 = vunpack.c.l.b16 %v862
    %v947 = vunpack.c.l.b16 %v865
    %v948 = vunpack.c.l.b16 %v869
    %v949 = vunpack.c.l.b16 %v872
    %v950 = vunpack.c.l.b16 %v876
    %v951 = vunpack.c.l.b16 %v879
    %v952 = vunpack.c.l.b16 %v883
    %v953 = vunpack.c.l.b16 %v886
    %v954 = vunpack.c.l.b16 %v890
    %v955 = vunpack.c.l.b16 %v893
    %v956 = vunpack.c.l.b16 %v897
    %v957 = vunpack.c.l.b16 %v900
    %v958 = vunpack.c.l.b16 %v904
    %v959 = vunpack.c.l.b16 %v907
    %v960 = vunpack.c.l.b16 %v911
    %v961 = vunpack.c.l.b16 %v914
    %v962 = vunpack.c.l.b16 %v918
    %v963 = vunpack.c.l.b16 %v921
    %v964 = vunpack.c.l.b16 %v925
    %v965 = vunpack.c.l.b16 %v928
    %v966 = vunpack.c.l.b16 %v932
    %v967 = vunpack.c.l.b16 %v935
    %v968 = vpack.c.b16 %v937, %v936
    %v969 = vpack.c.b16 %v939, %v938
    %v970 = vpack.c.b16 %v941, %v940
    %v971 = vpack.c.b16 %v943, %v942
    %v972 = vpack.c.b16 %v945, %v944
    %v973 = vpack.c.b16 %v947, %v946
    %v974 = vpack.c.b16 %v949, %v948
    %v975 = vpack.c.b16 %v951, %v950
    %v976 = vpack.c.b16 %v953, %v952
    %v977 = vpack.c.b16 %v955, %v954
    %v978 = vpack.c.b16 %v957, %v956
    %v979 = vpack.c.b16 %v959, %v958
    %v980 = vpack.c.b16 %v961, %v960
    %v981 = vpack.c.b16 %v963, %v962
    %v982 = vpack.c.b16 %v965, %v964
    %v983 = vpack.c.b16 %v967, %v966
    %984 = vrot.lane.b32.xlu0 %v968, 8
    %v985 = vpop.permute.xlu0 %984
    %986 = vrot.lane.b32.xlu0 %v969, 8
    %v987 = vpop.permute.xlu0 %986
    %988 = vrot.lane.b32.xlu0 %v970, 8
    %v989 = vpop.permute.xlu0 %988
    %990 = vrot.lane.b32.xlu0 %v971, 8
    %v991 = vpop.permute.xlu0 %990
    %992 = vrot.lane.b32.xlu0 %v972, 8
    %v993 = vpop.permute.xlu0 %992
    %994 = vrot.lane.b32.xlu0 %v973, 8
    %v995 = vpop.permute.xlu0 %994
    %996 = vrot.lane.b32.xlu0 %v974, 8
    %v997 = vpop.permute.xlu0 %996
    %998 = vrot.lane.b32.xlu0 %v975, 8
    %v999 = vpop.permute.xlu0 %998
    %1000 = vrot.lane.b32.xlu0 %v976, 8
    %v1001 = vpop.permute.xlu0 %1000
    %1002 = vrot.lane.b32.xlu0 %v977, 8
    %v1003 = vpop.permute.xlu0 %1002
    %1004 = vrot.lane.b32.xlu0 %v978, 8
    %v1005 = vpop.permute.xlu0 %1004
    %1006 = vrot.lane.b32.xlu0 %v979, 8
    %v1007 = vpop.permute.xlu0 %1006
    %1008 = vrot.lane.b32.xlu0 %v980, 8
    %v1009 = vpop.permute.xlu0 %1008
    %1010 = vrot.lane.b32.xlu0 %v981, 8
    %v1011 = vpop.permute.xlu0 %1010
    %1012 = vrot.lane.b32.xlu0 %v982, 8
    %v1013 = vpop.permute.xlu0 %1012
    %1014 = vrot.lane.b32.xlu0 %v983, 8
    %v1015 = vpop.permute.xlu0 %1014
    %vm1032 = vcmask 97344
    %1033 = vst.msk [vmem:[#allocation2] sm:$0xff] %vm1032, %v985
    %1034 = vst.msk [vmem:[#allocation2 + $0x8] sm:$0xff] %vm1032, %v987
    %1035 = vst.msk [vmem:[#allocation2 + $0x10] sm:$0xff] %vm1032, %v989
    %1036 = vst.msk [vmem:[#allocation2 + $0x18] sm:$0xff] %vm1032, %v991
    %1037 = vst.msk [vmem:[#allocation2 + $0x20] sm:$0xff] %vm1032, %v993
    %1038 = vst.msk [vmem:[#allocation2 + $0x28] sm:$0xff] %vm1032, %v995
    %1039 = vst.msk [vmem:[#allocation2 + $0x30] sm:$0xff] %vm1032, %v997
    %1040 = vst.msk [vmem:[#allocation2 + $0x38] sm:$0xff] %vm1032, %v999
    %1041 = vst.msk [vmem:[#allocation2 + $0x40] sm:$0xff] %vm1032, %v1001
    %1042 = vst.msk [vmem:[#allocation2 + $0x48] sm:$0xff] %vm1032, %v1003
    %1043 = vst.msk [vmem:[#allocation2 + $0x50] sm:$0xff] %vm1032, %v1005
    %1044 = vst.msk [vmem:[#allocation2 + $0x58] sm:$0xff] %vm1032, %v1007
    %1045 = vst.msk [vmem:[#allocation2 + $0x60] sm:$0xff] %vm1032, %v1009
    %1046 = vst.msk [vmem:[#allocation2 + $0x68] sm:$0xff] %vm1032, %v1011
    %1047 = vst.msk [vmem:[#allocation2 + $0x70] sm:$0xff] %vm1032, %v1013
    %1048 = vst.msk [vmem:[#allocation2 + $0x78] sm:$0xff] %vm1032, %v1015
    %s1049 = scalar_lea.vmem %s0, 12
    %v1050 = vld [vmem:[%s1049] sm:$0xf]
    %v1051 = vld [vmem:[%s1049 + $0x4] sm:$0xf]
    %v1052 = vld [vmem:[%s1049 + $0xc] sm:$0xf]
    %v1053 = vld [vmem:[%s1049 + $0x10] sm:$0xf]
    %v1054 = vld [vmem:[%s1049 + $0x18] sm:$0xf]
    %v1055 = vld [vmem:[%s1049 + $0x1c] sm:$0xf]
    %v1056 = vld [vmem:[%s1049 + $0x24] sm:$0xf]
    %v1057 = vld [vmem:[%s1049 + $0x28] sm:$0xf]
    %v1058 = vld [vmem:[%s1049 + $0x30] sm:$0xf]
    %v1059 = vld [vmem:[%s1049 + $0x34] sm:$0xf]
    %v1060 = vld [vmem:[%s1049 + $0x3c] sm:$0xf]
    %v1061 = vld [vmem:[%s1049 + $0x40] sm:$0xf]
    %v1062 = vld [vmem:[%s1049 + $0x48] sm:$0xf]
    %v1063 = vld [vmem:[%s1049 + $0x4c] sm:$0xf]
    %v1064 = vld [vmem:[%s1049 + $0x54] sm:$0xf]
    %v1065 = vld [vmem:[%s1049 + $0x58] sm:$0xf]
    %v1066 = vld [vmem:[%s1049 + $0x60] sm:$0xf]
    %v1067 = vld [vmem:[%s1049 + $0x64] sm:$0xf]
    %v1068 = vld [vmem:[%s1049 + $0x6c] sm:$0xf]
    %v1069 = vld [vmem:[%s1049 + $0x70] sm:$0xf]
    %v1070 = vld [vmem:[%s1049 + $0x78] sm:$0xf]
    %v1071 = vld [vmem:[%s1049 + $0x7c] sm:$0xf]
    %v1072 = vld [vmem:[%s1049 + $0x84] sm:$0xf]
    %v1073 = vld [vmem:[%s1049 + $0x88] sm:$0xf]
    %v1074 = vld [vmem:[%s1049 + $0x90] sm:$0xf]
    %v1075 = vld [vmem:[%s1049 + $0x94] sm:$0xf]
    %v1076 = vld [vmem:[%s1049 + $0x9c] sm:$0xf]
    %v1077 = vld [vmem:[%s1049 + $0xa0] sm:$0xf]
    %v1078 = vld [vmem:[%s1049 + $0xa8] sm:$0xf]
    %v1079 = vld [vmem:[%s1049 + $0xac] sm:$0xf]
    %v1080 = vld [vmem:[%s1049 + $0xb4] sm:$0xf]
    %v1081 = vld [vmem:[%s1049 + $0xb8] sm:$0xf]
    %v1114 = vunpack.c.l.b16 %v1050
    %v1115 = vunpack.c.l.b16 %v1051
    %v1116 = vunpack.c.l.b16 %v1052
    %v1117 = vunpack.c.l.b16 %v1053
    %v1118 = vunpack.c.l.b16 %v1054
    %v1119 = vunpack.c.l.b16 %v1055
    %v1120 = vunpack.c.l.b16 %v1056
    %v1121 = vunpack.c.l.b16 %v1057
    %v1122 = vunpack.c.l.b16 %v1058
    %v1123 = vunpack.c.l.b16 %v1059
    %v1124 = vunpack.c.l.b16 %v1060
    %v1125 = vunpack.c.l.b16 %v1061
    %v1126 = vunpack.c.l.b16 %v1062
    %v1127 = vunpack.c.l.b16 %v1063
    %v1128 = vunpack.c.l.b16 %v1064
    %v1129 = vunpack.c.l.b16 %v1065
    %v1130 = vunpack.c.l.b16 %v1066
    %v1131 = vunpack.c.l.b16 %v1067
    %v1132 = vunpack.c.l.b16 %v1068
    %v1133 = vunpack.c.l.b16 %v1069
    %v1134 = vunpack.c.l.b16 %v1070
    %v1135 = vunpack.c.l.b16 %v1071
    %v1136 = vunpack.c.l.b16 %v1072
    %v1137 = vunpack.c.l.b16 %v1073
    %v1138 = vunpack.c.l.b16 %v1074
    %v1139 = vunpack.c.l.b16 %v1075
    %v1140 = vunpack.c.l.b16 %v1076
    %v1141 = vunpack.c.l.b16 %v1077
    %v1142 = vunpack.c.l.b16 %v1078
    %v1143 = vunpack.c.l.b16 %v1079
    %v1144 = vunpack.c.l.b16 %v1080
    %v1145 = vunpack.c.l.b16 %v1081
    %v1146 = vpack.c.b16 %v1115, %v1114
    %v1147 = vpack.c.b16 %v1117, %v1116
    %v1148 = vpack.c.b16 %v1119, %v1118
    %v1149 = vpack.c.b16 %v1121, %v1120
    %v1150 = vpack.c.b16 %v1123, %v1122
    %v1151 = vpack.c.b16 %v1125, %v1124
    %v1152 = vpack.c.b16 %v1127, %v1126
    %v1153 = vpack.c.b16 %v1129, %v1128
    %v1154 = vpack.c.b16 %v1131, %v1130
    %v1155 = vpack.c.b16 %v1133, %v1132
    %v1156 = vpack.c.b16 %v1135, %v1134
    %v1157 = vpack.c.b16 %v1137, %v1136
    %v1158 = vpack.c.b16 %v1139, %v1138
    %v1159 = vpack.c.b16 %v1141, %v1140
    %v1160 = vpack.c.b16 %v1143, %v1142
    %v1161 = vpack.c.b16 %v1145, %v1144
    %1162 = vrot.lane.b32.xlu0 %v1146, 12
    %v1163 = vpop.permute.xlu0 %1162
    %1164 = vrot.lane.b32.xlu0 %v1147, 12
    %v1165 = vpop.permute.xlu0 %1164
    %1166 = vrot.lane.b32.xlu0 %v1148, 12
    %v1167 = vpop.permute.xlu0 %1166
    %1168 = vrot.lane.b32.xlu0 %v1149, 12
    %v1169 = vpop.permute.xlu0 %1168
    %1170 = vrot.lane.b32.xlu0 %v1150, 12
    %v1171 = vpop.permute.xlu0 %1170
    %1172 = vrot.lane.b32.xlu0 %v1151, 12
    %v1173 = vpop.permute.xlu0 %1172
    %1174 = vrot.lane.b32.xlu0 %v1152, 12
    %v1175 = vpop.permute.xlu0 %1174
    %1176 = vrot.lane.b32.xlu0 %v1153, 12
    %v1177 = vpop.permute.xlu0 %1176
    %1178 = vrot.lane.b32.xlu0 %v1154, 12
    %v1179 = vpop.permute.xlu0 %1178
    %1180 = vrot.lane.b32.xlu0 %v1155, 12
    %v1181 = vpop.permute.xlu0 %1180
    %1182 = vrot.lane.b32.xlu0 %v1156, 12
    %v1183 = vpop.permute.xlu0 %1182
    %1184 = vrot.lane.b32.xlu0 %v1157, 12
    %v1185 = vpop.permute.xlu0 %1184
    %1186 = vrot.lane.b32.xlu0 %v1158, 12
    %v1187 = vpop.permute.xlu0 %1186
    %1188 = vrot.lane.b32.xlu0 %v1159, 12
    %v1189 = vpop.permute.xlu0 %1188
    %1190 = vrot.lane.b32.xlu0 %v1160, 12
    %v1191 = vpop.permute.xlu0 %1190
    %1192 = vrot.lane.b32.xlu0 %v1161, 12
    %v1193 = vpop.permute.xlu0 %1192
    %vm1210 = vcmask 130144
    %1211 = vst.msk [vmem:[#allocation2] sm:$0xff] %vm1210, %v1163
    %1212 = vst.msk [vmem:[#allocation2 + $0x8] sm:$0xff] %vm1210, %v1165
    %1213 = vst.msk [vmem:[#allocation2 + $0x10] sm:$0xff] %vm1210, %v1167
    %1214 = vst.msk [vmem:[#allocation2 + $0x18] sm:$0xff] %vm1210, %v1169
    %1215 = vst.msk [vmem:[#allocation2 + $0x20] sm:$0xff] %vm1210, %v1171
    %1216 = vst.msk [vmem:[#allocation2 + $0x28] sm:$0xff] %vm1210, %v1173
    %1217 = vst.msk [vmem:[#allocation2 + $0x30] sm:$0xff] %vm1210, %v1175
    %1218 = vst.msk [vmem:[#allocation2 + $0x38] sm:$0xff] %vm1210, %v1177
    %1219 = vst.msk [vmem:[#allocation2 + $0x40] sm:$0xff] %vm1210, %v1179
    %1220 = vst.msk [vmem:[#allocation2 + $0x48] sm:$0xff] %vm1210, %v1181
    %1221 = vst.msk [vmem:[#allocation2 + $0x50] sm:$0xff] %vm1210, %v1183
    %1222 = vst.msk [vmem:[#allocation2 + $0x58] sm:$0xff] %vm1210, %v1185
    %1223 = vst.msk [vmem:[#allocation2 + $0x60] sm:$0xff] %vm1210, %v1187
    %1224 = vst.msk [vmem:[#allocation2 + $0x68] sm:$0xff] %vm1210, %v1189
    %1225 = vst.msk [vmem:[#allocation2 + $0x70] sm:$0xff] %vm1210, %v1191
    %1226 = vst.msk [vmem:[#allocation2 + $0x78] sm:$0xff] %vm1210, %v1193
    %v1227 = vld [vmem:[%s1049] sm:$0xf]
    %v1228 = vld [vmem:[%s1049 + $0x4] sm:$0xf]
    %v1229 = vld [vmem:[%s1049 + $0x8] sm:$0x1]
    %v1230 = vld [vmem:[%s1049 + $0xc] sm:$0xf]
    %v1231 = vld [vmem:[%s1049 + $0x10] sm:$0xf]
    %v1232 = vld [vmem:[%s1049 + $0x14] sm:$0x1]
    %v1233 = vld [vmem:[%s1049 + $0x18] sm:$0xf]
    %v1234 = vld [vmem:[%s1049 + $0x1c] sm:$0xf]
    %v1235 = vld [vmem:[%s1049 + $0x20] sm:$0x1]
    %v1236 = vld [vmem:[%s1049 + $0x24] sm:$0xf]
    %v1237 = vld [vmem:[%s1049 + $0x28] sm:$0xf]
    %v1238 = vld [vmem:[%s1049 + $0x2c] sm:$0x1]
    %v1239 = vld [vmem:[%s1049 + $0x30] sm:$0xf]
    %v1240 = vld [vmem:[%s1049 + $0x34] sm:$0xf]
    %v1241 = vld [vmem:[%s1049 + $0x38] sm:$0x1]
    %v1242 = vld [vmem:[%s1049 + $0x3c] sm:$0xf]
    %v1243 = vld [vmem:[%s1049 + $0x40] sm:$0xf]
    %v1244 = vld [vmem:[%s1049 + $0x44] sm:$0x1]
    %v1245 = vld [vmem:[%s1049 + $0x48] sm:$0xf]
    %v1246 = vld [vmem:[%s1049 + $0x4c] sm:$0xf]
    %v1247 = vld [vmem:[%s1049 + $0x50] sm:$0x1]
    %v1248 = vld [vmem:[%s1049 + $0x54] sm:$0xf]
    %v1249 = vld [vmem:[%s1049 + $0x58] sm:$0xf]
    %v1250 = vld [vmem:[%s1049 + $0x5c] sm:$0x1]
    %v1251 = vld [vmem:[%s1049 + $0x60] sm:$0xf]
    %v1252 = vld [vmem:[%s1049 + $0x64] sm:$0xf]
    %v1253 = vld [vmem:[%s1049 + $0x68] sm:$0x1]
    %v1254 = vld [vmem:[%s1049 + $0x6c] sm:$0xf]
    %v1255 = vld [vmem:[%s1049 + $0x70] sm:$0xf]
    %v1256 = vld [vmem:[%s1049 + $0x74] sm:$0x1]
    %v1257 = vld [vmem:[%s1049 + $0x78] sm:$0xf]
    %v1258 = vld [vmem:[%s1049 + $0x7c] sm:$0xf]
    %v1259 = vld [vmem:[%s1049 + $0x80] sm:$0x1]
    %v1260 = vld [vmem:[%s1049 + $0x84] sm:$0xf]
    %v1261 = vld [vmem:[%s1049 + $0x88] sm:$0xf]
    %v1262 = vld [vmem:[%s1049 + $0x8c] sm:$0x1]
    %v1263 = vld [vmem:[%s1049 + $0x90] sm:$0xf]
    %v1264 = vld [vmem:[%s1049 + $0x94] sm:$0xf]
    %v1265 = vld [vmem:[%s1049 + $0x98] sm:$0x1]
    %v1266 = vld [vmem:[%s1049 + $0x9c] sm:$0xf]
    %v1267 = vld [vmem:[%s1049 + $0xa0] sm:$0xf]
    %v1268 = vld [vmem:[%s1049 + $0xa4] sm:$0x1]
    %v1269 = vld [vmem:[%s1049 + $0xa8] sm:$0xf]
    %v1270 = vld [vmem:[%s1049 + $0xac] sm:$0xf]
    %v1271 = vld [vmem:[%s1049 + $0xb0] sm:$0x1]
    %v1272 = vld [vmem:[%s1049 + $0xb4] sm:$0xf]
    %v1273 = vld [vmem:[%s1049 + $0xb8] sm:$0xf]
    %v1274 = vld [vmem:[%s1049 + $0xbc] sm:$0x1]
    %v1276 = vshrl.u32 %v1227, 16
    %v1278 = vrot.slane %v1276, 4
    %v1279 = vshll.u32 %v1227, 16
    %v1281 = vrot.slane %v1279, 5
    %v1282 = vor.u32 %v1278, %v1281
    %v1283 = vrot.slane %v1282, 4
    %v1285 = vshll.u32 %v1228, 16
    %v1287 = vrot.slane %v1285, 5
    %v1288 = vsel %vm227, %v1283, %v1287
    %v1289 = vshrl.u32 %v1228, 16
    %v1291 = vrot.slane %v1289, 4
    %v1292 = vor.u32 %v1291, %v1287
    %v1293 = vrot.slane %v1292, 4
    %v1295 = vshll.u32 %v1229, 16
    %v1297 = vrot.slane %v1295, 5
    %v1298 = vsel %vm227, %v1293, %v1297
    %v1300 = vshrl.u32 %v1230, 16
    %v1302 = vrot.slane %v1300, 4
    %v1303 = vshll.u32 %v1230, 16
    %v1305 = vrot.slane %v1303, 5
    %v1306 = vor.u32 %v1302, %v1305
    %v1307 = vrot.slane %v1306, 4
    %v1309 = vshll.u32 %v1231, 16
    %v1311 = vrot.slane %v1309, 5
    %v1312 = vsel %vm227, %v1307, %v1311
    %v1313 = vshrl.u32 %v1231, 16
    %v1315 = vrot.slane %v1313, 4
    %v1316 = vor.u32 %v1315, %v1311
    %v1317 = vrot.slane %v1316, 4
    %v1319 = vshll.u32 %v1232, 16
    %v1321 = vrot.slane %v1319, 5
    %v1322 = vsel %vm227, %v1317, %v1321
    %v1324 = vshrl.u32 %v1233, 16
    %v1326 = vrot.slane %v1324, 4
    %v1327 = vshll.u32 %v1233, 16
    %v1329 = vrot.slane %v1327, 5
    %v1330 = vor.u32 %v1326, %v1329
    %v1331 = vrot.slane %v1330, 4
    %v1333 = vshll.u32 %v1234, 16
    %v1335 = vrot.slane %v1333, 5
    %v1336 = vsel %vm227, %v1331, %v1335
    %v1337 = vshrl.u32 %v1234, 16
    %v1339 = vrot.slane %v1337, 4
    %v1340 = vor.u32 %v1339, %v1335
    %v1341 = vrot.slane %v1340, 4
    %v1343 = vshll.u32 %v1235, 16
    %v1345 = vrot.slane %v1343, 5
    %v1346 = vsel %vm227, %v1341, %v1345
    %v1348 = vshrl.u32 %v1236, 16
    %v1350 = vrot.slane %v1348, 4
    %v1351 = vshll.u32 %v1236, 16
    %v1353 = vrot.slane %v1351, 5
    %v1354 = vor.u32 %v1350, %v1353
    %v1355 = vrot.slane %v1354, 4
    %v1357 = vshll.u32 %v1237, 16
    %v1359 = vrot.slane %v1357, 5
    %v1360 = vsel %vm227, %v1355, %v1359
    %v1361 = vshrl.u32 %v1237, 16
    %v1363 = vrot.slane %v1361, 4
    %v1364 = vor.u32 %v1363, %v1359
    %v1365 = vrot.slane %v1364, 4
    %v1367 = vshll.u32 %v1238, 16
    %v1369 = vrot.slane %v1367, 5
    %v1370 = vsel %vm227, %v1365, %v1369
    %v1372 = vshrl.u32 %v1239, 16
    %v1374 = vrot.slane %v1372, 4
    %v1375 = vshll.u32 %v1239, 16
    %v1377 = vrot.slane %v1375, 5
    %v1378 = vor.u32 %v1374, %v1377
    %v1379 = vrot.slane %v1378, 4
    %v1381 = vshll.u32 %v1240, 16
    %v1383 = vrot.slane %v1381, 5
    %v1384 = vsel %vm227, %v1379, %v1383
    %v1385 = vshrl.u32 %v1240, 16
    %v1387 = vrot.slane %v1385, 4
    %v1388 = vor.u32 %v1387, %v1383
    %v1389 = vrot.slane %v1388, 4
    %v1391 = vshll.u32 %v1241, 16
    %v1393 = vrot.slane %v1391, 5
    %v1394 = vsel %vm227, %v1389, %v1393
    %v1396 = vshrl.u32 %v1242, 16
    %v1398 = vrot.slane %v1396, 4
    %v1399 = vshll.u32 %v1242, 16
    %v1401 = vrot.slane %v1399, 5
    %v1402 = vor.u32 %v1398, %v1401
    %v1403 = vrot.slane %v1402, 4
    %v1405 = vshll.u32 %v1243, 16
    %v1407 = vrot.slane %v1405, 5
    %v1408 = vsel %vm227, %v1403, %v1407
    %v1409 = vshrl.u32 %v1243, 16
    %v1411 = vrot.slane %v1409, 4
    %v1412 = vor.u32 %v1411, %v1407
    %v1413 = vrot.slane %v1412, 4
    %v1415 = vshll.u32 %v1244, 16
    %v1417 = vrot.slane %v1415, 5
    %v1418 = vsel %vm227, %v1413, %v1417
    %v1420 = vshrl.u32 %v1245, 16
    %v1422 = vrot.slane %v1420, 4
    %v1423 = vshll.u32 %v1245, 16
    %v1425 = vrot.slane %v1423, 5
    %v1426 = vor.u32 %v1422, %v1425
    %v1427 = vrot.slane %v1426, 4
    %v1429 = vshll.u32 %v1246, 16
    %v1431 = vrot.slane %v1429, 5
    %v1432 = vsel %vm227, %v1427, %v1431
    %v1433 = vshrl.u32 %v1246, 16
    %v1435 = vrot.slane %v1433, 4
    %v1436 = vor.u32 %v1435, %v1431
    %v1437 = vrot.slane %v1436, 4
    %v1439 = vshll.u32 %v1247, 16
    %v1441 = vrot.slane %v1439, 5
    %v1442 = vsel %vm227, %v1437, %v1441
    %v1444 = vshrl.u32 %v1248, 16
    %v1446 = vrot.slane %v1444, 4
    %v1447 = vshll.u32 %v1248, 16
    %v1449 = vrot.slane %v1447, 5
    %v1450 = vor.u32 %v1446, %v1449
    %v1451 = vrot.slane %v1450, 4
    %v1453 = vshll.u32 %v1249, 16
    %v1455 = vrot.slane %v1453, 5
    %v1456 = vsel %vm227, %v1451, %v1455
    %v1457 = vshrl.u32 %v1249, 16
    %v1459 = vrot.slane %v1457, 4
    %v1460 = vor.u32 %v1459, %v1455
    %v1461 = vrot.slane %v1460, 4
    %v1463 = vshll.u32 %v1250, 16
    %v1465 = vrot.slane %v1463, 5
    %v1466 = vsel %vm227, %v1461, %v1465
    %v1468 = vshrl.u32 %v1251, 16
    %v1470 = vrot.slane %v1468, 4
    %v1471 = vshll.u32 %v1251, 16
    %v1473 = vrot.slane %v1471, 5
    %v1474 = vor.u32 %v1470, %v1473
    %v1475 = vrot.slane %v1474, 4
    %v1477 = vshll.u32 %v1252, 16
    %v1479 = vrot.slane %v1477, 5
    %v1480 = vsel %vm227, %v1475, %v1479
    %v1481 = vshrl.u32 %v1252, 16
    %v1483 = vrot.slane %v1481, 4
    %v1484 = vor.u32 %v1483, %v1479
    %v1485 = vrot.slane %v1484, 4
    %v1487 = vshll.u32 %v1253, 16
    %v1489 = vrot.slane %v1487, 5
    %v1490 = vsel %vm227, %v1485, %v1489
    %v1492 = vshrl.u32 %v1254, 16
    %v1494 = vrot.slane %v1492, 4
    %v1495 = vshll.u32 %v1254, 16
    %v1497 = vrot.slane %v1495, 5
    %v1498 = vor.u32 %v1494, %v1497
    %v1499 = vrot.slane %v1498, 4
    %v1501 = vshll.u32 %v1255, 16
    %v1503 = vrot.slane %v1501, 5
    %v1504 = vsel %vm227, %v1499, %v1503
    %v1505 = vshrl.u32 %v1255, 16
    %v1507 = vrot.slane %v1505, 4
    %v1508 = vor.u32 %v1507, %v1503
    %v1509 = vrot.slane %v1508, 4
    %v1511 = vshll.u32 %v1256, 16
    %v1513 = vrot.slane %v1511, 5
    %v1514 = vsel %vm227, %v1509, %v1513
    %v1516 = vshrl.u32 %v1257, 16
    %v1518 = vrot.slane %v1516, 4
    %v1519 = vshll.u32 %v1257, 16
    %v1521 = vrot.slane %v1519, 5
    %v1522 = vor.u32 %v1518, %v1521
    %v1523 = vrot.slane %v1522, 4
    %v1525 = vshll.u32 %v1258, 16
    %v1527 = vrot.slane %v1525, 5
    %v1528 = vsel %vm227, %v1523, %v1527
    %v1529 = vshrl.u32 %v1258, 16
    %v1531 = vrot.slane %v1529, 4
    %v1532 = vor.u32 %v1531, %v1527
    %v1533 = vrot.slane %v1532, 4
    %v1535 = vshll.u32 %v1259, 16
    %v1537 = vrot.slane %v1535, 5
    %v1538 = vsel %vm227, %v1533, %v1537
    %v1540 = vshrl.u32 %v1260, 16
    %v1542 = vrot.slane %v1540, 4
    %v1543 = vshll.u32 %v1260, 16
    %v1545 = vrot.slane %v1543, 5
    %v1546 = vor.u32 %v1542, %v1545
    %v1547 = vrot.slane %v1546, 4
    %v1549 = vshll.u32 %v1261, 16
    %v1551 = vrot.slane %v1549, 5
    %v1552 = vsel %vm227, %v1547, %v1551
    %v1553 = vshrl.u32 %v1261, 16
    %v1555 = vrot.slane %v1553, 4
    %v1556 = vor.u32 %v1555, %v1551
    %v1557 = vrot.slane %v1556, 4
    %v1559 = vshll.u32 %v1262, 16
    %v1561 = vrot.slane %v1559, 5
    %v1562 = vsel %vm227, %v1557, %v1561
    %v1564 = vshrl.u32 %v1263, 16
    %v1566 = vrot.slane %v1564, 4
    %v1567 = vshll.u32 %v1263, 16
    %v1569 = vrot.slane %v1567, 5
    %v1570 = vor.u32 %v1566, %v1569
    %v1571 = vrot.slane %v1570, 4
    %v1573 = vshll.u32 %v1264, 16
    %v1575 = vrot.slane %v1573, 5
    %v1576 = vsel %vm227, %v1571, %v1575
    %v1577 = vshrl.u32 %v1264, 16
    %v1579 = vrot.slane %v1577, 4
    %v1580 = vor.u32 %v1579, %v1575
    %v1581 = vrot.slane %v1580, 4
    %v1583 = vshll.u32 %v1265, 16
    %v1585 = vrot.slane %v1583, 5
    %v1586 = vsel %vm227, %v1581, %v1585
    %v1588 = vshrl.u32 %v1266, 16
    %v1590 = vrot.slane %v1588, 4
    %v1591 = vshll.u32 %v1266, 16
    %v1593 = vrot.slane %v1591, 5
    %v1594 = vor.u32 %v1590, %v1593
    %v1595 = vrot.slane %v1594, 4
    %v1597 = vshll.u32 %v1267, 16
    %v1599 = vrot.slane %v1597, 5
    %v1600 = vsel %vm227, %v1595, %v1599
    %v1601 = vshrl.u32 %v1267, 16
    %v1603 = vrot.slane %v1601, 4
    %v1604 = vor.u32 %v1603, %v1599
    %v1605 = vrot.slane %v1604, 4
    %v1607 = vshll.u32 %v1268, 16
    %v1609 = vrot.slane %v1607, 5
    %v1610 = vsel %vm227, %v1605, %v1609
    %v1612 = vshrl.u32 %v1269, 16
    %v1614 = vrot.slane %v1612, 4
    %v1615 = vshll.u32 %v1269, 16
    %v1617 = vrot.slane %v1615, 5
    %v1618 = vor.u32 %v1614, %v1617
    %v1619 = vrot.slane %v1618, 4
    %v1621 = vshll.u32 %v1270, 16
    %v1623 = vrot.slane %v1621, 5
    %v1624 = vsel %vm227, %v1619, %v1623
    %v1625 = vshrl.u32 %v1270, 16
    %v1627 = vrot.slane %v1625, 4
    %v1628 = vor.u32 %v1627, %v1623
    %v1629 = vrot.slane %v1628, 4
    %v1631 = vshll.u32 %v1271, 16
    %v1633 = vrot.slane %v1631, 5
    %v1634 = vsel %vm227, %v1629, %v1633
    %v1636 = vshrl.u32 %v1272, 16
    %v1638 = vrot.slane %v1636, 4
    %v1639 = vshll.u32 %v1272, 16
    %v1641 = vrot.slane %v1639, 5
    %v1642 = vor.u32 %v1638, %v1641
    %v1643 = vrot.slane %v1642, 4
    %v1645 = vshll.u32 %v1273, 16
    %v1647 = vrot.slane %v1645, 5
    %v1648 = vsel %vm227, %v1643, %v1647
    %v1649 = vshrl.u32 %v1273, 16
    %v1651 = vrot.slane %v1649, 4
    %v1652 = vor.u32 %v1651, %v1647
    %v1653 = vrot.slane %v1652, 4
    %v1655 = vshll.u32 %v1274, 16
    %v1657 = vrot.slane %v1655, 5
    %v1658 = vsel %vm227, %v1653, %v1657
    %v1659 = vunpack.c.l.b16 %v1288
    %v1660 = vunpack.c.l.b16 %v1298
    %v1661 = vunpack.c.l.b16 %v1312
    %v1662 = vunpack.c.l.b16 %v1322
    %v1663 = vunpack.c.l.b16 %v1336
    %v1664 = vunpack.c.l.b16 %v1346
    %v1665 = vunpack.c.l.b16 %v1360
    %v1666 = vunpack.c.l.b16 %v1370
    %v1667 = vunpack.c.l.b16 %v1384
    %v1668 = vunpack.c.l.b16 %v1394
    %v1669 = vunpack.c.l.b16 %v1408
    %v1670 = vunpack.c.l.b16 %v1418
    %v1671 = vunpack.c.l.b16 %v1432
    %v1672 = vunpack.c.l.b16 %v1442
    %v1673 = vunpack.c.l.b16 %v1456
    %v1674 = vunpack.c.l.b16 %v1466
    %v1675 = vunpack.c.l.b16 %v1480
    %v1676 = vunpack.c.l.b16 %v1490
    %v1677 = vunpack.c.l.b16 %v1504
    %v1678 = vunpack.c.l.b16 %v1514
    %v1679 = vunpack.c.l.b16 %v1528
    %v1680 = vunpack.c.l.b16 %v1538
    %v1681 = vunpack.c.l.b16 %v1552
    %v1682 = vunpack.c.l.b16 %v1562
    %v1683 = vunpack.c.l.b16 %v1576
    %v1684 = vunpack.c.l.b16 %v1586
    %v1685 = vunpack.c.l.b16 %v1600
    %v1686 = vunpack.c.l.b16 %v1610
    %v1687 = vunpack.c.l.b16 %v1624
    %v1688 = vunpack.c.l.b16 %v1634
    %v1689 = vunpack.c.l.b16 %v1648
    %v1690 = vunpack.c.l.b16 %v1658
    %v1691 = vpack.c.b16 %v1660, %v1659
    %v1692 = vpack.c.b16 %v1662, %v1661
    %v1693 = vpack.c.b16 %v1664, %v1663
    %v1694 = vpack.c.b16 %v1666, %v1665
    %v1695 = vpack.c.b16 %v1668, %v1667
    %v1696 = vpack.c.b16 %v1670, %v1669
    %v1697 = vpack.c.b16 %v1672, %v1671
    %v1698 = vpack.c.b16 %v1674, %v1673
    %v1699 = vpack.c.b16 %v1676, %v1675
    %v1700 = vpack.c.b16 %v1678, %v1677
    %v1701 = vpack.c.b16 %v1680, %v1679
    %v1702 = vpack.c.b16 %v1682, %v1681
    %v1703 = vpack.c.b16 %v1684, %v1683
    %v1704 = vpack.c.b16 %v1686, %v1685
    %v1705 = vpack.c.b16 %v1688, %v1687
    %v1706 = vpack.c.b16 %v1690, %v1689
    %1707 = vrot.lane.b32.xlu0 %v1691, 16
    %v1708 = vpop.permute.xlu0 %1707
    %1709 = vrot.lane.b32.xlu0 %v1692, 16
    %v1710 = vpop.permute.xlu0 %1709
    %1711 = vrot.lane.b32.xlu0 %v1693, 16
    %v1712 = vpop.permute.xlu0 %1711
    %1713 = vrot.lane.b32.xlu0 %v1694, 16
    %v1714 = vpop.permute.xlu0 %1713
    %1715 = vrot.lane.b32.xlu0 %v1695, 16
    %v1716 = vpop.permute.xlu0 %1715
    %1717 = vrot.lane.b32.xlu0 %v1696, 16
    %v1718 = vpop.permute.xlu0 %1717
    %1719 = vrot.lane.b32.xlu0 %v1697, 16
    %v1720 = vpop.permute.xlu0 %1719
    %1721 = vrot.lane.b32.xlu0 %v1698, 16
    %v1722 = vpop.permute.xlu0 %1721
    %1723 = vrot.lane.b32.xlu0 %v1699, 16
    %v1724 = vpop.permute.xlu0 %1723
    %1725 = vrot.lane.b32.xlu0 %v1700, 16
    %v1726 = vpop.permute.xlu0 %1725
    %1727 = vrot.lane.b32.xlu0 %v1701, 16
    %v1728 = vpop.permute.xlu0 %1727
    %1729 = vrot.lane.b32.xlu0 %v1702, 16
    %v1730 = vpop.permute.xlu0 %1729
    %1731 = vrot.lane.b32.xlu0 %v1703, 16
    %v1732 = vpop.permute.xlu0 %1731
    %1733 = vrot.lane.b32.xlu0 %v1704, 16
    %v1734 = vpop.permute.xlu0 %1733
    %1735 = vrot.lane.b32.xlu0 %v1705, 16
    %v1736 = vpop.permute.xlu0 %1735
    %1737 = vrot.lane.b32.xlu0 %v1706, 16
    %v1738 = vpop.permute.xlu0 %1737
    %vm1755 = vcmask 162944
    %1756 = vst.msk [vmem:[#allocation2] sm:$0xff] %vm1755, %v1708
    %1757 = vst.msk [vmem:[#allocation2 + $0x8] sm:$0xff] %vm1755, %v1710
    %1758 = vst.msk [vmem:[#allocation2 + $0x10] sm:$0xff] %vm1755, %v1712
    %1759 = vst.msk [vmem:[#allocation2 + $0x18] sm:$0xff] %vm1755, %v1714
    %1760 = vst.msk [vmem:[#allocation2 + $0x20] sm:$0xff] %vm1755, %v1716
    %1761 = vst.msk [vmem:[#allocation2 + $0x28] sm:$0xff] %vm1755, %v1718
    %1762 = vst.msk [vmem:[#allocation2 + $0x30] sm:$0xff] %vm1755, %v1720
    %1763 = vst.msk [vmem:[#allocation2 + $0x38] sm:$0xff] %vm1755, %v1722
    %1764 = vst.msk [vmem:[#allocation2 + $0x40] sm:$0xff] %vm1755, %v1724
    %1765 = vst.msk [vmem:[#allocation2 + $0x48] sm:$0xff] %vm1755, %v1726
    %1766 = vst.msk [vmem:[#allocation2 + $0x50] sm:$0xff] %vm1755, %v1728
    %1767 = vst.msk [vmem:[#allocation2 + $0x58] sm:$0xff] %vm1755, %v1730
    %1768 = vst.msk [vmem:[#allocation2 + $0x60] sm:$0xff] %vm1755, %v1732
    %1769 = vst.msk [vmem:[#allocation2 + $0x68] sm:$0xff] %vm1755, %v1734
    %1770 = vst.msk [vmem:[#allocation2 + $0x70] sm:$0xff] %vm1755, %v1736
    %1771 = vst.msk [vmem:[#allocation2 + $0x78] sm:$0xff] %vm1755, %v1738
    %v1772 = vld [vmem:[%s1049] sm:$0xe]
    %v1773 = vld [vmem:[%s1049 + $0x4] sm:$0xf]
    %v1774 = vld [vmem:[%s1049 + $0x8] sm:$0x1]
    %v1775 = vld [vmem:[%s1049 + $0xc] sm:$0xe]
    %v1776 = vld [vmem:[%s1049 + $0x10] sm:$0xf]
    %v1777 = vld [vmem:[%s1049 + $0x14] sm:$0x1]
    %v1778 = vld [vmem:[%s1049 + $0x18] sm:$0xe]
    %v1779 = vld [vmem:[%s1049 + $0x1c] sm:$0xf]
    %v1780 = vld [vmem:[%s1049 + $0x20] sm:$0x1]
    %v1781 = vld [vmem:[%s1049 + $0x24] sm:$0xe]
    %v1782 = vld [vmem:[%s1049 + $0x28] sm:$0xf]
    %v1783 = vld [vmem:[%s1049 + $0x2c] sm:$0x1]
    %v1784 = vld [vmem:[%s1049 + $0x30] sm:$0xe]
    %v1785 = vld [vmem:[%s1049 + $0x34] sm:$0xf]
    %v1786 = vld [vmem:[%s1049 + $0x38] sm:$0x1]
    %v1787 = vld [vmem:[%s1049 + $0x3c] sm:$0xe]
    %v1788 = vld [vmem:[%s1049 + $0x40] sm:$0xf]
    %v1789 = vld [vmem:[%s1049 + $0x44] sm:$0x1]
    %v1790 = vld [vmem:[%s1049 + $0x48] sm:$0xe]
    %v1791 = vld [vmem:[%s1049 + $0x4c] sm:$0xf]
    %v1792 = vld [vmem:[%s1049 + $0x50] sm:$0x1]
    %v1793 = vld [vmem:[%s1049 + $0x54] sm:$0xe]
    %v1794 = vld [vmem:[%s1049 + $0x58] sm:$0xf]
    %v1795 = vld [vmem:[%s1049 + $0x5c] sm:$0x1]
    %v1796 = vld [vmem:[%s1049 + $0x60] sm:$0xe]
    %v1797 = vld [vmem:[%s1049 + $0x64] sm:$0xf]
    %v1798 = vld [vmem:[%s1049 + $0x68] sm:$0x1]
    %v1799 = vld [vmem:[%s1049 + $0x6c] sm:$0xe]
    %v1800 = vld [vmem:[%s1049 + $0x70] sm:$0xf]
    %v1801 = vld [vmem:[%s1049 + $0x74] sm:$0x1]
    %v1802 = vld [vmem:[%s1049 + $0x78] sm:$0xe]
    %v1803 = vld [vmem:[%s1049 + $0x7c] sm:$0xf]
    %v1804 = vld [vmem:[%s1049 + $0x80] sm:$0x1]
    %v1805 = vld [vmem:[%s1049 + $0x84] sm:$0xe]
    %v1806 = vld [vmem:[%s1049 + $0x88] sm:$0xf]
    %v1807 = vld [vmem:[%s1049 + $0x8c] sm:$0x1]
    %v1808 = vld [vmem:[%s1049 + $0x90] sm:$0xe]
    %v1809 = vld [vmem:[%s1049 + $0x94] sm:$0xf]
    %v1810 = vld [vmem:[%s1049 + $0x98] sm:$0x1]
    %v1811 = vld [vmem:[%s1049 + $0x9c] sm:$0xe]
    %v1812 = vld [vmem:[%s1049 + $0xa0] sm:$0xf]
    %v1813 = vld [vmem:[%s1049 + $0xa4] sm:$0x1]
    %v1814 = vld [vmem:[%s1049 + $0xa8] sm:$0xe]
    %v1815 = vld [vmem:[%s1049 + $0xac] sm:$0xf]
    %v1816 = vld [vmem:[%s1049 + $0xb0] sm:$0x1]
    %v1817 = vld [vmem:[%s1049 + $0xb4] sm:$0xe]
    %v1818 = vld [vmem:[%s1049 + $0xb8] sm:$0xf]
    %v1819 = vld [vmem:[%s1049 + $0xbc] sm:$0x1]
    %v1868 = vrot.slane %v1772, 5
    %v1869 = vrot.slane %v1868, 4
    %v1870 = vrot.slane %v1773, 5
    %v1871 = vsel %vm823, %v1869, %v1870
    %v1872 = vrot.slane %v1870, 4
    %v1873 = vrot.slane %v1774, 5
    %v1874 = vsel %vm823, %v1872, %v1873
    %v1875 = vrot.slane %v1775, 5
    %v1876 = vrot.slane %v1875, 4
    %v1877 = vrot.slane %v1776, 5
    %v1878 = vsel %vm823, %v1876, %v1877
    %v1879 = vrot.slane %v1877, 4
    %v1880 = vrot.slane %v1777, 5
    %v1881 = vsel %vm823, %v1879, %v1880
    %v1882 = vrot.slane %v1778, 5
    %v1883 = vrot.slane %v1882, 4
    %v1884 = vrot.slane %v1779, 5
    %v1885 = vsel %vm823, %v1883, %v1884
    %v1886 = vrot.slane %v1884, 4
    %v1887 = vrot.slane %v1780, 5
    %v1888 = vsel %vm823, %v1886, %v1887
    %v1889 = vrot.slane %v1781, 5
    %v1890 = vrot.slane %v1889, 4
    %v1891 = vrot.slane %v1782, 5
    %v1892 = vsel %vm823, %v1890, %v1891
    %v1893 = vrot.slane %v1891, 4
    %v1894 = vrot.slane %v1783, 5
    %v1895 = vsel %vm823, %v1893, %v1894
    %v1896 = vrot.slane %v1784, 5
    %v1897 = vrot.slane %v1896, 4
    %v1898 = vrot.slane %v1785, 5
    %v1899 = vsel %vm823, %v1897, %v1898
    %v1900 = vrot.slane %v1898, 4
    %v1901 = vrot.slane %v1786, 5
    %v1902 = vsel %vm823, %v1900, %v1901
    %v1903 = vrot.slane %v1787, 5
    %v1904 = vrot.slane %v1903, 4
    %v1905 = vrot.slane %v1788, 5
    %v1906 = vsel %vm823, %v1904, %v1905
    %v1907 = vrot.slane %v1905, 4
    %v1908 = vrot.slane %v1789, 5
    %v1909 = vsel %vm823, %v1907, %v1908
    %v1910 = vrot.slane %v1790, 5
    %v1911 = vrot.slane %v1910, 4
    %v1912 = vrot.slane %v1791, 5
    %v1913 = vsel %vm823, %v1911, %v1912
    %v1914 = vrot.slane %v1912, 4
    %v1915 = vrot.slane %v1792, 5
    %v1916 = vsel %vm823, %v1914, %v1915
    %v1917 = vrot.slane %v1793, 5
    %v1918 = vrot.slane %v1917, 4
    %v1919 = vrot.slane %v1794, 5
    %v1920 = vsel %vm823, %v1918, %v1919
    %v1921 = vrot.slane %v1919, 4
    %v1922 = vrot.slane %v1795, 5
    %v1923 = vsel %vm823, %v1921, %v1922
    %v1924 = vrot.slane %v1796, 5
    %v1925 = vrot.slane %v1924, 4
    %v1926 = vrot.slane %v1797, 5
    %v1927 = vsel %vm823, %v1925, %v1926
    %v1928 = vrot.slane %v1926, 4
    %v1929 = vrot.slane %v1798, 5
    %v1930 = vsel %vm823, %v1928, %v1929
    %v1931 = vrot.slane %v1799, 5
    %v1932 = vrot.slane %v1931, 4
    %v1933 = vrot.slane %v1800, 5
    %v1934 = vsel %vm823, %v1932, %v1933
    %v1935 = vrot.slane %v1933, 4
    %v1936 = vrot.slane %v1801, 5
    %v1937 = vsel %vm823, %v1935, %v1936
    %v1938 = vrot.slane %v1802, 5
    %v1939 = vrot.slane %v1938, 4
    %v1940 = vrot.slane %v1803, 5
    %v1941 = vsel %vm823, %v1939, %v1940
    %v1942 = vrot.slane %v1940, 4
    %v1943 = vrot.slane %v1804, 5
    %v1944 = vsel %vm823, %v1942, %v1943
    %v1945 = vrot.slane %v1805, 5
    %v1946 = vrot.slane %v1945, 4
    %v1947 = vrot.slane %v1806, 5
    %v1948 = vsel %vm823, %v1946, %v1947
    %v1949 = vrot.slane %v1947, 4
    %v1950 = vrot.slane %v1807, 5
    %v1951 = vsel %vm823, %v1949, %v1950
    %v1952 = vrot.slane %v1808, 5
    %v1953 = vrot.slane %v1952, 4
    %v1954 = vrot.slane %v1809, 5
    %v1955 = vsel %vm823, %v1953, %v1954
    %v1956 = vrot.slane %v1954, 4
    %v1957 = vrot.slane %v1810, 5
    %v1958 = vsel %vm823, %v1956, %v1957
    %v1959 = vrot.slane %v1811, 5
    %v1960 = vrot.slane %v1959, 4
    %v1961 = vrot.slane %v1812, 5
    %v1962 = vsel %vm823, %v1960, %v1961
    %v1963 = vrot.slane %v1961, 4
    %v1964 = vrot.slane %v1813, 5
    %v1965 = vsel %vm823, %v1963, %v1964
    %v1966 = vrot.slane %v1814, 5
    %v1967 = vrot.slane %v1966, 4
    %v1968 = vrot.slane %v1815, 5
    %v1969 = vsel %vm823, %v1967, %v1968
    %v1970 = vrot.slane %v1968, 4
    %v1971 = vrot.slane %v1816, 5
    %v1972 = vsel %vm823, %v1970, %v1971
    %v1973 = vrot.slane %v1817, 5
    %v1974 = vrot.slane %v1973, 4
    %v1975 = vrot.slane %v1818, 5
    %v1976 = vsel %vm823, %v1974, %v1975
    %v1977 = vrot.slane %v1975, 4
    %v1978 = vrot.slane %v1819, 5
    %v1979 = vsel %vm823, %v1977, %v1978
    %v1980 = vunpack.c.l.b16 %v1871
    %v1981 = vunpack.c.l.b16 %v1874
    %v1982 = vunpack.c.l.b16 %v1878
    %v1983 = vunpack.c.l.b16 %v1881
    %v1984 = vunpack.c.l.b16 %v1885
    %v1985 = vunpack.c.l.b16 %v1888
    %v1986 = vunpack.c.l.b16 %v1892
    %v1987 = vunpack.c.l.b16 %v1895
    %v1988 = vunpack.c.l.b16 %v1899
    %v1989 = vunpack.c.l.b16 %v1902
    %v1990 = vunpack.c.l.b16 %v1906
    %v1991 = vunpack.c.l.b16 %v1909
    %v1992 = vunpack.c.l.b16 %v1913
    %v1993 = vunpack.c.l.b16 %v1916
    %v1994 = vunpack.c.l.b16 %v1920
    %v1995 = vunpack.c.l.b16 %v1923
    %v1996 = vunpack.c.l.b16 %v1927
    %v1997 = vunpack.c.l.b16 %v1930
    %v1998 = vunpack.c.l.b16 %v1934
    %v1999 = vunpack.c.l.b16 %v1937
    %v2000 = vunpack.c.l.b16 %v1941
    %v2001 = vunpack.c.l.b16 %v1944
    %v2002 = vunpack.c.l.b16 %v1948
    %v2003 = vunpack.c.l.b16 %v1951
    %v2004 = vunpack.c.l.b16 %v1955
    %v2005 = vunpack.c.l.b16 %v1958
    %v2006 = vunpack.c.l.b16 %v1962
    %v2007 = vunpack.c.l.b16 %v1965
    %v2008 = vunpack.c.l.b16 %v1969
    %v2009 = vunpack.c.l.b16 %v1972
    %v2010 = vunpack.c.l.b16 %v1976
    %v2011 = vunpack.c.l.b16 %v1979
    %v2012 = vpack.c.b16 %v1981, %v1980
    %v2013 = vpack.c.b16 %v1983, %v1982
    %v2014 = vpack.c.b16 %v1985, %v1984
    %v2015 = vpack.c.b16 %v1987, %v1986
    %v2016 = vpack.c.b16 %v1989, %v1988
    %v2017 = vpack.c.b16 %v1991, %v1990
    %v2018 = vpack.c.b16 %v1993, %v1992
    %v2019 = vpack.c.b16 %v1995, %v1994
    %v2020 = vpack.c.b16 %v1997, %v1996
    %v2021 = vpack.c.b16 %v1999, %v1998
    %v2022 = vpack.c.b16 %v2001, %v2000
    %v2023 = vpack.c.b16 %v2003, %v2002
    %v2024 = vpack.c.b16 %v2005, %v2004
    %v2025 = vpack.c.b16 %v2007, %v2006
    %v2026 = vpack.c.b16 %v2009, %v2008
    %v2027 = vpack.c.b16 %v2011, %v2010
    %2028 = vrot.lane.b32.xlu0 %v2012, 20
    %v2029 = vpop.permute.xlu0 %2028
    %2030 = vrot.lane.b32.xlu0 %v2013, 20
    %v2031 = vpop.permute.xlu0 %2030
    %2032 = vrot.lane.b32.xlu0 %v2014, 20
    %v2033 = vpop.permute.xlu0 %2032
    %2034 = vrot.lane.b32.xlu0 %v2015, 20
    %v2035 = vpop.permute.xlu0 %2034
    %2036 = vrot.lane.b32.xlu0 %v2016, 20
    %v2037 = vpop.permute.xlu0 %2036
    %2038 = vrot.lane.b32.xlu0 %v2017, 20
    %v2039 = vpop.permute.xlu0 %2038
    %2040 = vrot.lane.b32.xlu0 %v2018, 20
    %v2041 = vpop.permute.xlu0 %2040
    %2042 = vrot.lane.b32.xlu0 %v2019, 20
    %v2043 = vpop.permute.xlu0 %2042
    %2044 = vrot.lane.b32.xlu0 %v2020, 20
    %v2045 = vpop.permute.xlu0 %2044
    %2046 = vrot.lane.b32.xlu0 %v2021, 20
    %v2047 = vpop.permute.xlu0 %2046
    %2048 = vrot.lane.b32.xlu0 %v2022, 20
    %v2049 = vpop.permute.xlu0 %2048
    %2050 = vrot.lane.b32.xlu0 %v2023, 20
    %v2051 = vpop.permute.xlu0 %2050
    %2052 = vrot.lane.b32.xlu0 %v2024, 20
    %v2053 = vpop.permute.xlu0 %2052
    %2054 = vrot.lane.b32.xlu0 %v2025, 20
    %v2055 = vpop.permute.xlu0 %2054
    %2056 = vrot.lane.b32.xlu0 %v2026, 20
    %v2057 = vpop.permute.xlu0 %2056
    %2058 = vrot.lane.b32.xlu0 %v2027, 20
    %v2059 = vpop.permute.xlu0 %2058
    %vm2076 = vcmask 195744
    %2077 = vst.msk [vmem:[#allocation2] sm:$0xff] %vm2076, %v2029
    %2078 = vst.msk [vmem:[#allocation2 + $0x8] sm:$0xff] %vm2076, %v2031
    %2079 = vst.msk [vmem:[#allocation2 + $0x10] sm:$0xff] %vm2076, %v2033
    %2080 = vst.msk [vmem:[#allocation2 + $0x18] sm:$0xff] %vm2076, %v2035
    %2081 = vst.msk [vmem:[#allocation2 + $0x20] sm:$0xff] %vm2076, %v2037
    %2082 = vst.msk [vmem:[#allocation2 + $0x28] sm:$0xff] %vm2076, %v2039
    %2083 = vst.msk [vmem:[#allocation2 + $0x30] sm:$0xff] %vm2076, %v2041
    %2084 = vst.msk [vmem:[#allocation2 + $0x38] sm:$0xff] %vm2076, %v2043
    %2085 = vst.msk [vmem:[#allocation2 + $0x40] sm:$0xff] %vm2076, %v2045
    %2086 = vst.msk [vmem:[#allocation2 + $0x48] sm:$0xff] %vm2076, %v2047
    %2087 = vst.msk [vmem:[#allocation2 + $0x50] sm:$0xff] %vm2076, %v2049
    %2088 = vst.msk [vmem:[#allocation2 + $0x58] sm:$0xff] %vm2076, %v2051
    %2089 = vst.msk [vmem:[#allocation2 + $0x60] sm:$0xff] %vm2076, %v2053
    %2090 = vst.msk [vmem:[#allocation2 + $0x68] sm:$0xff] %vm2076, %v2055
    %2091 = vst.msk [vmem:[#allocation2 + $0x70] sm:$0xff] %vm2076, %v2057
    %2092 = vst.msk [vmem:[#allocation2 + $0x78] sm:$0xff] %vm2076, %v2059
    %s2093 = scalar_lea.vmem %s0, 24
    %v2094 = vld [vmem:[%s2093] sm:$0xf]
    %v2095 = vld [vmem:[%s2093 + $0x4] sm:$0xf]
    %v2096 = vld [vmem:[%s2093 + $0xc] sm:$0xf]
    %v2097 = vld [vmem:[%s2093 + $0x10] sm:$0xf]
    %v2098 = vld [vmem:[%s2093 + $0x18] sm:$0xf]
    %v2099 = vld [vmem:[%s2093 + $0x1c] sm:$0xf]
    %v2100 = vld [vmem:[%s2093 + $0x24] sm:$0xf]
    %v2101 = vld [vmem:[%s2093 + $0x28] sm:$0xf]
    %v2102 = vld [vmem:[%s2093 + $0x30] sm:$0xf]
    %v2103 = vld [vmem:[%s2093 + $0x34] sm:$0xf]
    %v2104 = vld [vmem:[%s2093 + $0x3c] sm:$0xf]
    %v2105 = vld [vmem:[%s2093 + $0x40] sm:$0xf]
    %v2106 = vld [vmem:[%s2093 + $0x48] sm:$0xf]
    %v2107 = vld [vmem:[%s2093 + $0x4c] sm:$0xf]
    %v2108 = vld [vmem:[%s2093 + $0x54] sm:$0xf]
    %v2109 = vld [vmem:[%s2093 + $0x58] sm:$0xf]
    %v2110 = vld [vmem:[%s2093 + $0x60] sm:$0xf]
    %v2111 = vld [vmem:[%s2093 + $0x64] sm:$0xf]
    %v2112 = vld [vmem:[%s2093 + $0x6c] sm:$0xf]
    %v2113 = vld [vmem:[%s2093 + $0x70] sm:$0xf]
    %v2114 = vld [vmem:[%s2093 + $0x78] sm:$0xf]
    %v2115 = vld [vmem:[%s2093 + $0x7c] sm:$0xf]
    %v2116 = vld [vmem:[%s2093 + $0x84] sm:$0xf]
    %v2117 = vld [vmem:[%s2093 + $0x88] sm:$0xf]
    %v2118 = vld [vmem:[%s2093 + $0x90] sm:$0xf]
    %v2119 = vld [vmem:[%s2093 + $0x94] sm:$0xf]
    %v2120 = vld [vmem:[%s2093 + $0x9c] sm:$0xf]
    %v2121 = vld [vmem:[%s2093 + $0xa0] sm:$0xf]
    %v2122 = vld [vmem:[%s2093 + $0xa8] sm:$0xf]
    %v2123 = vld [vmem:[%s2093 + $0xac] sm:$0xf]
    %v2124 = vld [vmem:[%s2093 + $0xb4] sm:$0xf]
    %v2125 = vld [vmem:[%s2093 + $0xb8] sm:$0xf]
    %v2158 = vunpack.c.l.b16 %v2094
    %v2159 = vunpack.c.l.b16 %v2095
    %v2160 = vunpack.c.l.b16 %v2096
    %v2161 = vunpack.c.l.b16 %v2097
    %v2162 = vunpack.c.l.b16 %v2098
    %v2163 = vunpack.c.l.b16 %v2099
    %v2164 = vunpack.c.l.b16 %v2100
    %v2165 = vunpack.c.l.b16 %v2101
    %v2166 = vunpack.c.l.b16 %v2102
    %v2167 = vunpack.c.l.b16 %v2103
    %v2168 = vunpack.c.l.b16 %v2104
    %v2169 = vunpack.c.l.b16 %v2105
    %v2170 = vunpack.c.l.b16 %v2106
    %v2171 = vunpack.c.l.b16 %v2107
    %v2172 = vunpack.c.l.b16 %v2108
    %v2173 = vunpack.c.l.b16 %v2109
    %v2174 = vunpack.c.l.b16 %v2110
    %v2175 = vunpack.c.l.b16 %v2111
    %v2176 = vunpack.c.l.b16 %v2112
    %v2177 = vunpack.c.l.b16 %v2113
    %v2178 = vunpack.c.l.b16 %v2114
    %v2179 = vunpack.c.l.b16 %v2115
    %v2180 = vunpack.c.l.b16 %v2116
    %v2181 = vunpack.c.l.b16 %v2117
    %v2182 = vunpack.c.l.b16 %v2118
    %v2183 = vunpack.c.l.b16 %v2119
    %v2184 = vunpack.c.l.b16 %v2120
    %v2185 = vunpack.c.l.b16 %v2121
    %v2186 = vunpack.c.l.b16 %v2122
    %v2187 = vunpack.c.l.b16 %v2123
    %v2188 = vunpack.c.l.b16 %v2124
    %v2189 = vunpack.c.l.b16 %v2125
    %v2190 = vpack.c.b16 %v2159, %v2158
    %v2191 = vpack.c.b16 %v2161, %v2160
    %v2192 = vpack.c.b16 %v2163, %v2162
    %v2193 = vpack.c.b16 %v2165, %v2164
    %v2194 = vpack.c.b16 %v2167, %v2166
    %v2195 = vpack.c.b16 %v2169, %v2168
    %v2196 = vpack.c.b16 %v2171, %v2170
    %v2197 = vpack.c.b16 %v2173, %v2172
    %v2198 = vpack.c.b16 %v2175, %v2174
    %v2199 = vpack.c.b16 %v2177, %v2176
    %v2200 = vpack.c.b16 %v2179, %v2178
    %v2201 = vpack.c.b16 %v2181, %v2180
    %v2202 = vpack.c.b16 %v2183, %v2182
    %v2203 = vpack.c.b16 %v2185, %v2184
    %v2204 = vpack.c.b16 %v2187, %v2186
    %v2205 = vpack.c.b16 %v2189, %v2188
    %2206 = vrot.lane.b32.xlu0 %v2190, 24
    %v2207 = vpop.permute.xlu0 %2206
    %2208 = vrot.lane.b32.xlu0 %v2191, 24
    %v2209 = vpop.permute.xlu0 %2208
    %2210 = vrot.lane.b32.xlu0 %v2192, 24
    %v2211 = vpop.permute.xlu0 %2210
    %2212 = vrot.lane.b32.xlu0 %v2193, 24
    %v2213 = vpop.permute.xlu0 %2212
    %2214 = vrot.lane.b32.xlu0 %v2194, 24
    %v2215 = vpop.permute.xlu0 %2214
    %2216 = vrot.lane.b32.xlu0 %v2195, 24
    %v2217 = vpop.permute.xlu0 %2216
    %2218 = vrot.lane.b32.xlu0 %v2196, 24
    %v2219 = vpop.permute.xlu0 %2218
    %2220 = vrot.lane.b32.xlu0 %v2197, 24
    %v2221 = vpop.permute.xlu0 %2220
    %2222 = vrot.lane.b32.xlu0 %v2198, 24
    %v2223 = vpop.permute.xlu0 %2222
    %2224 = vrot.lane.b32.xlu0 %v2199, 24
    %v2225 = vpop.permute.xlu0 %2224
    %2226 = vrot.lane.b32.xlu0 %v2200, 24
    %v2227 = vpop.permute.xlu0 %2226
    %2228 = vrot.lane.b32.xlu0 %v2201, 24
    %v2229 = vpop.permute.xlu0 %2228
    %2230 = vrot.lane.b32.xlu0 %v2202, 24
    %v2231 = vpop.permute.xlu0 %2230
    %2232 = vrot.lane.b32.xlu0 %v2203, 24
    %v2233 = vpop.permute.xlu0 %2232
    %2234 = vrot.lane.b32.xlu0 %v2204, 24
    %v2235 = vpop.permute.xlu0 %2234
    %2236 = vrot.lane.b32.xlu0 %v2205, 24
    %v2237 = vpop.permute.xlu0 %2236
    %vm2254 = vcmask 228544
    %2255 = vst.msk [vmem:[#allocation2] sm:$0xff] %vm2254, %v2207
    %2256 = vst.msk [vmem:[#allocation2 + $0x8] sm:$0xff] %vm2254, %v2209
    %2257 = vst.msk [vmem:[#allocation2 + $0x10] sm:$0xff] %vm2254, %v2211
    %2258 = vst.msk [vmem:[#allocation2 + $0x18] sm:$0xff] %vm2254, %v2213
    %2259 = vst.msk [vmem:[#allocation2 + $0x20] sm:$0xff] %vm2254, %v2215
    %2260 = vst.msk [vmem:[#allocation2 + $0x28] sm:$0xff] %vm2254, %v2217
    %2261 = vst.msk [vmem:[#allocation2 + $0x30] sm:$0xff] %vm2254, %v2219
    %2262 = vst.msk [vmem:[#allocation2 + $0x38] sm:$0xff] %vm2254, %v2221
    %2263 = vst.msk [vmem:[#allocation2 + $0x40] sm:$0xff] %vm2254, %v2223
    %2264 = vst.msk [vmem:[#allocation2 + $0x48] sm:$0xff] %vm2254, %v2225
    %2265 = vst.msk [vmem:[#allocation2 + $0x50] sm:$0xff] %vm2254, %v2227
    %2266 = vst.msk [vmem:[#allocation2 + $0x58] sm:$0xff] %vm2254, %v2229
    %2267 = vst.msk [vmem:[#allocation2 + $0x60] sm:$0xff] %vm2254, %v2231
    %2268 = vst.msk [vmem:[#allocation2 + $0x68] sm:$0xff] %vm2254, %v2233
    %2269 = vst.msk [vmem:[#allocation2 + $0x70] sm:$0xff] %vm2254, %v2235
    %2270 = vst.msk [vmem:[#allocation2 + $0x78] sm:$0xff] %vm2254, %v2237
    %v2271 = vld [vmem:[%s2093] sm:$0xf]
    %v2272 = vld [vmem:[%s2093 + $0x4] sm:$0xf]
    %v2273 = vld [vmem:[%s2093 + $0x8] sm:$0x1]
    %v2274 = vld [vmem:[%s2093 + $0xc] sm:$0xf]
    %v2275 = vld [vmem:[%s2093 + $0x10] sm:$0xf]
    %v2276 = vld [vmem:[%s2093 + $0x14] sm:$0x1]
    %v2277 = vld [vmem:[%s2093 + $0x18] sm:$0xf]
    %v2278 = vld [vmem:[%s2093 + $0x1c] sm:$0xf]
    %v2279 = vld [vmem:[%s2093 + $0x20] sm:$0x1]
    %v2280 = vld [vmem:[%s2093 + $0x24] sm:$0xf]
    %v2281 = vld [vmem:[%s2093 + $0x28] sm:$0xf]
    %v2282 = vld [vmem:[%s2093 + $0x2c] sm:$0x1]
    %v2283 = vld [vmem:[%s2093 + $0x30] sm:$0xf]
    %v2284 = vld [vmem:[%s2093 + $0x34] sm:$0xf]
    %v2285 = vld [vmem:[%s2093 + $0x38] sm:$0x1]
    %v2286 = vld [vmem:[%s2093 + $0x3c] sm:$0xf]
    %v2287 = vld [vmem:[%s2093 + $0x40] sm:$0xf]
    %v2288 = vld [vmem:[%s2093 + $0x44] sm:$0x1]
    %v2289 = vld [vmem:[%s2093 + $0x48] sm:$0xf]
    %v2290 = vld [vmem:[%s2093 + $0x4c] sm:$0xf]
    %v2291 = vld [vmem:[%s2093 + $0x50] sm:$0x1]
    %v2292 = vld [vmem:[%s2093 + $0x54] sm:$0xf]
    %v2293 = vld [vmem:[%s2093 + $0x58] sm:$0xf]
    %v2294 = vld [vmem:[%s2093 + $0x5c] sm:$0x1]
    %v2295 = vld [vmem:[%s2093 + $0x60] sm:$0xf]
    %v2296 = vld [vmem:[%s2093 + $0x64] sm:$0xf]
    %v2297 = vld [vmem:[%s2093 + $0x68] sm:$0x1]
    %v2298 = vld [vmem:[%s2093 + $0x6c] sm:$0xf]
    %v2299 = vld [vmem:[%s2093 + $0x70] sm:$0xf]
    %v2300 = vld [vmem:[%s2093 + $0x74] sm:$0x1]
    %v2301 = vld [vmem:[%s2093 + $0x78] sm:$0xf]
    %v2302 = vld [vmem:[%s2093 + $0x7c] sm:$0xf]
    %v2303 = vld [vmem:[%s2093 + $0x80] sm:$0x1]
    %v2304 = vld [vmem:[%s2093 + $0x84] sm:$0xf]
    %v2305 = vld [vmem:[%s2093 + $0x88] sm:$0xf]
    %v2306 = vld [vmem:[%s2093 + $0x8c] sm:$0x1]
    %v2307 = vld [vmem:[%s2093 + $0x90] sm:$0xf]
    %v2308 = vld [vmem:[%s2093 + $0x94] sm:$0xf]
    %v2309 = vld [vmem:[%s2093 + $0x98] sm:$0x1]
    %v2310 = vld [vmem:[%s2093 + $0x9c] sm:$0xf]
    %v2311 = vld [vmem:[%s2093 + $0xa0] sm:$0xf]
    %v2312 = vld [vmem:[%s2093 + $0xa4] sm:$0x1]
    %v2313 = vld [vmem:[%s2093 + $0xa8] sm:$0xf]
    %v2314 = vld [vmem:[%s2093 + $0xac] sm:$0xf]
    %v2315 = vld [vmem:[%s2093 + $0xb0] sm:$0x1]
    %v2316 = vld [vmem:[%s2093 + $0xb4] sm:$0xf]
    %v2317 = vld [vmem:[%s2093 + $0xb8] sm:$0xf]
    %v2318 = vld [vmem:[%s2093 + $0xbc] sm:$0x1]
    %v2320 = vshrl.u32 %v2271, 16
    %v2322 = vrot.slane %v2320, 4
    %v2323 = vshll.u32 %v2271, 16
    %v2325 = vrot.slane %v2323, 5
    %v2326 = vor.u32 %v2322, %v2325
    %v2327 = vrot.slane %v2326, 4
    %v2329 = vshll.u32 %v2272, 16
    %v2331 = vrot.slane %v2329, 5
    %v2332 = vsel %vm227, %v2327, %v2331
    %v2333 = vshrl.u32 %v2272, 16
    %v2335 = vrot.slane %v2333, 4
    %v2336 = vor.u32 %v2335, %v2331
    %v2337 = vrot.slane %v2336, 4
    %v2339 = vshll.u32 %v2273, 16
    %v2341 = vrot.slane %v2339, 5
    %v2342 = vsel %vm227, %v2337, %v2341
    %v2344 = vshrl.u32 %v2274, 16
    %v2346 = vrot.slane %v2344, 4
    %v2347 = vshll.u32 %v2274, 16
    %v2349 = vrot.slane %v2347, 5
    %v2350 = vor.u32 %v2346, %v2349
    %v2351 = vrot.slane %v2350, 4
    %v2353 = vshll.u32 %v2275, 16
    %v2355 = vrot.slane %v2353, 5
    %v2356 = vsel %vm227, %v2351, %v2355
    %v2357 = vshrl.u32 %v2275, 16
    %v2359 = vrot.slane %v2357, 4
    %v2360 = vor.u32 %v2359, %v2355
    %v2361 = vrot.slane %v2360, 4
    %v2363 = vshll.u32 %v2276, 16
    %v2365 = vrot.slane %v2363, 5
    %v2366 = vsel %vm227, %v2361, %v2365
    %v2368 = vshrl.u32 %v2277, 16
    %v2370 = vrot.slane %v2368, 4
    %v2371 = vshll.u32 %v2277, 16
    %v2373 = vrot.slane %v2371, 5
    %v2374 = vor.u32 %v2370, %v2373
    %v2375 = vrot.slane %v2374, 4
    %v2377 = vshll.u32 %v2278, 16
    %v2379 = vrot.slane %v2377, 5
    %v2380 = vsel %vm227, %v2375, %v2379
    %v2381 = vshrl.u32 %v2278, 16
    %v2383 = vrot.slane %v2381, 4
    %v2384 = vor.u32 %v2383, %v2379
    %v2385 = vrot.slane %v2384, 4
    %v2387 = vshll.u32 %v2279, 16
    %v2389 = vrot.slane %v2387, 5
    %v2390 = vsel %vm227, %v2385, %v2389
    %v2392 = vshrl.u32 %v2280, 16
    %v2394 = vrot.slane %v2392, 4
    %v2395 = vshll.u32 %v2280, 16
    %v2397 = vrot.slane %v2395, 5
    %v2398 = vor.u32 %v2394, %v2397
    %v2399 = vrot.slane %v2398, 4
    %v2401 = vshll.u32 %v2281, 16
    %v2403 = vrot.slane %v2401, 5
    %v2404 = vsel %vm227, %v2399, %v2403
    %v2405 = vshrl.u32 %v2281, 16
    %v2407 = vrot.slane %v2405, 4
    %v2408 = vor.u32 %v2407, %v2403
    %v2409 = vrot.slane %v2408, 4
    %v2411 = vshll.u32 %v2282, 16
    %v2413 = vrot.slane %v2411, 5
    %v2414 = vsel %vm227, %v2409, %v2413
    %v2416 = vshrl.u32 %v2283, 16
    %v2418 = vrot.slane %v2416, 4
    %v2419 = vshll.u32 %v2283, 16
    %v2421 = vrot.slane %v2419, 5
    %v2422 = vor.u32 %v2418, %v2421
    %v2423 = vrot.slane %v2422, 4
    %v2425 = vshll.u32 %v2284, 16
    %v2427 = vrot.slane %v2425, 5
    %v2428 = vsel %vm227, %v2423, %v2427
    %v2429 = vshrl.u32 %v2284, 16
    %v2431 = vrot.slane %v2429, 4
    %v2432 = vor.u32 %v2431, %v2427
    %v2433 = vrot.slane %v2432, 4
    %v2435 = vshll.u32 %v2285, 16
    %v2437 = vrot.slane %v2435, 5
    %v2438 = vsel %vm227, %v2433, %v2437
    %v2440 = vshrl.u32 %v2286, 16
    %v2442 = vrot.slane %v2440, 4
    %v2443 = vshll.u32 %v2286, 16
    %v2445 = vrot.slane %v2443, 5
    %v2446 = vor.u32 %v2442, %v2445
    %v2447 = vrot.slane %v2446, 4
    %v2449 = vshll.u32 %v2287, 16
    %v2451 = vrot.slane %v2449, 5
    %v2452 = vsel %vm227, %v2447, %v2451
    %v2453 = vshrl.u32 %v2287, 16
    %v2455 = vrot.slane %v2453, 4
    %v2456 = vor.u32 %v2455, %v2451
    %v2457 = vrot.slane %v2456, 4
    %v2459 = vshll.u32 %v2288, 16
    %v2461 = vrot.slane %v2459, 5
    %v2462 = vsel %vm227, %v2457, %v2461
    %v2464 = vshrl.u32 %v2289, 16
    %v2466 = vrot.slane %v2464, 4
    %v2467 = vshll.u32 %v2289, 16
    %v2469 = vrot.slane %v2467, 5
    %v2470 = vor.u32 %v2466, %v2469
    %v2471 = vrot.slane %v2470, 4
    %v2473 = vshll.u32 %v2290, 16
    %v2475 = vrot.slane %v2473, 5
    %v2476 = vsel %vm227, %v2471, %v2475
    %v2477 = vshrl.u32 %v2290, 16
    %v2479 = vrot.slane %v2477, 4
    %v2480 = vor.u32 %v2479, %v2475
    %v2481 = vrot.slane %v2480, 4
    %v2483 = vshll.u32 %v2291, 16
    %v2485 = vrot.slane %v2483, 5
    %v2486 = vsel %vm227, %v2481, %v2485
    %v2488 = vshrl.u32 %v2292, 16
    %v2490 = vrot.slane %v2488, 4
    %v2491 = vshll.u32 %v2292, 16
    %v2493 = vrot.slane %v2491, 5
    %v2494 = vor.u32 %v2490, %v2493
    %v2495 = vrot.slane %v2494, 4
    %v2497 = vshll.u32 %v2293, 16
    %v2499 = vrot.slane %v2497, 5
    %v2500 = vsel %vm227, %v2495, %v2499
    %v2501 = vshrl.u32 %v2293, 16
    %v2503 = vrot.slane %v2501, 4
    %v2504 = vor.u32 %v2503, %v2499
    %v2505 = vrot.slane %v2504, 4
    %v2507 = vshll.u32 %v2294, 16
    %v2509 = vrot.slane %v2507, 5
    %v2510 = vsel %vm227, %v2505, %v2509
    %v2512 = vshrl.u32 %v2295, 16
    %v2514 = vrot.slane %v2512, 4
    %v2515 = vshll.u32 %v2295, 16
    %v2517 = vrot.slane %v2515, 5
    %v2518 = vor.u32 %v2514, %v2517
    %v2519 = vrot.slane %v2518, 4
    %v2521 = vshll.u32 %v2296, 16
    %v2523 = vrot.slane %v2521, 5
    %v2524 = vsel %vm227, %v2519, %v2523
    %v2525 = vshrl.u32 %v2296, 16
    %v2527 = vrot.slane %v2525, 4
    %v2528 = vor.u32 %v2527, %v2523
    %v2529 = vrot.slane %v2528, 4
    %v2531 = vshll.u32 %v2297, 16
    %v2533 = vrot.slane %v2531, 5
    %v2534 = vsel %vm227, %v2529, %v2533
    %v2536 = vshrl.u32 %v2298, 16
    %v2538 = vrot.slane %v2536, 4
    %v2539 = vshll.u32 %v2298, 16
    %v2541 = vrot.slane %v2539, 5
    %v2542 = vor.u32 %v2538, %v2541
    %v2543 = vrot.slane %v2542, 4
    %v2545 = vshll.u32 %v2299, 16
    %v2547 = vrot.slane %v2545, 5
    %v2548 = vsel %vm227, %v2543, %v2547
    %v2549 = vshrl.u32 %v2299, 16
    %v2551 = vrot.slane %v2549, 4
    %v2552 = vor.u32 %v2551, %v2547
    %v2553 = vrot.slane %v2552, 4
    %v2555 = vshll.u32 %v2300, 16
    %v2557 = vrot.slane %v2555, 5
    %v2558 = vsel %vm227, %v2553, %v2557
    %v2560 = vshrl.u32 %v2301, 16
    %v2562 = vrot.slane %v2560, 4
    %v2563 = vshll.u32 %v2301, 16
    %v2565 = vrot.slane %v2563, 5
    %v2566 = vor.u32 %v2562, %v2565
    %v2567 = vrot.slane %v2566, 4
    %v2569 = vshll.u32 %v2302, 16
    %v2571 = vrot.slane %v2569, 5
    %v2572 = vsel %vm227, %v2567, %v2571
    %v2573 = vshrl.u32 %v2302, 16
    %v2575 = vrot.slane %v2573, 4
    %v2576 = vor.u32 %v2575, %v2571
    %v2577 = vrot.slane %v2576, 4
    %v2579 = vshll.u32 %v2303, 16
    %v2581 = vrot.slane %v2579, 5
    %v2582 = vsel %vm227, %v2577, %v2581
    %v2584 = vshrl.u32 %v2304, 16
    %v2586 = vrot.slane %v2584, 4
    %v2587 = vshll.u32 %v2304, 16
    %v2589 = vrot.slane %v2587, 5
    %v2590 = vor.u32 %v2586, %v2589
    %v2591 = vrot.slane %v2590, 4
    %v2593 = vshll.u32 %v2305, 16
    %v2595 = vrot.slane %v2593, 5
    %v2596 = vsel %vm227, %v2591, %v2595
    %v2597 = vshrl.u32 %v2305, 16
    %v2599 = vrot.slane %v2597, 4
    %v2600 = vor.u32 %v2599, %v2595
    %v2601 = vrot.slane %v2600, 4
    %v2603 = vshll.u32 %v2306, 16
    %v2605 = vrot.slane %v2603, 5
    %v2606 = vsel %vm227, %v2601, %v2605
    %v2608 = vshrl.u32 %v2307, 16
    %v2610 = vrot.slane %v2608, 4
    %v2611 = vshll.u32 %v2307, 16
    %v2613 = vrot.slane %v2611, 5
    %v2614 = vor.u32 %v2610, %v2613
    %v2615 = vrot.slane %v2614, 4
    %v2617 = vshll.u32 %v2308, 16
    %v2619 = vrot.slane %v2617, 5
    %v2620 = vsel %vm227, %v2615, %v2619
    %v2621 = vshrl.u32 %v2308, 16
    %v2623 = vrot.slane %v2621, 4
    %v2624 = vor.u32 %v2623, %v2619
    %v2625 = vrot.slane %v2624, 4
    %v2627 = vshll.u32 %v2309, 16
    %v2629 = vrot.slane %v2627, 5
    %v2630 = vsel %vm227, %v2625, %v2629
    %v2632 = vshrl.u32 %v2310, 16
    %v2634 = vrot.slane %v2632, 4
    %v2635 = vshll.u32 %v2310, 16
    %v2637 = vrot.slane %v2635, 5
    %v2638 = vor.u32 %v2634, %v2637
    %v2639 = vrot.slane %v2638, 4
    %v2641 = vshll.u32 %v2311, 16
    %v2643 = vrot.slane %v2641, 5
    %v2644 = vsel %vm227, %v2639, %v2643
    %v2645 = vshrl.u32 %v2311, 16
    %v2647 = vrot.slane %v2645, 4
    %v2648 = vor.u32 %v2647, %v2643
    %v2649 = vrot.slane %v2648, 4
    %v2651 = vshll.u32 %v2312, 16
    %v2653 = vrot.slane %v2651, 5
    %v2654 = vsel %vm227, %v2649, %v2653
    %v2656 = vshrl.u32 %v2313, 16
    %v2658 = vrot.slane %v2656, 4
    %v2659 = vshll.u32 %v2313, 16
    %v2661 = vrot.slane %v2659, 5
    %v2662 = vor.u32 %v2658, %v2661
    %v2663 = vrot.slane %v2662, 4
    %v2665 = vshll.u32 %v2314, 16
    %v2667 = vrot.slane %v2665, 5
    %v2668 = vsel %vm227, %v2663, %v2667
    %v2669 = vshrl.u32 %v2314, 16
    %v2671 = vrot.slane %v2669, 4
    %v2672 = vor.u32 %v2671, %v2667
    %v2673 = vrot.slane %v2672, 4
    %v2675 = vshll.u32 %v2315, 16
    %v2677 = vrot.slane %v2675, 5
    %v2678 = vsel %vm227, %v2673, %v2677
    %v2680 = vshrl.u32 %v2316, 16
    %v2682 = vrot.slane %v2680, 4
    %v2683 = vshll.u32 %v2316, 16
    %v2685 = vrot.slane %v2683, 5
    %v2686 = vor.u32 %v2682, %v2685
    %v2687 = vrot.slane %v2686, 4
    %v2689 = vshll.u32 %v2317, 16
    %v2691 = vrot.slane %v2689, 5
    %v2692 = vsel %vm227, %v2687, %v2691
    %v2693 = vshrl.u32 %v2317, 16
    %v2695 = vrot.slane %v2693, 4
    %v2696 = vor.u32 %v2695, %v2691
    %v2697 = vrot.slane %v2696, 4
    %v2699 = vshll.u32 %v2318, 16
    %v2701 = vrot.slane %v2699, 5
    %v2702 = vsel %vm227, %v2697, %v2701
    %v2703 = vunpack.c.l.b16 %v2332
    %v2704 = vunpack.c.l.b16 %v2342
    %v2705 = vunpack.c.l.b16 %v2356
    %v2706 = vunpack.c.l.b16 %v2366
    %v2707 = vunpack.c.l.b16 %v2380
    %v2708 = vunpack.c.l.b16 %v2390
    %v2709 = vunpack.c.l.b16 %v2404
    %v2710 = vunpack.c.l.b16 %v2414
    %v2711 = vunpack.c.l.b16 %v2428
    %v2712 = vunpack.c.l.b16 %v2438
    %v2713 = vunpack.c.l.b16 %v2452
    %v2714 = vunpack.c.l.b16 %v2462
    %v2715 = vunpack.c.l.b16 %v2476
    %v2716 = vunpack.c.l.b16 %v2486
    %v2717 = vunpack.c.l.b16 %v2500
    %v2718 = vunpack.c.l.b16 %v2510
    %v2719 = vunpack.c.l.b16 %v2524
    %v2720 = vunpack.c.l.b16 %v2534
    %v2721 = vunpack.c.l.b16 %v2548
    %v2722 = vunpack.c.l.b16 %v2558
    %v2723 = vunpack.c.l.b16 %v2572
    %v2724 = vunpack.c.l.b16 %v2582
    %v2725 = vunpack.c.l.b16 %v2596
    %v2726 = vunpack.c.l.b16 %v2606
    %v2727 = vunpack.c.l.b16 %v2620
    %v2728 = vunpack.c.l.b16 %v2630
    %v2729 = vunpack.c.l.b16 %v2644
    %v2730 = vunpack.c.l.b16 %v2654
    %v2731 = vunpack.c.l.b16 %v2668
    %v2732 = vunpack.c.l.b16 %v2678
    %v2733 = vunpack.c.l.b16 %v2692
    %v2734 = vunpack.c.l.b16 %v2702
    %v2735 = vpack.c.b16 %v2704, %v2703
    %v2736 = vpack.c.b16 %v2706, %v2705
    %v2737 = vpack.c.b16 %v2708, %v2707
    %v2738 = vpack.c.b16 %v2710, %v2709
    %v2739 = vpack.c.b16 %v2712, %v2711
    %v2740 = vpack.c.b16 %v2714, %v2713
    %v2741 = vpack.c.b16 %v2716, %v2715
    %v2742 = vpack.c.b16 %v2718, %v2717
    %v2743 = vpack.c.b16 %v2720, %v2719
    %v2744 = vpack.c.b16 %v2722, %v2721
    %v2745 = vpack.c.b16 %v2724, %v2723
    %v2746 = vpack.c.b16 %v2726, %v2725
    %v2747 = vpack.c.b16 %v2728, %v2727
    %v2748 = vpack.c.b16 %v2730, %v2729
    %v2749 = vpack.c.b16 %v2732, %v2731
    %v2750 = vpack.c.b16 %v2734, %v2733
    %2751 = vrot.lane.b32.xlu0 %v2735, 28
    %v2752 = vpop.permute.xlu0 %2751
    %2753 = vrot.lane.b32.xlu0 %v2736, 28
    %v2754 = vpop.permute.xlu0 %2753
    %2755 = vrot.lane.b32.xlu0 %v2737, 28
    %v2756 = vpop.permute.xlu0 %2755
    %2757 = vrot.lane.b32.xlu0 %v2738, 28
    %v2758 = vpop.permute.xlu0 %2757
    %2759 = vrot.lane.b32.xlu0 %v2739, 28
    %v2760 = vpop.permute.xlu0 %2759
    %2761 = vrot.lane.b32.xlu0 %v2740, 28
    %v2762 = vpop.permute.xlu0 %2761
    %2763 = vrot.lane.b32.xlu0 %v2741, 28
    %v2764 = vpop.permute.xlu0 %2763
    %2765 = vrot.lane.b32.xlu0 %v2742, 28
    %v2766 = vpop.permute.xlu0 %2765
    %2767 = vrot.lane.b32.xlu0 %v2743, 28
    %v2768 = vpop.permute.xlu0 %2767
    %2769 = vrot.lane.b32.xlu0 %v2744, 28
    %v2770 = vpop.permute.xlu0 %2769
    %2771 = vrot.lane.b32.xlu0 %v2745, 28
    %v2772 = vpop.permute.xlu0 %2771
    %2773 = vrot.lane.b32.xlu0 %v2746, 28
    %v2774 = vpop.permute.xlu0 %2773
    %2775 = vrot.lane.b32.xlu0 %v2747, 28
    %v2776 = vpop.permute.xlu0 %2775
    %2777 = vrot.lane.b32.xlu0 %v2748, 28
    %v2778 = vpop.permute.xlu0 %2777
    %2779 = vrot.lane.b32.xlu0 %v2749, 28
    %v2780 = vpop.permute.xlu0 %2779
    %2781 = vrot.lane.b32.xlu0 %v2750, 28
    %v2782 = vpop.permute.xlu0 %2781
    %vm2799 = vcmask 261344
    %2800 = vst.msk [vmem:[#allocation2] sm:$0xff] %vm2799, %v2752
    %2801 = vst.msk [vmem:[#allocation2 + $0x8] sm:$0xff] %vm2799, %v2754
    %2802 = vst.msk [vmem:[#allocation2 + $0x10] sm:$0xff] %vm2799, %v2756
    %2803 = vst.msk [vmem:[#allocation2 + $0x18] sm:$0xff] %vm2799, %v2758
    %2804 = vst.msk [vmem:[#allocation2 + $0x20] sm:$0xff] %vm2799, %v2760
    %2805 = vst.msk [vmem:[#allocation2 + $0x28] sm:$0xff] %vm2799, %v2762
    %2806 = vst.msk [vmem:[#allocation2 + $0x30] sm:$0xff] %vm2799, %v2764
    %2807 = vst.msk [vmem:[#allocation2 + $0x38] sm:$0xff] %vm2799, %v2766
    %2808 = vst.msk [vmem:[#allocation2 + $0x40] sm:$0xff] %vm2799, %v2768
    %2809 = vst.msk [vmem:[#allocation2 + $0x48] sm:$0xff] %vm2799, %v2770
    %2810 = vst.msk [vmem:[#allocation2 + $0x50] sm:$0xff] %vm2799, %v2772
    %2811 = vst.msk [vmem:[#allocation2 + $0x58] sm:$0xff] %vm2799, %v2774
    %2812 = vst.msk [vmem:[#allocation2 + $0x60] sm:$0xff] %vm2799, %v2776
    %2813 = vst.msk [vmem:[#allocation2 + $0x68] sm:$0xff] %vm2799, %v2778
    %2814 = vst.msk [vmem:[#allocation2 + $0x70] sm:$0xff] %vm2799, %v2780
    %2815 = vst.msk [vmem:[#allocation2 + $0x78] sm:$0xff] %vm2799, %v2782
    %v2816 = vld [vmem:[%s2093] sm:$0xe]
    %v2817 = vld [vmem:[%s2093 + $0x4] sm:$0xf]
    %v2818 = vld [vmem:[%s2093 + $0x8] sm:$0x1]
    %v2819 = vld [vmem:[%s2093 + $0xc] sm:$0xe]
    %v2820 = vld [vmem:[%s2093 + $0x10] sm:$0xf]
    %v2821 = vld [vmem:[%s2093 + $0x14] sm:$0x1]
    %v2822 = vld [vmem:[%s2093 + $0x18] sm:$0xe]
    %v2823 = vld [vmem:[%s2093 + $0x1c] sm:$0xf]
    %v2824 = vld [vmem:[%s2093 + $0x20] sm:$0x1]
    %v2825 = vld [vmem:[%s2093 + $0x24] sm:$0xe]
    %v2826 = vld [vmem:[%s2093 + $0x28] sm:$0xf]
    %v2827 = vld [vmem:[%s2093 + $0x2c] sm:$0x1]
    %v2828 = vld [vmem:[%s2093 + $0x30] sm:$0xe]
    %v2829 = vld [vmem:[%s2093 + $0x34] sm:$0xf]
    %v2830 = vld [vmem:[%s2093 + $0x38] sm:$0x1]
    %v2831 = vld [vmem:[%s2093 + $0x3c] sm:$0xe]
    %v2832 = vld [vmem:[%s2093 + $0x40] sm:$0xf]
    %v2833 = vld [vmem:[%s2093 + $0x44] sm:$0x1]
    %v2834 = vld [vmem:[%s2093 + $0x48] sm:$0xe]
    %v2835 = vld [vmem:[%s2093 + $0x4c] sm:$0xf]
    %v2836 = vld [vmem:[%s2093 + $0x50] sm:$0x1]
    %v2837 = vld [vmem:[%s2093 + $0x54] sm:$0xe]
    %v2838 = vld [vmem:[%s2093 + $0x58] sm:$0xf]
    %v2839 = vld [vmem:[%s2093 + $0x5c] sm:$0x1]
    %v2840 = vld [vmem:[%s2093 + $0x60] sm:$0xe]
    %v2841 = vld [vmem:[%s2093 + $0x64] sm:$0xf]
    %v2842 = vld [vmem:[%s2093 + $0x68] sm:$0x1]
    %v2843 = vld [vmem:[%s2093 + $0x6c] sm:$0xe]
    %v2844 = vld [vmem:[%s2093 + $0x70] sm:$0xf]
    %v2845 = vld [vmem:[%s2093 + $0x74] sm:$0x1]
    %v2846 = vld [vmem:[%s2093 + $0x78] sm:$0xe]
    %v2847 = vld [vmem:[%s2093 + $0x7c] sm:$0xf]
    %v2848 = vld [vmem:[%s2093 + $0x80] sm:$0x1]
    %v2849 = vld [vmem:[%s2093 + $0x84] sm:$0xe]
    %v2850 = vld [vmem:[%s2093 + $0x88] sm:$0xf]
    %v2851 = vld [vmem:[%s2093 + $0x8c] sm:$0x1]
    %v2852 = vld [vmem:[%s2093 + $0x90] sm:$0xe]
    %v2853 = vld [vmem:[%s2093 + $0x94] sm:$0xf]
    %v2854 = vld [vmem:[%s2093 + $0x98] sm:$0x1]
    %v2855 = vld [vmem:[%s2093 + $0x9c] sm:$0xe]
    %v2856 = vld [vmem:[%s2093 + $0xa0] sm:$0xf]
    %v2857 = vld [vmem:[%s2093 + $0xa4] sm:$0x1]
    %v2858 = vld [vmem:[%s2093 + $0xa8] sm:$0xe]
    %v2859 = vld [vmem:[%s2093 + $0xac] sm:$0xf]
    %v2860 = vld [vmem:[%s2093 + $0xb0] sm:$0x1]
    %v2861 = vld [vmem:[%s2093 + $0xb4] sm:$0xe]
    %v2862 = vld [vmem:[%s2093 + $0xb8] sm:$0xf]
    %v2863 = vld [vmem:[%s2093 + $0xbc] sm:$0x1]
    %v2912 = vrot.slane %v2816, 5
    %v2913 = vrot.slane %v2912, 4
    %v2914 = vrot.slane %v2817, 5
    %v2915 = vsel %vm823, %v2913, %v2914
    %v2916 = vrot.slane %v2914, 4
    %v2917 = vrot.slane %v2818, 5
    %v2918 = vsel %vm823, %v2916, %v2917
    %v2919 = vrot.slane %v2819, 5
    %v2920 = vrot.slane %v2919, 4
    %v2921 = vrot.slane %v2820, 5
    %v2922 = vsel %vm823, %v2920, %v2921
    %v2923 = vrot.slane %v2921, 4
    %v2924 = vrot.slane %v2821, 5
    %v2925 = vsel %vm823, %v2923, %v2924
    %v2926 = vrot.slane %v2822, 5
    %v2927 = vrot.slane %v2926, 4
    %v2928 = vrot.slane %v2823, 5
    %v2929 = vsel %vm823, %v2927, %v2928
    %v2930 = vrot.slane %v2928, 4
    %v2931 = vrot.slane %v2824, 5
    %v2932 = vsel %vm823, %v2930, %v2931
    %v2933 = vrot.slane %v2825, 5
    %v2934 = vrot.slane %v2933, 4
    %v2935 = vrot.slane %v2826, 5
    %v2936 = vsel %vm823, %v2934, %v2935
    %v2937 = vrot.slane %v2935, 4
    %v2938 = vrot.slane %v2827, 5
    %v2939 = vsel %vm823, %v2937, %v2938
    %v2940 = vrot.slane %v2828, 5
    %v2941 = vrot.slane %v2940, 4
    %v2942 = vrot.slane %v2829, 5
    %v2943 = vsel %vm823, %v2941, %v2942
    %v2944 = vrot.slane %v2942, 4
    %v2945 = vrot.slane %v2830, 5
    %v2946 = vsel %vm823, %v2944, %v2945
    %v2947 = vrot.slane %v2831, 5
    %v2948 = vrot.slane %v2947, 4
    %v2949 = vrot.slane %v2832, 5
    %v2950 = vsel %vm823, %v2948, %v2949
    %v2951 = vrot.slane %v2949, 4
    %v2952 = vrot.slane %v2833, 5
    %v2953 = vsel %vm823, %v2951, %v2952
    %v2954 = vrot.slane %v2834, 5
    %v2955 = vrot.slane %v2954, 4
    %v2956 = vrot.slane %v2835, 5
    %v2957 = vsel %vm823, %v2955, %v2956
    %v2958 = vrot.slane %v2956, 4
    %v2959 = vrot.slane %v2836, 5
    %v2960 = vsel %vm823, %v2958, %v2959
    %v2961 = vrot.slane %v2837, 5
    %v2962 = vrot.slane %v2961, 4
    %v2963 = vrot.slane %v2838, 5
    %v2964 = vsel %vm823, %v2962, %v2963
    %v2965 = vrot.slane %v2963, 4
    %v2966 = vrot.slane %v2839, 5
    %v2967 = vsel %vm823, %v2965, %v2966
    %v2968 = vrot.slane %v2840, 5
    %v2969 = vrot.slane %v2968, 4
    %v2970 = vrot.slane %v2841, 5
    %v2971 = vsel %vm823, %v2969, %v2970
    %v2972 = vrot.slane %v2970, 4
    %v2973 = vrot.slane %v2842, 5
    %v2974 = vsel %vm823, %v2972, %v2973
    %v2975 = vrot.slane %v2843, 5
    %v2976 = vrot.slane %v2975, 4
    %v2977 = vrot.slane %v2844, 5
    %v2978 = vsel %vm823, %v2976, %v2977
    %v2979 = vrot.slane %v2977, 4
    %v2980 = vrot.slane %v2845, 5
    %v2981 = vsel %vm823, %v2979, %v2980
    %v2982 = vrot.slane %v2846, 5
    %v2983 = vrot.slane %v2982, 4
    %v2984 = vrot.slane %v2847, 5
    %v2985 = vsel %vm823, %v2983, %v2984
    %v2986 = vrot.slane %v2984, 4
    %v2987 = vrot.slane %v2848, 5
    %v2988 = vsel %vm823, %v2986, %v2987
    %v2989 = vrot.slane %v2849, 5
    %v2990 = vrot.slane %v2989, 4
    %v2991 = vrot.slane %v2850, 5
    %v2992 = vsel %vm823, %v2990, %v2991
    %v2993 = vrot.slane %v2991, 4
    %v2994 = vrot.slane %v2851, 5
    %v2995 = vsel %vm823, %v2993, %v2994
    %v2996 = vrot.slane %v2852, 5
    %v2997 = vrot.slane %v2996, 4
    %v2998 = vrot.slane %v2853, 5
    %v2999 = vsel %vm823, %v2997, %v2998
    %v3000 = vrot.slane %v2998, 4
    %v3001 = vrot.slane %v2854, 5
    %v3002 = vsel %vm823, %v3000, %v3001
    %v3003 = vrot.slane %v2855, 5
    %v3004 = vrot.slane %v3003, 4
    %v3005 = vrot.slane %v2856, 5
    %v3006 = vsel %vm823, %v3004, %v3005
    %v3007 = vrot.slane %v3005, 4
    %v3008 = vrot.slane %v2857, 5
    %v3009 = vsel %vm823, %v3007, %v3008
    %v3010 = vrot.slane %v2858, 5
    %v3011 = vrot.slane %v3010, 4
    %v3012 = vrot.slane %v2859, 5
    %v3013 = vsel %vm823, %v3011, %v3012
    %v3014 = vrot.slane %v3012, 4
    %v3015 = vrot.slane %v2860, 5
    %v3016 = vsel %vm823, %v3014, %v3015
    %v3017 = vrot.slane %v2861, 5
    %v3018 = vrot.slane %v3017, 4
    %v3019 = vrot.slane %v2862, 5
    %v3020 = vsel %vm823, %v3018, %v3019
    %v3021 = vrot.slane %v3019, 4
    %v3022 = vrot.slane %v2863, 5
    %v3023 = vsel %vm823, %v3021, %v3022
    %v3024 = vunpack.c.l.b16 %v2915
    %v3025 = vunpack.c.l.b16 %v2918
    %v3026 = vunpack.c.l.b16 %v2922
    %v3027 = vunpack.c.l.b16 %v2925
    %v3028 = vunpack.c.l.b16 %v2929
    %v3029 = vunpack.c.l.b16 %v2932
    %v3030 = vunpack.c.l.b16 %v2936
    %v3031 = vunpack.c.l.b16 %v2939
    %v3032 = vunpack.c.l.b16 %v2943
    %v3033 = vunpack.c.l.b16 %v2946
    %v3034 = vunpack.c.l.b16 %v2950
    %v3035 = vunpack.c.l.b16 %v2953
    %v3036 = vunpack.c.l.b16 %v2957
    %v3037 = vunpack.c.l.b16 %v2960
    %v3038 = vunpack.c.l.b16 %v2964
    %v3039 = vunpack.c.l.b16 %v2967
    %v3040 = vunpack.c.l.b16 %v2971
    %v3041 = vunpack.c.l.b16 %v2974
    %v3042 = vunpack.c.l.b16 %v2978
    %v3043 = vunpack.c.l.b16 %v2981
    %v3044 = vunpack.c.l.b16 %v2985
    %v3045 = vunpack.c.l.b16 %v2988
    %v3046 = vunpack.c.l.b16 %v2992
    %v3047 = vunpack.c.l.b16 %v2995
    %v3048 = vunpack.c.l.b16 %v2999
    %v3049 = vunpack.c.l.b16 %v3002
    %v3050 = vunpack.c.l.b16 %v3006
    %v3051 = vunpack.c.l.b16 %v3009
    %v3052 = vunpack.c.l.b16 %v3013
    %v3053 = vunpack.c.l.b16 %v3016
    %v3054 = vunpack.c.l.b16 %v3020
    %v3055 = vunpack.c.l.b16 %v3023
    %v3056 = vpack.c.b16 %v3025, %v3024
    %v3057 = vpack.c.b16 %v3027, %v3026
    %v3058 = vpack.c.b16 %v3029, %v3028
    %v3059 = vpack.c.b16 %v3031, %v3030
    %v3060 = vpack.c.b16 %v3033, %v3032
    %v3061 = vpack.c.b16 %v3035, %v3034
    %v3062 = vpack.c.b16 %v3037, %v3036
    %v3063 = vpack.c.b16 %v3039, %v3038
    %v3064 = vpack.c.b16 %v3041, %v3040
    %v3065 = vpack.c.b16 %v3043, %v3042
    %v3066 = vpack.c.b16 %v3045, %v3044
    %v3067 = vpack.c.b16 %v3047, %v3046
    %v3068 = vpack.c.b16 %v3049, %v3048
    %v3069 = vpack.c.b16 %v3051, %v3050
    %v3070 = vpack.c.b16 %v3053, %v3052
    %v3071 = vpack.c.b16 %v3055, %v3054
    %3072 = vrot.lane.b32.xlu0 %v3056, 32
    %v3073 = vpop.permute.xlu0 %3072
    %3074 = vrot.lane.b32.xlu0 %v3057, 32
    %v3075 = vpop.permute.xlu0 %3074
    %3076 = vrot.lane.b32.xlu0 %v3058, 32
    %v3077 = vpop.permute.xlu0 %3076
    %3078 = vrot.lane.b32.xlu0 %v3059, 32
    %v3079 = vpop.permute.xlu0 %3078
    %3080 = vrot.lane.b32.xlu0 %v3060, 32
    %v3081 = vpop.permute.xlu0 %3080
    %3082 = vrot.lane.b32.xlu0 %v3061, 32
    %v3083 = vpop.permute.xlu0 %3082
    %3084 = vrot.lane.b32.xlu0 %v3062, 32
    %v3085 = vpop.permute.xlu0 %3084
    %3086 = vrot.lane.b32.xlu0 %v3063, 32
    %v3087 = vpop.permute.xlu0 %3086
    %3088 = vrot.lane.b32.xlu0 %v3064, 32
    %v3089 = vpop.permute.xlu0 %3088
    %3090 = vrot.lane.b32.xlu0 %v3065, 32
    %v3091 = vpop.permute.xlu0 %3090
    %3092 = vrot.lane.b32.xlu0 %v3066, 32
    %v3093 = vpop.permute.xlu0 %3092
    %3094 = vrot.lane.b32.xlu0 %v3067, 32
    %v3095 = vpop.permute.xlu0 %3094
    %3096 = vrot.lane.b32.xlu0 %v3068, 32
    %v3097 = vpop.permute.xlu0 %3096
    %3098 = vrot.lane.b32.xlu0 %v3069, 32
    %v3099 = vpop.permute.xlu0 %3098
    %3100 = vrot.lane.b32.xlu0 %v3070, 32
    %v3101 = vpop.permute.xlu0 %3100
    %3102 = vrot.lane.b32.xlu0 %v3071, 32
    %v3103 = vpop.permute.xlu0 %3102
    %vm3120 = vcmask 294144
    %3121 = vst.msk [vmem:[#allocation2] sm:$0xff] %vm3120, %v3073
    %3122 = vst.msk [vmem:[#allocation2 + $0x8] sm:$0xff] %vm3120, %v3075
    %3123 = vst.msk [vmem:[#allocation2 + $0x10] sm:$0xff] %vm3120, %v3077
    %3124 = vst.msk [vmem:[#allocation2 + $0x18] sm:$0xff] %vm3120, %v3079
    %3125 = vst.msk [vmem:[#allocation2 + $0x20] sm:$0xff] %vm3120, %v3081
    %3126 = vst.msk [vmem:[#allocation2 + $0x28] sm:$0xff] %vm3120, %v3083
    %3127 = vst.msk [vmem:[#allocation2 + $0x30] sm:$0xff] %vm3120, %v3085
    %3128 = vst.msk [vmem:[#allocation2 + $0x38] sm:$0xff] %vm3120, %v3087
    %3129 = vst.msk [vmem:[#allocation2 + $0x40] sm:$0xff] %vm3120, %v3089
    %3130 = vst.msk [vmem:[#allocation2 + $0x48] sm:$0xff] %vm3120, %v3091
    %3131 = vst.msk [vmem:[#allocation2 + $0x50] sm:$0xff] %vm3120, %v3093
    %3132 = vst.msk [vmem:[#allocation2 + $0x58] sm:$0xff] %vm3120, %v3095
    %3133 = vst.msk [vmem:[#allocation2 + $0x60] sm:$0xff] %vm3120, %v3097
    %3134 = vst.msk [vmem:[#allocation2 + $0x68] sm:$0xff] %vm3120, %v3099
    %3135 = vst.msk [vmem:[#allocation2 + $0x70] sm:$0xff] %vm3120, %v3101
    %3136 = vst.msk [vmem:[#allocation2 + $0x78] sm:$0xff] %vm3120, %v3103
    %v3137 = vld [vmem:[#allocation2] sm:$0xff]
    %v3138 = vld [vmem:[#allocation2 + $0x8] sm:$0xff]
    %v3139 = vld [vmem:[#allocation2 + $0x10] sm:$0xff]
    %v3140 = vld [vmem:[#allocation2 + $0x18] sm:$0xff]
    %v3141 = vld [vmem:[#allocation2 + $0x20] sm:$0xff]
    %v3142 = vld [vmem:[#allocation2 + $0x28] sm:$0xff]
    %v3143 = vld [vmem:[#allocation2 + $0x30] sm:$0xff]
    %v3144 = vld [vmem:[#allocation2 + $0x38] sm:$0xff]
    %v3145 = vld [vmem:[#allocation2 + $0x40] sm:$0xff]
    %v3146 = vld [vmem:[#allocation2 + $0x48] sm:$0xff]
    %v3147 = vld [vmem:[#allocation2 + $0x50] sm:$0xff]
    %v3148 = vld [vmem:[#allocation2 + $0x58] sm:$0xff]
    %v3149 = vld [vmem:[#allocation2 + $0x60] sm:$0xff]
    %v3150 = vld [vmem:[#allocation2 + $0x68] sm:$0xff]
    %v3151 = vld [vmem:[#allocation2 + $0x70] sm:$0xff]
    %v3152 = vld [vmem:[#allocation2 + $0x78] sm:$0xff]
    %v3153 = vld [vmem:[%s1] sm:$0xf]
    %v3154 = vld [vmem:[%s1 + $0x4] sm:$0xf]
    %v3155 = vld [vmem:[%s1 + $0x8] sm:$0xf]
    %v3156 = vld [vmem:[%s1 + $0xc] sm:$0xf]
    %v3157 = vld [vmem:[%s1 + $0x10] sm:$0x3]
    %v3163 = vunpack.c.l.b16 %v3153
    %v3164 = vunpack.c.l.b16 %v3154
    %v3165 = vunpack.c.l.b16 %v3155
    %v3166 = vunpack.c.l.b16 %v3156
    %v3167 = vunpack.c.l.b16 %v3157
    %v3168 = vpack.c.b16 %v3164, %v3163
    %v3169 = vpack.c.b16 %v3166, %v3165
    %v3170 = vpack.c.b16 %v3167, %v3167
    %vm3173 = vcmask 293888
    %v3175 = vsel %vm3173, %v3137, 0
    %v3178 = vsel %vm3173, %v3138, 0
    %v3181 = vsel %vm3173, %v3139, 0
    %v3184 = vsel %vm3173, %v3140, 0
    %v3187 = vsel %vm3173, %v3141, 0
    %v3190 = vsel %vm3173, %v3142, 0
    %v3193 = vsel %vm3173, %v3143, 0
    %v3196 = vsel %vm3173, %v3144, 0
    %v3199 = vsel %vm3173, %v3145, 0
    %v3202 = vsel %vm3173, %v3146, 0
    %v3205 = vsel %vm3173, %v3147, 0
    %v3208 = vsel %vm3173, %v3148, 0
    %v3211 = vsel %vm3173, %v3149, 0
    %v3214 = vsel %vm3173, %v3150, 0
    %v3217 = vsel %vm3173, %v3151, 0
    %v3220 = vsel %vm3173, %v3152, 0
    %vm3222 = vcmask 1041408
    %v3224 = vsel %vm3222, %v3170, 0
    %3226 = vmatprep.subr.bf16.mxu0 0
    %3227 = vmatpush1.bf16.msra.mxu0 %v3168
    %3228 = vmatprep.subr.bf16.mxu0 0
    %3229 = vmatpush1.bf16.msra.mxu0 %v3169
    %3230 = vmatprep.subr.bf16.mxu0 0
    %3231 = vmatpush1.bf16.msra.mxu0 %v3224
    %3232 = vmatprep.subr.bf16.mxu0 0
    %3233 = vmatpush1.bf16.msra.mxu0 0
    %3234 = vmatprep.subr.bf16.mxu0 0
    %3235 = vmatpush1.bf16.msra.mxu0 0
    %3236 = vmatprep.subr.bf16.mxu0 0
    %3237 = vmatpush1.bf16.msra.mxu0 0
    %3238 = vmatprep.subr.bf16.mxu0 0
    %3239 = vmatpush1.bf16.msra.mxu0 0
    %3240 = vmatprep.subr.bf16.mxu0 0
    %3241 = vmatpush1.bf16.msra.mxu0 0
    %3242 = vmatprep.subr.bf16.mxu0 0
    %3243 = vmatpush1.bf16.msra.mxu0 0
    %3244 = vmatprep.subr.bf16.mxu0 0
    %3245 = vmatpush1.bf16.msra.mxu0 0
    %3246 = vmatprep.subr.bf16.mxu0 0
    %3247 = vmatpush1.bf16.msra.mxu0 0
    %3248 = vmatprep.subr.bf16.mxu0 0
    %3249 = vmatpush1.bf16.msra.mxu0 0
    %3250 = vmatprep.subr.bf16.mxu0 0
    %3251 = vmatpush1.bf16.msra.mxu0 0
    %3252 = vmatprep.subr.bf16.mxu0 0
    %3253 = vmatpush1.bf16.msra.mxu0 0
    %3254 = vmatprep.subr.bf16.mxu0 0
    %3255 = vmatpush1.bf16.msra.mxu0 0
    %3256 = vmatprep.subr.bf16.mxu0 0
    %3257 = vmatpush1.bf16.msra.mxu0 0
    %3258 = vmatprep.mubr.bf16.mxu0 0
    %3259 = vmatmul.mubr.bf16.gmra.mrb[0].mxu0 %v3175
    %v3260 = vpop.f32.mrb[0].mxu0
    %v3261 = vadd.f32 0.0, %v3260
    %v3262 = vpop.f32.mrb[0].mxu0
    %v3263 = vpop.f32.mrb[0].mxu0
    %v3264 = vadd.f32 0.0, %v3263
    %v3265 = vpop.f32.mrb[0].mxu0
    %3266 = vmatprep.mubr.bf16.mxu0 0
    %3267 = vmatmul.mubr.bf16.gmra.mrb[0].mxu0 %v3178
    %v3268 = vpop.f32.mrb[0].mxu0
    %v3269 = vadd.f32 0.0, %v3268
    %v3270 = vpop.f32.mrb[0].mxu0
    %v3271 = vpop.f32.mrb[0].mxu0
    %v3272 = vadd.f32 0.0, %v3271
    %v3273 = vpop.f32.mrb[0].mxu0
    %3274 = vmatprep.mubr.bf16.mxu0 0
    %3275 = vmatmul.mubr.bf16.gmra.mrb[0].mxu0 %v3181
    %v3276 = vpop.f32.mrb[0].mxu0
    %v3277 = vadd.f32 0.0, %v3276
    %v3278 = vpop.f32.mrb[0].mxu0
    %v3279 = vpop.f32.mrb[0].mxu0
    %v3280 = vadd.f32 0.0, %v3279
    %v3281 = vpop.f32.mrb[0].mxu0
    %3282 = vmatprep.mubr.bf16.mxu0 0
    %3283 = vmatmul.mubr.bf16.gmra.mrb[0].mxu0 %v3184
    %v3284 = vpop.f32.mrb[0].mxu0
    %v3285 = vadd.f32 0.0, %v3284
    %v3286 = vpop.f32.mrb[0].mxu0
    %v3287 = vpop.f32.mrb[0].mxu0
    %v3288 = vadd.f32 0.0, %v3287
    %v3289 = vpop.f32.mrb[0].mxu0
    %3290 = vmatprep.mubr.bf16.mxu0 0
    %3291 = vmatmul.mubr.bf16.gmra.mrb[0].mxu0 %v3187
    %v3292 = vpop.f32.mrb[0].mxu0
    %v3293 = vadd.f32 0.0, %v3292
    %v3294 = vpop.f32.mrb[0].mxu0
    %v3295 = vpop.f32.mrb[0].mxu0
    %v3296 = vadd.f32 0.0, %v3295
    %v3297 = vpop.f32.mrb[0].mxu0
    %3298 = vmatprep.mubr.bf16.mxu0 0
    %3299 = vmatmul.mubr.bf16.gmra.mrb[0].mxu0 %v3190
    %v3300 = vpop.f32.mrb[0].mxu0
    %v3301 = vadd.f32 0.0, %v3300
    %v3302 = vpop.f32.mrb[0].mxu0
    %v3303 = vpop.f32.mrb[0].mxu0
    %v3304 = vadd.f32 0.0, %v3303
    %v3305 = vpop.f32.mrb[0].mxu0
    %3306 = vmatprep.mubr.bf16.mxu0 0
    %3307 = vmatmul.mubr.bf16.gmra.mrb[0].mxu0 %v3193
    %v3308 = vpop.f32.mrb[0].mxu0
    %v3309 = vadd.f32 0.0, %v3308
    %v3310 = vpop.f32.mrb[0].mxu0
    %v3311 = vpop.f32.mrb[0].mxu0
    %v3312 = vadd.f32 0.0, %v3311
    %v3313 = vpop.f32.mrb[0].mxu0
    %3314 = vmatprep.mubr.bf16.mxu0 0
    %3315 = vmatmul.mubr.bf16.gmra.mrb[0].mxu0 %v3196
    %v3316 = vpop.f32.mrb[0].mxu0
    %v3317 = vadd.f32 0.0, %v3316
    %v3318 = vpop.f32.mrb[0].mxu0
    %v3319 = vpop.f32.mrb[0].mxu0
    %v3320 = vadd.f32 0.0, %v3319
    %v3321 = vpop.f32.mrb[0].mxu0
    %3322 = vmatprep.mubr.bf16.mxu0 0
    %3323 = vmatmul.mubr.bf16.gmra.mrb[0].mxu0 %v3199
    %v3324 = vpop.f32.mrb[0].mxu0
    %v3325 = vadd.f32 0.0, %v3324
    %v3326 = vpop.f32.mrb[0].mxu0
    %v3327 = vpop.f32.mrb[0].mxu0
    %v3328 = vadd.f32 0.0, %v3327
    %v3329 = vpop.f32.mrb[0].mxu0
    %3330 = vmatprep.mubr.bf16.mxu0 0
    %3331 = vmatmul.mubr.bf16.gmra.mrb[0].mxu0 %v3202
    %v3332 = vpop.f32.mrb[0].mxu0
    %v3333 = vadd.f32 0.0, %v3332
    %v3334 = vpop.f32.mrb[0].mxu0
    %v3335 = vpop.f32.mrb[0].mxu0
    %v3336 = vadd.f32 0.0, %v3335
    %v3337 = vpop.f32.mrb[0].mxu0
    %3338 = vmatprep.mubr.bf16.mxu0 0
    %3339 = vmatmul.mubr.bf16.gmra.mrb[0].mxu0 %v3205
    %v3340 = vpop.f32.mrb[0].mxu0
    %v3341 = vadd.f32 0.0, %v3340
    %v3342 = vpop.f32.mrb[0].mxu0
    %v3343 = vpop.f32.mrb[0].mxu0
    %v3344 = vadd.f32 0.0, %v3343
    %v3345 = vpop.f32.mrb[0].mxu0
    %3346 = vmatprep.mubr.bf16.mxu0 0
    %3347 = vmatmul.mubr.bf16.gmra.mrb[0].mxu0 %v3208
    %v3348 = vpop.f32.mrb[0].mxu0
    %v3349 = vadd.f32 0.0, %v3348
    %v3350 = vpop.f32.mrb[0].mxu0
    %v3351 = vpop.f32.mrb[0].mxu0
    %v3352 = vadd.f32 0.0, %v3351
    %v3353 = vpop.f32.mrb[0].mxu0
    %3354 = vmatprep.mubr.bf16.mxu0 0
    %3355 = vmatmul.mubr.bf16.gmra.mrb[0].mxu0 %v3211
    %v3356 = vpop.f32.mrb[0].mxu0
    %v3357 = vadd.f32 0.0, %v3356
    %v3358 = vpop.f32.mrb[0].mxu0
    %v3359 = vpop.f32.mrb[0].mxu0
    %v3360 = vadd.f32 0.0, %v3359
    %v3361 = vpop.f32.mrb[0].mxu0
    %3362 = vmatprep.mubr.bf16.mxu0 0
    %3363 = vmatmul.mubr.bf16.gmra.mrb[0].mxu0 %v3214
    %v3364 = vpop.f32.mrb[0].mxu0
    %v3365 = vadd.f32 0.0, %v3364
    %v3366 = vpop.f32.mrb[0].mxu0
    %v3367 = vpop.f32.mrb[0].mxu0
    %v3368 = vadd.f32 0.0, %v3367
    %v3369 = vpop.f32.mrb[0].mxu0
    %3370 = vmatprep.mubr.bf16.mxu0 0
    %3371 = vmatmul.mubr.bf16.gmra.mrb[0].mxu0 %v3217
    %v3372 = vpop.f32.mrb[0].mxu0
    %v3373 = vadd.f32 0.0, %v3372
    %v3374 = vpop.f32.mrb[0].mxu0
    %v3375 = vpop.f32.mrb[0].mxu0
    %v3376 = vadd.f32 0.0, %v3375
    %v3377 = vpop.f32.mrb[0].mxu0
    %3378 = vmatprep.mubr.bf16.mxu0 0
    %3379 = vmatmul.mubr.bf16.gmra.mrb[0].mxu0 %v3220
    %v3380 = vpop.f32.mrb[0].mxu0
    %v3381 = vadd.f32 0.0, %v3380
    %v3382 = vpop.f32.mrb[0].mxu0
    %v3383 = vpop.f32.mrb[0].mxu0
    %v3384 = vadd.f32 0.0, %v3383
    %v3385 = vpop.f32.mrb[0].mxu0
    %3386 = vdwg.mxu0
    %vm3387 = vcmask 261120
    %v3388 = vsel %vm3387, %v3261, 0.0
    %v3389 = vsel %vm3387, %v3264, 0.0
    %v3390 = vadd.f32 %v3388, %v3389
    %v3391 = vsel %vm3387, %v3269, 0.0
    %v3392 = vadd.f32 %v3390, %v3391
    %v3393 = vsel %vm3387, %v3272, 0.0
    %v3394 = vadd.f32 %v3392, %v3393
    %v3395 = vsel %vm3387, %v3277, 0.0
    %v3396 = vadd.f32 %v3394, %v3395
    %v3397 = vsel %vm3387, %v3280, 0.0
    %v3398 = vadd.f32 %v3396, %v3397
    %v3399 = vsel %vm3387, %v3285, 0.0
    %v3400 = vadd.f32 %v3398, %v3399
    %v3401 = vsel %vm3387, %v3288, 0.0
    %v3402 = vadd.f32 %v3400, %v3401
    %v3403 = vsel %vm3387, %v3293, 0.0
    %v3404 = vadd.f32 %v3402, %v3403
    %v3405 = vsel %vm3387, %v3296, 0.0
    %v3406 = vadd.f32 %v3404, %v3405
    %v3407 = vsel %vm3387, %v3301, 0.0
    %v3408 = vadd.f32 %v3406, %v3407
    %v3409 = vsel %vm3387, %v3304, 0.0
    %v3410 = vadd.f32 %v3408, %v3409
    %v3411 = vsel %vm3387, %v3309, 0.0
    %v3412 = vadd.f32 %v3410, %v3411
    %v3413 = vsel %vm3387, %v3312, 0.0
    %v3414 = vadd.f32 %v3412, %v3413
    %v3415 = vsel %vm3387, %v3317, 0.0
    %v3416 = vadd.f32 %v3414, %v3415
    %v3417 = vsel %vm3387, %v3320, 0.0
    %v3418 = vadd.f32 %v3416, %v3417
    %v3419 = vsel %vm3387, %v3325, 0.0
    %v3420 = vadd.f32 %v3418, %v3419
    %v3421 = vsel %vm3387, %v3328, 0.0
    %v3422 = vadd.f32 %v3420, %v3421
    %v3423 = vsel %vm3387, %v3333, 0.0
    %v3424 = vadd.f32 %v3422, %v3423
    %v3425 = vsel %vm3387, %v3336, 0.0
    %v3426 = vadd.f32 %v3424, %v3425
    %v3427 = vsel %vm3387, %v3341, 0.0
    %v3428 = vadd.f32 %v3426, %v3427
    %v3429 = vsel %vm3387, %v3344, 0.0
    %v3430 = vadd.f32 %v3428, %v3429
    %v3431 = vsel %vm3387, %v3349, 0.0
    %v3432 = vadd.f32 %v3430, %v3431
    %v3433 = vsel %vm3387, %v3352, 0.0
    %v3434 = vadd.f32 %v3432, %v3433
    %v3435 = vsel %vm3387, %v3357, 0.0
    %v3436 = vadd.f32 %v3434, %v3435
    %v3437 = vsel %vm3387, %v3360, 0.0
    %v3438 = vadd.f32 %v3436, %v3437
    %v3439 = vsel %vm3387, %v3365, 0.0
    %v3440 = vadd.f32 %v3438, %v3439
    %v3441 = vsel %vm3387, %v3368, 0.0
    %v3442 = vadd.f32 %v3440, %v3441
    %v3443 = vsel %vm3387, %v3373, 0.0
    %v3444 = vadd.f32 %v3442, %v3443
    %v3445 = vsel %vm3387, %v3376, 0.0
    %v3446 = vadd.f32 %v3444, %v3445
    %v3447 = vsel %vm3387, %v3381, 0.0
    %v3448 = vadd.f32 %v3446, %v3447
    %v3449 = vsel %vm3387, %v3384, 0.0
    %v3450 = vadd.f32 %v3448, %v3449
    %v3451 = vrot.slane %v3450, 4
    %v3452 = vadd.f32 %v3450, %v3451
    %v3453 = vrot.slane %v3452, 2
    %v3454 = vadd.f32 %v3452, %v3453
    %v3455 = vrot.slane %v3454, 1
    %v3456 = vadd.f32 %v3454, %v3455
    %v3457 = vmul.f32 %v3261, %v3261
    %v3458 = vmul.f32 %v3264, %v3264
    %v3459 = vmul.f32 %v3269, %v3269
    %v3460 = vmul.f32 %v3272, %v3272
    %v3461 = vmul.f32 %v3277, %v3277
    %v3462 = vmul.f32 %v3280, %v3280
    %v3463 = vmul.f32 %v3285, %v3285
    %v3464 = vmul.f32 %v3288, %v3288
    %v3465 = vmul.f32 %v3293, %v3293
    %v3466 = vmul.f32 %v3296, %v3296
    %v3467 = vmul.f32 %v3301, %v3301
    %v3468 = vmul.f32 %v3304, %v3304
    %v3469 = vmul.f32 %v3309, %v3309
    %v3470 = vmul.f32 %v3312, %v3312
    %v3471 = vmul.f32 %v3317, %v3317
    %v3472 = vmul.f32 %v3320, %v3320
    %v3473 = vmul.f32 %v3325, %v3325
    %v3474 = vmul.f32 %v3328, %v3328
    %v3475 = vmul.f32 %v3333, %v3333
    %v3476 = vmul.f32 %v3336, %v3336
    %v3477 = vmul.f32 %v3341, %v3341
    %v3478 = vmul.f32 %v3344, %v3344
    %v3479 = vmul.f32 %v3349, %v3349
    %v3480 = vmul.f32 %v3352, %v3352
    %v3481 = vmul.f32 %v3357, %v3357
    %v3482 = vmul.f32 %v3360, %v3360
    %v3483 = vmul.f32 %v3365, %v3365
    %v3484 = vmul.f32 %v3368, %v3368
    %v3485 = vmul.f32 %v3373, %v3373
    %v3486 = vmul.f32 %v3376, %v3376
    %v3487 = vmul.f32 %v3381, %v3381
    %v3488 = vmul.f32 %v3384, %v3384
    %v3489 = vsel %vm3387, %v3457, 0.0
    %v3490 = vsel %vm3387, %v3458, 0.0
    %v3491 = vadd.f32 %v3489, %v3490
    %v3492 = vsel %vm3387, %v3459, 0.0
    %v3493 = vadd.f32 %v3491, %v3492
    %v3494 = vsel %vm3387, %v3460, 0.0
    %v3495 = vadd.f32 %v3493, %v3494
    %v3496 = vsel %vm3387, %v3461, 0.0
    %v3497 = vadd.f32 %v3495, %v3496
    %v3498 = vsel %vm3387, %v3462, 0.0
    %v3499 = vadd.f32 %v3497, %v3498
    %v3500 = vsel %vm3387, %v3463, 0.0
    %v3501 = vadd.f32 %v3499, %v3500
    %v3502 = vsel %vm3387, %v3464, 0.0
    %v3503 = vadd.f32 %v3501, %v3502
    %v3504 = vsel %vm3387, %v3465, 0.0
    %v3505 = vadd.f32 %v3503, %v3504
    %v3506 = vsel %vm3387, %v3466, 0.0
    %v3507 = vadd.f32 %v3505, %v3506
    %v3508 = vsel %vm3387, %v3467, 0.0
    %v3509 = vadd.f32 %v3507, %v3508
    %v3510 = vsel %vm3387, %v3468, 0.0
    %v3511 = vadd.f32 %v3509, %v3510
    %v3512 = vsel %vm3387, %v3469, 0.0
    %v3513 = vadd.f32 %v3511, %v3512
    %v3514 = vsel %vm3387, %v3470, 0.0
    %v3515 = vadd.f32 %v3513, %v3514
    %v3516 = vsel %vm3387, %v3471, 0.0
    %v3517 = vadd.f32 %v3515, %v3516
    %v3518 = vsel %vm3387, %v3472, 0.0
    %v3519 = vadd.f32 %v3517, %v3518
    %v3520 = vsel %vm3387, %v3473, 0.0
    %v3521 = vadd.f32 %v3519, %v3520
    %v3522 = vsel %vm3387, %v3474, 0.0
    %v3523 = vadd.f32 %v3521, %v3522
    %v3524 = vsel %vm3387, %v3475, 0.0
    %v3525 = vadd.f32 %v3523, %v3524
    %v3526 = vsel %vm3387, %v3476, 0.0
    %v3527 = vadd.f32 %v3525, %v3526
    %v3528 = vsel %vm3387, %v3477, 0.0
    %v3529 = vadd.f32 %v3527, %v3528
    %v3530 = vsel %vm3387, %v3478, 0.0
    %v3531 = vadd.f32 %v3529, %v3530
    %v3532 = vsel %vm3387, %v3479, 0.0
    %v3533 = vadd.f32 %v3531, %v3532
    %v3534 = vsel %vm3387, %v3480, 0.0
    %v3535 = vadd.f32 %v3533, %v3534
    %v3536 = vsel %vm3387, %v3481, 0.0
    %v3537 = vadd.f32 %v3535, %v3536
    %v3538 = vsel %vm3387, %v3482, 0.0
    %v3539 = vadd.f32 %v3537, %v3538
    %v3540 = vsel %vm3387, %v3483, 0.0
    %v3541 = vadd.f32 %v3539, %v3540
    %v3542 = vsel %vm3387, %v3484, 0.0
    %v3543 = vadd.f32 %v3541, %v3542
    %v3544 = vsel %vm3387, %v3485, 0.0
    %v3545 = vadd.f32 %v3543, %v3544
    %v3546 = vsel %vm3387, %v3486, 0.0
    %v3547 = vadd.f32 %v3545, %v3546
    %v3548 = vsel %vm3387, %v3487, 0.0
    %v3549 = vadd.f32 %v3547, %v3548
    %v3550 = vsel %vm3387, %v3488, 0.0
    %v3551 = vadd.f32 %v3549, %v3550
    %v3552 = vrot.slane %v3551, 4
    %v3553 = vadd.f32 %v3551, %v3552
    %v3554 = vrot.slane %v3553, 2
    %v3555 = vadd.f32 %v3553, %v3554
    %v3556 = vrot.slane %v3555, 1
    %v3557 = vadd.f32 %v3555, %v3556
    %v3558 = vmul.f32 %v25, 256.0
    %v3559 = vadd.f32 %v3456, %v3558
    %v3560 = vmul.f32 %v25, 2.0
    %v3561 = vmul.f32 %v3560, %v3456
    %v3562 = vadd.f32 %v3557, %v3561
    %v3563 = vmul.f32 %v3558, %v25
    %v3564 = vadd.f32 %v3562, %v3563
    %v3566 = vsel %vm3387, %v3559, 0
    %3568 = vmatprep.subr.mxu0 0.0
    %3569 = vmatpush1.msra.mxu0 %v28
    %3570 = vmatprep.subr.mxu0 0.0
    %3571 = vmatpush1.msra.mxu0 %v29
    %3572 = vmatprep.subr.mxu0 0.0
    %3573 = vmatpush1.msra.mxu0 %v30
    %3574 = vmatprep.subr.mxu0 0.0
    %3575 = vmatpush1.msra.mxu0 %v31
    %3576 = vmatprep.subr.mxu0 0.0
    %3577 = vmatpush1.msra.mxu0 0.0
    %3578 = vmatprep.subr.mxu0 0.0
    %3579 = vmatpush1.msra.mxu0 0.0
    %3580 = vmatprep.subr.mxu0 0.0
    %3581 = vmatpush1.msra.mxu0 0.0
    %3582 = vmatprep.subr.mxu0 0.0
    %3583 = vmatpush1.msra.mxu0 0.0
    %3584 = vmatprep.subr.mxu0 0.0
    %3585 = vmatpush1.msra.mxu0 0.0
    %3586 = vmatprep.subr.mxu0 0.0
    %3587 = vmatpush1.msra.mxu0 0.0
    %3588 = vmatprep.subr.mxu0 0.0
    %3589 = vmatpush1.msra.mxu0 0.0
    %3590 = vmatprep.subr.mxu0 0.0
    %3591 = vmatpush1.msra.mxu0 0.0
    %3592 = vmatprep.subr.mxu0 0.0
    %3593 = vmatpush1.msra.mxu0 0.0
    %3594 = vmatprep.subr.mxu0 0.0
    %3595 = vmatpush1.msra.mxu0 0.0
    %3596 = vmatprep.subr.mxu0 0.0
    %3597 = vmatpush1.msra.mxu0 0.0
    %3598 = vmatprep.subr.mxu0 0.0
    %3599 = vmatpush1.msra.mxu0 0.0
    %3600 = vmatprep.subr.mxu0 0.0
    %3601 = vmatpush1.msra.mxu0 0.0
    %3602 = vmatprep.subr.mxu0 0.0
    %3603 = vmatpush1.msra.mxu0 0.0
    %3604 = vmatprep.subr.mxu0 0.0
    %3605 = vmatpush1.msra.mxu0 0.0
    %3606 = vmatprep.subr.mxu0 0.0
    %3607 = vmatpush1.msra.mxu0 0.0
    %3608 = vmatprep.subr.mxu0 0.0
    %3609 = vmatpush1.msra.mxu0 0.0
    %3610 = vmatprep.subr.mxu0 0.0
    %3611 = vmatpush1.msra.mxu0 0.0
    %3612 = vmatprep.subr.mxu0 0.0
    %3613 = vmatpush1.msra.mxu0 0.0
    %3614 = vmatprep.subr.mxu0 0.0
    %3615 = vmatpush1.msra.mxu0 0.0
    %3616 = vmatprep.subr.mxu0 0.0
    %3617 = vmatpush1.msra.mxu0 0.0
    %3618 = vmatprep.subr.mxu0 0.0
    %3619 = vmatpush1.msra.mxu0 0.0
    %3620 = vmatprep.subr.mxu0 0.0
    %3621 = vmatpush1.msra.mxu0 0.0
    %3622 = vmatprep.subr.mxu0 0.0
    %3623 = vmatpush1.msra.mxu0 0.0
    %3624 = vmatprep.subr.mxu0 0.0
    %3625 = vmatpush1.msra.mxu0 0.0
    %3626 = vmatprep.subr.mxu0 0.0
    %3627 = vmatpush1.msra.mxu0 0.0
    %3628 = vmatprep.subr.mxu0 0.0
    %3629 = vmatpush1.msra.mxu0 0.0
    %3630 = vmatprep.subr.mxu0 0.0
    %3631 = vmatpush1.msra.mxu0 0.0
    %3632 = vmatprep.mubr.f32.mxu0 0.0
    %3633 = vmatmul.mubr.f32.gmra.mrb[0].mxu0 %v3566
    %v3634 = vpop.f32.mrb[0].mxu0
    %v3635 = vadd.f32 0.0, %v3634
    %v3636 = vpop.f32.mrb[0].mxu0
    %3637 = vdwg.mxu0
    %v3639 = vsel %vm3387, %v3564, 0
    %3641 = vmatprep.subr.mxu0 0.0
    %3642 = vmatpush1.msra.mxu0 %v28
    %3643 = vmatprep.subr.mxu0 0.0
    %3644 = vmatpush1.msra.mxu0 %v29
    %3645 = vmatprep.subr.mxu0 0.0
    %3646 = vmatpush1.msra.mxu0 %v30
    %3647 = vmatprep.subr.mxu0 0.0
    %3648 = vmatpush1.msra.mxu0 %v31
    %3649 = vmatprep.subr.mxu0 0.0
    %3650 = vmatpush1.msra.mxu0 0.0
    %3651 = vmatprep.subr.mxu0 0.0
    %3652 = vmatpush1.msra.mxu0 0.0
    %3653 = vmatprep.subr.mxu0 0.0
    %3654 = vmatpush1.msra.mxu0 0.0
    %3655 = vmatprep.subr.mxu0 0.0
    %3656 = vmatpush1.msra.mxu0 0.0
    %3657 = vmatprep.subr.mxu0 0.0
    %3658 = vmatpush1.msra.mxu0 0.0
    %3659 = vmatprep.subr.mxu0 0.0
    %3660 = vmatpush1.msra.mxu0 0.0
    %3661 = vmatprep.subr.mxu0 0.0
    %3662 = vmatpush1.msra.mxu0 0.0
    %3663 = vmatprep.subr.mxu0 0.0
    %3664 = vmatpush1.msra.mxu0 0.0
    %3665 = vmatprep.subr.mxu0 0.0
    %3666 = vmatpush1.msra.mxu0 0.0
    %3667 = vmatprep.subr.mxu0 0.0
    %3668 = vmatpush1.msra.mxu0 0.0
    %3669 = vmatprep.subr.mxu0 0.0
    %3670 = vmatpush1.msra.mxu0 0.0
    %3671 = vmatprep.subr.mxu0 0.0
    %3672 = vmatpush1.msra.mxu0 0.0
    %3673 = vmatprep.subr.mxu0 0.0
    %3674 = vmatpush1.msra.mxu0 0.0
    %3675 = vmatprep.subr.mxu0 0.0
    %3676 = vmatpush1.msra.mxu0 0.0
    %3677 = vmatprep.subr.mxu0 0.0
    %3678 = vmatpush1.msra.mxu0 0.0
    %3679 = vmatprep.subr.mxu0 0.0
    %3680 = vmatpush1.msra.mxu0 0.0
    %3681 = vmatprep.subr.mxu0 0.0
    %3682 = vmatpush1.msra.mxu0 0.0
    %3683 = vmatprep.subr.mxu0 0.0
    %3684 = vmatpush1.msra.mxu0 0.0
    %3685 = vmatprep.subr.mxu0 0.0
    %3686 = vmatpush1.msra.mxu0 0.0
    %3687 = vmatprep.subr.mxu0 0.0
    %3688 = vmatpush1.msra.mxu0 0.0
    %3689 = vmatprep.subr.mxu0 0.0
    %3690 = vmatpush1.msra.mxu0 0.0
    %3691 = vmatprep.subr.mxu0 0.0
    %3692 = vmatpush1.msra.mxu0 0.0
    %3693 = vmatprep.subr.mxu0 0.0
    %3694 = vmatpush1.msra.mxu0 0.0
    %3695 = vmatprep.subr.mxu0 0.0
    %3696 = vmatpush1.msra.mxu0 0.0
    %3697 = vmatprep.subr.mxu0 0.0
    %3698 = vmatpush1.msra.mxu0 0.0
    %3699 = vmatprep.subr.mxu0 0.0
    %3700 = vmatpush1.msra.mxu0 0.0
    %3701 = vmatprep.subr.mxu0 0.0
    %3702 = vmatpush1.msra.mxu0 0.0
    %3703 = vmatprep.subr.mxu0 0.0
    %3704 = vmatpush1.msra.mxu0 0.0
    %3705 = vmatprep.mubr.f32.mxu0 0.0
    %3706 = vmatmul.mubr.f32.gmra.mrb[0].mxu0 %v3639
    %v3707 = vpop.f32.mrb[0].mxu0
    %v3708 = vadd.f32 0.0, %v3707
    %v3709 = vpop.f32.mrb[0].mxu0
    %3710 = vdwg.mxu0
    %v3711 = vmul.f32 %v3635, %v3635
    %v3712 = vsub.f32 %v3708, %v3711
    %v3713 = vmax.f32 %v3712, 0.0
    %v3714 = vadd.f32 %v3713, 1e-05
    %v3715 = vrsqrt.pop %v3714
    %v3716 = vmul.f32 %v3715, %v26
    %v3717 = vsub.f32 %v25, %v3635
    %v3718 = vmul.f32 %v3717, %v3716
    %v3719 = vadd.f32 %v27, %v3718
    %v3720 = vlaneseq
    %v3721 = vshrl.u32 %v3720, 7
    %v3722 = vsub.s32 0, %v3721
    %v3723 = vrot.slane %v3716, %v3722
    %v3724 = vmul.f32 %v3261, %v3723
    %v3725 = vmul.f32 %v3264, %v3723
    %v3726 = vmul.f32 %v3269, %v3723
    %v3727 = vmul.f32 %v3272, %v3723
    %v3728 = vmul.f32 %v3277, %v3723
    %v3729 = vmul.f32 %v3280, %v3723
    %v3730 = vmul.f32 %v3285, %v3723
    %v3731 = vmul.f32 %v3288, %v3723
    %v3732 = vmul.f32 %v3293, %v3723
    %v3733 = vmul.f32 %v3296, %v3723
    %v3734 = vmul.f32 %v3301, %v3723
    %v3735 = vmul.f32 %v3304, %v3723
    %v3736 = vmul.f32 %v3309, %v3723
    %v3737 = vmul.f32 %v3312, %v3723
    %v3738 = vmul.f32 %v3317, %v3723
    %v3739 = vmul.f32 %v3320, %v3723
    %v3740 = vmul.f32 %v3325, %v3723
    %v3741 = vmul.f32 %v3328, %v3723
    %v3742 = vmul.f32 %v3333, %v3723
    %v3743 = vmul.f32 %v3336, %v3723
    %v3744 = vmul.f32 %v3341, %v3723
    %v3745 = vmul.f32 %v3344, %v3723
    %v3746 = vmul.f32 %v3349, %v3723
    %v3747 = vmul.f32 %v3352, %v3723
    %v3748 = vmul.f32 %v3357, %v3723
    %v3749 = vmul.f32 %v3360, %v3723
    %v3750 = vmul.f32 %v3365, %v3723
    %v3751 = vmul.f32 %v3368, %v3723
    %v3752 = vmul.f32 %v3373, %v3723
    %v3753 = vmul.f32 %v3376, %v3723
    %v3754 = vmul.f32 %v3381, %v3723
    %v3755 = vmul.f32 %v3384, %v3723
    %v3757 = vlaneseq
    %v3758 = vshrl.u32 %v3757, 7
    %v3759 = vsub.s32 0, %v3758
    %v3760 = vrot.slane %v3719, %v3759
    %v3762 = vadd.f32 %v3724, %v3760
    %v3763 = vadd.f32 %v3725, %v3760
    %v3764 = vadd.f32 %v3726, %v3760
    %v3765 = vadd.f32 %v3727, %v3760
    %v3766 = vadd.f32 %v3728, %v3760
    %v3767 = vadd.f32 %v3729, %v3760
    %v3768 = vadd.f32 %v3730, %v3760
    %v3769 = vadd.f32 %v3731, %v3760
    %v3770 = vadd.f32 %v3732, %v3760
    %v3771 = vadd.f32 %v3733, %v3760
    %v3772 = vadd.f32 %v3734, %v3760
    %v3773 = vadd.f32 %v3735, %v3760
    %v3774 = vadd.f32 %v3736, %v3760
    %v3775 = vadd.f32 %v3737, %v3760
    %v3776 = vadd.f32 %v3738, %v3760
    %v3777 = vadd.f32 %v3739, %v3760
    %v3778 = vadd.f32 %v3740, %v3760
    %v3779 = vadd.f32 %v3741, %v3760
    %v3780 = vadd.f32 %v3742, %v3760
    %v3781 = vadd.f32 %v3743, %v3760
    %v3782 = vadd.f32 %v3744, %v3760
    %v3783 = vadd.f32 %v3745, %v3760
    %v3784 = vadd.f32 %v3746, %v3760
    %v3785 = vadd.f32 %v3747, %v3760
    %v3786 = vadd.f32 %v3748, %v3760
    %v3787 = vadd.f32 %v3749, %v3760
    %v3788 = vadd.f32 %v3750, %v3760
    %v3789 = vadd.f32 %v3751, %v3760
    %v3790 = vadd.f32 %v3752, %v3760
    %v3791 = vadd.f32 %v3753, %v3760
    %v3792 = vadd.f32 %v3754, %v3760
    %v3793 = vadd.f32 %v3755, %v3760
    %3794 = vst.msk [vmem:[#allocation3] sm:$0xff] %vm3387, %v3762
    %3795 = vst.msk [vmem:[#allocation3 + $0x8] sm:$0xff] %vm3387, %v3763
    %3796 = vst.msk [vmem:[#allocation3 + $0x10] sm:$0xff] %vm3387, %v3764
    %3797 = vst.msk [vmem:[#allocation3 + $0x18] sm:$0xff] %vm3387, %v3765
    %3798 = vst.msk [vmem:[#allocation3 + $0x20] sm:$0xff] %vm3387, %v3766
    %3799 = vst.msk [vmem:[#allocation3 + $0x28] sm:$0xff] %vm3387, %v3767
    %3800 = vst.msk [vmem:[#allocation3 + $0x30] sm:$0xff] %vm3387, %v3768
    %3801 = vst.msk [vmem:[#allocation3 + $0x38] sm:$0xff] %vm3387, %v3769
    %3802 = vst.msk [vmem:[#allocation3 + $0x40] sm:$0xff] %vm3387, %v3770
    %3803 = vst.msk [vmem:[#allocation3 + $0x48] sm:$0xff] %vm3387, %v3771
    %3804 = vst.msk [vmem:[#allocation3 + $0x50] sm:$0xff] %vm3387, %v3772
    %3805 = vst.msk [vmem:[#allocation3 + $0x58] sm:$0xff] %vm3387, %v3773
    %3806 = vst.msk [vmem:[#allocation3 + $0x60] sm:$0xff] %vm3387, %v3774
    %3807 = vst.msk [vmem:[#allocation3 + $0x68] sm:$0xff] %vm3387, %v3775
    %3808 = vst.msk [vmem:[#allocation3 + $0x70] sm:$0xff] %vm3387, %v3776
    %3809 = vst.msk [vmem:[#allocation3 + $0x78] sm:$0xff] %vm3387, %v3777
    %3810 = vst.msk [vmem:[#allocation3 + $0x80] sm:$0xff] %vm3387, %v3778
    %3811 = vst.msk [vmem:[#allocation3 + $0x88] sm:$0xff] %vm3387, %v3779
    %3812 = vst.msk [vmem:[#allocation3 + $0x90] sm:$0xff] %vm3387, %v3780
    %3813 = vst.msk [vmem:[#allocation3 + $0x98] sm:$0xff] %vm3387, %v3781
    %3814 = vst.msk [vmem:[#allocation3 + $0xa0] sm:$0xff] %vm3387, %v3782
    %3815 = vst.msk [vmem:[#allocation3 + $0xa8] sm:$0xff] %vm3387, %v3783
    %3816 = vst.msk [vmem:[#allocation3 + $0xb0] sm:$0xff] %vm3387, %v3784
    %3817 = vst.msk [vmem:[#allocation3 + $0xb8] sm:$0xff] %vm3387, %v3785
    %3818 = vst.msk [vmem:[#allocation3 + $0xc0] sm:$0xff] %vm3387, %v3786
    %3819 = vst.msk [vmem:[#allocation3 + $0xc8] sm:$0xff] %vm3387, %v3787
    %3820 = vst.msk [vmem:[#allocation3 + $0xd0] sm:$0xff] %vm3387, %v3788
    %3821 = vst.msk [vmem:[#allocation3 + $0xd8] sm:$0xff] %vm3387, %v3789
    %3822 = vst.msk [vmem:[#allocation3 + $0xe0] sm:$0xff] %vm3387, %v3790
    %3823 = vst.msk [vmem:[#allocation3 + $0xe8] sm:$0xff] %vm3387, %v3791
    %3824 = vst.msk [vmem:[#allocation3 + $0xf0] sm:$0xff] %vm3387, %v3792
    %3825 = vst.msk [vmem:[#allocation3 + $0xf8] sm:$0xff] %vm3387, %v3793
    %s3826 = scalar_lea.vmem %s0, 216
    %v3827 = vld [vmem:[%s3826] sm:$0xf]
    %v3828 = vld [vmem:[%s3826 + $0x4] sm:$0xf]
    %v3829 = vld [vmem:[%s3826 + $0xc] sm:$0xf]
    %v3830 = vld [vmem:[%s3826 + $0x10] sm:$0xf]
    %v3831 = vld [vmem:[%s3826 + $0x18] sm:$0xf]
    %v3832 = vld [vmem:[%s3826 + $0x1c] sm:$0xf]
    %v3833 = vld [vmem:[%s3826 + $0x24] sm:$0xf]
    %v3834 = vld [vmem:[%s3826 + $0x28] sm:$0xf]
    %v3835 = vld [vmem:[%s3826 + $0x30] sm:$0xf]
    %v3836 = vld [vmem:[%s3826 + $0x34] sm:$0xf]
    %v3837 = vld [vmem:[%s3826 + $0x3c] sm:$0xf]
    %v3838 = vld [vmem:[%s3826 + $0x40] sm:$0xf]
    %v3839 = vld [vmem:[%s3826 + $0x48] sm:$0xf]
    %v3840 = vld [vmem:[%s3826 + $0x4c] sm:$0xf]
    %v3841 = vld [vmem:[%s3826 + $0x54] sm:$0xf]
    %v3842 = vld [vmem:[%s3826 + $0x58] sm:$0xf]
    %v3843 = vld [vmem:[%s3826 + $0x60] sm:$0xf]
    %v3844 = vld [vmem:[%s3826 + $0x64] sm:$0xf]
    %v3845 = vld [vmem:[%s3826 + $0x6c] sm:$0xf]
    %v3846 = vld [vmem:[%s3826 + $0x70] sm:$0xf]
    %v3847 = vld [vmem:[%s3826 + $0x78] sm:$0xf]
    %v3848 = vld [vmem:[%s3826 + $0x7c] sm:$0xf]
    %v3849 = vld [vmem:[%s3826 + $0x84] sm:$0xf]
    %v3850 = vld [vmem:[%s3826 + $0x88] sm:$0xf]
    %v3851 = vld [vmem:[%s3826 + $0x90] sm:$0xf]
    %v3852 = vld [vmem:[%s3826 + $0x94] sm:$0xf]
    %v3853 = vld [vmem:[%s3826 + $0x9c] sm:$0xf]
    %v3854 = vld [vmem:[%s3826 + $0xa0] sm:$0xf]
    %v3855 = vld [vmem:[%s3826 + $0xa8] sm:$0xf]
    %v3856 = vld [vmem:[%s3826 + $0xac] sm:$0xf]
    %v3857 = vld [vmem:[%s3826 + $0xb4] sm:$0xf]
    %v3858 = vld [vmem:[%s3826 + $0xb8] sm:$0xf]
    %v3891 = vunpack.c.l.b16 %v3827
    %v3892 = vunpack.c.l.b16 %v3828
    %v3893 = vunpack.c.l.b16 %v3829
    %v3894 = vunpack.c.l.b16 %v3830
    %v3895 = vunpack.c.l.b16 %v3831
    %v3896 = vunpack.c.l.b16 %v3832
    %v3897 = vunpack.c.l.b16 %v3833
    %v3898 = vunpack.c.l.b16 %v3834
    %v3899 = vunpack.c.l.b16 %v3835
    %v3900 = vunpack.c.l.b16 %v3836
    %v3901 = vunpack.c.l.b16 %v3837
    %v3902 = vunpack.c.l.b16 %v3838
    %v3903 = vunpack.c.l.b16 %v3839
    %v3904 = vunpack.c.l.b16 %v3840
    %v3905 = vunpack.c.l.b16 %v3841
    %v3906 = vunpack.c.l.b16 %v3842
    %v3907 = vunpack.c.l.b16 %v3843
    %v3908 = vunpack.c.l.b16 %v3844
    %v3909 = vunpack.c.l.b16 %v3845
    %v3910 = vunpack.c.l.b16 %v3846
    %v3911 = vunpack.c.l.b16 %v3847
    %v3912 = vunpack.c.l.b16 %v3848
    %v3913 = vunpack.c.l.b16 %v3849
    %v3914 = vunpack.c.l.b16 %v3850
    %v3915 = vunpack.c.l.b16 %v3851
    %v3916 = vunpack.c.l.b16 %v3852
    %v3917 = vunpack.c.l.b16 %v3853
    %v3918 = vunpack.c.l.b16 %v3854
    %v3919 = vunpack.c.l.b16 %v3855
    %v3920 = vunpack.c.l.b16 %v3856
    %v3921 = vunpack.c.l.b16 %v3857
    %v3922 = vunpack.c.l.b16 %v3858
    %v3923 = vpack.c.b16 %v3892, %v3891
    %v3924 = vpack.c.b16 %v3894, %v3893
    %v3925 = vpack.c.b16 %v3896, %v3895
    %v3926 = vpack.c.b16 %v3898, %v3897
    %v3927 = vpack.c.b16 %v3900, %v3899
    %v3928 = vpack.c.b16 %v3902, %v3901
    %v3929 = vpack.c.b16 %v3904, %v3903
    %v3930 = vpack.c.b16 %v3906, %v3905
    %v3931 = vpack.c.b16 %v3908, %v3907
    %v3932 = vpack.c.b16 %v3910, %v3909
    %v3933 = vpack.c.b16 %v3912, %v3911
    %v3934 = vpack.c.b16 %v3914, %v3913
    %v3935 = vpack.c.b16 %v3916, %v3915
    %v3936 = vpack.c.b16 %v3918, %v3917
    %v3937 = vpack.c.b16 %v3920, %v3919
    %v3938 = vpack.c.b16 %v3922, %v3921
    %3955 = vst.msk [vmem:[#allocation2] sm:$0xff] %vm160, %v3923
    %3956 = vst.msk [vmem:[#allocation2 + $0x8] sm:$0xff] %vm160, %v3924
    %3957 = vst.msk [vmem:[#allocation2 + $0x10] sm:$0xff] %vm160, %v3925
    %3958 = vst.msk [vmem:[#allocation2 + $0x18] sm:$0xff] %vm160, %v3926
    %3959 = vst.msk [vmem:[#allocation2 + $0x20] sm:$0xff] %vm160, %v3927
    %3960 = vst.msk [vmem:[#allocation2 + $0x28] sm:$0xff] %vm160, %v3928
    %3961 = vst.msk [vmem:[#allocation2 + $0x30] sm:$0xff] %vm160, %v3929
    %3962 = vst.msk [vmem:[#allocation2 + $0x38] sm:$0xff] %vm160, %v3930
    %3963 = vst.msk [vmem:[#allocation2 + $0x40] sm:$0xff] %vm160, %v3931
    %3964 = vst.msk [vmem:[#allocation2 + $0x48] sm:$0xff] %vm160, %v3932
    %3965 = vst.msk [vmem:[#allocation2 + $0x50] sm:$0xff] %vm160, %v3933
    %3966 = vst.msk [vmem:[#allocation2 + $0x58] sm:$0xff] %vm160, %v3934
    %3967 = vst.msk [vmem:[#allocation2 + $0x60] sm:$0xff] %vm160, %v3935
    %3968 = vst.msk [vmem:[#allocation2 + $0x68] sm:$0xff] %vm160, %v3936
    %3969 = vst.msk [vmem:[#allocation2 + $0x70] sm:$0xff] %vm160, %v3937
    %3970 = vst.msk [vmem:[#allocation2 + $0x78] sm:$0xff] %vm160, %v3938
    %v3971 = vld [vmem:[%s3826] sm:$0xf]
    %v3972 = vld [vmem:[%s3826 + $0x4] sm:$0xf]
    %v3973 = vld [vmem:[%s3826 + $0x8] sm:$0x1]
    %v3974 = vld [vmem:[%s3826 + $0xc] sm:$0xf]
    %v3975 = vld [vmem:[%s3826 + $0x10] sm:$0xf]
    %v3976 = vld [vmem:[%s3826 + $0x14] sm:$0x1]
    %v3977 = vld [vmem:[%s3826 + $0x18] sm:$0xf]
    %v3978 = vld [vmem:[%s3826 + $0x1c] sm:$0xf]
    %v3979 = vld [vmem:[%s3826 + $0x20] sm:$0x1]
    %v3980 = vld [vmem:[%s3826 + $0x24] sm:$0xf]
    %v3981 = vld [vmem:[%s3826 + $0x28] sm:$0xf]
    %v3982 = vld [vmem:[%s3826 + $0x2c] sm:$0x1]
    %v3983 = vld [vmem:[%s3826 + $0x30] sm:$0xf]
    %v3984 = vld [vmem:[%s3826 + $0x34] sm:$0xf]
    %v3985 = vld [vmem:[%s3826 + $0x38] sm:$0x1]
    %v3986 = vld [vmem:[%s3826 + $0x3c] sm:$0xf]
    %v3987 = vld [vmem:[%s3826 + $0x40] sm:$0xf]
    %v3988 = vld [vmem:[%s3826 + $0x44] sm:$0x1]
    %v3989 = vld [vmem:[%s3826 + $0x48] sm:$0xf]
    %v3990 = vld [vmem:[%s3826 + $0x4c] sm:$0xf]
    %v3991 = vld [vmem:[%s3826 + $0x50] sm:$0x1]
    %v3992 = vld [vmem:[%s3826 + $0x54] sm:$0xf]
    %v3993 = vld [vmem:[%s3826 + $0x58] sm:$0xf]
    %v3994 = vld [vmem:[%s3826 + $0x5c] sm:$0x1]
    %v3995 = vld [vmem:[%s3826 + $0x60] sm:$0xf]
    %v3996 = vld [vmem:[%s3826 + $0x64] sm:$0xf]
    %v3997 = vld [vmem:[%s3826 + $0x68] sm:$0x1]
    %v3998 = vld [vmem:[%s3826 + $0x6c] sm:$0xf]
    %v3999 = vld [vmem:[%s3826 + $0x70] sm:$0xf]
    %v4000 = vld [vmem:[%s3826 + $0x74] sm:$0x1]
    %v4001 = vld [vmem:[%s3826 + $0x78] sm:$0xf]
    %v4002 = vld [vmem:[%s3826 + $0x7c] sm:$0xf]
    %v4003 = vld [vmem:[%s3826 + $0x80] sm:$0x1]
    %v4004 = vld [vmem:[%s3826 + $0x84] sm:$0xf]
    %v4005 = vld [vmem:[%s3826 + $0x88] sm:$0xf]
    %v4006 = vld [vmem:[%s3826 + $0x8c] sm:$0x1]
    %v4007 = vld [vmem:[%s3826 + $0x90] sm:$0xf]
    %v4008 = vld [vmem:[%s3826 + $0x94] sm:$0xf]
    %v4009 = vld [vmem:[%s3826 + $0x98] sm:$0x1]
    %v4010 = vld [vmem:[%s3826 + $0x9c] sm:$0xf]
    %v4011 = vld [vmem:[%s3826 + $0xa0] sm:$0xf]
    %v4012 = vld [vmem:[%s3826 + $0xa4] sm:$0x1]
    %v4013 = vld [vmem:[%s3826 + $0xa8] sm:$0xf]
    %v4014 = vld [vmem:[%s3826 + $0xac] sm:$0xf]
    %v4015 = vld [vmem:[%s3826 + $0xb0] sm:$0x1]
    %v4016 = vld [vmem:[%s3826 + $0xb4] sm:$0xf]
    %v4017 = vld [vmem:[%s3826 + $0xb8] sm:$0xf]
    %v4018 = vld [vmem:[%s3826 + $0xbc] sm:$0x1]
    %v4020 = vshrl.u32 %v3971, 16
    %v4022 = vrot.slane %v4020, 4
    %v4023 = vshll.u32 %v3971, 16
    %v4025 = vrot.slane %v4023, 5
    %v4026 = vor.u32 %v4022, %v4025
    %v4027 = vrot.slane %v4026, 4
    %v4029 = vshll.u32 %v3972, 16
    %v4031 = vrot.slane %v4029, 5
    %v4032 = vsel %vm227, %v4027, %v4031
    %v4033 = vshrl.u32 %v3972, 16
    %v4035 = vrot.slane %v4033, 4
    %v4036 = vor.u32 %v4035, %v4031
    %v4037 = vrot.slane %v4036, 4
    %v4039 = vshll.u32 %v3973, 16
    %v4041 = vrot.slane %v4039, 5
    %v4042 = vsel %vm227, %v4037, %v4041
    %v4044 = vshrl.u32 %v3974, 16
    %v4046 = vrot.slane %v4044, 4
    %v4047 = vshll.u32 %v3974, 16
    %v4049 = vrot.slane %v4047, 5
    %v4050 = vor.u32 %v4046, %v4049
    %v4051 = vrot.slane %v4050, 4
    %v4053 = vshll.u32 %v3975, 16
    %v4055 = vrot.slane %v4053, 5
    %v4056 = vsel %vm227, %v4051, %v4055
    %v4057 = vshrl.u32 %v3975, 16
    %v4059 = vrot.slane %v4057, 4
    %v4060 = vor.u32 %v4059, %v4055
    %v4061 = vrot.slane %v4060, 4
    %v4063 = vshll.u32 %v3976, 16
    %v4065 = vrot.slane %v4063, 5
    %v4066 = vsel %vm227, %v4061, %v4065
    %v4068 = vshrl.u32 %v3977, 16
    %v4070 = vrot.slane %v4068, 4
    %v4071 = vshll.u32 %v3977, 16
    %v4073 = vrot.slane %v4071, 5
    %v4074 = vor.u32 %v4070, %v4073
    %v4075 = vrot.slane %v4074, 4
    %v4077 = vshll.u32 %v3978, 16
    %v4079 = vrot.slane %v4077, 5
    %v4080 = vsel %vm227, %v4075, %v4079
    %v4081 = vshrl.u32 %v3978, 16
    %v4083 = vrot.slane %v4081, 4
    %v4084 = vor.u32 %v4083, %v4079
    %v4085 = vrot.slane %v4084, 4
    %v4087 = vshll.u32 %v3979, 16
    %v4089 = vrot.slane %v4087, 5
    %v4090 = vsel %vm227, %v4085, %v4089
    %v4092 = vshrl.u32 %v3980, 16
    %v4094 = vrot.slane %v4092, 4
    %v4095 = vshll.u32 %v3980, 16
    %v4097 = vrot.slane %v4095, 5
    %v4098 = vor.u32 %v4094, %v4097
    %v4099 = vrot.slane %v4098, 4
    %v4101 = vshll.u32 %v3981, 16
    %v4103 = vrot.slane %v4101, 5
    %v4104 = vsel %vm227, %v4099, %v4103
    %v4105 = vshrl.u32 %v3981, 16
    %v4107 = vrot.slane %v4105, 4
    %v4108 = vor.u32 %v4107, %v4103
    %v4109 = vrot.slane %v4108, 4
    %v4111 = vshll.u32 %v3982, 16
    %v4113 = vrot.slane %v4111, 5
    %v4114 = vsel %vm227, %v4109, %v4113
    %v4116 = vshrl.u32 %v3983, 16
    %v4118 = vrot.slane %v4116, 4
    %v4119 = vshll.u32 %v3983, 16
    %v4121 = vrot.slane %v4119, 5
    %v4122 = vor.u32 %v4118, %v4121
    %v4123 = vrot.slane %v4122, 4
    %v4125 = vshll.u32 %v3984, 16
    %v4127 = vrot.slane %v4125, 5
    %v4128 = vsel %vm227, %v4123, %v4127
    %v4129 = vshrl.u32 %v3984, 16
    %v4131 = vrot.slane %v4129, 4
    %v4132 = vor.u32 %v4131, %v4127
    %v4133 = vrot.slane %v4132, 4
    %v4135 = vshll.u32 %v3985, 16
    %v4137 = vrot.slane %v4135, 5
    %v4138 = vsel %vm227, %v4133, %v4137
    %v4140 = vshrl.u32 %v3986, 16
    %v4142 = vrot.slane %v4140, 4
    %v4143 = vshll.u32 %v3986, 16
    %v4145 = vrot.slane %v4143, 5
    %v4146 = vor.u32 %v4142, %v4145
    %v4147 = vrot.slane %v4146, 4
    %v4149 = vshll.u32 %v3987, 16
    %v4151 = vrot.slane %v4149, 5
    %v4152 = vsel %vm227, %v4147, %v4151
    %v4153 = vshrl.u32 %v3987, 16
    %v4155 = vrot.slane %v4153, 4
    %v4156 = vor.u32 %v4155, %v4151
    %v4157 = vrot.slane %v4156, 4
    %v4159 = vshll.u32 %v3988, 16
    %v4161 = vrot.slane %v4159, 5
    %v4162 = vsel %vm227, %v4157, %v4161
    %v4164 = vshrl.u32 %v3989, 16
    %v4166 = vrot.slane %v4164, 4
    %v4167 = vshll.u32 %v3989, 16
    %v4169 = vrot.slane %v4167, 5
    %v4170 = vor.u32 %v4166, %v4169
    %v4171 = vrot.slane %v4170, 4
    %v4173 = vshll.u32 %v3990, 16
    %v4175 = vrot.slane %v4173, 5
    %v4176 = vsel %vm227, %v4171, %v4175
    %v4177 = vshrl.u32 %v3990, 16
    %v4179 = vrot.slane %v4177, 4
    %v4180 = vor.u32 %v4179, %v4175
    %v4181 = vrot.slane %v4180, 4
    %v4183 = vshll.u32 %v3991, 16
    %v4185 = vrot.slane %v4183, 5
    %v4186 = vsel %vm227, %v4181, %v4185
    %v4188 = vshrl.u32 %v3992, 16
    %v4190 = vrot.slane %v4188, 4
    %v4191 = vshll.u32 %v3992, 16
    %v4193 = vrot.slane %v4191, 5
    %v4194 = vor.u32 %v4190, %v4193
    %v4195 = vrot.slane %v4194, 4
    %v4197 = vshll.u32 %v3993, 16
    %v4199 = vrot.slane %v4197, 5
    %v4200 = vsel %vm227, %v4195, %v4199
    %v4201 = vshrl.u32 %v3993, 16
    %v4203 = vrot.slane %v4201, 4
    %v4204 = vor.u32 %v4203, %v4199
    %v4205 = vrot.slane %v4204, 4
    %v4207 = vshll.u32 %v3994, 16
    %v4209 = vrot.slane %v4207, 5
    %v4210 = vsel %vm227, %v4205, %v4209
    %v4212 = vshrl.u32 %v3995, 16
    %v4214 = vrot.slane %v4212, 4
    %v4215 = vshll.u32 %v3995, 16
    %v4217 = vrot.slane %v4215, 5
    %v4218 = vor.u32 %v4214, %v4217
    %v4219 = vrot.slane %v4218, 4
    %v4221 = vshll.u32 %v3996, 16
    %v4223 = vrot.slane %v4221, 5
    %v4224 = vsel %vm227, %v4219, %v4223
    %v4225 = vshrl.u32 %v3996, 16
    %v4227 = vrot.slane %v4225, 4
    %v4228 = vor.u32 %v4227, %v4223
    %v4229 = vrot.slane %v4228, 4
    %v4231 = vshll.u32 %v3997, 16
    %v4233 = vrot.slane %v4231, 5
    %v4234 = vsel %vm227, %v4229, %v4233
    %v4236 = vshrl.u32 %v3998, 16
    %v4238 = vrot.slane %v4236, 4
    %v4239 = vshll.u32 %v3998, 16
    %v4241 = vrot.slane %v4239, 5
    %v4242 = vor.u32 %v4238, %v4241
    %v4243 = vrot.slane %v4242, 4
    %v4245 = vshll.u32 %v3999, 16
    %v4247 = vrot.slane %v4245, 5
    %v4248 = vsel %vm227, %v4243, %v4247
    %v4249 = vshrl.u32 %v3999, 16
    %v4251 = vrot.slane %v4249, 4
    %v4252 = vor.u32 %v4251, %v4247
    %v4253 = vrot.slane %v4252, 4
    %v4255 = vshll.u32 %v4000, 16
    %v4257 = vrot.slane %v4255, 5
    %v4258 = vsel %vm227, %v4253, %v4257
    %v4260 = vshrl.u32 %v4001, 16
    %v4262 = vrot.slane %v4260, 4
    %v4263 = vshll.u32 %v4001, 16
    %v4265 = vrot.slane %v4263, 5
    %v4266 = vor.u32 %v4262, %v4265
    %v4267 = vrot.slane %v4266, 4
    %v4269 = vshll.u32 %v4002, 16
    %v4271 = vrot.slane %v4269, 5
    %v4272 = vsel %vm227, %v4267, %v4271
    %v4273 = vshrl.u32 %v4002, 16
    %v4275 = vrot.slane %v4273, 4
    %v4276 = vor.u32 %v4275, %v4271
    %v4277 = vrot.slane %v4276, 4
    %v4279 = vshll.u32 %v4003, 16
    %v4281 = vrot.slane %v4279, 5
    %v4282 = vsel %vm227, %v4277, %v4281
    %v4284 = vshrl.u32 %v4004, 16
    %v4286 = vrot.slane %v4284, 4
    %v4287 = vshll.u32 %v4004, 16
    %v4289 = vrot.slane %v4287, 5
    %v4290 = vor.u32 %v4286, %v4289
    %v4291 = vrot.slane %v4290, 4
    %v4293 = vshll.u32 %v4005, 16
    %v4295 = vrot.slane %v4293, 5
    %v4296 = vsel %vm227, %v4291, %v4295
    %v4297 = vshrl.u32 %v4005, 16
    %v4299 = vrot.slane %v4297, 4
    %v4300 = vor.u32 %v4299, %v4295
    %v4301 = vrot.slane %v4300, 4
    %v4303 = vshll.u32 %v4006, 16
    %v4305 = vrot.slane %v4303, 5
    %v4306 = vsel %vm227, %v4301, %v4305
    %v4308 = vshrl.u32 %v4007, 16
    %v4310 = vrot.slane %v4308, 4
    %v4311 = vshll.u32 %v4007, 16
    %v4313 = vrot.slane %v4311, 5
    %v4314 = vor.u32 %v4310, %v4313
    %v4315 = vrot.slane %v4314, 4
    %v4317 = vshll.u32 %v4008, 16
    %v4319 = vrot.slane %v4317, 5
    %v4320 = vsel %vm227, %v4315, %v4319
    %v4321 = vshrl.u32 %v4008, 16
    %v4323 = vrot.slane %v4321, 4
    %v4324 = vor.u32 %v4323, %v4319
    %v4325 = vrot.slane %v4324, 4
    %v4327 = vshll.u32 %v4009, 16
    %v4329 = vrot.slane %v4327, 5
    %v4330 = vsel %vm227, %v4325, %v4329
    %v4332 = vshrl.u32 %v4010, 16
    %v4334 = vrot.slane %v4332, 4
    %v4335 = vshll.u32 %v4010, 16
    %v4337 = vrot.slane %v4335, 5
    %v4338 = vor.u32 %v4334, %v4337
    %v4339 = vrot.slane %v4338, 4
    %v4341 = vshll.u32 %v4011, 16
    %v4343 = vrot.slane %v4341, 5
    %v4344 = vsel %vm227, %v4339, %v4343
    %v4345 = vshrl.u32 %v4011, 16
    %v4347 = vrot.slane %v4345, 4
    %v4348 = vor.u32 %v4347, %v4343
    %v4349 = vrot.slane %v4348, 4
    %v4351 = vshll.u32 %v4012, 16
    %v4353 = vrot.slane %v4351, 5
    %v4354 = vsel %vm227, %v4349, %v4353
    %v4356 = vshrl.u32 %v4013, 16
    %v4358 = vrot.slane %v4356, 4
    %v4359 = vshll.u32 %v4013, 16
    %v4361 = vrot.slane %v4359, 5
    %v4362 = vor.u32 %v4358, %v4361
    %v4363 = vrot.slane %v4362, 4
    %v4365 = vshll.u32 %v4014, 16
    %v4367 = vrot.slane %v4365, 5
    %v4368 = vsel %vm227, %v4363, %v4367
    %v4369 = vshrl.u32 %v4014, 16
    %v4371 = vrot.slane %v4369, 4
    %v4372 = vor.u32 %v4371, %v4367
    %v4373 = vrot.slane %v4372, 4
    %v4375 = vshll.u32 %v4015, 16
    %v4377 = vrot.slane %v4375, 5
    %v4378 = vsel %vm227, %v4373, %v4377
    %v4380 = vshrl.u32 %v4016, 16
    %v4382 = vrot.slane %v4380, 4
    %v4383 = vshll.u32 %v4016, 16
    %v4385 = vrot.slane %v4383, 5
    %v4386 = vor.u32 %v4382, %v4385
    %v4387 = vrot.slane %v4386, 4
    %v4389 = vshll.u32 %v4017, 16
    %v4391 = vrot.slane %v4389, 5
    %v4392 = vsel %vm227, %v4387, %v4391
    %v4393 = vshrl.u32 %v4017, 16
    %v4395 = vrot.slane %v4393, 4
    %v4396 = vor.u32 %v4395, %v4391
    %v4397 = vrot.slane %v4396, 4
    %v4399 = vshll.u32 %v4018, 16
    %v4401 = vrot.slane %v4399, 5
    %v4402 = vsel %vm227, %v4397, %v4401
    %v4403 = vunpack.c.l.b16 %v4032
    %v4404 = vunpack.c.l.b16 %v4042
    %v4405 = vunpack.c.l.b16 %v4056
    %v4406 = vunpack.c.l.b16 %v4066
    %v4407 = vunpack.c.l.b16 %v4080
    %v4408 = vunpack.c.l.b16 %v4090
    %v4409 = vunpack.c.l.b16 %v4104
    %v4410 = vunpack.c.l.b16 %v4114
    %v4411 = vunpack.c.l.b16 %v4128
    %v4412 = vunpack.c.l.b16 %v4138
    %v4413 = vunpack.c.l.b16 %v4152
    %v4414 = vunpack.c.l.b16 %v4162
    %v4415 = vunpack.c.l.b16 %v4176
    %v4416 = vunpack.c.l.b16 %v4186
    %v4417 = vunpack.c.l.b16 %v4200
    %v4418 = vunpack.c.l.b16 %v4210
    %v4419 = vunpack.c.l.b16 %v4224
    %v4420 = vunpack.c.l.b16 %v4234
    %v4421 = vunpack.c.l.b16 %v4248
    %v4422 = vunpack.c.l.b16 %v4258
    %v4423 = vunpack.c.l.b16 %v4272
    %v4424 = vunpack.c.l.b16 %v4282
    %v4425 = vunpack.c.l.b16 %v4296
    %v4426 = vunpack.c.l.b16 %v4306
    %v4427 = vunpack.c.l.b16 %v4320
    %v4428 = vunpack.c.l.b16 %v4330
    %v4429 = vunpack.c.l.b16 %v4344
    %v4430 = vunpack.c.l.b16 %v4354
    %v4431 = vunpack.c.l.b16 %v4368
    %v4432 = vunpack.c.l.b16 %v4378
    %v4433 = vunpack.c.l.b16 %v4392
    %v4434 = vunpack.c.l.b16 %v4402
    %v4435 = vpack.c.b16 %v4404, %v4403
    %v4436 = vpack.c.b16 %v4406, %v4405
    %v4437 = vpack.c.b16 %v4408, %v4407
    %v4438 = vpack.c.b16 %v4410, %v4409
    %v4439 = vpack.c.b16 %v4412, %v4411
    %v4440 = vpack.c.b16 %v4414, %v4413
    %v4441 = vpack.c.b16 %v4416, %v4415
    %v4442 = vpack.c.b16 %v4418, %v4417
    %v4443 = vpack.c.b16 %v4420, %v4419
    %v4444 = vpack.c.b16 %v4422, %v4421
    %v4445 = vpack.c.b16 %v4424, %v4423
    %v4446 = vpack.c.b16 %v4426, %v4425
    %v4447 = vpack.c.b16 %v4428, %v4427
    %v4448 = vpack.c.b16 %v4430, %v4429
    %v4449 = vpack.c.b16 %v4432, %v4431
    %v4450 = vpack.c.b16 %v4434, %v4433
    %4451 = vrot.lane.b32.xlu0 %v4435, 4
    %v4452 = vpop.permute.xlu0 %4451
    %4453 = vrot.lane.b32.xlu0 %v4436, 4
    %v4454 = vpop.permute.xlu0 %4453
    %4455 = vrot.lane.b32.xlu0 %v4437, 4
    %v4456 = vpop.permute.xlu0 %4455
    %4457 = vrot.lane.b32.xlu0 %v4438, 4
    %v4458 = vpop.permute.xlu0 %4457
    %4459 = vrot.lane.b32.xlu0 %v4439, 4
    %v4460 = vpop.permute.xlu0 %4459
    %4461 = vrot.lane.b32.xlu0 %v4440, 4
    %v4462 = vpop.permute.xlu0 %4461
    %4463 = vrot.lane.b32.xlu0 %v4441, 4
    %v4464 = vpop.permute.xlu0 %4463
    %4465 = vrot.lane.b32.xlu0 %v4442, 4
    %v4466 = vpop.permute.xlu0 %4465
    %4467 = vrot.lane.b32.xlu0 %v4443, 4
    %v4468 = vpop.permute.xlu0 %4467
    %4469 = vrot.lane.b32.xlu0 %v4444, 4
    %v4470 = vpop.permute.xlu0 %4469
    %4471 = vrot.lane.b32.xlu0 %v4445, 4
    %v4472 = vpop.permute.xlu0 %4471
    %4473 = vrot.lane.b32.xlu0 %v4446, 4
    %v4474 = vpop.permute.xlu0 %4473
    %4475 = vrot.lane.b32.xlu0 %v4447, 4
    %v4476 = vpop.permute.xlu0 %4475
    %4477 = vrot.lane.b32.xlu0 %v4448, 4
    %v4478 = vpop.permute.xlu0 %4477
    %4479 = vrot.lane.b32.xlu0 %v4449, 4
    %v4480 = vpop.permute.xlu0 %4479
    %4481 = vrot.lane.b32.xlu0 %v4450, 4
    %v4482 = vpop.permute.xlu0 %4481
    %4499 = vst.msk [vmem:[#allocation2] sm:$0xff] %vm708, %v4452
    %4500 = vst.msk [vmem:[#allocation2 + $0x8] sm:$0xff] %vm708, %v4454
    %4501 = vst.msk [vmem:[#allocation2 + $0x10] sm:$0xff] %vm708, %v4456
    %4502 = vst.msk [vmem:[#allocation2 + $0x18] sm:$0xff] %vm708, %v4458
    %4503 = vst.msk [vmem:[#allocation2 + $0x20] sm:$0xff] %vm708, %v4460
    %4504 = vst.msk [vmem:[#allocation2 + $0x28] sm:$0xff] %vm708, %v4462
    %4505 = vst.msk [vmem:[#allocation2 + $0x30] sm:$0xff] %vm708, %v4464
    %4506 = vst.msk [vmem:[#allocation2 + $0x38] sm:$0xff] %vm708, %v4466
    %4507 = vst.msk [vmem:[#allocation2 + $0x40] sm:$0xff] %vm708, %v4468
    %4508 = vst.msk [vmem:[#allocation2 + $0x48] sm:$0xff] %vm708, %v4470
    %4509 = vst.msk [vmem:[#allocation2 + $0x50] sm:$0xff] %vm708, %v4472
    %4510 = vst.msk [vmem:[#allocation2 + $0x58] sm:$0xff] %vm708, %v4474
    %4511 = vst.msk [vmem:[#allocation2 + $0x60] sm:$0xff] %vm708, %v4476
    %4512 = vst.msk [vmem:[#allocation2 + $0x68] sm:$0xff] %vm708, %v4478
    %4513 = vst.msk [vmem:[#allocation2 + $0x70] sm:$0xff] %vm708, %v4480
    %4514 = vst.msk [vmem:[#allocation2 + $0x78] sm:$0xff] %vm708, %v4482
    %v4515 = vld [vmem:[%s3826] sm:$0xe]
    %v4516 = vld [vmem:[%s3826 + $0x4] sm:$0xf]
    %v4517 = vld [vmem:[%s3826 + $0x8] sm:$0x1]
    %v4518 = vld [vmem:[%s3826 + $0xc] sm:$0xe]
    %v4519 = vld [vmem:[%s3826 + $0x10] sm:$0xf]
    %v4520 = vld [vmem:[%s3826 + $0x14] sm:$0x1]
    %v4521 = vld [vmem:[%s3826 + $0x18] sm:$0xe]
    %v4522 = vld [vmem:[%s3826 + $0x1c] sm:$0xf]
    %v4523 = vld [vmem:[%s3826 + $0x20] sm:$0x1]
    %v4524 = vld [vmem:[%s3826 + $0x24] sm:$0xe]
    %v4525 = vld [vmem:[%s3826 + $0x28] sm:$0xf]
    %v4526 = vld [vmem:[%s3826 + $0x2c] sm:$0x1]
    %v4527 = vld [vmem:[%s3826 + $0x30] sm:$0xe]
    %v4528 = vld [vmem:[%s3826 + $0x34] sm:$0xf]
    %v4529 = vld [vmem:[%s3826 + $0x38] sm:$0x1]
    %v4530 = vld [vmem:[%s3826 + $0x3c] sm:$0xe]
    %v4531 = vld [vmem:[%s3826 + $0x40] sm:$0xf]
    %v4532 = vld [vmem:[%s3826 + $0x44] sm:$0x1]
    %v4533 = vld [vmem:[%s3826 + $0x48] sm:$0xe]
    %v4534 = vld [vmem:[%s3826 + $0x4c] sm:$0xf]
    %v4535 = vld [vmem:[%s3826 + $0x50] sm:$0x1]
    %v4536 = vld [vmem:[%s3826 + $0x54] sm:$0xe]
    %v4537 = vld [vmem:[%s3826 + $0x58] sm:$0xf]
    %v4538 = vld [vmem:[%s3826 + $0x5c] sm:$0x1]
    %v4539 = vld [vmem:[%s3826 + $0x60] sm:$0xe]
    %v4540 = vld [vmem:[%s3826 + $0x64] sm:$0xf]
    %v4541 = vld [vmem:[%s3826 + $0x68] sm:$0x1]
    %v4542 = vld [vmem:[%s3826 + $0x6c] sm:$0xe]
    %v4543 = vld [vmem:[%s3826 + $0x70] sm:$0xf]
    %v4544 = vld [vmem:[%s3826 + $0x74] sm:$0x1]
    %v4545 = vld [vmem:[%s3826 + $0x78] sm:$0xe]
    %v4546 = vld [vmem:[%s3826 + $0x7c] sm:$0xf]
    %v4547 = vld [vmem:[%s3826 + $0x80] sm:$0x1]
    %v4548 = vld [vmem:[%s3826 + $0x84] sm:$0xe]
    %v4549 = vld [vmem:[%s3826 + $0x88] sm:$0xf]
    %v4550 = vld [vmem:[%s3826 + $0x8c] sm:$0x1]
    %v4551 = vld [vmem:[%s3826 + $0x90] sm:$0xe]
    %v4552 = vld [vmem:[%s3826 + $0x94] sm:$0xf]
    %v4553 = vld [vmem:[%s3826 + $0x98] sm:$0x1]
    %v4554 = vld [vmem:[%s3826 + $0x9c] sm:$0xe]
    %v4555 = vld [vmem:[%s3826 + $0xa0] sm:$0xf]
    %v4556 = vld [vmem:[%s3826 + $0xa4] sm:$0x1]
    %v4557 = vld [vmem:[%s3826 + $0xa8] sm:$0xe]
    %v4558 = vld [vmem:[%s3826 + $0xac] sm:$0xf]
    %v4559 = vld [vmem:[%s3826 + $0xb0] sm:$0x1]
    %v4560 = vld [vmem:[%s3826 + $0xb4] sm:$0xe]
    %v4561 = vld [vmem:[%s3826 + $0xb8] sm:$0xf]
    %v4562 = vld [vmem:[%s3826 + $0xbc] sm:$0x1]
    %v4611 = vrot.slane %v4515, 5
    %v4612 = vrot.slane %v4611, 4
    %v4613 = vrot.slane %v4516, 5
    %v4614 = vsel %vm823, %v4612, %v4613
    %v4615 = vrot.slane %v4613, 4
    %v4616 = vrot.slane %v4517, 5
    %v4617 = vsel %vm823, %v4615, %v4616
    %v4618 = vrot.slane %v4518, 5
    %v4619 = vrot.slane %v4618, 4
    %v4620 = vrot.slane %v4519, 5
    %v4621 = vsel %vm823, %v4619, %v4620
    %v4622 = vrot.slane %v4620, 4
    %v4623 = vrot.slane %v4520, 5
    %v4624 = vsel %vm823, %v4622, %v4623
    %v4625 = vrot.slane %v4521, 5
    %v4626 = vrot.slane %v4625, 4
    %v4627 = vrot.slane %v4522, 5
    %v4628 = vsel %vm823, %v4626, %v4627
    %v4629 = vrot.slane %v4627, 4
    %v4630 = vrot.slane %v4523, 5
    %v4631 = vsel %vm823, %v4629, %v4630
    %v4632 = vrot.slane %v4524, 5
    %v4633 = vrot.slane %v4632, 4
    %v4634 = vrot.slane %v4525, 5
    %v4635 = vsel %vm823, %v4633, %v4634
    %v4636 = vrot.slane %v4634, 4
    %v4637 = vrot.slane %v4526, 5
    %v4638 = vsel %vm823, %v4636, %v4637
    %v4639 = vrot.slane %v4527, 5
    %v4640 = vrot.slane %v4639, 4
    %v4641 = vrot.slane %v4528, 5
    %v4642 = vsel %vm823, %v4640, %v4641
    %v4643 = vrot.slane %v4641, 4
    %v4644 = vrot.slane %v4529, 5
    %v4645 = vsel %vm823, %v4643, %v4644
    %v4646 = vrot.slane %v4530, 5
    %v4647 = vrot.slane %v4646, 4
    %v4648 = vrot.slane %v4531, 5
    %v4649 = vsel %vm823, %v4647, %v4648
    %v4650 = vrot.slane %v4648, 4
    %v4651 = vrot.slane %v4532, 5
    %v4652 = vsel %vm823, %v4650, %v4651
    %v4653 = vrot.slane %v4533, 5
    %v4654 = vrot.slane %v4653, 4
    %v4655 = vrot.slane %v4534, 5
    %v4656 = vsel %vm823, %v4654, %v4655
    %v4657 = vrot.slane %v4655, 4
    %v4658 = vrot.slane %v4535, 5
    %v4659 = vsel %vm823, %v4657, %v4658
    %v4660 = vrot.slane %v4536, 5
    %v4661 = vrot.slane %v4660, 4
    %v4662 = vrot.slane %v4537, 5
    %v4663 = vsel %vm823, %v4661, %v4662
    %v4664 = vrot.slane %v4662, 4
    %v4665 = vrot.slane %v4538, 5
    %v4666 = vsel %vm823, %v4664, %v4665
    %v4667 = vrot.slane %v4539, 5
    %v4668 = vrot.slane %v4667, 4
    %v4669 = vrot.slane %v4540, 5
    %v4670 = vsel %vm823, %v4668, %v4669
    %v4671 = vrot.slane %v4669, 4
    %v4672 = vrot.slane %v4541, 5
    %v4673 = vsel %vm823, %v4671, %v4672
    %v4674 = vrot.slane %v4542, 5
    %v4675 = vrot.slane %v4674, 4
    %v4676 = vrot.slane %v4543, 5
    %v4677 = vsel %vm823, %v4675, %v4676
    %v4678 = vrot.slane %v4676, 4
    %v4679 = vrot.slane %v4544, 5
    %v4680 = vsel %vm823, %v4678, %v4679
    %v4681 = vrot.slane %v4545, 5
    %v4682 = vrot.slane %v4681, 4
    %v4683 = vrot.slane %v4546, 5
    %v4684 = vsel %vm823, %v4682, %v4683
    %v4685 = vrot.slane %v4683, 4
    %v4686 = vrot.slane %v4547, 5
    %v4687 = vsel %vm823, %v4685, %v4686
    %v4688 = vrot.slane %v4548, 5
    %v4689 = vrot.slane %v4688, 4
    %v4690 = vrot.slane %v4549, 5
    %v4691 = vsel %vm823, %v4689, %v4690
    %v4692 = vrot.slane %v4690, 4
    %v4693 = vrot.slane %v4550, 5
    %v4694 = vsel %vm823, %v4692, %v4693
    %v4695 = vrot.slane %v4551, 5
    %v4696 = vrot.slane %v4695, 4
    %v4697 = vrot.slane %v4552, 5
    %v4698 = vsel %vm823, %v4696, %v4697
    %v4699 = vrot.slane %v4697, 4
    %v4700 = vrot.slane %v4553, 5
    %v4701 = vsel %vm823, %v4699, %v4700
    %v4702 = vrot.slane %v4554, 5
    %v4703 = vrot.slane %v4702, 4
    %v4704 = vrot.slane %v4555, 5
    %v4705 = vsel %vm823, %v4703, %v4704
    %v4706 = vrot.slane %v4704, 4
    %v4707 = vrot.slane %v4556, 5
    %v4708 = vsel %vm823, %v4706, %v4707
    %v4709 = vrot.slane %v4557, 5
    %v4710 = vrot.slane %v4709, 4
    %v4711 = vrot.slane %v4558, 5
    %v4712 = vsel %vm823, %v4710, %v4711
    %v4713 = vrot.slane %v4711, 4
    %v4714 = vrot.slane %v4559, 5
    %v4715 = vsel %vm823, %v4713, %v4714
    %v4716 = vrot.slane %v4560, 5
    %v4717 = vrot.slane %v4716, 4
    %v4718 = vrot.slane %v4561, 5
    %v4719 = vsel %vm823, %v4717, %v4718
    %v4720 = vrot.slane %v4718, 4
    %v4721 = vrot.slane %v4562, 5
    %v4722 = vsel %vm823, %v4720, %v4721
    %v4723 = vunpack.c.l.b16 %v4614
    %v4724 = vunpack.c.l.b16 %v4617
    %v4725 = vunpack.c.l.b16 %v4621
    %v4726 = vunpack.c.l.b16 %v4624
    %v4727 = vunpack.c.l.b16 %v4628
    %v4728 = vunpack.c.l.b16 %v4631
    %v4729 = vunpack.c.l.b16 %v4635
    %v4730 = vunpack.c.l.b16 %v4638
    %v4731 = vunpack.c.l.b16 %v4642
    %v4732 = vunpack.c.l.b16 %v4645
    %v4733 = vunpack.c.l.b16 %v4649
    %v4734 = vunpack.c.l.b16 %v4652
    %v4735 = vunpack.c.l.b16 %v4656
    %v4736 = vunpack.c.l.b16 %v4659
    %v4737 = vunpack.c.l.b16 %v4663
    %v4738 = vunpack.c.l.b16 %v4666
    %v4739 = vunpack.c.l.b16 %v4670
    %v4740 = vunpack.c.l.b16 %v4673
    %v4741 = vunpack.c.l.b16 %v4677
    %v4742 = vunpack.c.l.b16 %v4680
    %v4743 = vunpack.c.l.b16 %v4684
    %v4744 = vunpack.c.l.b16 %v4687
    %v4745 = vunpack.c.l.b16 %v4691
    %v4746 = vunpack.c.l.b16 %v4694
    %v4747 = vunpack.c.l.b16 %v4698
    %v4748 = vunpack.c.l.b16 %v4701
    %v4749 = vunpack.c.l.b16 %v4705
    %v4750 = vunpack.c.l.b16 %v4708
    %v4751 = vunpack.c.l.b16 %v4712
    %v4752 = vunpack.c.l.b16 %v4715
    %v4753 = vunpack.c.l.b16 %v4719
    %v4754 = vunpack.c.l.b16 %v4722
    %v4755 = vpack.c.b16 %v4724, %v4723
    %v4756 = vpack.c.b16 %v4726, %v4725
    %v4757 = vpack.c.b16 %v4728, %v4727
    %v4758 = vpack.c.b16 %v4730, %v4729
    %v4759 = vpack.c.b16 %v4732, %v4731
    %v4760 = vpack.c.b16 %v4734, %v4733
    %v4761 = vpack.c.b16 %v4736, %v4735
    %v4762 = vpack.c.b16 %v4738, %v4737
    %v4763 = vpack.c.b16 %v4740, %v4739
    %v4764 = vpack.c.b16 %v4742, %v4741
    %v4765 = vpack.c.b16 %v4744, %v4743
    %v4766 = vpack.c.b16 %v4746, %v4745
    %v4767 = vpack.c.b16 %v4748, %v4747
    %v4768 = vpack.c.b16 %v4750, %v4749
    %v4769 = vpack.c.b16 %v4752, %v4751
    %v4770 = vpack.c.b16 %v4754, %v4753
    %4771 = vrot.lane.b32.xlu0 %v4755, 8
    %v4772 = vpop.permute.xlu0 %4771
    %4773 = vrot.lane.b32.xlu0 %v4756, 8
    %v4774 = vpop.permute.xlu0 %4773
    %4775 = vrot.lane.b32.xlu0 %v4757, 8
    %v4776 = vpop.permute.xlu0 %4775
    %4777 = vrot.lane.b32.xlu0 %v4758, 8
    %v4778 = vpop.permute.xlu0 %4777
    %4779 = vrot.lane.b32.xlu0 %v4759, 8
    %v4780 = vpop.permute.xlu0 %4779
    %4781 = vrot.lane.b32.xlu0 %v4760, 8
    %v4782 = vpop.permute.xlu0 %4781
    %4783 = vrot.lane.b32.xlu0 %v4761, 8
    %v4784 = vpop.permute.xlu0 %4783
    %4785 = vrot.lane.b32.xlu0 %v4762, 8
    %v4786 = vpop.permute.xlu0 %4785
    %4787 = vrot.lane.b32.xlu0 %v4763, 8
    %v4788 = vpop.permute.xlu0 %4787
    %4789 = vrot.lane.b32.xlu0 %v4764, 8
    %v4790 = vpop.permute.xlu0 %4789
    %4791 = vrot.lane.b32.xlu0 %v4765, 8
    %v4792 = vpop.permute.xlu0 %4791
    %4793 = vrot.lane.b32.xlu0 %v4766, 8
    %v4794 = vpop.permute.xlu0 %4793
    %4795 = vrot.lane.b32.xlu0 %v4767, 8
    %v4796 = vpop.permute.xlu0 %4795
    %4797 = vrot.lane.b32.xlu0 %v4768, 8
    %v4798 = vpop.permute.xlu0 %4797
    %4799 = vrot.lane.b32.xlu0 %v4769, 8
    %v4800 = vpop.permute.xlu0 %4799
    %4801 = vrot.lane.b32.xlu0 %v4770, 8
    %v4802 = vpop.permute.xlu0 %4801
    %4819 = vst.msk [vmem:[#allocation2] sm:$0xff] %vm1032, %v4772
    %4820 = vst.msk [vmem:[#allocation2 + $0x8] sm:$0xff] %vm1032, %v4774
    %4821 = vst.msk [vmem:[#allocation2 + $0x10] sm:$0xff] %vm1032, %v4776
    %4822 = vst.msk [vmem:[#allocation2 + $0x18] sm:$0xff] %vm1032, %v4778
    %4823 = vst.msk [vmem:[#allocation2 + $0x20] sm:$0xff] %vm1032, %v4780
    %4824 = vst.msk [vmem:[#allocation2 + $0x28] sm:$0xff] %vm1032, %v4782
    %4825 = vst.msk [vmem:[#allocation2 + $0x30] sm:$0xff] %vm1032, %v4784
    %4826 = vst.msk [vmem:[#allocation2 + $0x38] sm:$0xff] %vm1032, %v4786
    %4827 = vst.msk [vmem:[#allocation2 + $0x40] sm:$0xff] %vm1032, %v4788
    %4828 = vst.msk [vmem:[#allocation2 + $0x48] sm:$0xff] %vm1032, %v4790
    %4829 = vst.msk [vmem:[#allocation2 + $0x50] sm:$0xff] %vm1032, %v4792
    %4830 = vst.msk [vmem:[#allocation2 + $0x58] sm:$0xff] %vm1032, %v4794
    %4831 = vst.msk [vmem:[#allocation2 + $0x60] sm:$0xff] %vm1032, %v4796
    %4832 = vst.msk [vmem:[#allocation2 + $0x68] sm:$0xff] %vm1032, %v4798
    %4833 = vst.msk [vmem:[#allocation2 + $0x70] sm:$0xff] %vm1032, %v4800
    %4834 = vst.msk [vmem:[#allocation2 + $0x78] sm:$0xff] %vm1032, %v4802
    %s4835 = scalar_lea.vmem %s0, 228
    %v4836 = vld [vmem:[%s4835] sm:$0xf]
    %v4837 = vld [vmem:[%s4835 + $0x4] sm:$0xf]
    %v4838 = vld [vmem:[%s4835 + $0xc] sm:$0xf]
    %v4839 = vld [vmem:[%s4835 + $0x10] sm:$0xf]
    %v4840 = vld [vmem:[%s4835 + $0x18] sm:$0xf]
    %v4841 = vld [vmem:[%s4835 + $0x1c] sm:$0xf]
    %v4842 = vld [vmem:[%s4835 + $0x24] sm:$0xf]
    %v4843 = vld [vmem:[%s4835 + $0x28] sm:$0xf]
    %v4844 = vld [vmem:[%s4835 + $0x30] sm:$0xf]
    %v4845 = vld [vmem:[%s4835 + $0x34] sm:$0xf]
    %v4846 = vld [vmem:[%s4835 + $0x3c] sm:$0xf]
    %v4847 = vld [vmem:[%s4835 + $0x40] sm:$0xf]
    %v4848 = vld [vmem:[%s4835 + $0x48] sm:$0xf]
    %v4849 = vld [vmem:[%s4835 + $0x4c] sm:$0xf]
    %v4850 = vld [vmem:[%s4835 + $0x54] sm:$0xf]
    %v4851 = vld [vmem:[%s4835 + $0x58] sm:$0xf]
    %v4852 = vld [vmem:[%s4835 + $0x60] sm:$0xf]
    %v4853 = vld [vmem:[%s4835 + $0x64] sm:$0xf]
    %v4854 = vld [vmem:[%s4835 + $0x6c] sm:$0xf]
    %v4855 = vld [vmem:[%s4835 + $0x70] sm:$0xf]
    %v4856 = vld [vmem:[%s4835 + $0x78] sm:$0xf]
    %v4857 = vld [vmem:[%s4835 + $0x7c] sm:$0xf]
    %v4858 = vld [vmem:[%s4835 + $0x84] sm:$0xf]
    %v4859 = vld [vmem:[%s4835 + $0x88] sm:$0xf]
    %v4860 = vld [vmem:[%s4835 + $0x90] sm:$0xf]
    %v4861 = vld [vmem:[%s4835 + $0x94] sm:$0xf]
    %v4862 = vld [vmem:[%s4835 + $0x9c] sm:$0xf]
    %v4863 = vld [vmem:[%s4835 + $0xa0] sm:$0xf]
    %v4864 = vld [vmem:[%s4835 + $0xa8] sm:$0xf]
    %v4865 = vld [vmem:[%s4835 + $0xac] sm:$0xf]
    %v4866 = vld [vmem:[%s4835 + $0xb4] sm:$0xf]
    %v4867 = vld [vmem:[%s4835 + $0xb8] sm:$0xf]
    %v4900 = vunpack.c.l.b16 %v4836
    %v4901 = vunpack.c.l.b16 %v4837
    %v4902 = vunpack.c.l.b16 %v4838
    %v4903 = vunpack.c.l.b16 %v4839
    %v4904 = vunpack.c.l.b16 %v4840
    %v4905 = vunpack.c.l.b16 %v4841
    %v4906 = vunpack.c.l.b16 %v4842
    %v4907 = vunpack.c.l.b16 %v4843
    %v4908 = vunpack.c.l.b16 %v4844
    %v4909 = vunpack.c.l.b16 %v4845
    %v4910 = vunpack.c.l.b16 %v4846
    %v4911 = vunpack.c.l.b16 %v4847
    %v4912 = vunpack.c.l.b16 %v4848
    %v4913 = vunpack.c.l.b16 %v4849
    %v4914 = vunpack.c.l.b16 %v4850
    %v4915 = vunpack.c.l.b16 %v4851
    %v4916 = vunpack.c.l.b16 %v4852
    %v4917 = vunpack.c.l.b16 %v4853
    %v4918 = vunpack.c.l.b16 %v4854
    %v4919 = vunpack.c.l.b16 %v4855
    %v4920 = vunpack.c.l.b16 %v4856
    %v4921 = vunpack.c.l.b16 %v4857
    %v4922 = vunpack.c.l.b16 %v4858
    %v4923 = vunpack.c.l.b16 %v4859
    %v4924 = vunpack.c.l.b16 %v4860
    %v4925 = vunpack.c.l.b16 %v4861
    %v4926 = vunpack.c.l.b16 %v4862
    %v4927 = vunpack.c.l.b16 %v4863
    %v4928 = vunpack.c.l.b16 %v4864
    %v4929 = vunpack.c.l.b16 %v4865
    %v4930 = vunpack.c.l.b16 %v4866
    %v4931 = vunpack.c.l.b16 %v4867
    %v4932 = vpack.c.b16 %v4901, %v4900
    %v4933 = vpack.c.b16 %v4903, %v4902
    %v4934 = vpack.c.b16 %v4905, %v4904
    %v4935 = vpack.c.b16 %v4907, %v4906
    %v4936 = vpack.c.b16 %v4909, %v4908
    %v4937 = vpack.c.b16 %v4911, %v4910
    %v4938 = vpack.c.b16 %v4913, %v4912
    %v4939 = vpack.c.b16 %v4915, %v4914
    %v4940 = vpack.c.b16 %v4917, %v4916
    %v4941 = vpack.c.b16 %v4919, %v4918
    %v4942 = vpack.c.b16 %v4921, %v4920
    %v4943 = vpack.c.b16 %v4923, %v4922
    %v4944 = vpack.c.b16 %v4925, %v4924
    %v4945 = vpack.c.b16 %v4927, %v4926
    %v4946 = vpack.c.b16 %v4929, %v4928
    %v4947 = vpack.c.b16 %v4931, %v4930
    %4948 = vrot.lane.b32.xlu0 %v4932, 12
    %v4949 = vpop.permute.xlu0 %4948
    %4950 = vrot.lane.b32.xlu0 %v4933, 12
    %v4951 = vpop.permute.xlu0 %4950
    %4952 = vrot.lane.b32.xlu0 %v4934, 12
    %v4953 = vpop.permute.xlu0 %4952
    %4954 = vrot.lane.b32.xlu0 %v4935, 12
    %v4955 = vpop.permute.xlu0 %4954
    %4956 = vrot.lane.b32.xlu0 %v4936, 12
    %v4957 = vpop.permute.xlu0 %4956
    %4958 = vrot.lane.b32.xlu0 %v4937, 12
    %v4959 = vpop.permute.xlu0 %4958
    %4960 = vrot.lane.b32.xlu0 %v4938, 12
    %v4961 = vpop.permute.xlu0 %4960
    %4962 = vrot.lane.b32.xlu0 %v4939, 12
    %v4963 = vpop.permute.xlu0 %4962
    %4964 = vrot.lane.b32.xlu0 %v4940, 12
    %v4965 = vpop.permute.xlu0 %4964
    %4966 = vrot.lane.b32.xlu0 %v4941, 12
    %v4967 = vpop.permute.xlu0 %4966
    %4968 = vrot.lane.b32.xlu0 %v4942, 12
    %v4969 = vpop.permute.xlu0 %4968
    %4970 = vrot.lane.b32.xlu0 %v4943, 12
    %v4971 = vpop.permute.xlu0 %4970
    %4972 = vrot.lane.b32.xlu0 %v4944, 12
    %v4973 = vpop.permute.xlu0 %4972
    %4974 = vrot.lane.b32.xlu0 %v4945, 12
    %v4975 = vpop.permute.xlu0 %4974
    %4976 = vrot.lane.b32.xlu0 %v4946, 12
    %v4977 = vpop.permute.xlu0 %4976
    %4978 = vrot.lane.b32.xlu0 %v4947, 12
    %v4979 = vpop.permute.xlu0 %4978
    %4996 = vst.msk [vmem:[#allocation2] sm:$0xff] %vm1210, %v4949
    %4997 = vst.msk [vmem:[#allocation2 + $0x8] sm:$0xff] %vm1210, %v4951
    %4998 = vst.msk [vmem:[#allocation2 + $0x10] sm:$0xff] %vm1210, %v4953
    %4999 = vst.msk [vmem:[#allocation2 + $0x18] sm:$0xff] %vm1210, %v4955
    %5000 = vst.msk [vmem:[#allocation2 + $0x20] sm:$0xff] %vm1210, %v4957
    %5001 = vst.msk [vmem:[#allocation2 + $0x28] sm:$0xff] %vm1210, %v4959
    %5002 = vst.msk [vmem:[#allocation2 + $0x30] sm:$0xff] %vm1210, %v4961
    %5003 = vst.msk [vmem:[#allocation2 + $0x38] sm:$0xff] %vm1210, %v4963
    %5004 = vst.msk [vmem:[#allocation2 + $0x40] sm:$0xff] %vm1210, %v4965
    %5005 = vst.msk [vmem:[#allocation2 + $0x48] sm:$0xff] %vm1210, %v4967
    %5006 = vst.msk [vmem:[#allocation2 + $0x50] sm:$0xff] %vm1210, %v4969
    %5007 = vst.msk [vmem:[#allocation2 + $0x58] sm:$0xff] %vm1210, %v4971
    %5008 = vst.msk [vmem:[#allocation2 + $0x60] sm:$0xff] %vm1210, %v4973
    %5009 = vst.msk [vmem:[#allocation2 + $0x68] sm:$0xff] %vm1210, %v4975
    %5010 = vst.msk [vmem:[#allocation2 + $0x70] sm:$0xff] %vm1210, %v4977
    %5011 = vst.msk [vmem:[#allocation2 + $0x78] sm:$0xff] %vm1210, %v4979
    %v5012 = vld [vmem:[%s4835] sm:$0xf]
    %v5013 = vld [vmem:[%s4835 + $0x4] sm:$0xf]
    %v5014 = vld [vmem:[%s4835 + $0x8] sm:$0x1]
    %v5015 = vld [vmem:[%s4835 + $0xc] sm:$0xf]
    %v5016 = vld [vmem:[%s4835 + $0x10] sm:$0xf]
    %v5017 = vld [vmem:[%s4835 + $0x14] sm:$0x1]
    %v5018 = vld [vmem:[%s4835 + $0x18] sm:$0xf]
    %v5019 = vld [vmem:[%s4835 + $0x1c] sm:$0xf]
    %v5020 = vld [vmem:[%s4835 + $0x20] sm:$0x1]
    %v5021 = vld [vmem:[%s4835 + $0x24] sm:$0xf]
    %v5022 = vld [vmem:[%s4835 + $0x28] sm:$0xf]
    %v5023 = vld [vmem:[%s4835 + $0x2c] sm:$0x1]
    %v5024 = vld [vmem:[%s4835 + $0x30] sm:$0xf]
    %v5025 = vld [vmem:[%s4835 + $0x34] sm:$0xf]
    %v5026 = vld [vmem:[%s4835 + $0x38] sm:$0x1]
    %v5027 = vld [vmem:[%s4835 + $0x3c] sm:$0xf]
    %v5028 = vld [vmem:[%s4835 + $0x40] sm:$0xf]
    %v5029 = vld [vmem:[%s4835 + $0x44] sm:$0x1]
    %v5030 = vld [vmem:[%s4835 + $0x48] sm:$0xf]
    %v5031 = vld [vmem:[%s4835 + $0x4c] sm:$0xf]
    %v5032 = vld [vmem:[%s4835 + $0x50] sm:$0x1]
    %v5033 = vld [vmem:[%s4835 + $0x54] sm:$0xf]
    %v5034 = vld [vmem:[%s4835 + $0x58] sm:$0xf]
    %v5035 = vld [vmem:[%s4835 + $0x5c] sm:$0x1]
    %v5036 = vld [vmem:[%s4835 + $0x60] sm:$0xf]
    %v5037 = vld [vmem:[%s4835 + $0x64] sm:$0xf]
    %v5038 = vld [vmem:[%s4835 + $0x68] sm:$0x1]
    %v5039 = vld [vmem:[%s4835 + $0x6c] sm:$0xf]
    %v5040 = vld [vmem:[%s4835 + $0x70] sm:$0xf]
    %v5041 = vld [vmem:[%s4835 + $0x74] sm:$0x1]
    %v5042 = vld [vmem:[%s4835 + $0x78] sm:$0xf]
    %v5043 = vld [vmem:[%s4835 + $0x7c] sm:$0xf]
    %v5044 = vld [vmem:[%s4835 + $0x80] sm:$0x1]
    %v5045 = vld [vmem:[%s4835 + $0x84] sm:$0xf]
    %v5046 = vld [vmem:[%s4835 + $0x88] sm:$0xf]
    %v5047 = vld [vmem:[%s4835 + $0x8c] sm:$0x1]
    %v5048 = vld [vmem:[%s4835 + $0x90] sm:$0xf]
    %v5049 = vld [vmem:[%s4835 + $0x94] sm:$0xf]
    %v5050 = vld [vmem:[%s4835 + $0x98] sm:$0x1]
    %v5051 = vld [vmem:[%s4835 + $0x9c] sm:$0xf]
    %v5052 = vld [vmem:[%s4835 + $0xa0] sm:$0xf]
    %v5053 = vld [vmem:[%s4835 + $0xa4] sm:$0x1]
    %v5054 = vld [vmem:[%s4835 + $0xa8] sm:$0xf]
    %v5055 = vld [vmem:[%s4835 + $0xac] sm:$0xf]
    %v5056 = vld [vmem:[%s4835 + $0xb0] sm:$0x1]
    %v5057 = vld [vmem:[%s4835 + $0xb4] sm:$0xf]
    %v5058 = vld [vmem:[%s4835 + $0xb8] sm:$0xf]
    %v5059 = vld [vmem:[%s4835 + $0xbc] sm:$0x1]
    %v5061 = vshrl.u32 %v5012, 16
    %v5063 = vrot.slane %v5061, 4
    %v5064 = vshll.u32 %v5012, 16
    %v5066 = vrot.slane %v5064, 5
    %v5067 = vor.u32 %v5063, %v5066
    %v5068 = vrot.slane %v5067, 4
    %v5070 = vshll.u32 %v5013, 16
    %v5072 = vrot.slane %v5070, 5
    %v5073 = vsel %vm227, %v5068, %v5072
    %v5074 = vshrl.u32 %v5013, 16
    %v5076 = vrot.slane %v5074, 4
    %v5077 = vor.u32 %v5076, %v5072
    %v5078 = vrot.slane %v5077, 4
    %v5080 = vshll.u32 %v5014, 16
    %v5082 = vrot.slane %v5080, 5
    %v5083 = vsel %vm227, %v5078, %v5082
    %v5085 = vshrl.u32 %v5015, 16
    %v5087 = vrot.slane %v5085, 4
    %v5088 = vshll.u32 %v5015, 16
    %v5090 = vrot.slane %v5088, 5
    %v5091 = vor.u32 %v5087, %v5090
    %v5092 = vrot.slane %v5091, 4
    %v5094 = vshll.u32 %v5016, 16
    %v5096 = vrot.slane %v5094, 5
    %v5097 = vsel %vm227, %v5092, %v5096
    %v5098 = vshrl.u32 %v5016, 16
    %v5100 = vrot.slane %v5098, 4
    %v5101 = vor.u32 %v5100, %v5096
    %v5102 = vrot.slane %v5101, 4
    %v5104 = vshll.u32 %v5017, 16
    %v5106 = vrot.slane %v5104, 5
    %v5107 = vsel %vm227, %v5102, %v5106
    %v5109 = vshrl.u32 %v5018, 16
    %v5111 = vrot.slane %v5109, 4
    %v5112 = vshll.u32 %v5018, 16
    %v5114 = vrot.slane %v5112, 5
    %v5115 = vor.u32 %v5111, %v5114
    %v5116 = vrot.slane %v5115, 4
    %v5118 = vshll.u32 %v5019, 16
    %v5120 = vrot.slane %v5118, 5
    %v5121 = vsel %vm227, %v5116, %v5120
    %v5122 = vshrl.u32 %v5019, 16
    %v5124 = vrot.slane %v5122, 4
    %v5125 = vor.u32 %v5124, %v5120
    %v5126 = vrot.slane %v5125, 4
    %v5128 = vshll.u32 %v5020, 16
    %v5130 = vrot.slane %v5128, 5
    %v5131 = vsel %vm227, %v5126, %v5130
    %v5133 = vshrl.u32 %v5021, 16
    %v5135 = vrot.slane %v5133, 4
    %v5136 = vshll.u32 %v5021, 16
    %v5138 = vrot.slane %v5136, 5
    %v5139 = vor.u32 %v5135, %v5138
    %v5140 = vrot.slane %v5139, 4
    %v5142 = vshll.u32 %v5022, 16
    %v5144 = vrot.slane %v5142, 5
    %v5145 = vsel %vm227, %v5140, %v5144
    %v5146 = vshrl.u32 %v5022, 16
    %v5148 = vrot.slane %v5146, 4
    %v5149 = vor.u32 %v5148, %v5144
    %v5150 = vrot.slane %v5149, 4
    %v5152 = vshll.u32 %v5023, 16
    %v5154 = vrot.slane %v5152, 5
    %v5155 = vsel %vm227, %v5150, %v5154
    %v5157 = vshrl.u32 %v5024, 16
    %v5159 = vrot.slane %v5157, 4
    %v5160 = vshll.u32 %v5024, 16
    %v5162 = vrot.slane %v5160, 5
    %v5163 = vor.u32 %v5159, %v5162
    %v5164 = vrot.slane %v5163, 4
    %v5166 = vshll.u32 %v5025, 16
    %v5168 = vrot.slane %v5166, 5
    %v5169 = vsel %vm227, %v5164, %v5168
    %v5170 = vshrl.u32 %v5025, 16
    %v5172 = vrot.slane %v5170, 4
    %v5173 = vor.u32 %v5172, %v5168
    %v5174 = vrot.slane %v5173, 4
    %v5176 = vshll.u32 %v5026, 16
    %v5178 = vrot.slane %v5176, 5
    %v5179 = vsel %vm227, %v5174, %v5178
    %v5181 = vshrl.u32 %v5027, 16
    %v5183 = vrot.slane %v5181, 4
    %v5184 = vshll.u32 %v5027, 16
    %v5186 = vrot.slane %v5184, 5
    %v5187 = vor.u32 %v5183, %v5186
    %v5188 = vrot.slane %v5187, 4
    %v5190 = vshll.u32 %v5028, 16
    %v5192 = vrot.slane %v5190, 5
    %v5193 = vsel %vm227, %v5188, %v5192
    %v5194 = vshrl.u32 %v5028, 16
    %v5196 = vrot.slane %v5194, 4
    %v5197 = vor.u32 %v5196, %v5192
    %v5198 = vrot.slane %v5197, 4
    %v5200 = vshll.u32 %v5029, 16
    %v5202 = vrot.slane %v5200, 5
    %v5203 = vsel %vm227, %v5198, %v5202
    %v5205 = vshrl.u32 %v5030, 16
    %v5207 = vrot.slane %v5205, 4
    %v5208 = vshll.u32 %v5030, 16
    %v5210 = vrot.slane %v5208, 5
    %v5211 = vor.u32 %v5207, %v5210
    %v5212 = vrot.slane %v5211, 4
    %v5214 = vshll.u32 %v5031, 16
    %v5216 = vrot.slane %v5214, 5
    %v5217 = vsel %vm227, %v5212, %v5216
    %v5218 = vshrl.u32 %v5031, 16
    %v5220 = vrot.slane %v5218, 4
    %v5221 = vor.u32 %v5220, %v5216
    %v5222 = vrot.slane %v5221, 4
    %v5224 = vshll.u32 %v5032, 16
    %v5226 = vrot.slane %v5224, 5
    %v5227 = vsel %vm227, %v5222, %v5226
    %v5229 = vshrl.u32 %v5033, 16
    %v5231 = vrot.slane %v5229, 4
    %v5232 = vshll.u32 %v5033, 16
    %v5234 = vrot.slane %v5232, 5
    %v5235 = vor.u32 %v5231, %v5234
    %v5236 = vrot.slane %v5235, 4
    %v5238 = vshll.u32 %v5034, 16
    %v5240 = vrot.slane %v5238, 5
    %v5241 = vsel %vm227, %v5236, %v5240
    %v5242 = vshrl.u32 %v5034, 16
    %v5244 = vrot.slane %v5242, 4
    %v5245 = vor.u32 %v5244, %v5240
    %v5246 = vrot.slane %v5245, 4
    %v5248 = vshll.u32 %v5035, 16
    %v5250 = vrot.slane %v5248, 5
    %v5251 = vsel %vm227, %v5246, %v5250
    %v5253 = vshrl.u32 %v5036, 16
    %v5255 = vrot.slane %v5253, 4
    %v5256 = vshll.u32 %v5036, 16
    %v5258 = vrot.slane %v5256, 5
    %v5259 = vor.u32 %v5255, %v5258
    %v5260 = vrot.slane %v5259, 4
    %v5262 = vshll.u32 %v5037, 16
    %v5264 = vrot.slane %v5262, 5
    %v5265 = vsel %vm227, %v5260, %v5264
    %v5266 = vshrl.u32 %v5037, 16
    %v5268 = vrot.slane %v5266, 4
    %v5269 = vor.u32 %v5268, %v5264
    %v5270 = vrot.slane %v5269, 4
    %v5272 = vshll.u32 %v5038, 16
    %v5274 = vrot.slane %v5272, 5
    %v5275 = vsel %vm227, %v5270, %v5274
    %v5277 = vshrl.u32 %v5039, 16
    %v5279 = vrot.slane %v5277, 4
    %v5280 = vshll.u32 %v5039, 16
    %v5282 = vrot.slane %v5280, 5
    %v5283 = vor.u32 %v5279, %v5282
    %v5284 = vrot.slane %v5283, 4
    %v5286 = vshll.u32 %v5040, 16
    %v5288 = vrot.slane %v5286, 5
    %v5289 = vsel %vm227, %v5284, %v5288
    %v5290 = vshrl.u32 %v5040, 16
    %v5292 = vrot.slane %v5290, 4
    %v5293 = vor.u32 %v5292, %v5288
    %v5294 = vrot.slane %v5293, 4
    %v5296 = vshll.u32 %v5041, 16
    %v5298 = vrot.slane %v5296, 5
    %v5299 = vsel %vm227, %v5294, %v5298
    %v5301 = vshrl.u32 %v5042, 16
    %v5303 = vrot.slane %v5301, 4
    %v5304 = vshll.u32 %v5042, 16
    %v5306 = vrot.slane %v5304, 5
    %v5307 = vor.u32 %v5303, %v5306
    %v5308 = vrot.slane %v5307, 4
    %v5310 = vshll.u32 %v5043, 16
    %v5312 = vrot.slane %v5310, 5
    %v5313 = vsel %vm227, %v5308, %v5312
    %v5314 = vshrl.u32 %v5043, 16
    %v5316 = vrot.slane %v5314, 4
    %v5317 = vor.u32 %v5316, %v5312
    %v5318 = vrot.slane %v5317, 4
    %v5320 = vshll.u32 %v5044, 16
    %v5322 = vrot.slane %v5320, 5
    %v5323 = vsel %vm227, %v5318, %v5322
    %v5325 = vshrl.u32 %v5045, 16
    %v5327 = vrot.slane %v5325, 4
    %v5328 = vshll.u32 %v5045, 16
    %v5330 = vrot.slane %v5328, 5
    %v5331 = vor.u32 %v5327, %v5330
    %v5332 = vrot.slane %v5331, 4
    %v5334 = vshll.u32 %v5046, 16
    %v5336 = vrot.slane %v5334, 5
    %v5337 = vsel %vm227, %v5332, %v5336
    %v5338 = vshrl.u32 %v5046, 16
    %v5340 = vrot.slane %v5338, 4
    %v5341 = vor.u32 %v5340, %v5336
    %v5342 = vrot.slane %v5341, 4
    %v5344 = vshll.u32 %v5047, 16
    %v5346 = vrot.slane %v5344, 5
    %v5347 = vsel %vm227, %v5342, %v5346
    %v5349 = vshrl.u32 %v5048, 16
    %v5351 = vrot.slane %v5349, 4
    %v5352 = vshll.u32 %v5048, 16
    %v5354 = vrot.slane %v5352, 5
    %v5355 = vor.u32 %v5351, %v5354
    %v5356 = vrot.slane %v5355, 4
    %v5358 = vshll.u32 %v5049, 16
    %v5360 = vrot.slane %v5358, 5
    %v5361 = vsel %vm227, %v5356, %v5360
    %v5362 = vshrl.u32 %v5049, 16
    %v5364 = vrot.slane %v5362, 4
    %v5365 = vor.u32 %v5364, %v5360
    %v5366 = vrot.slane %v5365, 4
    %v5368 = vshll.u32 %v5050, 16
    %v5370 = vrot.slane %v5368, 5
    %v5371 = vsel %vm227, %v5366, %v5370
    %v5373 = vshrl.u32 %v5051, 16
    %v5375 = vrot.slane %v5373, 4
    %v5376 = vshll.u32 %v5051, 16
    %v5378 = vrot.slane %v5376, 5
    %v5379 = vor.u32 %v5375, %v5378
    %v5380 = vrot.slane %v5379, 4
    %v5382 = vshll.u32 %v5052, 16
    %v5384 = vrot.slane %v5382, 5
    %v5385 = vsel %vm227, %v5380, %v5384
    %v5386 = vshrl.u32 %v5052, 16
    %v5388 = vrot.slane %v5386, 4
    %v5389 = vor.u32 %v5388, %v5384
    %v5390 = vrot.slane %v5389, 4
    %v5392 = vshll.u32 %v5053, 16
    %v5394 = vrot.slane %v5392, 5
    %v5395 = vsel %vm227, %v5390, %v5394
    %v5397 = vshrl.u32 %v5054, 16
    %v5399 = vrot.slane %v5397, 4
    %v5400 = vshll.u32 %v5054, 16
    %v5402 = vrot.slane %v5400, 5
    %v5403 = vor.u32 %v5399, %v5402
    %v5404 = vrot.slane %v5403, 4
    %v5406 = vshll.u32 %v5055, 16
    %v5408 = vrot.slane %v5406, 5
    %v5409 = vsel %vm227, %v5404, %v5408
    %v5410 = vshrl.u32 %v5055, 16
    %v5412 = vrot.slane %v5410, 4
    %v5413 = vor.u32 %v5412, %v5408
    %v5414 = vrot.slane %v5413, 4
    %v5416 = vshll.u32 %v5056, 16
    %v5418 = vrot.slane %v5416, 5
    %v5419 = vsel %vm227, %v5414, %v5418
    %v5421 = vshrl.u32 %v5057, 16
    %v5423 = vrot.slane %v5421, 4
    %v5424 = vshll.u32 %v5057, 16
    %v5426 = vrot.slane %v5424, 5
    %v5427 = vor.u32 %v5423, %v5426
    %v5428 = vrot.slane %v5427, 4
    %v5430 = vshll.u32 %v5058, 16
    %v5432 = vrot.slane %v5430, 5
    %v5433 = vsel %vm227, %v5428, %v5432
    %v5434 = vshrl.u32 %v5058, 16
    %v5436 = vrot.slane %v5434, 4
    %v5437 = vor.u32 %v5436, %v5432
    %v5438 = vrot.slane %v5437, 4
    %v5440 = vshll.u32 %v5059, 16
    %v5442 = vrot.slane %v5440, 5
    %v5443 = vsel %vm227, %v5438, %v5442
    %v5444 = vunpack.c.l.b16 %v5073
    %v5445 = vunpack.c.l.b16 %v5083
    %v5446 = vunpack.c.l.b16 %v5097
    %v5447 = vunpack.c.l.b16 %v5107
    %v5448 = vunpack.c.l.b16 %v5121
    %v5449 = vunpack.c.l.b16 %v5131
    %v5450 = vunpack.c.l.b16 %v5145
    %v5451 = vunpack.c.l.b16 %v5155
    %v5452 = vunpack.c.l.b16 %v5169
    %v5453 = vunpack.c.l.b16 %v5179
    %v5454 = vunpack.c.l.b16 %v5193
    %v5455 = vunpack.c.l.b16 %v5203
    %v5456 = vunpack.c.l.b16 %v5217
    %v5457 = vunpack.c.l.b16 %v5227
    %v5458 = vunpack.c.l.b16 %v5241
    %v5459 = vunpack.c.l.b16 %v5251
    %v5460 = vunpack.c.l.b16 %v5265
    %v5461 = vunpack.c.l.b16 %v5275
    %v5462 = vunpack.c.l.b16 %v5289
    %v5463 = vunpack.c.l.b16 %v5299
    %v5464 = vunpack.c.l.b16 %v5313
    %v5465 = vunpack.c.l.b16 %v5323
    %v5466 = vunpack.c.l.b16 %v5337
    %v5467 = vunpack.c.l.b16 %v5347
    %v5468 = vunpack.c.l.b16 %v5361
    %v5469 = vunpack.c.l.b16 %v5371
    %v5470 = vunpack.c.l.b16 %v5385
    %v5471 = vunpack.c.l.b16 %v5395
    %v5472 = vunpack.c.l.b16 %v5409
    %v5473 = vunpack.c.l.b16 %v5419
    %v5474 = vunpack.c.l.b16 %v5433
    %v5475 = vunpack.c.l.b16 %v5443
    %v5476 = vpack.c.b16 %v5445, %v5444
    %v5477 = vpack.c.b16 %v5447, %v5446
    %v5478 = vpack.c.b16 %v5449, %v5448
    %v5479 = vpack.c.b16 %v5451, %v5450
    %v5480 = vpack.c.b16 %v5453, %v5452
    %v5481 = vpack.c.b16 %v5455, %v5454
    %v5482 = vpack.c.b16 %v5457, %v5456
    %v5483 = vpack.c.b16 %v5459, %v5458
    %v5484 = vpack.c.b16 %v5461, %v5460
    %v5485 = vpack.c.b16 %v5463, %v5462
    %v5486 = vpack.c.b16 %v5465, %v5464
    %v5487 = vpack.c.b16 %v5467, %v5466
    %v5488 = vpack.c.b16 %v5469, %v5468
    %v5489 = vpack.c.b16 %v5471, %v5470
    %v5490 = vpack.c.b16 %v5473, %v5472
    %v5491 = vpack.c.b16 %v5475, %v5474
    %5492 = vrot.lane.b32.xlu0 %v5476, 16
    %v5493 = vpop.permute.xlu0 %5492
    %5494 = vrot.lane.b32.xlu0 %v5477, 16
    %v5495 = vpop.permute.xlu0 %5494
    %5496 = vrot.lane.b32.xlu0 %v5478, 16
    %v5497 = vpop.permute.xlu0 %5496
    %5498 = vrot.lane.b32.xlu0 %v5479, 16
    %v5499 = vpop.permute.xlu0 %5498
    %5500 = vrot.lane.b32.xlu0 %v5480, 16
    %v5501 = vpop.permute.xlu0 %5500
    %5502 = vrot.lane.b32.xlu0 %v5481, 16
    %v5503 = vpop.permute.xlu0 %5502
    %5504 = vrot.lane.b32.xlu0 %v5482, 16
    %v5505 = vpop.permute.xlu0 %5504
    %5506 = vrot.lane.b32.xlu0 %v5483, 16
    %v5507 = vpop.permute.xlu0 %5506
    %5508 = vrot.lane.b32.xlu0 %v5484, 16
    %v5509 = vpop.permute.xlu0 %5508
    %5510 = vrot.lane.b32.xlu0 %v5485, 16
    %v5511 = vpop.permute.xlu0 %5510
    %5512 = vrot.lane.b32.xlu0 %v5486, 16
    %v5513 = vpop.permute.xlu0 %5512
    %5514 = vrot.lane.b32.xlu0 %v5487, 16
    %v5515 = vpop.permute.xlu0 %5514
    %5516 = vrot.lane.b32.xlu0 %v5488, 16
    %v5517 = vpop.permute.xlu0 %5516
    %5518 = vrot.lane.b32.xlu0 %v5489, 16
    %v5519 = vpop.permute.xlu0 %5518
    %5520 = vrot.lane.b32.xlu0 %v5490, 16
    %v5521 = vpop.permute.xlu0 %5520
    %5522 = vrot.lane.b32.xlu0 %v5491, 16
    %v5523 = vpop.permute.xlu0 %5522
    %5540 = vst.msk [vmem:[#allocation2] sm:$0xff] %vm1755, %v5493
    %5541 = vst.msk [vmem:[#allocation2 + $0x8] sm:$0xff] %vm1755, %v5495
    %5542 = vst.msk [vmem:[#allocation2 + $0x10] sm:$0xff] %vm1755, %v5497
    %5543 = vst.msk [vmem:[#allocation2 + $0x18] sm:$0xff] %vm1755, %v5499
    %5544 = vst.msk [vmem:[#allocation2 + $0x20] sm:$0xff] %vm1755, %v5501
    %5545 = vst.msk [vmem:[#allocation2 + $0x28] sm:$0xff] %vm1755, %v5503
    %5546 = vst.msk [vmem:[#allocation2 + $0x30] sm:$0xff] %vm1755, %v5505
    %5547 = vst.msk [vmem:[#allocation2 + $0x38] sm:$0xff] %vm1755, %v5507
    %5548 = vst.msk [vmem:[#allocation2 + $0x40] sm:$0xff] %vm1755, %v5509
    %5549 = vst.msk [vmem:[#allocation2 + $0x48] sm:$0xff] %vm1755, %v5511
    %5550 = vst.msk [vmem:[#allocation2 + $0x50] sm:$0xff] %vm1755, %v5513
    %5551 = vst.msk [vmem:[#allocation2 + $0x58] sm:$0xff] %vm1755, %v5515
    %5552 = vst.msk [vmem:[#allocation2 + $0x60] sm:$0xff] %vm1755, %v5517
    %5553 = vst.msk [vmem:[#allocation2 + $0x68] sm:$0xff] %vm1755, %v5519
    %5554 = vst.msk [vmem:[#allocation2 + $0x70] sm:$0xff] %vm1755, %v5521
    %5555 = vst.msk [vmem:[#allocation2 + $0x78] sm:$0xff] %vm1755, %v5523
    %v5556 = vld [vmem:[%s4835] sm:$0xe]
    %v5557 = vld [vmem:[%s4835 + $0x4] sm:$0xf]
    %v5558 = vld [vmem:[%s4835 + $0x8] sm:$0x1]
    %v5559 = vld [vmem:[%s4835 + $0xc] sm:$0xe]
    %v5560 = vld [vmem:[%s4835 + $0x10] sm:$0xf]
    %v5561 = vld [vmem:[%s4835 + $0x14] sm:$0x1]
    %v5562 = vld [vmem:[%s4835 + $0x18] sm:$0xe]
    %v5563 = vld [vmem:[%s4835 + $0x1c] sm:$0xf]
    %v5564 = vld [vmem:[%s4835 + $0x20] sm:$0x1]
    %v5565 = vld [vmem:[%s4835 + $0x24] sm:$0xe]
    %v5566 = vld [vmem:[%s4835 + $0x28] sm:$0xf]
    %v5567 = vld [vmem:[%s4835 + $0x2c] sm:$0x1]
    %v5568 = vld [vmem:[%s4835 + $0x30] sm:$0xe]
    %v5569 = vld [vmem:[%s4835 + $0x34] sm:$0xf]
    %v5570 = vld [vmem:[%s4835 + $0x38] sm:$0x1]
    %v5571 = vld [vmem:[%s4835 + $0x3c] sm:$0xe]
    %v5572 = vld [vmem:[%s4835 + $0x40] sm:$0xf]
    %v5573 = vld [vmem:[%s4835 + $0x44] sm:$0x1]
    %v5574 = vld [vmem:[%s4835 + $0x48] sm:$0xe]
    %v5575 = vld [vmem:[%s4835 + $0x4c] sm:$0xf]
    %v5576 = vld [vmem:[%s4835 + $0x50] sm:$0x1]
    %v5577 = vld [vmem:[%s4835 + $0x54] sm:$0xe]
    %v5578 = vld [vmem:[%s4835 + $0x58] sm:$0xf]
    %v5579 = vld [vmem:[%s4835 + $0x5c] sm:$0x1]
    %v5580 = vld [vmem:[%s4835 + $0x60] sm:$0xe]
    %v5581 = vld [vmem:[%s4835 + $0x64] sm:$0xf]
    %v5582 = vld [vmem:[%s4835 + $0x68] sm:$0x1]
    %v5583 = vld [vmem:[%s4835 + $0x6c] sm:$0xe]
    %v5584 = vld [vmem:[%s4835 + $0x70] sm:$0xf]
    %v5585 = vld [vmem:[%s4835 + $0x74] sm:$0x1]
    %v5586 = vld [vmem:[%s4835 + $0x78] sm:$0xe]
    %v5587 = vld [vmem:[%s4835 + $0x7c] sm:$0xf]
    %v5588 = vld [vmem:[%s4835 + $0x80] sm:$0x1]
    %v5589 = vld [vmem:[%s4835 + $0x84] sm:$0xe]
    %v5590 = vld [vmem:[%s4835 + $0x88] sm:$0xf]
    %v5591 = vld [vmem:[%s4835 + $0x8c] sm:$0x1]
    %v5592 = vld [vmem:[%s4835 + $0x90] sm:$0xe]
    %v5593 = vld [vmem:[%s4835 + $0x94] sm:$0xf]
    %v5594 = vld [vmem:[%s4835 + $0x98] sm:$0x1]
    %v5595 = vld [vmem:[%s4835 + $0x9c] sm:$0xe]
    %v5596 = vld [vmem:[%s4835 + $0xa0] sm:$0xf]
    %v5597 = vld [vmem:[%s4835 + $0xa4] sm:$0x1]
    %v5598 = vld [vmem:[%s4835 + $0xa8] sm:$0xe]
    %v5599 = vld [vmem:[%s4835 + $0xac] sm:$0xf]
    %v5600 = vld [vmem:[%s4835 + $0xb0] sm:$0x1]
    %v5601 = vld [vmem:[%s4835 + $0xb4] sm:$0xe]
    %v5602 = vld [vmem:[%s4835 + $0xb8] sm:$0xf]
    %v5603 = vld [vmem:[%s4835 + $0xbc] sm:$0x1]
    %v5652 = vrot.slane %v5556, 5
    %v5653 = vrot.slane %v5652, 4
    %v5654 = vrot.slane %v5557, 5
    %v5655 = vsel %vm823, %v5653, %v5654
    %v5656 = vrot.slane %v5654, 4
    %v5657 = vrot.slane %v5558, 5
    %v5658 = vsel %vm823, %v5656, %v5657
    %v5659 = vrot.slane %v5559, 5
    %v5660 = vrot.slane %v5659, 4
    %v5661 = vrot.slane %v5560, 5
    %v5662 = vsel %vm823, %v5660, %v5661
    %v5663 = vrot.slane %v5661, 4
    %v5664 = vrot.slane %v5561, 5
    %v5665 = vsel %vm823, %v5663, %v5664
    %v5666 = vrot.slane %v5562, 5
    %v5667 = vrot.slane %v5666, 4
    %v5668 = vrot.slane %v5563, 5
    %v5669 = vsel %vm823, %v5667, %v5668
    %v5670 = vrot.slane %v5668, 4
    %v5671 = vrot.slane %v5564, 5
    %v5672 = vsel %vm823, %v5670, %v5671
    %v5673 = vrot.slane %v5565, 5
    %v5674 = vrot.slane %v5673, 4
    %v5675 = vrot.slane %v5566, 5
    %v5676 = vsel %vm823, %v5674, %v5675
    %v5677 = vrot.slane %v5675, 4
    %v5678 = vrot.slane %v5567, 5
    %v5679 = vsel %vm823, %v5677, %v5678
    %v5680 = vrot.slane %v5568, 5
    %v5681 = vrot.slane %v5680, 4
    %v5682 = vrot.slane %v5569, 5
    %v5683 = vsel %vm823, %v5681, %v5682
    %v5684 = vrot.slane %v5682, 4
    %v5685 = vrot.slane %v5570, 5
    %v5686 = vsel %vm823, %v5684, %v5685
    %v5687 = vrot.slane %v5571, 5
    %v5688 = vrot.slane %v5687, 4
    %v5689 = vrot.slane %v5572, 5
    %v5690 = vsel %vm823, %v5688, %v5689
    %v5691 = vrot.slane %v5689, 4
    %v5692 = vrot.slane %v5573, 5
    %v5693 = vsel %vm823, %v5691, %v5692
    %v5694 = vrot.slane %v5574, 5
    %v5695 = vrot.slane %v5694, 4
    %v5696 = vrot.slane %v5575, 5
    %v5697 = vsel %vm823, %v5695, %v5696
    %v5698 = vrot.slane %v5696, 4
    %v5699 = vrot.slane %v5576, 5
    %v5700 = vsel %vm823, %v5698, %v5699
    %v5701 = vrot.slane %v5577, 5
    %v5702 = vrot.slane %v5701, 4
    %v5703 = vrot.slane %v5578, 5
    %v5704 = vsel %vm823, %v5702, %v5703
    %v5705 = vrot.slane %v5703, 4
    %v5706 = vrot.slane %v5579, 5
    %v5707 = vsel %vm823, %v5705, %v5706
    %v5708 = vrot.slane %v5580, 5
    %v5709 = vrot.slane %v5708, 4
    %v5710 = vrot.slane %v5581, 5
    %v5711 = vsel %vm823, %v5709, %v5710
    %v5712 = vrot.slane %v5710, 4
    %v5713 = vrot.slane %v5582, 5
    %v5714 = vsel %vm823, %v5712, %v5713
    %v5715 = vrot.slane %v5583, 5
    %v5716 = vrot.slane %v5715, 4
    %v5717 = vrot.slane %v5584, 5
    %v5718 = vsel %vm823, %v5716, %v5717
    %v5719 = vrot.slane %v5717, 4
    %v5720 = vrot.slane %v5585, 5
    %v5721 = vsel %vm823, %v5719, %v5720
    %v5722 = vrot.slane %v5586, 5
    %v5723 = vrot.slane %v5722, 4
    %v5724 = vrot.slane %v5587, 5
    %v5725 = vsel %vm823, %v5723, %v5724
    %v5726 = vrot.slane %v5724, 4
    %v5727 = vrot.slane %v5588, 5
    %v5728 = vsel %vm823, %v5726, %v5727
    %v5729 = vrot.slane %v5589, 5
    %v5730 = vrot.slane %v5729, 4
    %v5731 = vrot.slane %v5590, 5
    %v5732 = vsel %vm823, %v5730, %v5731
    %v5733 = vrot.slane %v5731, 4
    %v5734 = vrot.slane %v5591, 5
    %v5735 = vsel %vm823, %v5733, %v5734
    %v5736 = vrot.slane %v5592, 5
    %v5737 = vrot.slane %v5736, 4
    %v5738 = vrot.slane %v5593, 5
    %v5739 = vsel %vm823, %v5737, %v5738
    %v5740 = vrot.slane %v5738, 4
    %v5741 = vrot.slane %v5594, 5
    %v5742 = vsel %vm823, %v5740, %v5741
    %v5743 = vrot.slane %v5595, 5
    %v5744 = vrot.slane %v5743, 4
    %v5745 = vrot.slane %v5596, 5
    %v5746 = vsel %vm823, %v5744, %v5745
    %v5747 = vrot.slane %v5745, 4
    %v5748 = vrot.slane %v5597, 5
    %v5749 = vsel %vm823, %v5747, %v5748
    %v5750 = vrot.slane %v5598, 5
    %v5751 = vrot.slane %v5750, 4
    %v5752 = vrot.slane %v5599, 5
    %v5753 = vsel %vm823, %v5751, %v5752
    %v5754 = vrot.slane %v5752, 4
    %v5755 = vrot.slane %v5600, 5
    %v5756 = vsel %vm823, %v5754, %v5755
    %v5757 = vrot.slane %v5601, 5
    %v5758 = vrot.slane %v5757, 4
    %v5759 = vrot.slane %v5602, 5
    %v5760 = vsel %vm823, %v5758, %v5759
    %v5761 = vrot.slane %v5759, 4
    %v5762 = vrot.slane %v5603, 5
    %v5763 = vsel %vm823, %v5761, %v5762
    %v5764 = vunpack.c.l.b16 %v5655
    %v5765 = vunpack.c.l.b16 %v5658
    %v5766 = vunpack.c.l.b16 %v5662
    %v5767 = vunpack.c.l.b16 %v5665
    %v5768 = vunpack.c.l.b16 %v5669
    %v5769 = vunpack.c.l.b16 %v5672
    %v5770 = vunpack.c.l.b16 %v5676
    %v5771 = vunpack.c.l.b16 %v5679
    %v5772 = vunpack.c.l.b16 %v5683
    %v5773 = vunpack.c.l.b16 %v5686
    %v5774 = vunpack.c.l.b16 %v5690
    %v5775 = vunpack.c.l.b16 %v5693
    %v5776 = vunpack.c.l.b16 %v5697
    %v5777 = vunpack.c.l.b16 %v5700
    %v5778 = vunpack.c.l.b16 %v5704
    %v5779 = vunpack.c.l.b16 %v5707
    %v5780 = vunpack.c.l.b16 %v5711
    %v5781 = vunpack.c.l.b16 %v5714
    %v5782 = vunpack.c.l.b16 %v5718
    %v5783 = vunpack.c.l.b16 %v5721
    %v5784 = vunpack.c.l.b16 %v5725
    %v5785 = vunpack.c.l.b16 %v5728
    %v5786 = vunpack.c.l.b16 %v5732
    %v5787 = vunpack.c.l.b16 %v5735
    %v5788 = vunpack.c.l.b16 %v5739
    %v5789 = vunpack.c.l.b16 %v5742
    %v5790 = vunpack.c.l.b16 %v5746
    %v5791 = vunpack.c.l.b16 %v5749
    %v5792 = vunpack.c.l.b16 %v5753
    %v5793 = vunpack.c.l.b16 %v5756
    %v5794 = vunpack.c.l.b16 %v5760
    %v5795 = vunpack.c.l.b16 %v5763
    %v5796 = vpack.c.b16 %v5765, %v5764
    %v5797 = vpack.c.b16 %v5767, %v5766
    %v5798 = vpack.c.b16 %v5769, %v5768
    %v5799 = vpack.c.b16 %v5771, %v5770
    %v5800 = vpack.c.b16 %v5773, %v5772
    %v5801 = vpack.c.b16 %v5775, %v5774
    %v5802 = vpack.c.b16 %v5777, %v5776
    %v5803 = vpack.c.b16 %v5779, %v5778
    %v5804 = vpack.c.b16 %v5781, %v5780
    %v5805 = vpack.c.b16 %v5783, %v5782
    %v5806 = vpack.c.b16 %v5785, %v5784
    %v5807 = vpack.c.b16 %v5787, %v5786
    %v5808 = vpack.c.b16 %v5789, %v5788
    %v5809 = vpack.c.b16 %v5791, %v5790
    %v5810 = vpack.c.b16 %v5793, %v5792
    %v5811 = vpack.c.b16 %v5795, %v5794
    %5812 = vrot.lane.b32.xlu0 %v5796, 20
    %v5813 = vpop.permute.xlu0 %5812
    %5814 = vrot.lane.b32.xlu0 %v5797, 20
    %v5815 = vpop.permute.xlu0 %5814
    %5816 = vrot.lane.b32.xlu0 %v5798, 20
    %v5817 = vpop.permute.xlu0 %5816
    %5818 = vrot.lane.b32.xlu0 %v5799, 20
    %v5819 = vpop.permute.xlu0 %5818
    %5820 = vrot.lane.b32.xlu0 %v5800, 20
    %v5821 = vpop.permute.xlu0 %5820
    %5822 = vrot.lane.b32.xlu0 %v5801, 20
    %v5823 = vpop.permute.xlu0 %5822
    %5824 = vrot.lane.b32.xlu0 %v5802, 20
    %v5825 = vpop.permute.xlu0 %5824
    %5826 = vrot.lane.b32.xlu0 %v5803, 20
    %v5827 = vpop.permute.xlu0 %5826
    %5828 = vrot.lane.b32.xlu0 %v5804, 20
    %v5829 = vpop.permute.xlu0 %5828
    %5830 = vrot.lane.b32.xlu0 %v5805, 20
    %v5831 = vpop.permute.xlu0 %5830
    %5832 = vrot.lane.b32.xlu0 %v5806, 20
    %v5833 = vpop.permute.xlu0 %5832
    %5834 = vrot.lane.b32.xlu0 %v5807, 20
    %v5835 = vpop.permute.xlu0 %5834
    %5836 = vrot.lane.b32.xlu0 %v5808, 20
    %v5837 = vpop.permute.xlu0 %5836
    %5838 = vrot.lane.b32.xlu0 %v5809, 20
    %v5839 = vpop.permute.xlu0 %5838
    %5840 = vrot.lane.b32.xlu0 %v5810, 20
    %v5841 = vpop.permute.xlu0 %5840
    %5842 = vrot.lane.b32.xlu0 %v5811, 20
    %v5843 = vpop.permute.xlu0 %5842
    %5860 = vst.msk [vmem:[#allocation2] sm:$0xff] %vm2076, %v5813
    %5861 = vst.msk [vmem:[#allocation2 + $0x8] sm:$0xff] %vm2076, %v5815
    %5862 = vst.msk [vmem:[#allocation2 + $0x10] sm:$0xff] %vm2076, %v5817
    %5863 = vst.msk [vmem:[#allocation2 + $0x18] sm:$0xff] %vm2076, %v5819
    %5864 = vst.msk [vmem:[#allocation2 + $0x20] sm:$0xff] %vm2076, %v5821
    %5865 = vst.msk [vmem:[#allocation2 + $0x28] sm:$0xff] %vm2076, %v5823
    %5866 = vst.msk [vmem:[#allocation2 + $0x30] sm:$0xff] %vm2076, %v5825
    %5867 = vst.msk [vmem:[#allocation2 + $0x38] sm:$0xff] %vm2076, %v5827
    %5868 = vst.msk [vmem:[#allocation2 + $0x40] sm:$0xff] %vm2076, %v5829
    %5869 = vst.msk [vmem:[#allocation2 + $0x48] sm:$0xff] %vm2076, %v5831
    %5870 = vst.msk [vmem:[#allocation2 + $0x50] sm:$0xff] %vm2076, %v5833
    %5871 = vst.msk [vmem:[#allocation2 + $0x58] sm:$0xff] %vm2076, %v5835
    %5872 = vst.msk [vmem:[#allocation2 + $0x60] sm:$0xff] %vm2076, %v5837
    %5873 = vst.msk [vmem:[#allocation2 + $0x68] sm:$0xff] %vm2076, %v5839
    %5874 = vst.msk [vmem:[#allocation2 + $0x70] sm:$0xff] %vm2076, %v5841
    %5875 = vst.msk [vmem:[#allocation2 + $0x78] sm:$0xff] %vm2076, %v5843
    %s5876 = scalar_lea.vmem %s0, 240
    %v5877 = vld [vmem:[%s5876] sm:$0xf]
    %v5878 = vld [vmem:[%s5876 + $0x4] sm:$0xf]
    %v5879 = vld [vmem:[%s5876 + $0xc] sm:$0xf]
    %v5880 = vld [vmem:[%s5876 + $0x10] sm:$0xf]
    %v5881 = vld [vmem:[%s5876 + $0x18] sm:$0xf]
    %v5882 = vld [vmem:[%s5876 + $0x1c] sm:$0xf]
    %v5883 = vld [vmem:[%s5876 + $0x24] sm:$0xf]
    %v5884 = vld [vmem:[%s5876 + $0x28] sm:$0xf]
    %v5885 = vld [vmem:[%s5876 + $0x30] sm:$0xf]
    %v5886 = vld [vmem:[%s5876 + $0x34] sm:$0xf]
    %v5887 = vld [vmem:[%s5876 + $0x3c] sm:$0xf]
    %v5888 = vld [vmem:[%s5876 + $0x40] sm:$0xf]
    %v5889 = vld [vmem:[%s5876 + $0x48] sm:$0xf]
    %v5890 = vld [vmem:[%s5876 + $0x4c] sm:$0xf]
    %v5891 = vld [vmem:[%s5876 + $0x54] sm:$0xf]
    %v5892 = vld [vmem:[%s5876 + $0x58] sm:$0xf]
    %v5893 = vld [vmem:[%s5876 + $0x60] sm:$0xf]
    %v5894 = vld [vmem:[%s5876 + $0x64] sm:$0xf]
    %v5895 = vld [vmem:[%s5876 + $0x6c] sm:$0xf]
    %v5896 = vld [vmem:[%s5876 + $0x70] sm:$0xf]
    %v5897 = vld [vmem:[%s5876 + $0x78] sm:$0xf]
    %v5898 = vld [vmem:[%s5876 + $0x7c] sm:$0xf]
    %v5899 = vld [vmem:[%s5876 + $0x84] sm:$0xf]
    %v5900 = vld [vmem:[%s5876 + $0x88] sm:$0xf]
    %v5901 = vld [vmem:[%s5876 + $0x90] sm:$0xf]
    %v5902 = vld [vmem:[%s5876 + $0x94] sm:$0xf]
    %v5903 = vld [vmem:[%s5876 + $0x9c] sm:$0xf]
    %v5904 = vld [vmem:[%s5876 + $0xa0] sm:$0xf]
    %v5905 = vld [vmem:[%s5876 + $0xa8] sm:$0xf]
    %v5906 = vld [vmem:[%s5876 + $0xac] sm:$0xf]
    %v5907 = vld [vmem:[%s5876 + $0xb4] sm:$0xf]
    %v5908 = vld [vmem:[%s5876 + $0xb8] sm:$0xf]
    %v5941 = vunpack.c.l.b16 %v5877
    %v5942 = vunpack.c.l.b16 %v5878
    %v5943 = vunpack.c.l.b16 %v5879
    %v5944 = vunpack.c.l.b16 %v5880
    %v5945 = vunpack.c.l.b16 %v5881
    %v5946 = vunpack.c.l.b16 %v5882
    %v5947 = vunpack.c.l.b16 %v5883
    %v5948 = vunpack.c.l.b16 %v5884
    %v5949 = vunpack.c.l.b16 %v5885
    %v5950 = vunpack.c.l.b16 %v5886
    %v5951 = vunpack.c.l.b16 %v5887
    %v5952 = vunpack.c.l.b16 %v5888
    %v5953 = vunpack.c.l.b16 %v5889
    %v5954 = vunpack.c.l.b16 %v5890
    %v5955 = vunpack.c.l.b16 %v5891
    %v5956 = vunpack.c.l.b16 %v5892
    %v5957 = vunpack.c.l.b16 %v5893
    %v5958 = vunpack.c.l.b16 %v5894
    %v5959 = vunpack.c.l.b16 %v5895
    %v5960 = vunpack.c.l.b16 %v5896
    %v5961 = vunpack.c.l.b16 %v5897
    %v5962 = vunpack.c.l.b16 %v5898
    %v5963 = vunpack.c.l.b16 %v5899
    %v5964 = vunpack.c.l.b16 %v5900
    %v5965 = vunpack.c.l.b16 %v5901
    %v5966 = vunpack.c.l.b16 %v5902
    %v5967 = vunpack.c.l.b16 %v5903
    %v5968 = vunpack.c.l.b16 %v5904
    %v5969 = vunpack.c.l.b16 %v5905
    %v5970 = vunpack.c.l.b16 %v5906
    %v5971 = vunpack.c.l.b16 %v5907
    %v5972 = vunpack.c.l.b16 %v5908
    %v5973 = vpack.c.b16 %v5942, %v5941
    %v5974 = vpack.c.b16 %v5944, %v5943
    %v5975 = vpack.c.b16 %v5946, %v5945
    %v5976 = vpack.c.b16 %v5948, %v5947
    %v5977 = vpack.c.b16 %v5950, %v5949
    %v5978 = vpack.c.b16 %v5952, %v5951
    %v5979 = vpack.c.b16 %v5954, %v5953
    %v5980 = vpack.c.b16 %v5956, %v5955
    %v5981 = vpack.c.b16 %v5958, %v5957
    %v5982 = vpack.c.b16 %v5960, %v5959
    %v5983 = vpack.c.b16 %v5962, %v5961
    %v5984 = vpack.c.b16 %v5964, %v5963
    %v5985 = vpack.c.b16 %v5966, %v5965
    %v5986 = vpack.c.b16 %v5968, %v5967
    %v5987 = vpack.c.b16 %v5970, %v5969
    %v5988 = vpack.c.b16 %v5972, %v5971
    %5989 = vrot.lane.b32.xlu0 %v5973, 24
    %v5990 = vpop.permute.xlu0 %5989
    %5991 = vrot.lane.b32.xlu0 %v5974, 24
    %v5992 = vpop.permute.xlu0 %5991
    %5993 = vrot.lane.b32.xlu0 %v5975, 24
    %v5994 = vpop.permute.xlu0 %5993
    %5995 = vrot.lane.b32.xlu0 %v5976, 24
    %v5996 = vpop.permute.xlu0 %5995
    %5997 = vrot.lane.b32.xlu0 %v5977, 24
    %v5998 = vpop.permute.xlu0 %5997
    %5999 = vrot.lane.b32.xlu0 %v5978, 24
    %v6000 = vpop.permute.xlu0 %5999
    %6001 = vrot.lane.b32.xlu0 %v5979, 24
    %v6002 = vpop.permute.xlu0 %6001
    %6003 = vrot.lane.b32.xlu0 %v5980, 24
    %v6004 = vpop.permute.xlu0 %6003
    %6005 = vrot.lane.b32.xlu0 %v5981, 24
    %v6006 = vpop.permute.xlu0 %6005
    %6007 = vrot.lane.b32.xlu0 %v5982, 24
    %v6008 = vpop.permute.xlu0 %6007
    %6009 = vrot.lane.b32.xlu0 %v5983, 24
    %v6010 = vpop.permute.xlu0 %6009
    %6011 = vrot.lane.b32.xlu0 %v5984, 24
    %v6012 = vpop.permute.xlu0 %6011
    %6013 = vrot.lane.b32.xlu0 %v5985, 24
    %v6014 = vpop.permute.xlu0 %6013
    %6015 = vrot.lane.b32.xlu0 %v5986, 24
    %v6016 = vpop.permute.xlu0 %6015
    %6017 = vrot.lane.b32.xlu0 %v5987, 24
    %v6018 = vpop.permute.xlu0 %6017
    %6019 = vrot.lane.b32.xlu0 %v5988, 24
    %v6020 = vpop.permute.xlu0 %6019
    %6037 = vst.msk [vmem:[#allocation2] sm:$0xff] %vm2254, %v5990
    %6038 = vst.msk [vmem:[#allocation2 + $0x8] sm:$0xff] %vm2254, %v5992
    %6039 = vst.msk [vmem:[#allocation2 + $0x10] sm:$0xff] %vm2254, %v5994
    %6040 = vst.msk [vmem:[#allocation2 + $0x18] sm:$0xff] %vm2254, %v5996
    %6041 = vst.msk [vmem:[#allocation2 + $0x20] sm:$0xff] %vm2254, %v5998
    %6042 = vst.msk [vmem:[#allocation2 + $0x28] sm:$0xff] %vm2254, %v6000
    %6043 = vst.msk [vmem:[#allocation2 + $0x30] sm:$0xff] %vm2254, %v6002
    %6044 = vst.msk [vmem:[#allocation2 + $0x38] sm:$0xff] %vm2254, %v6004
    %6045 = vst.msk [vmem:[#allocation2 + $0x40] sm:$0xff] %vm2254, %v6006
    %6046 = vst.msk [vmem:[#allocation2 + $0x48] sm:$0xff] %vm2254, %v6008
    %6047 = vst.msk [vmem:[#allocation2 + $0x50] sm:$0xff] %vm2254, %v6010
    %6048 = vst.msk [vmem:[#allocation2 + $0x58] sm:$0xff] %vm2254, %v6012
    %6049 = vst.msk [vmem:[#allocation2 + $0x60] sm:$0xff] %vm2254, %v6014
    %6050 = vst.msk [vmem:[#allocation2 + $0x68] sm:$0xff] %vm2254, %v6016
    %6051 = vst.msk [vmem:[#allocation2 + $0x70] sm:$0xff] %vm2254, %v6018
    %6052 = vst.msk [vmem:[#allocation2 + $0x78] sm:$0xff] %vm2254, %v6020
    %v6053 = vld [vmem:[%s5876] sm:$0xf]
    %v6054 = vld [vmem:[%s5876 + $0x4] sm:$0xf]
    %v6055 = vld [vmem:[%s5876 + $0x8] sm:$0x1]
    %v6056 = vld [vmem:[%s5876 + $0xc] sm:$0xf]
    %v6057 = vld [vmem:[%s5876 + $0x10] sm:$0xf]
    %v6058 = vld [vmem:[%s5876 + $0x14] sm:$0x1]
    %v6059 = vld [vmem:[%s5876 + $0x18] sm:$0xf]
    %v6060 = vld [vmem:[%s5876 + $0x1c] sm:$0xf]
    %v6061 = vld [vmem:[%s5876 + $0x20] sm:$0x1]
    %v6062 = vld [vmem:[%s5876 + $0x24] sm:$0xf]
    %v6063 = vld [vmem:[%s5876 + $0x28] sm:$0xf]
    %v6064 = vld [vmem:[%s5876 + $0x2c] sm:$0x1]
    %v6065 = vld [vmem:[%s5876 + $0x30] sm:$0xf]
    %v6066 = vld [vmem:[%s5876 + $0x34] sm:$0xf]
    %v6067 = vld [vmem:[%s5876 + $0x38] sm:$0x1]
    %v6068 = vld [vmem:[%s5876 + $0x3c] sm:$0xf]
    %v6069 = vld [vmem:[%s5876 + $0x40] sm:$0xf]
    %v6070 = vld [vmem:[%s5876 + $0x44] sm:$0x1]
    %v6071 = vld [vmem:[%s5876 + $0x48] sm:$0xf]
    %v6072 = vld [vmem:[%s5876 + $0x4c] sm:$0xf]
    %v6073 = vld [vmem:[%s5876 + $0x50] sm:$0x1]
    %v6074 = vld [vmem:[%s5876 + $0x54] sm:$0xf]
    %v6075 = vld [vmem:[%s5876 + $0x58] sm:$0xf]
    %v6076 = vld [vmem:[%s5876 + $0x5c] sm:$0x1]
    %v6077 = vld [vmem:[%s5876 + $0x60] sm:$0xf]
    %v6078 = vld [vmem:[%s5876 + $0x64] sm:$0xf]
    %v6079 = vld [vmem:[%s5876 + $0x68] sm:$0x1]
    %v6080 = vld [vmem:[%s5876 + $0x6c] sm:$0xf]
    %v6081 = vld [vmem:[%s5876 + $0x70] sm:$0xf]
    %v6082 = vld [vmem:[%s5876 + $0x74] sm:$0x1]
    %v6083 = vld [vmem:[%s5876 + $0x78] sm:$0xf]
    %v6084 = vld [vmem:[%s5876 + $0x7c] sm:$0xf]
    %v6085 = vld [vmem:[%s5876 + $0x80] sm:$0x1]
    %v6086 = vld [vmem:[%s5876 + $0x84] sm:$0xf]
    %v6087 = vld [vmem:[%s5876 + $0x88] sm:$0xf]
    %v6088 = vld [vmem:[%s5876 + $0x8c] sm:$0x1]
    %v6089 = vld [vmem:[%s5876 + $0x90] sm:$0xf]
    %v6090 = vld [vmem:[%s5876 + $0x94] sm:$0xf]
    %v6091 = vld [vmem:[%s5876 + $0x98] sm:$0x1]
    %v6092 = vld [vmem:[%s5876 + $0x9c] sm:$0xf]
    %v6093 = vld [vmem:[%s5876 + $0xa0] sm:$0xf]
    %v6094 = vld [vmem:[%s5876 + $0xa4] sm:$0x1]
    %v6095 = vld [vmem:[%s5876 + $0xa8] sm:$0xf]
    %v6096 = vld [vmem:[%s5876 + $0xac] sm:$0xf]
    %v6097 = vld [vmem:[%s5876 + $0xb0] sm:$0x1]
    %v6098 = vld [vmem:[%s5876 + $0xb4] sm:$0xf]
    %v6099 = vld [vmem:[%s5876 + $0xb8] sm:$0xf]
    %v6100 = vld [vmem:[%s5876 + $0xbc] sm:$0x1]
    %v6102 = vshrl.u32 %v6053, 16
    %v6104 = vrot.slane %v6102, 4
    %v6105 = vshll.u32 %v6053, 16
    %v6107 = vrot.slane %v6105, 5
    %v6108 = vor.u32 %v6104, %v6107
    %v6109 = vrot.slane %v6108, 4
    %v6111 = vshll.u32 %v6054, 16
    %v6113 = vrot.slane %v6111, 5
    %v6114 = vsel %vm227, %v6109, %v6113
    %v6115 = vshrl.u32 %v6054, 16
    %v6117 = vrot.slane %v6115, 4
    %v6118 = vor.u32 %v6117, %v6113
    %v6119 = vrot.slane %v6118, 4
    %v6121 = vshll.u32 %v6055, 16
    %v6123 = vrot.slane %v6121, 5
    %v6124 = vsel %vm227, %v6119, %v6123
    %v6126 = vshrl.u32 %v6056, 16
    %v6128 = vrot.slane %v6126, 4
    %v6129 = vshll.u32 %v6056, 16
    %v6131 = vrot.slane %v6129, 5
    %v6132 = vor.u32 %v6128, %v6131
    %v6133 = vrot.slane %v6132, 4
    %v6135 = vshll.u32 %v6057, 16
    %v6137 = vrot.slane %v6135, 5
    %v6138 = vsel %vm227, %v6133, %v6137
    %v6139 = vshrl.u32 %v6057, 16
    %v6141 = vrot.slane %v6139, 4
    %v6142 = vor.u32 %v6141, %v6137
    %v6143 = vrot.slane %v6142, 4
    %v6145 = vshll.u32 %v6058, 16
    %v6147 = vrot.slane %v6145, 5
    %v6148 = vsel %vm227, %v6143, %v6147
    %v6150 = vshrl.u32 %v6059, 16
    %v6152 = vrot.slane %v6150, 4
    %v6153 = vshll.u32 %v6059, 16
    %v6155 = vrot.slane %v6153, 5
    %v6156 = vor.u32 %v6152, %v6155
    %v6157 = vrot.slane %v6156, 4
    %v6159 = vshll.u32 %v6060, 16
    %v6161 = vrot.slane %v6159, 5
    %v6162 = vsel %vm227, %v6157, %v6161
    %v6163 = vshrl.u32 %v6060, 16
    %v6165 = vrot.slane %v6163, 4
    %v6166 = vor.u32 %v6165, %v6161
    %v6167 = vrot.slane %v6166, 4
    %v6169 = vshll.u32 %v6061, 16
    %v6171 = vrot.slane %v6169, 5
    %v6172 = vsel %vm227, %v6167, %v6171
    %v6174 = vshrl.u32 %v6062, 16
    %v6176 = vrot.slane %v6174, 4
    %v6177 = vshll.u32 %v6062, 16
    %v6179 = vrot.slane %v6177, 5
    %v6180 = vor.u32 %v6176, %v6179
    %v6181 = vrot.slane %v6180, 4
    %v6183 = vshll.u32 %v6063, 16
    %v6185 = vrot.slane %v6183, 5
    %v6186 = vsel %vm227, %v6181, %v6185
    %v6187 = vshrl.u32 %v6063, 16
    %v6189 = vrot.slane %v6187, 4
    %v6190 = vor.u32 %v6189, %v6185
    %v6191 = vrot.slane %v6190, 4
    %v6193 = vshll.u32 %v6064, 16
    %v6195 = vrot.slane %v6193, 5
    %v6196 = vsel %vm227, %v6191, %v6195
    %v6198 = vshrl.u32 %v6065, 16
    %v6200 = vrot.slane %v6198, 4
    %v6201 = vshll.u32 %v6065, 16
    %v6203 = vrot.slane %v6201, 5
    %v6204 = vor.u32 %v6200, %v6203
    %v6205 = vrot.slane %v6204, 4
    %v6207 = vshll.u32 %v6066, 16
    %v6209 = vrot.slane %v6207, 5
    %v6210 = vsel %vm227, %v6205, %v6209
    %v6211 = vshrl.u32 %v6066, 16
    %v6213 = vrot.slane %v6211, 4
    %v6214 = vor.u32 %v6213, %v6209
    %v6215 = vrot.slane %v6214, 4
    %v6217 = vshll.u32 %v6067, 16
    %v6219 = vrot.slane %v6217, 5
    %v6220 = vsel %vm227, %v6215, %v6219
    %v6222 = vshrl.u32 %v6068, 16
    %v6224 = vrot.slane %v6222, 4
    %v6225 = vshll.u32 %v6068, 16
    %v6227 = vrot.slane %v6225, 5
    %v6228 = vor.u32 %v6224, %v6227
    %v6229 = vrot.slane %v6228, 4
    %v6231 = vshll.u32 %v6069, 16
    %v6233 = vrot.slane %v6231, 5
    %v6234 = vsel %vm227, %v6229, %v6233
    %v6235 = vshrl.u32 %v6069, 16
    %v6237 = vrot.slane %v6235, 4
    %v6238 = vor.u32 %v6237, %v6233
    %v6239 = vrot.slane %v6238, 4
    %v6241 = vshll.u32 %v6070, 16
    %v6243 = vrot.slane %v6241, 5
    %v6244 = vsel %vm227, %v6239, %v6243
    %v6246 = vshrl.u32 %v6071, 16
    %v6248 = vrot.slane %v6246, 4
    %v6249 = vshll.u32 %v6071, 16
    %v6251 = vrot.slane %v6249, 5
    %v6252 = vor.u32 %v6248, %v6251
    %v6253 = vrot.slane %v6252, 4
    %v6255 = vshll.u32 %v6072, 16
    %v6257 = vrot.slane %v6255, 5
    %v6258 = vsel %vm227, %v6253, %v6257
    %v6259 = vshrl.u32 %v6072, 16
    %v6261 = vrot.slane %v6259, 4
    %v6262 = vor.u32 %v6261, %v6257
    %v6263 = vrot.slane %v6262, 4
    %v6265 = vshll.u32 %v6073, 16
    %v6267 = vrot.slane %v6265, 5
    %v6268 = vsel %vm227, %v6263, %v6267
    %v6270 = vshrl.u32 %v6074, 16
    %v6272 = vrot.slane %v6270, 4
    %v6273 = vshll.u32 %v6074, 16
    %v6275 = vrot.slane %v6273, 5
    %v6276 = vor.u32 %v6272, %v6275
    %v6277 = vrot.slane %v6276, 4
    %v6279 = vshll.u32 %v6075, 16
    %v6281 = vrot.slane %v6279, 5
    %v6282 = vsel %vm227, %v6277, %v6281
    %v6283 = vshrl.u32 %v6075, 16
    %v6285 = vrot.slane %v6283, 4
    %v6286 = vor.u32 %v6285, %v6281
    %v6287 = vrot.slane %v6286, 4
    %v6289 = vshll.u32 %v6076, 16
    %v6291 = vrot.slane %v6289, 5
    %v6292 = vsel %vm227, %v6287, %v6291
    %v6294 = vshrl.u32 %v6077, 16
    %v6296 = vrot.slane %v6294, 4
    %v6297 = vshll.u32 %v6077, 16
    %v6299 = vrot.slane %v6297, 5
    %v6300 = vor.u32 %v6296, %v6299
    %v6301 = vrot.slane %v6300, 4
    %v6303 = vshll.u32 %v6078, 16
    %v6305 = vrot.slane %v6303, 5
    %v6306 = vsel %vm227, %v6301, %v6305
    %v6307 = vshrl.u32 %v6078, 16
    %v6309 = vrot.slane %v6307, 4
    %v6310 = vor.u32 %v6309, %v6305
    %v6311 = vrot.slane %v6310, 4
    %v6313 = vshll.u32 %v6079, 16
    %v6315 = vrot.slane %v6313, 5
    %v6316 = vsel %vm227, %v6311, %v6315
    %v6318 = vshrl.u32 %v6080, 16
    %v6320 = vrot.slane %v6318, 4
    %v6321 = vshll.u32 %v6080, 16
    %v6323 = vrot.slane %v6321, 5
    %v6324 = vor.u32 %v6320, %v6323
    %v6325 = vrot.slane %v6324, 4
    %v6327 = vshll.u32 %v6081, 16
    %v6329 = vrot.slane %v6327, 5
    %v6330 = vsel %vm227, %v6325, %v6329
    %v6331 = vshrl.u32 %v6081, 16
    %v6333 = vrot.slane %v6331, 4
    %v6334 = vor.u32 %v6333, %v6329
    %v6335 = vrot.slane %v6334, 4
    %v6337 = vshll.u32 %v6082, 16
    %v6339 = vrot.slane %v6337, 5
    %v6340 = vsel %vm227, %v6335, %v6339
    %v6342 = vshrl.u32 %v6083, 16
    %v6344 = vrot.slane %v6342, 4
    %v6345 = vshll.u32 %v6083, 16
    %v6347 = vrot.slane %v6345, 5
    %v6348 = vor.u32 %v6344, %v6347
    %v6349 = vrot.slane %v6348, 4
    %v6351 = vshll.u32 %v6084, 16
    %v6353 = vrot.slane %v6351, 5
    %v6354 = vsel %vm227, %v6349, %v6353
    %v6355 = vshrl.u32 %v6084, 16
    %v6357 = vrot.slane %v6355, 4
    %v6358 = vor.u32 %v6357, %v6353
    %v6359 = vrot.slane %v6358, 4
    %v6361 = vshll.u32 %v6085, 16
    %v6363 = vrot.slane %v6361, 5
    %v6364 = vsel %vm227, %v6359, %v6363
    %v6366 = vshrl.u32 %v6086, 16
    %v6368 = vrot.slane %v6366, 4
    %v6369 = vshll.u32 %v6086, 16
    %v6371 = vrot.slane %v6369, 5
    %v6372 = vor.u32 %v6368, %v6371
    %v6373 = vrot.slane %v6372, 4
    %v6375 = vshll.u32 %v6087, 16
    %v6377 = vrot.slane %v6375, 5
    %v6378 = vsel %vm227, %v6373, %v6377
    %v6379 = vshrl.u32 %v6087, 16
    %v6381 = vrot.slane %v6379, 4
    %v6382 = vor.u32 %v6381, %v6377
    %v6383 = vrot.slane %v6382, 4
    %v6385 = vshll.u32 %v6088, 16
    %v6387 = vrot.slane %v6385, 5
    %v6388 = vsel %vm227, %v6383, %v6387
    %v6390 = vshrl.u32 %v6089, 16
    %v6392 = vrot.slane %v6390, 4
    %v6393 = vshll.u32 %v6089, 16
    %v6395 = vrot.slane %v6393, 5
    %v6396 = vor.u32 %v6392, %v6395
    %v6397 = vrot.slane %v6396, 4
    %v6399 = vshll.u32 %v6090, 16
    %v6401 = vrot.slane %v6399, 5
    %v6402 = vsel %vm227, %v6397, %v6401
    %v6403 = vshrl.u32 %v6090, 16
    %v6405 = vrot.slane %v6403, 4
    %v6406 = vor.u32 %v6405, %v6401
    %v6407 = vrot.slane %v6406, 4
    %v6409 = vshll.u32 %v6091, 16
    %v6411 = vrot.slane %v6409, 5
    %v6412 = vsel %vm227, %v6407, %v6411
    %v6414 = vshrl.u32 %v6092, 16
    %v6416 = vrot.slane %v6414, 4
    %v6417 = vshll.u32 %v6092, 16
    %v6419 = vrot.slane %v6417, 5
    %v6420 = vor.u32 %v6416, %v6419
    %v6421 = vrot.slane %v6420, 4
    %v6423 = vshll.u32 %v6093, 16
    %v6425 = vrot.slane %v6423, 5
    %v6426 = vsel %vm227, %v6421, %v6425
    %v6427 = vshrl.u32 %v6093, 16
    %v6429 = vrot.slane %v6427, 4
    %v6430 = vor.u32 %v6429, %v6425
    %v6431 = vrot.slane %v6430, 4
    %v6433 = vshll.u32 %v6094, 16
    %v6435 = vrot.slane %v6433, 5
    %v6436 = vsel %vm227, %v6431, %v6435
    %v6438 = vshrl.u32 %v6095, 16
    %v6440 = vrot.slane %v6438, 4
    %v6441 = vshll.u32 %v6095, 16
    %v6443 = vrot.slane %v6441, 5
    %v6444 = vor.u32 %v6440, %v6443
    %v6445 = vrot.slane %v6444, 4
    %v6447 = vshll.u32 %v6096, 16
    %v6449 = vrot.slane %v6447, 5
    %v6450 = vsel %vm227, %v6445, %v6449
    %v6451 = vshrl.u32 %v6096, 16
    %v6453 = vrot.slane %v6451, 4
    %v6454 = vor.u32 %v6453, %v6449
    %v6455 = vrot.slane %v6454, 4
    %v6457 = vshll.u32 %v6097, 16
    %v6459 = vrot.slane %v6457, 5
    %v6460 = vsel %vm227, %v6455, %v6459
    %v6462 = vshrl.u32 %v6098, 16
    %v6464 = vrot.slane %v6462, 4
    %v6465 = vshll.u32 %v6098, 16
    %v6467 = vrot.slane %v6465, 5
    %v6468 = vor.u32 %v6464, %v6467
    %v6469 = vrot.slane %v6468, 4
    %v6471 = vshll.u32 %v6099, 16
    %v6473 = vrot.slane %v6471, 5
    %v6474 = vsel %vm227, %v6469, %v6473
    %v6475 = vshrl.u32 %v6099, 16
    %v6477 = vrot.slane %v6475, 4
    %v6478 = vor.u32 %v6477, %v6473
    %v6479 = vrot.slane %v6478, 4
    %v6481 = vshll.u32 %v6100, 16
    %v6483 = vrot.slane %v6481, 5
    %v6484 = vsel %vm227, %v6479, %v6483
    %v6485 = vunpack.c.l.b16 %v6114
    %v6486 = vunpack.c.l.b16 %v6124
    %v6487 = vunpack.c.l.b16 %v6138
    %v6488 = vunpack.c.l.b16 %v6148
    %v6489 = vunpack.c.l.b16 %v6162
    %v6490 = vunpack.c.l.b16 %v6172
    %v6491 = vunpack.c.l.b16 %v6186
    %v6492 = vunpack.c.l.b16 %v6196
    %v6493 = vunpack.c.l.b16 %v6210
    %v6494 = vunpack.c.l.b16 %v6220
    %v6495 = vunpack.c.l.b16 %v6234
    %v6496 = vunpack.c.l.b16 %v6244
    %v6497 = vunpack.c.l.b16 %v6258
    %v6498 = vunpack.c.l.b16 %v6268
    %v6499 = vunpack.c.l.b16 %v6282
    %v6500 = vunpack.c.l.b16 %v6292
    %v6501 = vunpack.c.l.b16 %v6306
    %v6502 = vunpack.c.l.b16 %v6316
    %v6503 = vunpack.c.l.b16 %v6330
    %v6504 = vunpack.c.l.b16 %v6340
    %v6505 = vunpack.c.l.b16 %v6354
    %v6506 = vunpack.c.l.b16 %v6364
    %v6507 = vunpack.c.l.b16 %v6378
    %v6508 = vunpack.c.l.b16 %v6388
    %v6509 = vunpack.c.l.b16 %v6402
    %v6510 = vunpack.c.l.b16 %v6412
    %v6511 = vunpack.c.l.b16 %v6426
    %v6512 = vunpack.c.l.b16 %v6436
    %v6513 = vunpack.c.l.b16 %v6450
    %v6514 = vunpack.c.l.b16 %v6460
    %v6515 = vunpack.c.l.b16 %v6474
    %v6516 = vunpack.c.l.b16 %v6484
    %v6517 = vpack.c.b16 %v6486, %v6485
    %v6518 = vpack.c.b16 %v6488, %v6487
    %v6519 = vpack.c.b16 %v6490, %v6489
    %v6520 = vpack.c.b16 %v6492, %v6491
    %v6521 = vpack.c.b16 %v6494, %v6493
    %v6522 = vpack.c.b16 %v6496, %v6495
    %v6523 = vpack.c.b16 %v6498, %v6497
    %v6524 = vpack.c.b16 %v6500, %v6499
    %v6525 = vpack.c.b16 %v6502, %v6501
    %v6526 = vpack.c.b16 %v6504, %v6503
    %v6527 = vpack.c.b16 %v6506, %v6505
    %v6528 = vpack.c.b16 %v6508, %v6507
    %v6529 = vpack.c.b16 %v6510, %v6509
    %v6530 = vpack.c.b16 %v6512, %v6511
    %v6531 = vpack.c.b16 %v6514, %v6513
    %v6532 = vpack.c.b16 %v6516, %v6515
    %6533 = vrot.lane.b32.xlu0 %v6517, 28
    %v6534 = vpop.permute.xlu0 %6533
    %6535 = vrot.lane.b32.xlu0 %v6518, 28
    %v6536 = vpop.permute.xlu0 %6535
    %6537 = vrot.lane.b32.xlu0 %v6519, 28
    %v6538 = vpop.permute.xlu0 %6537
    %6539 = vrot.lane.b32.xlu0 %v6520, 28
    %v6540 = vpop.permute.xlu0 %6539
    %6541 = vrot.lane.b32.xlu0 %v6521, 28
    %v6542 = vpop.permute.xlu0 %6541
    %6543 = vrot.lane.b32.xlu0 %v6522, 28
    %v6544 = vpop.permute.xlu0 %6543
    %6545 = vrot.lane.b32.xlu0 %v6523, 28
    %v6546 = vpop.permute.xlu0 %6545
    %6547 = vrot.lane.b32.xlu0 %v6524, 28
    %v6548 = vpop.permute.xlu0 %6547
    %6549 = vrot.lane.b32.xlu0 %v6525, 28
    %v6550 = vpop.permute.xlu0 %6549
    %6551 = vrot.lane.b32.xlu0 %v6526, 28
    %v6552 = vpop.permute.xlu0 %6551
    %6553 = vrot.lane.b32.xlu0 %v6527, 28
    %v6554 = vpop.permute.xlu0 %6553
    %6555 = vrot.lane.b32.xlu0 %v6528, 28
    %v6556 = vpop.permute.xlu0 %6555
    %6557 = vrot.lane.b32.xlu0 %v6529, 28
    %v6558 = vpop.permute.xlu0 %6557
    %6559 = vrot.lane.b32.xlu0 %v6530, 28
    %v6560 = vpop.permute.xlu0 %6559
    %6561 = vrot.lane.b32.xlu0 %v6531, 28
    %v6562 = vpop.permute.xlu0 %6561
    %6563 = vrot.lane.b32.xlu0 %v6532, 28
    %v6564 = vpop.permute.xlu0 %6563
    %6581 = vst.msk [vmem:[#allocation2] sm:$0xff] %vm2799, %v6534
    %6582 = vst.msk [vmem:[#allocation2 + $0x8] sm:$0xff] %vm2799, %v6536
    %6583 = vst.msk [vmem:[#allocation2 + $0x10] sm:$0xff] %vm2799, %v6538
    %6584 = vst.msk [vmem:[#allocation2 + $0x18] sm:$0xff] %vm2799, %v6540
    %6585 = vst.msk [vmem:[#allocation2 + $0x20] sm:$0xff] %vm2799, %v6542
    %6586 = vst.msk [vmem:[#allocation2 + $0x28] sm:$0xff] %vm2799, %v6544
    %6587 = vst.msk [vmem:[#allocation2 + $0x30] sm:$0xff] %vm2799, %v6546
    %6588 = vst.msk [vmem:[#allocation2 + $0x38] sm:$0xff] %vm2799, %v6548
    %6589 = vst.msk [vmem:[#allocation2 + $0x40] sm:$0xff] %vm2799, %v6550
    %6590 = vst.msk [vmem:[#allocation2 + $0x48] sm:$0xff] %vm2799, %v6552
    %6591 = vst.msk [vmem:[#allocation2 + $0x50] sm:$0xff] %vm2799, %v6554
    %6592 = vst.msk [vmem:[#allocation2 + $0x58] sm:$0xff] %vm2799, %v6556
    %6593 = vst.msk [vmem:[#allocation2 + $0x60] sm:$0xff] %vm2799, %v6558
    %6594 = vst.msk [vmem:[#allocation2 + $0x68] sm:$0xff] %vm2799, %v6560
    %6595 = vst.msk [vmem:[#allocation2 + $0x70] sm:$0xff] %vm2799, %v6562
    %6596 = vst.msk [vmem:[#allocation2 + $0x78] sm:$0xff] %vm2799, %v6564
    %v6597 = vld [vmem:[%s5876] sm:$0xe]
    %v6598 = vld [vmem:[%s5876 + $0x4] sm:$0xf]
    %v6599 = vld [vmem:[%s5876 + $0x8] sm:$0x1]
    %v6600 = vld [vmem:[%s5876 + $0xc] sm:$0xe]
    %v6601 = vld [vmem:[%s5876 + $0x10] sm:$0xf]
    %v6602 = vld [vmem:[%s5876 + $0x14] sm:$0x1]
    %v6603 = vld [vmem:[%s5876 + $0x18] sm:$0xe]
    %v6604 = vld [vmem:[%s5876 + $0x1c] sm:$0xf]
    %v6605 = vld [vmem:[%s5876 + $0x20] sm:$0x1]
    %v6606 = vld [vmem:[%s5876 + $0x24] sm:$0xe]
    %v6607 = vld [vmem:[%s5876 + $0x28] sm:$0xf]
    %v6608 = vld [vmem:[%s5876 + $0x2c] sm:$0x1]
    %v6609 = vld [vmem:[%s5876 + $0x30] sm:$0xe]
    %v6610 = vld [vmem:[%s5876 + $0x34] sm:$0xf]
    %v6611 = vld [vmem:[%s5876 + $0x38] sm:$0x1]
    %v6612 = vld [vmem:[%s5876 + $0x3c] sm:$0xe]
    %v6613 = vld [vmem:[%s5876 + $0x40] sm:$0xf]
    %v6614 = vld [vmem:[%s5876 + $0x44] sm:$0x1]
    %v6615 = vld [vmem:[%s5876 + $0x48] sm:$0xe]
    %v6616 = vld [vmem:[%s5876 + $0x4c] sm:$0xf]
    %v6617 = vld [vmem:[%s5876 + $0x50] sm:$0x1]
    %v6618 = vld [vmem:[%s5876 + $0x54] sm:$0xe]
    %v6619 = vld [vmem:[%s5876 + $0x58] sm:$0xf]
    %v6620 = vld [vmem:[%s5876 + $0x5c] sm:$0x1]
    %v6621 = vld [vmem:[%s5876 + $0x60] sm:$0xe]
    %v6622 = vld [vmem:[%s5876 + $0x64] sm:$0xf]
    %v6623 = vld [vmem:[%s5876 + $0x68] sm:$0x1]
    %v6624 = vld [vmem:[%s5876 + $0x6c] sm:$0xe]
    %v6625 = vld [vmem:[%s5876 + $0x70] sm:$0xf]
    %v6626 = vld [vmem:[%s5876 + $0x74] sm:$0x1]
    %v6627 = vld [vmem:[%s5876 + $0x78] sm:$0xe]
    %v6628 = vld [vmem:[%s5876 + $0x7c] sm:$0xf]
    %v6629 = vld [vmem:[%s5876 + $0x80] sm:$0x1]
    %v6630 = vld [vmem:[%s5876 + $0x84] sm:$0xe]
    %v6631 = vld [vmem:[%s5876 + $0x88] sm:$0xf]
    %v6632 = vld [vmem:[%s5876 + $0x8c] sm:$0x1]
    %v6633 = vld [vmem:[%s5876 + $0x90] sm:$0xe]
    %v6634 = vld [vmem:[%s5876 + $0x94] sm:$0xf]
    %v6635 = vld [vmem:[%s5876 + $0x98] sm:$0x1]
    %v6636 = vld [vmem:[%s5876 + $0x9c] sm:$0xe]
    %v6637 = vld [vmem:[%s5876 + $0xa0] sm:$0xf]
    %v6638 = vld [vmem:[%s5876 + $0xa4] sm:$0x1]
    %v6639 = vld [vmem:[%s5876 + $0xa8] sm:$0xe]
    %v6640 = vld [vmem:[%s5876 + $0xac] sm:$0xf]
    %v6641 = vld [vmem:[%s5876 + $0xb0] sm:$0x1]
    %v6642 = vld [vmem:[%s5876 + $0xb4] sm:$0xe]
    %v6643 = vld [vmem:[%s5876 + $0xb8] sm:$0xf]
    %v6644 = vld [vmem:[%s5876 + $0xbc] sm:$0x1]
    %v6693 = vrot.slane %v6597, 5
    %v6694 = vrot.slane %v6693, 4
    %v6695 = vrot.slane %v6598, 5
    %v6696 = vsel %vm823, %v6694, %v6695
    %v6697 = vrot.slane %v6695, 4
    %v6698 = vrot.slane %v6599, 5
    %v6699 = vsel %vm823, %v6697, %v6698
    %v6700 = vrot.slane %v6600, 5
    %v6701 = vrot.slane %v6700, 4
    %v6702 = vrot.slane %v6601, 5
    %v6703 = vsel %vm823, %v6701, %v6702
    %v6704 = vrot.slane %v6702, 4
    %v6705 = vrot.slane %v6602, 5
    %v6706 = vsel %vm823, %v6704, %v6705
    %v6707 = vrot.slane %v6603, 5
    %v6708 = vrot.slane %v6707, 4
    %v6709 = vrot.slane %v6604, 5
    %v6710 = vsel %vm823, %v6708, %v6709
    %v6711 = vrot.slane %v6709, 4
    %v6712 = vrot.slane %v6605, 5
    %v6713 = vsel %vm823, %v6711, %v6712
    %v6714 = vrot.slane %v6606, 5
    %v6715 = vrot.slane %v6714, 4
    %v6716 = vrot.slane %v6607, 5
    %v6717 = vsel %vm823, %v6715, %v6716
    %v6718 = vrot.slane %v6716, 4
    %v6719 = vrot.slane %v6608, 5
    %v6720 = vsel %vm823, %v6718, %v6719
    %v6721 = vrot.slane %v6609, 5
    %v6722 = vrot.slane %v6721, 4
    %v6723 = vrot.slane %v6610, 5
    %v6724 = vsel %vm823, %v6722, %v6723
    %v6725 = vrot.slane %v6723, 4
    %v6726 = vrot.slane %v6611, 5
    %v6727 = vsel %vm823, %v6725, %v6726
    %v6728 = vrot.slane %v6612, 5
    %v6729 = vrot.slane %v6728, 4
    %v6730 = vrot.slane %v6613, 5
    %v6731 = vsel %vm823, %v6729, %v6730
    %v6732 = vrot.slane %v6730, 4
    %v6733 = vrot.slane %v6614, 5
    %v6734 = vsel %vm823, %v6732, %v6733
    %v6735 = vrot.slane %v6615, 5
    %v6736 = vrot.slane %v6735, 4
    %v6737 = vrot.slane %v6616, 5
    %v6738 = vsel %vm823, %v6736, %v6737
    %v6739 = vrot.slane %v6737, 4
    %v6740 = vrot.slane %v6617, 5
    %v6741 = vsel %vm823, %v6739, %v6740
    %v6742 = vrot.slane %v6618, 5
    %v6743 = vrot.slane %v6742, 4
    %v6744 = vrot.slane %v6619, 5
    %v6745 = vsel %vm823, %v6743, %v6744
    %v6746 = vrot.slane %v6744, 4
    %v6747 = vrot.slane %v6620, 5
    %v6748 = vsel %vm823, %v6746, %v6747
    %v6749 = vrot.slane %v6621, 5
    %v6750 = vrot.slane %v6749, 4
    %v6751 = vrot.slane %v6622, 5
    %v6752 = vsel %vm823, %v6750, %v6751
    %v6753 = vrot.slane %v6751, 4
    %v6754 = vrot.slane %v6623, 5
    %v6755 = vsel %vm823, %v6753, %v6754
    %v6756 = vrot.slane %v6624, 5
    %v6757 = vrot.slane %v6756, 4
    %v6758 = vrot.slane %v6625, 5
    %v6759 = vsel %vm823, %v6757, %v6758
    %v6760 = vrot.slane %v6758, 4
    %v6761 = vrot.slane %v6626, 5
    %v6762 = vsel %vm823, %v6760, %v6761
    %v6763 = vrot.slane %v6627, 5
    %v6764 = vrot.slane %v6763, 4
    %v6765 = vrot.slane %v6628, 5
    %v6766 = vsel %vm823, %v6764, %v6765
    %v6767 = vrot.slane %v6765, 4
    %v6768 = vrot.slane %v6629, 5
    %v6769 = vsel %vm823, %v6767, %v6768
    %v6770 = vrot.slane %v6630, 5
    %v6771 = vrot.slane %v6770, 4
    %v6772 = vrot.slane %v6631, 5
    %v6773 = vsel %vm823, %v6771, %v6772
    %v6774 = vrot.slane %v6772, 4
    %v6775 = vrot.slane %v6632, 5
    %v6776 = vsel %vm823, %v6774, %v6775
    %v6777 = vrot.slane %v6633, 5
    %v6778 = vrot.slane %v6777, 4
    %v6779 = vrot.slane %v6634, 5
    %v6780 = vsel %vm823, %v6778, %v6779
    %v6781 = vrot.slane %v6779, 4
    %v6782 = vrot.slane %v6635, 5
    %v6783 = vsel %vm823, %v6781, %v6782
    %v6784 = vrot.slane %v6636, 5
    %v6785 = vrot.slane %v6784, 4
    %v6786 = vrot.slane %v6637, 5
    %v6787 = vsel %vm823, %v6785, %v6786
    %v6788 = vrot.slane %v6786, 4
    %v6789 = vrot.slane %v6638, 5
    %v6790 = vsel %vm823, %v6788, %v6789
    %v6791 = vrot.slane %v6639, 5
    %v6792 = vrot.slane %v6791, 4
    %v6793 = vrot.slane %v6640, 5
    %v6794 = vsel %vm823, %v6792, %v6793
    %v6795 = vrot.slane %v6793, 4
    %v6796 = vrot.slane %v6641, 5
    %v6797 = vsel %vm823, %v6795, %v6796
    %v6798 = vrot.slane %v6642, 5
    %v6799 = vrot.slane %v6798, 4
    %v6800 = vrot.slane %v6643, 5
    %v6801 = vsel %vm823, %v6799, %v6800
    %v6802 = vrot.slane %v6800, 4
    %v6803 = vrot.slane %v6644, 5
    %v6804 = vsel %vm823, %v6802, %v6803
    %v6805 = vunpack.c.l.b16 %v6696
    %v6806 = vunpack.c.l.b16 %v6699
    %v6807 = vunpack.c.l.b16 %v6703
    %v6808 = vunpack.c.l.b16 %v6706
    %v6809 = vunpack.c.l.b16 %v6710
    %v6810 = vunpack.c.l.b16 %v6713
    %v6811 = vunpack.c.l.b16 %v6717
    %v6812 = vunpack.c.l.b16 %v6720
    %v6813 = vunpack.c.l.b16 %v6724
    %v6814 = vunpack.c.l.b16 %v6727
    %v6815 = vunpack.c.l.b16 %v6731
    %v6816 = vunpack.c.l.b16 %v6734
    %v6817 = vunpack.c.l.b16 %v6738
    %v6818 = vunpack.c.l.b16 %v6741
    %v6819 = vunpack.c.l.b16 %v6745
    %v6820 = vunpack.c.l.b16 %v6748
    %v6821 = vunpack.c.l.b16 %v6752
    %v6822 = vunpack.c.l.b16 %v6755
    %v6823 = vunpack.c.l.b16 %v6759
    %v6824 = vunpack.c.l.b16 %v6762
    %v6825 = vunpack.c.l.b16 %v6766
    %v6826 = vunpack.c.l.b16 %v6769
    %v6827 = vunpack.c.l.b16 %v6773
    %v6828 = vunpack.c.l.b16 %v6776
    %v6829 = vunpack.c.l.b16 %v6780
    %v6830 = vunpack.c.l.b16 %v6783
    %v6831 = vunpack.c.l.b16 %v6787
    %v6832 = vunpack.c.l.b16 %v6790
    %v6833 = vunpack.c.l.b16 %v6794
    %v6834 = vunpack.c.l.b16 %v6797
    %v6835 = vunpack.c.l.b16 %v6801
    %v6836 = vunpack.c.l.b16 %v6804
    %v6837 = vpack.c.b16 %v6806, %v6805
    %v6838 = vpack.c.b16 %v6808, %v6807
    %v6839 = vpack.c.b16 %v6810, %v6809
    %v6840 = vpack.c.b16 %v6812, %v6811
    %v6841 = vpack.c.b16 %v6814, %v6813
    %v6842 = vpack.c.b16 %v6816, %v6815
    %v6843 = vpack.c.b16 %v6818, %v6817
    %v6844 = vpack.c.b16 %v6820, %v6819
    %v6845 = vpack.c.b16 %v6822, %v6821
    %v6846 = vpack.c.b16 %v6824, %v6823
    %v6847 = vpack.c.b16 %v6826, %v6825
    %v6848 = vpack.c.b16 %v6828, %v6827
    %v6849 = vpack.c.b16 %v6830, %v6829
    %v6850 = vpack.c.b16 %v6832, %v6831
    %v6851 = vpack.c.b16 %v6834, %v6833
    %v6852 = vpack.c.b16 %v6836, %v6835
    %6853 = vrot.lane.b32.xlu0 %v6837, 32
    %v6854 = vpop.permute.xlu0 %6853
    %6855 = vrot.lane.b32.xlu0 %v6838, 32
    %v6856 = vpop.permute.xlu0 %6855
    %6857 = vrot.lane.b32.xlu0 %v6839, 32
    %v6858 = vpop.permute.xlu0 %6857
    %6859 = vrot.lane.b32.xlu0 %v6840, 32
    %v6860 = vpop.permute.xlu0 %6859
    %6861 = vrot.lane.b32.xlu0 %v6841, 32
    %v6862 = vpop.permute.xlu0 %6861
    %6863 = vrot.lane.b32.xlu0 %v6842, 32
    %v6864 = vpop.permute.xlu0 %6863
    %6865 = vrot.lane.b32.xlu0 %v6843, 32
    %v6866 = vpop.permute.xlu0 %6865
    %6867 = vrot.lane.b32.xlu0 %v6844, 32
    %v6868 = vpop.permute.xlu0 %6867
    %6869 = vrot.lane.b32.xlu0 %v6845, 32
    %v6870 = vpop.permute.xlu0 %6869
    %6871 = vrot.lane.b32.xlu0 %v6846, 32
    %v6872 = vpop.permute.xlu0 %6871
    %6873 = vrot.lane.b32.xlu0 %v6847, 32
    %v6874 = vpop.permute.xlu0 %6873
    %6875 = vrot.lane.b32.xlu0 %v6848, 32
    %v6876 = vpop.permute.xlu0 %6875
    %6877 = vrot.lane.b32.xlu0 %v6849, 32
    %v6878 = vpop.permute.xlu0 %6877
    %6879 = vrot.lane.b32.xlu0 %v6850, 32
    %v6880 = vpop.permute.xlu0 %6879
    %6881 = vrot.lane.b32.xlu0 %v6851, 32
    %v6882 = vpop.permute.xlu0 %6881
    %6883 = vrot.lane.b32.xlu0 %v6852, 32
    %v6884 = vpop.permute.xlu0 %6883
    %6901 = vst.msk [vmem:[#allocation2] sm:$0xff] %vm3120, %v6854
    %6902 = vst.msk [vmem:[#allocation2 + $0x8] sm:$0xff] %vm3120, %v6856
    %6903 = vst.msk [vmem:[#allocation2 + $0x10] sm:$0xff] %vm3120, %v6858
    %6904 = vst.msk [vmem:[#allocation2 + $0x18] sm:$0xff] %vm3120, %v6860
    %6905 = vst.msk [vmem:[#allocation2 + $0x20] sm:$0xff] %vm3120, %v6862
    %6906 = vst.msk [vmem:[#allocation2 + $0x28] sm:$0xff] %vm3120, %v6864
    %6907 = vst.msk [vmem:[#allocation2 + $0x30] sm:$0xff] %vm3120, %v6866
    %6908 = vst.msk [vmem:[#allocation2 + $0x38] sm:$0xff] %vm3120, %v6868
    %6909 = vst.msk [vmem:[#allocation2 + $0x40] sm:$0xff] %vm3120, %v6870
    %6910 = vst.msk [vmem:[#allocation2 + $0x48] sm:$0xff] %vm3120, %v6872
    %6911 = vst.msk [vmem:[#allocation2 + $0x50] sm:$0xff] %vm3120, %v6874
    %6912 = vst.msk [vmem:[#allocation2 + $0x58] sm:$0xff] %vm3120, %v6876
    %6913 = vst.msk [vmem:[#allocation2 + $0x60] sm:$0xff] %vm3120, %v6878
    %6914 = vst.msk [vmem:[#allocation2 + $0x68] sm:$0xff] %vm3120, %v6880
    %6915 = vst.msk [vmem:[#allocation2 + $0x70] sm:$0xff] %vm3120, %v6882
    %6916 = vst.msk [vmem:[#allocation2 + $0x78] sm:$0xff] %vm3120, %v6884
    %v6917 = vld [vmem:[#allocation2] sm:$0xff]
    %v6918 = vld [vmem:[#allocation2 + $0x8] sm:$0xff]
    %v6919 = vld [vmem:[#allocation2 + $0x10] sm:$0xff]
    %v6920 = vld [vmem:[#allocation2 + $0x18] sm:$0xff]
    %v6921 = vld [vmem:[#allocation2 + $0x20] sm:$0xff]
    %v6922 = vld [vmem:[#allocation2 + $0x28] sm:$0xff]
    %v6923 = vld [vmem:[#allocation2 + $0x30] sm:$0xff]
    %v6924 = vld [vmem:[#allocation2 + $0x38] sm:$0xff]
    %v6925 = vld [vmem:[#allocation2 + $0x40] sm:$0xff]
    %v6926 = vld [vmem:[#allocation2 + $0x48] sm:$0xff]
    %v6927 = vld [vmem:[#allocation2 + $0x50] sm:$0xff]
    %v6928 = vld [vmem:[#allocation2 + $0x58] sm:$0xff]
    %v6929 = vld [vmem:[#allocation2 + $0x60] sm:$0xff]
    %v6930 = vld [vmem:[#allocation2 + $0x68] sm:$0xff]
    %v6931 = vld [vmem:[#allocation2 + $0x70] sm:$0xff]
    %v6932 = vld [vmem:[#allocation2 + $0x78] sm:$0xff]
    %v6933 = vld [vmem:[%s1] sm:$0xf]
    %v6934 = vld [vmem:[%s1 + $0x4] sm:$0xf]
    %v6935 = vld [vmem:[%s1 + $0x8] sm:$0xf]
    %v6936 = vld [vmem:[%s1 + $0xc] sm:$0xf]
    %v6937 = vld [vmem:[%s1 + $0x10] sm:$0x3]
    %v6943 = vunpack.c.l.b16 %v6933
    %v6944 = vunpack.c.l.b16 %v6934
    %v6945 = vunpack.c.l.b16 %v6935
    %v6946 = vunpack.c.l.b16 %v6936
    %v6947 = vunpack.c.l.b16 %v6937
    %v6948 = vpack.c.b16 %v6944, %v6943
    %v6949 = vpack.c.b16 %v6946, %v6945
    %v6950 = vpack.c.b16 %v6947, %v6947
    %v6954 = vsel %vm3173, %v6917, 0
    %v6957 = vsel %vm3173, %v6918, 0
    %v6960 = vsel %vm3173, %v6919, 0
    %v6963 = vsel %vm3173, %v6920, 0
    %v6966 = vsel %vm3173, %v6921, 0
    %v6969 = vsel %vm3173, %v6922, 0
    %v6972 = vsel %vm3173, %v6923, 0
    %v6975 = vsel %vm3173, %v6924, 0
    %v6978 = vsel %vm3173, %v6925, 0
    %v6981 = vsel %vm3173, %v6926, 0
    %v6984 = vsel %vm3173, %v6927, 0
    %v6987 = vsel %vm3173, %v6928, 0
    %v6990 = vsel %vm3173, %v6929, 0
    %v6993 = vsel %vm3173, %v6930, 0
    %v6996 = vsel %vm3173, %v6931, 0
    %v6999 = vsel %vm3173, %v6932, 0
    %v7002 = vsel %vm3222, %v6950, 0
    %7004 = vmatprep.subr.bf16.mxu0 0
    %7005 = vmatpush1.bf16.msra.mxu0 %v6948
    %7006 = vmatprep.subr.bf16.mxu0 0
    %7007 = vmatpush1.bf16.msra.mxu0 %v6949
    %7008 = vmatprep.subr.bf16.mxu0 0
    %7009 = vmatpush1.bf16.msra.mxu0 %v7002
    %7010 = vmatprep.subr.bf16.mxu0 0
    %7011 = vmatpush1.bf16.msra.mxu0 0
    %7012 = vmatprep.subr.bf16.mxu0 0
    %7013 = vmatpush1.bf16.msra.mxu0 0
    %7014 = vmatprep.subr.bf16.mxu0 0
    %7015 = vmatpush1.bf16.msra.mxu0 0
    %7016 = vmatprep.subr.bf16.mxu0 0
    %7017 = vmatpush1.bf16.msra.mxu0 0
    %7018 = vmatprep.subr.bf16.mxu0 0
    %7019 = vmatpush1.bf16.msra.mxu0 0
    %7020 = vmatprep.subr.bf16.mxu0 0
    %7021 = vmatpush1.bf16.msra.mxu0 0
    %7022 = vmatprep.subr.bf16.mxu0 0
    %7023 = vmatpush1.bf16.msra.mxu0 0
    %7024 = vmatprep.subr.bf16.mxu0 0
    %7025 = vmatpush1.bf16.msra.mxu0 0
    %7026 = vmatprep.subr.bf16.mxu0 0
    %7027 = vmatpush1.bf16.msra.mxu0 0
    %7028 = vmatprep.subr.bf16.mxu0 0
    %7029 = vmatpush1.bf16.msra.mxu0 0
    %7030 = vmatprep.subr.bf16.mxu0 0
    %7031 = vmatpush1.bf16.msra.mxu0 0
    %7032 = vmatprep.subr.bf16.mxu0 0
    %7033 = vmatpush1.bf16.msra.mxu0 0
    %7034 = vmatprep.subr.bf16.mxu0 0
    %7035 = vmatpush1.bf16.msra.mxu0 0
    %7036 = vmatprep.mubr.bf16.mxu0 0
    %7037 = vmatmul.mubr.bf16.gmra.mrb[0].mxu0 %v6954
    %v7038 = vpop.f32.mrb[0].mxu0
    %v7039 = vadd.f32 0.0, %v7038
    %v7040 = vpop.f32.mrb[0].mxu0
    %v7041 = vpop.f32.mrb[0].mxu0
    %v7042 = vadd.f32 0.0, %v7041
    %v7043 = vpop.f32.mrb[0].mxu0
    %7044 = vmatprep.mubr.bf16.mxu0 0
    %7045 = vmatmul.mubr.bf16.gmra.mrb[0].mxu0 %v6957
    %v7046 = vpop.f32.mrb[0].mxu0
    %v7047 = vadd.f32 0.0, %v7046
    %v7048 = vpop.f32.mrb[0].mxu0
    %v7049 = vpop.f32.mrb[0].mxu0
    %v7050 = vadd.f32 0.0, %v7049
    %v7051 = vpop.f32.mrb[0].mxu0
    %7052 = vmatprep.mubr.bf16.mxu0 0
    %7053 = vmatmul.mubr.bf16.gmra.mrb[0].mxu0 %v6960
    %v7054 = vpop.f32.mrb[0].mxu0
    %v7055 = vadd.f32 0.0, %v7054
    %v7056 = vpop.f32.mrb[0].mxu0
    %v7057 = vpop.f32.mrb[0].mxu0
    %v7058 = vadd.f32 0.0, %v7057
    %v7059 = vpop.f32.mrb[0].mxu0
    %7060 = vmatprep.mubr.bf16.mxu0 0
    %7061 = vmatmul.mubr.bf16.gmra.mrb[0].mxu0 %v6963
    %v7062 = vpop.f32.mrb[0].mxu0
    %v7063 = vadd.f32 0.0, %v7062
    %v7064 = vpop.f32.mrb[0].mxu0
    %v7065 = vpop.f32.mrb[0].mxu0
    %v7066 = vadd.f32 0.0, %v7065
    %v7067 = vpop.f32.mrb[0].mxu0
    %7068 = vmatprep.mubr.bf16.mxu0 0
    %7069 = vmatmul.mubr.bf16.gmra.mrb[0].mxu0 %v6966
    %v7070 = vpop.f32.mrb[0].mxu0
    %v7071 = vadd.f32 0.0, %v7070
    %v7072 = vpop.f32.mrb[0].mxu0
    %v7073 = vpop.f32.mrb[0].mxu0
    %v7074 = vadd.f32 0.0, %v7073
    %v7075 = vpop.f32.mrb[0].mxu0
    %7076 = vmatprep.mubr.bf16.mxu0 0
    %7077 = vmatmul.mubr.bf16.gmra.mrb[0].mxu0 %v6969
    %v7078 = vpop.f32.mrb[0].mxu0
    %v7079 = vadd.f32 0.0, %v7078
    %v7080 = vpop.f32.mrb[0].mxu0
    %v7081 = vpop.f32.mrb[0].mxu0
    %v7082 = vadd.f32 0.0, %v7081
    %v7083 = vpop.f32.mrb[0].mxu0
    %7084 = vmatprep.mubr.bf16.mxu0 0
    %7085 = vmatmul.mubr.bf16.gmra.mrb[0].mxu0 %v6972
    %v7086 = vpop.f32.mrb[0].mxu0
    %v7087 = vadd.f32 0.0, %v7086
    %v7088 = vpop.f32.mrb[0].mxu0
    %v7089 = vpop.f32.mrb[0].mxu0
    %v7090 = vadd.f32 0.0, %v7089
    %v7091 = vpop.f32.mrb[0].mxu0
    %7092 = vmatprep.mubr.bf16.mxu0 0
    %7093 = vmatmul.mubr.bf16.gmra.mrb[0].mxu0 %v6975
    %v7094 = vpop.f32.mrb[0].mxu0
    %v7095 = vadd.f32 0.0, %v7094
    %v7096 = vpop.f32.mrb[0].mxu0
    %v7097 = vpop.f32.mrb[0].mxu0
    %v7098 = vadd.f32 0.0, %v7097
    %v7099 = vpop.f32.mrb[0].mxu0
    %7100 = vmatprep.mubr.bf16.mxu0 0
    %7101 = vmatmul.mubr.bf16.gmra.mrb[0].mxu0 %v6978
    %v7102 = vpop.f32.mrb[0].mxu0
    %v7103 = vadd.f32 0.0, %v7102
    %v7104 = vpop.f32.mrb[0].mxu0
    %v7105 = vpop.f32.mrb[0].mxu0
    %v7106 = vadd.f32 0.0, %v7105
    %v7107 = vpop.f32.mrb[0].mxu0
    %7108 = vmatprep.mubr.bf16.mxu0 0
    %7109 = vmatmul.mubr.bf16.gmra.mrb[0].mxu0 %v6981
    %v7110 = vpop.f32.mrb[0].mxu0
    %v7111 = vadd.f32 0.0, %v7110
    %v7112 = vpop.f32.mrb[0].mxu0
    %v7113 = vpop.f32.mrb[0].mxu0
    %v7114 = vadd.f32 0.0, %v7113
    %v7115 = vpop.f32.mrb[0].mxu0
    %7116 = vmatprep.mubr.bf16.mxu0 0
    %7117 = vmatmul.mubr.bf16.gmra.mrb[0].mxu0 %v6984
    %v7118 = vpop.f32.mrb[0].mxu0
    %v7119 = vadd.f32 0.0, %v7118
    %v7120 = vpop.f32.mrb[0].mxu0
    %v7121 = vpop.f32.mrb[0].mxu0
    %v7122 = vadd.f32 0.0, %v7121
    %v7123 = vpop.f32.mrb[0].mxu0
    %7124 = vmatprep.mubr.bf16.mxu0 0
    %7125 = vmatmul.mubr.bf16.gmra.mrb[0].mxu0 %v6987
    %v7126 = vpop.f32.mrb[0].mxu0
    %v7127 = vadd.f32 0.0, %v7126
    %v7128 = vpop.f32.mrb[0].mxu0
    %v7129 = vpop.f32.mrb[0].mxu0
    %v7130 = vadd.f32 0.0, %v7129
    %v7131 = vpop.f32.mrb[0].mxu0
    %7132 = vmatprep.mubr.bf16.mxu0 0
    %7133 = vmatmul.mubr.bf16.gmra.mrb[0].mxu0 %v6990
    %v7134 = vpop.f32.mrb[0].mxu0
    %v7135 = vadd.f32 0.0, %v7134
    %v7136 = vpop.f32.mrb[0].mxu0
    %v7137 = vpop.f32.mrb[0].mxu0
    %v7138 = vadd.f32 0.0, %v7137
    %v7139 = vpop.f32.mrb[0].mxu0
    %7140 = vmatprep.mubr.bf16.mxu0 0
    %7141 = vmatmul.mubr.bf16.gmra.mrb[0].mxu0 %v6993
    %v7142 = vpop.f32.mrb[0].mxu0
    %v7143 = vadd.f32 0.0, %v7142
    %v7144 = vpop.f32.mrb[0].mxu0
    %v7145 = vpop.f32.mrb[0].mxu0
    %v7146 = vadd.f32 0.0, %v7145
    %v7147 = vpop.f32.mrb[0].mxu0
    %7148 = vmatprep.mubr.bf16.mxu0 0
    %7149 = vmatmul.mubr.bf16.gmra.mrb[0].mxu0 %v6996
    %v7150 = vpop.f32.mrb[0].mxu0
    %v7151 = vadd.f32 0.0, %v7150
    %v7152 = vpop.f32.mrb[0].mxu0
    %v7153 = vpop.f32.mrb[0].mxu0
    %v7154 = vadd.f32 0.0, %v7153
    %v7155 = vpop.f32.mrb[0].mxu0
    %7156 = vmatprep.mubr.bf16.mxu0 0
    %7157 = vmatmul.mubr.bf16.gmra.mrb[0].mxu0 %v6999
    %v7158 = vpop.f32.mrb[0].mxu0
    %v7159 = vadd.f32 0.0, %v7158
    %v7160 = vpop.f32.mrb[0].mxu0
    %v7161 = vpop.f32.mrb[0].mxu0
    %v7162 = vadd.f32 0.0, %v7161
    %v7163 = vpop.f32.mrb[0].mxu0
    %7164 = vdwg.mxu0
    %v7165 = vsel %vm3387, %v7039, 0.0
    %v7166 = vsel %vm3387, %v7042, 0.0
    %v7167 = vadd.f32 %v7165, %v7166
    %v7168 = vsel %vm3387, %v7047, 0.0
    %v7169 = vadd.f32 %v7167, %v7168
    %v7170 = vsel %vm3387, %v7050, 0.0
    %v7171 = vadd.f32 %v7169, %v7170
    %v7172 = vsel %vm3387, %v7055, 0.0
    %v7173 = vadd.f32 %v7171, %v7172
    %v7174 = vsel %vm3387, %v7058, 0.0
    %v7175 = vadd.f32 %v7173, %v7174
    %v7176 = vsel %vm3387, %v7063, 0.0
    %v7177 = vadd.f32 %v7175, %v7176
    %v7178 = vsel %vm3387, %v7066, 0.0
    %v7179 = vadd.f32 %v7177, %v7178
    %v7180 = vsel %vm3387, %v7071, 0.0
    %v7181 = vadd.f32 %v7179, %v7180
    %v7182 = vsel %vm3387, %v7074, 0.0
    %v7183 = vadd.f32 %v7181, %v7182
    %v7184 = vsel %vm3387, %v7079, 0.0
    %v7185 = vadd.f32 %v7183, %v7184
    %v7186 = vsel %vm3387, %v7082, 0.0
    %v7187 = vadd.f32 %v7185, %v7186
    %v7188 = vsel %vm3387, %v7087, 0.0
    %v7189 = vadd.f32 %v7187, %v7188
    %v7190 = vsel %vm3387, %v7090, 0.0
    %v7191 = vadd.f32 %v7189, %v7190
    %v7192 = vsel %vm3387, %v7095, 0.0
    %v7193 = vadd.f32 %v7191, %v7192
    %v7194 = vsel %vm3387, %v7098, 0.0
    %v7195 = vadd.f32 %v7193, %v7194
    %v7196 = vsel %vm3387, %v7103, 0.0
    %v7197 = vadd.f32 %v7195, %v7196
    %v7198 = vsel %vm3387, %v7106, 0.0
    %v7199 = vadd.f32 %v7197, %v7198
    %v7200 = vsel %vm3387, %v7111, 0.0
    %v7201 = vadd.f32 %v7199, %v7200
    %v7202 = vsel %vm3387, %v7114, 0.0
    %v7203 = vadd.f32 %v7201, %v7202
    %v7204 = vsel %vm3387, %v7119, 0.0
    %v7205 = vadd.f32 %v7203, %v7204
    %v7206 = vsel %vm3387, %v7122, 0.0
    %v7207 = vadd.f32 %v7205, %v7206
    %v7208 = vsel %vm3387, %v7127, 0.0
    %v7209 = vadd.f32 %v7207, %v7208
    %v7210 = vsel %vm3387, %v7130, 0.0
    %v7211 = vadd.f32 %v7209, %v7210
    %v7212 = vsel %vm3387, %v7135, 0.0
    %v7213 = vadd.f32 %v7211, %v7212
    %v7214 = vsel %vm3387, %v7138, 0.0
    %v7215 = vadd.f32 %v7213, %v7214
    %v7216 = vsel %vm3387, %v7143, 0.0
    %v7217 = vadd.f32 %v7215, %v7216
    %v7218 = vsel %vm3387, %v7146, 0.0
    %v7219 = vadd.f32 %v7217, %v7218
    %v7220 = vsel %vm3387, %v7151, 0.0
    %v7221 = vadd.f32 %v7219, %v7220
    %v7222 = vsel %vm3387, %v7154, 0.0
    %v7223 = vadd.f32 %v7221, %v7222
    %v7224 = vsel %vm3387, %v7159, 0.0
    %v7225 = vadd.f32 %v7223, %v7224
    %v7226 = vsel %vm3387, %v7162, 0.0
    %v7227 = vadd.f32 %v7225, %v7226
    %v7228 = vrot.slane %v7227, 4
    %v7229 = vadd.f32 %v7227, %v7228
    %v7230 = vrot.slane %v7229, 2
    %v7231 = vadd.f32 %v7229, %v7230
    %v7232 = vrot.slane %v7231, 1
    %v7233 = vadd.f32 %v7231, %v7232
    %v7234 = vmul.f32 %v7039, %v7039
    %v7235 = vmul.f32 %v7042, %v7042
    %v7236 = vmul.f32 %v7047, %v7047
    %v7237 = vmul.f32 %v7050, %v7050
    %v7238 = vmul.f32 %v7055, %v7055
    %v7239 = vmul.f32 %v7058, %v7058
    %v7240 = vmul.f32 %v7063, %v7063
    %v7241 = vmul.f32 %v7066, %v7066
    %v7242 = vmul.f32 %v7071, %v7071
    %v7243 = vmul.f32 %v7074, %v7074
    %v7244 = vmul.f32 %v7079, %v7079
    %v7245 = vmul.f32 %v7082, %v7082
    %v7246 = vmul.f32 %v7087, %v7087
    %v7247 = vmul.f32 %v7090, %v7090
    %v7248 = vmul.f32 %v7095, %v7095
    %v7249 = vmul.f32 %v7098, %v7098
    %v7250 = vmul.f32 %v7103, %v7103
    %v7251 = vmul.f32 %v7106, %v7106
    %v7252 = vmul.f32 %v7111, %v7111
    %v7253 = vmul.f32 %v7114, %v7114
    %v7254 = vmul.f32 %v7119, %v7119
    %v7255 = vmul.f32 %v7122, %v7122
    %v7256 = vmul.f32 %v7127, %v7127
    %v7257 = vmul.f32 %v7130, %v7130
    %v7258 = vmul.f32 %v7135, %v7135
    %v7259 = vmul.f32 %v7138, %v7138
    %v7260 = vmul.f32 %v7143, %v7143
    %v7261 = vmul.f32 %v7146, %v7146
    %v7262 = vmul.f32 %v7151, %v7151
    %v7263 = vmul.f32 %v7154, %v7154
    %v7264 = vmul.f32 %v7159, %v7159
    %v7265 = vmul.f32 %v7162, %v7162
    %v7266 = vsel %vm3387, %v7234, 0.0
    %v7267 = vsel %vm3387, %v7235, 0.0
    %v7268 = vadd.f32 %v7266, %v7267
    %v7269 = vsel %vm3387, %v7236, 0.0
    %v7270 = vadd.f32 %v7268, %v7269
    %v7271 = vsel %vm3387, %v7237, 0.0
    %v7272 = vadd.f32 %v7270, %v7271
    %v7273 = vsel %vm3387, %v7238, 0.0
    %v7274 = vadd.f32 %v7272, %v7273
    %v7275 = vsel %vm3387, %v7239, 0.0
    %v7276 = vadd.f32 %v7274, %v7275
    %v7277 = vsel %vm3387, %v7240, 0.0
    %v7278 = vadd.f32 %v7276, %v7277
    %v7279 = vsel %vm3387, %v7241, 0.0
    %v7280 = vadd.f32 %v7278, %v7279
    %v7281 = vsel %vm3387, %v7242, 0.0
    %v7282 = vadd.f32 %v7280, %v7281
    %v7283 = vsel %vm3387, %v7243, 0.0
    %v7284 = vadd.f32 %v7282, %v7283
    %v7285 = vsel %vm3387, %v7244, 0.0
    %v7286 = vadd.f32 %v7284, %v7285
    %v7287 = vsel %vm3387, %v7245, 0.0
    %v7288 = vadd.f32 %v7286, %v7287
    %v7289 = vsel %vm3387, %v7246, 0.0
    %v7290 = vadd.f32 %v7288, %v7289
    %v7291 = vsel %vm3387, %v7247, 0.0
    %v7292 = vadd.f32 %v7290, %v7291
    %v7293 = vsel %vm3387, %v7248, 0.0
    %v7294 = vadd.f32 %v7292, %v7293
    %v7295 = vsel %vm3387, %v7249, 0.0
    %v7296 = vadd.f32 %v7294, %v7295
    %v7297 = vsel %vm3387, %v7250, 0.0
    %v7298 = vadd.f32 %v7296, %v7297
    %v7299 = vsel %vm3387, %v7251, 0.0
    %v7300 = vadd.f32 %v7298, %v7299
    %v7301 = vsel %vm3387, %v7252, 0.0
    %v7302 = vadd.f32 %v7300, %v7301
    %v7303 = vsel %vm3387, %v7253, 0.0
    %v7304 = vadd.f32 %v7302, %v7303
    %v7305 = vsel %vm3387, %v7254, 0.0
    %v7306 = vadd.f32 %v7304, %v7305
    %v7307 = vsel %vm3387, %v7255, 0.0
    %v7308 = vadd.f32 %v7306, %v7307
    %v7309 = vsel %vm3387, %v7256, 0.0
    %v7310 = vadd.f32 %v7308, %v7309
    %v7311 = vsel %vm3387, %v7257, 0.0
    %v7312 = vadd.f32 %v7310, %v7311
    %v7313 = vsel %vm3387, %v7258, 0.0
    %v7314 = vadd.f32 %v7312, %v7313
    %v7315 = vsel %vm3387, %v7259, 0.0
    %v7316 = vadd.f32 %v7314, %v7315
    %v7317 = vsel %vm3387, %v7260, 0.0
    %v7318 = vadd.f32 %v7316, %v7317
    %v7319 = vsel %vm3387, %v7261, 0.0
    %v7320 = vadd.f32 %v7318, %v7319
    %v7321 = vsel %vm3387, %v7262, 0.0
    %v7322 = vadd.f32 %v7320, %v7321
    %v7323 = vsel %vm3387, %v7263, 0.0
    %v7324 = vadd.f32 %v7322, %v7323
    %v7325 = vsel %vm3387, %v7264, 0.0
    %v7326 = vadd.f32 %v7324, %v7325
    %v7327 = vsel %vm3387, %v7265, 0.0
    %v7328 = vadd.f32 %v7326, %v7327
    %v7329 = vrot.slane %v7328, 4
    %v7330 = vadd.f32 %v7328, %v7329
    %v7331 = vrot.slane %v7330, 2
    %v7332 = vadd.f32 %v7330, %v7331
    %v7333 = vrot.slane %v7332, 1
    %v7334 = vadd.f32 %v7332, %v7333
    %v7335 = vadd.f32 %v7233, %v3558
    %v7336 = vmul.f32 %v3560, %v7233
    %v7337 = vadd.f32 %v7334, %v7336
    %v7338 = vadd.f32 %v7337, %v3563
    %v7340 = vsel %vm3387, %v7335, 0
    %7342 = vmatprep.subr.mxu0 0.0
    %7343 = vmatpush1.msra.mxu0 %v28
    %7344 = vmatprep.subr.mxu0 0.0
    %7345 = vmatpush1.msra.mxu0 %v29
    %7346 = vmatprep.subr.mxu0 0.0
    %7347 = vmatpush1.msra.mxu0 %v30
    %7348 = vmatprep.subr.mxu0 0.0
    %7349 = vmatpush1.msra.mxu0 %v31
    %7350 = vmatprep.subr.mxu0 0.0
    %7351 = vmatpush1.msra.mxu0 0.0
    %7352 = vmatprep.subr.mxu0 0.0
    %7353 = vmatpush1.msra.mxu0 0.0
    %7354 = vmatprep.subr.mxu0 0.0
    %7355 = vmatpush1.msra.mxu0 0.0
    %7356 = vmatprep.subr.mxu0 0.0
    %7357 = vmatpush1.msra.mxu0 0.0
    %7358 = vmatprep.subr.mxu0 0.0
    %7359 = vmatpush1.msra.mxu0 0.0
    %7360 = vmatprep.subr.mxu0 0.0
    %7361 = vmatpush1.msra.mxu0 0.0
    %7362 = vmatprep.subr.mxu0 0.0
    %7363 = vmatpush1.msra.mxu0 0.0
    %7364 = vmatprep.subr.mxu0 0.0
    %7365 = vmatpush1.msra.mxu0 0.0
    %7366 = vmatprep.subr.mxu0 0.0
    %7367 = vmatpush1.msra.mxu0 0.0
    %7368 = vmatprep.subr.mxu0 0.0
    %7369 = vmatpush1.msra.mxu0 0.0
    %7370 = vmatprep.subr.mxu0 0.0
    %7371 = vmatpush1.msra.mxu0 0.0
    %7372 = vmatprep.subr.mxu0 0.0
    %7373 = vmatpush1.msra.mxu0 0.0
    %7374 = vmatprep.subr.mxu0 0.0
    %7375 = vmatpush1.msra.mxu0 0.0
    %7376 = vmatprep.subr.mxu0 0.0
    %7377 = vmatpush1.msra.mxu0 0.0
    %7378 = vmatprep.subr.mxu0 0.0
    %7379 = vmatpush1.msra.mxu0 0.0
    %7380 = vmatprep.subr.mxu0 0.0
    %7381 = vmatpush1.msra.mxu0 0.0
    %7382 = vmatprep.subr.mxu0 0.0
    %7383 = vmatpush1.msra.mxu0 0.0
    %7384 = vmatprep.subr.mxu0 0.0
    %7385 = vmatpush1.msra.mxu0 0.0
    %7386 = vmatprep.subr.mxu0 0.0
    %7387 = vmatpush1.msra.mxu0 0.0
    %7388 = vmatprep.subr.mxu0 0.0
    %7389 = vmatpush1.msra.mxu0 0.0
    %7390 = vmatprep.subr.mxu0 0.0
    %7391 = vmatpush1.msra.mxu0 0.0
    %7392 = vmatprep.subr.mxu0 0.0
    %7393 = vmatpush1.msra.mxu0 0.0
    %7394 = vmatprep.subr.mxu0 0.0
    %7395 = vmatpush1.msra.mxu0 0.0
    %7396 = vmatprep.subr.mxu0 0.0
    %7397 = vmatpush1.msra.mxu0 0.0
    %7398 = vmatprep.subr.mxu0 0.0
    %7399 = vmatpush1.msra.mxu0 0.0
    %7400 = vmatprep.subr.mxu0 0.0
    %7401 = vmatpush1.msra.mxu0 0.0
    %7402 = vmatprep.subr.mxu0 0.0
    %7403 = vmatpush1.msra.mxu0 0.0
    %7404 = vmatprep.subr.mxu0 0.0
    %7405 = vmatpush1.msra.mxu0 0.0
    %7406 = vmatprep.mubr.f32.mxu0 0.0
    %7407 = vmatmul.mubr.f32.gmra.mrb[0].mxu0 %v7340
    %v7408 = vpop.f32.mrb[0].mxu0
    %v7409 = vadd.f32 0.0, %v7408
    %v7410 = vpop.f32.mrb[0].mxu0
    %7411 = vdwg.mxu0
    %v7413 = vsel %vm3387, %v7338, 0
    %7415 = vmatprep.subr.mxu0 0.0
    %7416 = vmatpush1.msra.mxu0 %v28
    %7417 = vmatprep.subr.mxu0 0.0
    %7418 = vmatpush1.msra.mxu0 %v29
    %7419 = vmatprep.subr.mxu0 0.0
    %7420 = vmatpush1.msra.mxu0 %v30
    %7421 = vmatprep.subr.mxu0 0.0
    %7422 = vmatpush1.msra.mxu0 %v31
    %7423 = vmatprep.subr.mxu0 0.0
    %7424 = vmatpush1.msra.mxu0 0.0
    %7425 = vmatprep.subr.mxu0 0.0
    %7426 = vmatpush1.msra.mxu0 0.0
    %7427 = vmatprep.subr.mxu0 0.0
    %7428 = vmatpush1.msra.mxu0 0.0
    %7429 = vmatprep.subr.mxu0 0.0
    %7430 = vmatpush1.msra.mxu0 0.0
    %7431 = vmatprep.subr.mxu0 0.0
    %7432 = vmatpush1.msra.mxu0 0.0
    %7433 = vmatprep.subr.mxu0 0.0
    %7434 = vmatpush1.msra.mxu0 0.0
    %7435 = vmatprep.subr.mxu0 0.0
    %7436 = vmatpush1.msra.mxu0 0.0
    %7437 = vmatprep.subr.mxu0 0.0
    %7438 = vmatpush1.msra.mxu0 0.0
    %7439 = vmatprep.subr.mxu0 0.0
    %7440 = vmatpush1.msra.mxu0 0.0
    %7441 = vmatprep.subr.mxu0 0.0
    %7442 = vmatpush1.msra.mxu0 0.0
    %7443 = vmatprep.subr.mxu0 0.0
    %7444 = vmatpush1.msra.mxu0 0.0
    %7445 = vmatprep.subr.mxu0 0.0
    %7446 = vmatpush1.msra.mxu0 0.0
    %7447 = vmatprep.subr.mxu0 0.0
    %7448 = vmatpush1.msra.mxu0 0.0
    %7449 = vmatprep.subr.mxu0 0.0
    %7450 = vmatpush1.msra.mxu0 0.0
    %7451 = vmatprep.subr.mxu0 0.0
    %7452 = vmatpush1.msra.mxu0 0.0
    %7453 = vmatprep.subr.mxu0 0.0
    %7454 = vmatpush1.msra.mxu0 0.0
    %7455 = vmatprep.subr.mxu0 0.0
    %7456 = vmatpush1.msra.mxu0 0.0
    %7457 = vmatprep.subr.mxu0 0.0
    %7458 = vmatpush1.msra.mxu0 0.0
    %7459 = vmatprep.subr.mxu0 0.0
    %7460 = vmatpush1.msra.mxu0 0.0
    %7461 = vmatprep.subr.mxu0 0.0
    %7462 = vmatpush1.msra.mxu0 0.0
    %7463 = vmatprep.subr.mxu0 0.0
    %7464 = vmatpush1.msra.mxu0 0.0
    %7465 = vmatprep.subr.mxu0 0.0
    %7466 = vmatpush1.msra.mxu0 0.0
    %7467 = vmatprep.subr.mxu0 0.0
    %7468 = vmatpush1.msra.mxu0 0.0
    %7469 = vmatprep.subr.mxu0 0.0
    %7470 = vmatpush1.msra.mxu0 0.0
    %7471 = vmatprep.subr.mxu0 0.0
    %7472 = vmatpush1.msra.mxu0 0.0
    %7473 = vmatprep.subr.mxu0 0.0
    %7474 = vmatpush1.msra.mxu0 0.0
    %7475 = vmatprep.subr.mxu0 0.0
    %7476 = vmatpush1.msra.mxu0 0.0
    %7477 = vmatprep.subr.mxu0 0.0
    %7478 = vmatpush1.msra.mxu0 0.0
    %7479 = vmatprep.mubr.f32.mxu0 0.0
    %7480 = vmatmul.mubr.f32.gmra.mrb[0].mxu0 %v7413
    %v7481 = vpop.f32.mrb[0].mxu0
    %v7482 = vadd.f32 0.0, %v7481
    %v7483 = vpop.f32.mrb[0].mxu0
    %7484 = vdwg.mxu0
    %v7485 = vmul.f32 %v7409, %v7409
    %v7486 = vsub.f32 %v7482, %v7485
    %v7487 = vmax.f32 %v7486, 0.0
    %v7488 = vadd.f32 %v7487, 1e-05
    %v7489 = vrsqrt.pop %v7488
    %v7490 = vmul.f32 %v7489, %v26
    %v7491 = vsub.f32 %v25, %v7409
    %v7492 = vmul.f32 %v7491, %v7490
    %v7493 = vadd.f32 %v27, %v7492
    %v7494 = vlaneseq
    %v7495 = vshrl.u32 %v7494, 7
    %v7496 = vsub.s32 0, %v7495
    %v7497 = vrot.slane %v7490, %v7496
    %v7498 = vmul.f32 %v7039, %v7497
    %v7499 = vmul.f32 %v7042, %v7497
    %v7500 = vmul.f32 %v7047, %v7497
    %v7501 = vmul.f32 %v7050, %v7497
    %v7502 = vmul.f32 %v7055, %v7497
    %v7503 = vmul.f32 %v7058, %v7497
    %v7504 = vmul.f32 %v7063, %v7497
    %v7505 = vmul.f32 %v7066, %v7497
    %v7506 = vmul.f32 %v7071, %v7497
    %v7507 = vmul.f32 %v7074, %v7497
    %v7508 = vmul.f32 %v7079, %v7497
    %v7509 = vmul.f32 %v7082, %v7497
    %v7510 = vmul.f32 %v7087, %v7497
    %v7511 = vmul.f32 %v7090, %v7497
    %v7512 = vmul.f32 %v7095, %v7497
    %v7513 = vmul.f32 %v7098, %v7497
    %v7514 = vmul.f32 %v7103, %v7497
    %v7515 = vmul.f32 %v7106, %v7497
    %v7516 = vmul.f32 %v7111, %v7497
    %v7517 = vmul.f32 %v7114, %v7497
    %v7518 = vmul.f32 %v7119, %v7497
    %v7519 = vmul.f32 %v7122, %v7497
    %v7520 = vmul.f32 %v7127, %v7497
    %v7521 = vmul.f32 %v7130, %v7497
    %v7522 = vmul.f32 %v7135, %v7497
    %v7523 = vmul.f32 %v7138, %v7497
    %v7524 = vmul.f32 %v7143, %v7497
    %v7525 = vmul.f32 %v7146, %v7497
    %v7526 = vmul.f32 %v7151, %v7497
    %v7527 = vmul.f32 %v7154, %v7497
    %v7528 = vmul.f32 %v7159, %v7497
    %v7529 = vmul.f32 %v7162, %v7497
    %v7531 = vlaneseq
    %v7532 = vshrl.u32 %v7531, 7
    %v7533 = vsub.s32 0, %v7532
    %v7534 = vrot.slane %v7493, %v7533
    %v7536 = vadd.f32 %v7498, %v7534
    %v7537 = vadd.f32 %v7499, %v7534
    %v7538 = vadd.f32 %v7500, %v7534
    %v7539 = vadd.f32 %v7501, %v7534
    %v7540 = vadd.f32 %v7502, %v7534
    %v7541 = vadd.f32 %v7503, %v7534
    %v7542 = vadd.f32 %v7504, %v7534
    %v7543 = vadd.f32 %v7505, %v7534
    %v7544 = vadd.f32 %v7506, %v7534
    %v7545 = vadd.f32 %v7507, %v7534
    %v7546 = vadd.f32 %v7508, %v7534
    %v7547 = vadd.f32 %v7509, %v7534
    %v7548 = vadd.f32 %v7510, %v7534
    %v7549 = vadd.f32 %v7511, %v7534
    %v7550 = vadd.f32 %v7512, %v7534
    %v7551 = vadd.f32 %v7513, %v7534
    %v7552 = vadd.f32 %v7514, %v7534
    %v7553 = vadd.f32 %v7515, %v7534
    %v7554 = vadd.f32 %v7516, %v7534
    %v7555 = vadd.f32 %v7517, %v7534
    %v7556 = vadd.f32 %v7518, %v7534
    %v7557 = vadd.f32 %v7519, %v7534
    %v7558 = vadd.f32 %v7520, %v7534
    %v7559 = vadd.f32 %v7521, %v7534
    %v7560 = vadd.f32 %v7522, %v7534
    %v7561 = vadd.f32 %v7523, %v7534
    %v7562 = vadd.f32 %v7524, %v7534
    %v7563 = vadd.f32 %v7525, %v7534
    %v7564 = vadd.f32 %v7526, %v7534
    %v7565 = vadd.f32 %v7527, %v7534
    %v7566 = vadd.f32 %v7528, %v7534
    %v7567 = vadd.f32 %v7529, %v7534
    %s7568 = scalar_lea.vmem [#allocation3], 256
    %7569 = vst.msk [vmem:[%s7568] sm:$0xff] %vm3387, %v7536
    %7570 = vst.msk [vmem:[%s7568 + $0x8] sm:$0xff] %vm3387, %v7537
    %7571 = vst.msk [vmem:[%s7568 + $0x10] sm:$0xff] %vm3387, %v7538
    %7572 = vst.msk [vmem:[%s7568 + $0x18] sm:$0xff] %vm3387, %v7539
    %7573 = vst.msk [vmem:[%s7568 + $0x20] sm:$0xff] %vm3387, %v7540
    %7574 = vst.msk [vmem:[%s7568 + $0x28] sm:$0xff] %vm3387, %v7541
    %7575 = vst.msk [vmem:[%s7568 + $0x30] sm:$0xff] %vm3387, %v7542
    %7576 = vst.msk [vmem:[%s7568 + $0x38] sm:$0xff] %vm3387, %v7543
    %7577 = vst.msk [vmem:[%s7568 + $0x40] sm:$0xff] %vm3387, %v7544
    %7578 = vst.msk [vmem:[%s7568 + $0x48] sm:$0xff] %vm3387, %v7545
    %7579 = vst.msk [vmem:[%s7568 + $0x50] sm:$0xff] %vm3387, %v7546
    %7580 = vst.msk [vmem:[%s7568 + $0x58] sm:$0xff] %vm3387, %v7547
    %7581 = vst.msk [vmem:[%s7568 + $0x60] sm:$0xff] %vm3387, %v7548
    %7582 = vst.msk [vmem:[%s7568 + $0x68] sm:$0xff] %vm3387, %v7549
    %7583 = vst.msk [vmem:[%s7568 + $0x70] sm:$0xff] %vm3387, %v7550
    %7584 = vst.msk [vmem:[%s7568 + $0x78] sm:$0xff] %vm3387, %v7551
    %7585 = vst.msk [vmem:[%s7568 + $0x80] sm:$0xff] %vm3387, %v7552
    %7586 = vst.msk [vmem:[%s7568 + $0x88] sm:$0xff] %vm3387, %v7553
    %7587 = vst.msk [vmem:[%s7568 + $0x90] sm:$0xff] %vm3387, %v7554
    %7588 = vst.msk [vmem:[%s7568 + $0x98] sm:$0xff] %vm3387, %v7555
    %7589 = vst.msk [vmem:[%s7568 + $0xa0] sm:$0xff] %vm3387, %v7556
    %7590 = vst.msk [vmem:[%s7568 + $0xa8] sm:$0xff] %vm3387, %v7557
    %7591 = vst.msk [vmem:[%s7568 + $0xb0] sm:$0xff] %vm3387, %v7558
    %7592 = vst.msk [vmem:[%s7568 + $0xb8] sm:$0xff] %vm3387, %v7559
    %7593 = vst.msk [vmem:[%s7568 + $0xc0] sm:$0xff] %vm3387, %v7560
    %7594 = vst.msk [vmem:[%s7568 + $0xc8] sm:$0xff] %vm3387, %v7561
    %7595 = vst.msk [vmem:[%s7568 + $0xd0] sm:$0xff] %vm3387, %v7562
    %7596 = vst.msk [vmem:[%s7568 + $0xd8] sm:$0xff] %vm3387, %v7563
    %7597 = vst.msk [vmem:[%s7568 + $0xe0] sm:$0xff] %vm3387, %v7564
    %7598 = vst.msk [vmem:[%s7568 + $0xe8] sm:$0xff] %vm3387, %v7565
    %7599 = vst.msk [vmem:[%s7568 + $0xf0] sm:$0xff] %vm3387, %v7566
    %7600 = vst.msk [vmem:[%s7568 + $0xf8] sm:$0xff] %vm3387, %v7567
    // Predicated region
    $region26: #{conv2d_groupnorm.1} parent=1 // pred_check
      _
    $region27: #{conv2d_groupnorm.1} parent=1 // pred_check_branch
      %7602 = sbr.rel (0) target = $region29
    $region28: #{conv2d_groupnorm.1} parent=1 // pred_region
      %s7604 = ssub.s32 8192, 8192
      %7605 = vsyncadd [#allocation4], %s7604
      %s7606 = sshll.u32 [#allocation3], 4
      %s7607 = int_to_ptr.vmem [resolvable:$true] %s7606
      %7612 = dma.vmem_to_hbm [thread:$0]  %s7607, 8192, %s6, [#allocation4], 128, 128, 8
    $region29: #{conv2d_groupnorm.1} parent=1 // pred_fallthru
      _
    // Predicated region
    $region30: #{conv2d_groupnorm.1} parent=1 // pred_check
      _
    $region31: #{conv2d_groupnorm.1} parent=1 // pred_check_branch
      %7614 = sbr.rel (0) target = $region33
    $region32: #{conv2d_groupnorm.1} parent=1 // pred_region
      %7615 = dma.done [#allocation4], 8192
    $region33: #{conv2d_groupnorm.1} parent=1 // pred_fallthru
      _
    %7616 = vsyncpa [#allocation4], 1

</llo_original>
